<compile_context>
chip_gen: v7x
topology: tpu7x:2x2x1
jax: 0.10.0
libtpu: 0.0.40
codegen_flags: <defaults>
</compile_context>

<pallas_src>
import functools
import math

import jax
import jax.numpy as jnp
from jax.experimental import pallas as pl
from jax.experimental.pallas import tpu as pltpu


def _round_up(x, m):
    return (x + m - 1) // m * m


# --------------------------------------------------------------------------- parameter prep
def _prepare_params(params, num_heads, compute_dtype):
    """Pack all parameters into 3 slabs + static layout metadata.

      * weight slab (bf16): all matrices row-stacked, each row-block padded to a multiple of
        8 sublanes, common column width 3*dim_hidden; K columns pre-scaled by 1/sqrt(head_dim).
      * bias slab (f32): one row per (fused) bias vector, zero-padded to 3*dim_hidden columns.
      * points slab (f32): pre-projected fc_q(I1), fc_q(I2), fc_q(S) (batch independent).
    """
    e10, e11 = params["enc1_mab0"], params["enc1_mab1"]
    e20, e21 = params["enc2_mab0"], params["enc2_mab1"]
    d1, d2, d3 = params["dec1_mab"], params["dec2_mab"], params["dec3_mab"]
    dh = e10["wq"].shape[-1]
    scale = 1.0 / math.sqrt(dh // num_heads)
    cat = lambda *xs: jnp.concatenate(xs, axis=-1)

    # (name, fused weight, fused bias); K parts pre-scaled so scores need no extra divide.
    entries = [
        # fused projection on raw X: enc1.mab0's K,V + enc1.mab1's Q (same input X)
        ("x1",       cat(e10["wk"] * scale, e10["wv"], e11["wq"]),
                     cat(e10["bk"] * scale, e10["bv"], e11["bq"])),
        ("o_e1m0",   e10["wo"], e10["bo"]),
        ("kv_e1m1",  cat(e11["wk"] * scale, e11["wv"]),
                     cat(e11["bk"] * scale, e11["bv"])),
        ("o_e1m1",   e11["wo"], e11["bo"]),
        ("x2",       cat(e20["wk"] * scale, e20["wv"], e21["wq"]),
                     cat(e20["bk"] * scale, e20["bv"], e21["bq"])),
        ("o_e2m0",   e20["wo"], e20["bo"]),
        ("kv_e2m1",  cat(e21["wk"] * scale, e21["wv"]),
                     cat(e21["bk"] * scale, e21["bv"])),
        ("o_e2m1",   e21["wo"], e21["bo"]),
        ("kv_dec1",  cat(d1["wk"] * scale, d1["wv"]),
                     cat(d1["bk"] * scale, d1["bv"])),
        ("o_dec1",   d1["wo"], d1["bo"]),
        # SAB blocks: Q = K = X, so fuse all three projections into one matmul
        ("qkv_dec2", cat(d2["wq"], d2["wk"] * scale, d2["wv"]),
                     cat(d2["bq"], d2["bk"] * scale, d2["bv"])),
        ("o_dec2",   d2["wo"], d2["bo"]),
        ("qkv_dec3", cat(d3["wq"], d3["wk"] * scale, d3["wv"]),
                     cat(d3["bq"], d3["bk"] * scale, d3["bv"])),
        ("o_dec3",   d3["wo"], d3["bo"]),
        ("final",    params["final_w"], params["final_b"]),
    ]

    wcols = 3 * dh
    wmeta, wblocks, off = {}, [], 0
    bmeta, brows = {}, []
    for i, (name, w, b) in enumerate(entries):
        r, c = w.shape
        rp = _round_up(r, 8)                       # sublane-aligned row block
        wblocks.append(jnp.zeros((rp, wcols), jnp.float32).at[:r, :c].set(w))
        wmeta[name] = (off, r, c)                  # static (row_off, rows, cols)
        off += rp
        bw = b.shape[-1]
        brows.append(jnp.zeros((1, wcols), jnp.float32).at[:, :bw].set(b.reshape(1, bw)))
        bmeta[name] = (i, bw)                      # static (row, width)
    w_slab = jnp.concatenate(wblocks, axis=0).astype(compute_dtype)
    b_slab = jnp.concatenate(brows, axis=0)        # f32

    # pre-projected (batch-shared) queries: fc_q applied to I1 / I2 / S once, in f32.
    def proj_q(pts, m):
        return pts[0] @ m["wq"] + m["bq"]          # (n, dh) f32

    pentries = [("Iq1", proj_q(params["enc1_I"], e10)),
                ("Iq2", proj_q(params["enc2_I"], e20)),
                ("Sq",  proj_q(params["dec1_S"], d1))]
    pmeta, pblocks, off = {}, [], 0
    for name, p in pentries:
        r = p.shape[0]
        rp = _round_up(r, 8)
        pblocks.append(jnp.zeros((rp, dh), jnp.float32).at[:r, :].set(p))
        pmeta[name] = (off, r)
        off += rp
    p_slab = jnp.concatenate(pblocks, axis=0)      # f32

    return w_slab, b_slab, p_slab, wmeta, bmeta, pmeta


# --------------------------------------------------------------------------- fused kernel
def _set_transformer_kernel(x_ref, w_ref, b_ref, p_ref, o_ref, *,
                            num_heads, wmeta, bmeta, pmeta):
    bt, n_set, _ = x_ref.shape
    dh = p_ref.shape[-1]
    ds = dh // num_heads
    cdtype = w_ref.dtype                           # matmul input dtype (bf16)

    # -------- slab accessors (static offsets; weights read at point of use) --------
    def weight(name):
        off, r, c = wmeta[name]
        return w_ref[off:off + r, 0:c]

    def bias(name):
        i, c = bmeta[name]
        return b_ref[i:i + 1, 0:c]

    def points(name):
        off, r = pmeta[name]
        return p_ref[off:off + r, :]               # (r, dh) f32

    def mm(x2d, name):                             # fused Linear: (M,K)@(K,C)+(1,C) -> f32
        return jnp.dot(x2d.astype(cdtype), weight(name),
                       preferred_element_type=jnp.float32) + bias(name)

    def split2(p2d, b_, n_):
        return (p2d[:, 0:dh].reshape(b_, n_, dh),
                p2d[:, dh:2 * dh].reshape(b_, n_, dh))

    def split3(p2d, b_, n_):
        return (p2d[:, 0:dh].reshape(b_, n_, dh),
                p2d[:, dh:2 * dh].reshape(b_, n_, dh),
                p2d[:, 2 * dh:3 * dh].reshape(b_, n_, dh))

    # -------- multi-head attention + MAB residual (casts/residual hoisted out of loop) -----
    def attention(qp, kp, vp):
        """qp: (1|bt, nq, dh) f32 projected queries; kp pre-scaled K, vp V: (bt, nk, dh) f32."""
        if qp.shape[0] == 1:                       # batch-shared (inducing/seed) queries
            qp = jnp.broadcast_to(qp, (bt,) + qp.shape[1:])
        qb, kb, vb = qp.astype(cdtype), kp.astype(cdtype), vp.astype(cdtype)  # cast once
        pv = []
        for h in range(num_heads):                 # heads as static lane slices (ds lanes)
            sl = slice(h * ds, (h + 1) * ds)
            s = jnp.einsum("bqd,bkd->bqk", qb[:, :, sl], kb[:, :, sl],
                           preferred_element_type=jnp.float32)
            s = s - jnp.max(s, axis=-1, keepdims=True)
            e = jnp.exp(s)
            a = e * pl.reciprocal(jnp.sum(e, axis=-1, keepdims=True), approx=True)
            pv.append(jnp.einsum("bqk,bkd->bqd", a.astype(cdtype), vb[:, :, sl],
                                 preferred_element_type=jnp.float32))
        # TODO(synk): if the bundle dump shows this concat's lane shuffles dominating,
        # accumulate heads into a (bt, nq, dh) VMEM scratch lane slice instead.
        return qp + jnp.concatenate(pv, axis=-1)   # residual O = Q_ + A V_, full width, once

    def mab_tail(o, name):                         # O = O + relu(fc_o(O)); ln=False default
        b_, nq, dv = o.shape
        of = o.reshape(b_ * nq, dv)
        of = of + jnp.maximum(mm(of, "o_" + name), 0.0)
        return of.reshape(b_, nq, dv)

    x = x_ref[...]                                 # (bt, N, dim_input) bf16

    # ---- enc1 (ISAB): H = MAB(I1, X); X = MAB(X, H) ----
    p = mm(x.reshape(bt * n_set, -1), "x1")        # fused [K0|V0|Q1] projection of raw X
    k0, v0, q1 = split3(p, bt, n_set)
    h = mab_tail(attention(points("Iq1")[None], k0, v0), "e1m0")     # (bt, ni, dh)
    ni = h.shape[1]
    k1, v1 = split2(mm(h.reshape(bt * ni, dh), "kv_e1m1"), bt, ni)
    x = mab_tail(attention(q1, k1, v1), "e1m1")                      # (bt, N, dh)

    # ---- enc2 (ISAB) ----
    p = mm(x.reshape(bt * n_set, dh), "x2")
    k0, v0, q1 = split3(p, bt, n_set)
    h = mab_tail(attention(points("Iq2")[None], k0, v0), "e2m0")
    k1, v1 = split2(mm(h.reshape(bt * ni, dh), "kv_e2m1"), bt, ni)
    x = mab_tail(attention(q1, k1, v1), "e2m1")

    # ---- dec1 (PMA) ----
    k, v = split2(mm(x.reshape(bt * n_set, dh), "kv_dec1"), bt, n_set)
    x = mab_tail(attention(points("Sq")[None], k, v), "dec1")        # (bt, num_outputs, dh)
    n_out = x.shape[1]

    # ---- dec2, dec3 (SAB): Q = K = X, single fused QKV matmul ----
    for name in ("dec2", "dec3"):
        q, k, v = split3(mm(x.reshape(bt * n_out, dh), "qkv_" + name), bt, n_out)
        x = mab_tail(attention(q, k, v), name)

    # ---- final Linear(dim_hidden, dim_output) ----
    y = mm(x.reshape(bt * n_out, dh), "final")
    o_ref[...] = y.reshape(bt, n_out, -1).astype(o_ref.dtype)


# --------------------------------------------------------------------------- cost estimate
def _cost_estimate(B, N, di, dh, ni, no, dout, num_heads,
                   in_bytes, param_bytes, out_bytes):
    def mab(nq, nk, dk_in, q_din=None):
        f = 2 * nk * dk_in * 2 * dh                # K|V projection
        f += 4 * nq * nk * dh                      # scores + A@V (all heads)
        f += 2 * nq * dh * dh                      # fc_o
        if q_din is not None:                      # fc_q (absent for pre-projected queries)
            f += 2 * nq * q_din * dh
        return f

    flops = B * (mab(ni, N, di) + mab(N, ni, dh, di)
                 + mab(ni, N, dh) + mab(N, ni, dh, dh)
                 + mab(no, N, dh)
                 + mab(no, no, dh, dh) + mab(no, no, dh, dh)
                 + 2 * no * dh * dout)
    trans = B * num_heads * (4 * ni * N + no * N + 2 * no * no)      # exp rows across 7 MABs
    return pl.CostEstimate(flops=int(flops), transcendentals=int(trans),
                           bytes_accessed=int(in_bytes + param_bytes + out_bytes))


# --------------------------------------------------------------------------- wrapper
def set_transformer_forward(X, params, num_heads, *, compute_dtype=jnp.bfloat16,
                            batch_tile=None, vmem_limit_bytes=32 * 1024 * 1024):
    """Full SetTransformer forward as a single pallas_call gridded over the batch."""
    B, N, di = X.shape
    ni = params["enc1_I"].shape[1]
    no = params["dec1_S"].shape[1]
    dh = params["final_w"].shape[0]
    dout = params["final_w"].shape[-1]

    w_slab, b_slab, p_slab, wmeta, bmeta, pmeta = _prepare_params(
        params, num_heads, compute_dtype)

    # Batch tile: aim for ~256 projection rows per grid step (fills a v6e 256x256 MXU pass and
    # amortizes the ~0.35us/step overhead); keep >=2 grid steps for v7x's two TensorCores only
    # if that still leaves >=128 rows per step.  Raise vmem_limit_bytes if dh/bt grow.
    if batch_tile is None:
        bt = max(1, min(B, max(1, 256 // N)))
        if bt == B and B >= 2 and (B // 2) * N >= 128:
            bt = B // 2
    else:
        bt = max(1, min(batch_tile, B))
    while B % bt:
        bt -= 1

    kernel = functools.partial(_set_transformer_kernel, num_heads=num_heads,
                               wmeta=wmeta, bmeta=bmeta, pmeta=pmeta)

    param_bytes = w_slab.size * w_slab.dtype.itemsize \
        + b_slab.size * 4 + p_slab.size * 4
    cost = _cost_estimate(B, N, di, dh, ni, no, dout, num_heads,
                          in_bytes=B * N * di * 2, param_bytes=param_bytes,
                          out_bytes=B * no * dout * 4)

    # Parameter slabs: whole array resident in VMEM, single-buffered (no per-step pipelining,
    # no double-buffer copy) -- they are grid-invariant.
    resident = pl.BlockSpec(memory_space=pltpu.MemorySpace.VMEM)

    return pl.pallas_call(
        kernel,
        out_shape=jax.ShapeDtypeStruct((B, no, dout), jnp.float32),
        grid=(B // bt,),
        in_specs=[pl.BlockSpec((bt, N, di), lambda b: (b, 0, 0)),   # X: pipelined over batch
                  resident,                                          # weight slab (bf16)
                  resident,                                          # bias slab (f32)
                  resident],                                         # pre-projected points (f32)
        out_specs=pl.BlockSpec((bt, no, dout), lambda b: (b, 0, 0)),
        compiler_params=pltpu.CompilerParams(
            dimension_semantics=("parallel",),
            vmem_limit_bytes=vmem_limit_bytes),
        cost_estimate=cost,
    )(X.astype(compute_dtype), w_slab, b_slab, p_slab)


# --------------------------------------------------------------------------- params
def _init_mab(key, dq, dk, dv):
    ks = jax.random.split(key, 8)
    w = lambda k, shape, fan: jax.random.normal(k, shape, jnp.float32) / math.sqrt(fan)
    b = lambda k, n: 0.01 * jax.random.normal(k, (1, n), jnp.float32)
    return dict(wq=w(ks[0], (dq, dv), dq), bq=b(ks[1], dv),
                wk=w(ks[2], (dk, dv), dk), bk=b(ks[3], dv),
                wv=w(ks[4], (dk, dv), dk), bv=b(ks[5], dv),
                wo=w(ks[6], (dv, dv), dv), bo=b(ks[7], dv))


def init_set_transformer(key, dim_input, num_outputs, dim_output,
                         num_inds, dim_hidden, num_heads):
    keys = jax.random.split(key, 12)
    xavier = lambda k, shape: (jax.random.uniform(k, shape, jnp.float32, -1.0, 1.0)
                               * math.sqrt(6.0 / (shape[-2] + shape[-1])))
    return dict(
        enc1_I=xavier(keys[0], (1, num_inds, dim_hidden)),
        enc1_mab0=_init_mab(keys[1], dim_hidden, dim_input, dim_hidden),
        enc1_mab1=_init_mab(keys[2], dim_input, dim_hidden, dim_hidden),
        enc2_I=xavier(keys[3], (1, num_inds, dim_hidden)),
        enc2_mab0=_init_mab(keys[4], dim_hidden, dim_hidden, dim_hidden),
        enc2_mab1=_init_mab(keys[5], dim_hidden, dim_hidden, dim_hidden),
        dec1_S=xavier(keys[6], (1, num_outputs, dim_hidden)),
        dec1_mab=_init_mab(keys[7], dim_hidden, dim_hidden, dim_hidden),
        dec2_mab=_init_mab(keys[8], dim_hidden, dim_hidden, dim_hidden),
        dec3_mab=_init_mab(keys[9], dim_hidden, dim_hidden, dim_hidden),
        final_w=xavier(keys[10], (dim_hidden, dim_output)),
        final_b=0.01 * jax.random.normal(keys[11], (1, dim_output), jnp.float32),
    )


# --------------------------------------------------------------------------- pure-JAX reference
def _mab_reference(Q, K, p, num_heads):
    dv = p["wq"].shape[-1]
    ds = dv // num_heads
    Qp = Q @ p["wq"] + p["bq"]
    Kp = K @ p["wk"] + p["bk"]
    Vp = K @ p["wv"] + p["bv"]
    split = lambda x: jnp.transpose(
        x.reshape(x.shape[0], x.shape[1], num_heads, ds), (0, 2, 1, 3))
    Qh, Kh, Vh = split(Qp), split(Kp), split(Vp)
    A = jax.nn.softmax(jnp.einsum("bhqd,bhkd->bhqk", Qh, Kh) / math.sqrt(ds), axis=-1)
    O = Qh + jnp.einsum("bhqk,bhkd->bhqd", A, Vh)
    O = jnp.transpose(O, (0, 2, 1, 3)).reshape(O.shape[0], O.shape[2], dv)
    return O + jax.nn.relu(O @ p["wo"] + p["bo"])


def set_transformer_reference(X, params, num_heads):
    B = X.shape[0]
    rep = lambda t: jnp.broadcast_to(t, (B,) + t.shape[1:])
    H = _mab_reference(rep(params["enc1_I"]), X, params["enc1_mab0"], num_heads)
    X = _mab_reference(X, H, params["enc1_mab1"], num_heads)
    H = _mab_reference(rep(params["enc2_I"]), X, params["enc2_mab0"], num_heads)
    X = _mab_reference(X, H, params["enc2_mab1"], num_heads)
    X = _mab_reference(rep(params["dec1_S"]), X, params["dec1_mab"], num_heads)
    X = _mab_reference(X, X, params["dec2_mab"], num_heads)
    X = _mab_reference(X, X, params["dec3_mab"], num_heads)
    return X @ params["final_w"] + params["final_b"]


# --------------------------------------------------------------------------- demo
if __name__ == "__main__":
    dim_input, num_outputs, dim_output = 4, 2, 3
    num_inds, dim_hidden, num_heads = 8, 32, 4
    batch, set_size = 2, 8

    key = jax.random.PRNGKey(0)
    k_x, k_p = jax.random.split(key)
    X = jax.random.normal(k_x, (batch, set_size, dim_input), jnp.float32)
    params = init_set_transformer(k_p, dim_input, num_outputs, dim_output,
                                  num_inds, dim_hidden, num_heads)

    out = set_transformer_forward(X, params, num_heads)
    out = jax.block_until_ready(out)
    assert out.shape == (batch, num_outputs, dim_output), out.shape

    # Sanity check vs. a pure-JAX f32 reference (loose tolerance: the kernel runs matmuls with
    # bf16 inputs and uses an approximate reciprocal in the softmax).
    ref = set_transformer_reference(X, params, num_heads)
    err = float(jnp.max(jnp.abs(out - ref)))
    tol = 0.1 * float(jnp.max(jnp.abs(ref))) + 0.1
    assert err <= tol, f"kernel/reference mismatch: max abs err {err} (tol {tol})"

    print("KERNEL_OK")
</pallas_src>

<mosaic_0001>
module attributes {stable_mosaic.version = 11 : i64} {
  func.func @_set_transformer_kernel(%arg0: i32, %arg1: memref<2x8x4xbf16, #tpu.memory_space<vmem>>, %arg2: memref<456x96xbf16, #tpu.memory_space<vmem>>, %arg3: memref<15x96xf32, #tpu.memory_space<vmem>>, %arg4: memref<24x32xf32, #tpu.memory_space<vmem>>, %arg5: memref<2x2x3xf32, #tpu.memory_space<vmem>>) attributes {dimension_semantics = [#tpu.dimension_semantics<parallel>], iteration_bounds = array<i64: 1>, scalar_prefetch = 0 : i64, scratch_operands = 0 : i64, tpu.core_type = #tpu.core_type<tc>, window_params = [{transform_indices = @transform_0, window_bounds = array<i64: 2, 8, 4>}, {pipeline_mode = #tpu.pipeline_mode<synchronous>, transform_indices = @transform_1, window_bounds = array<i64: 456, 96>}, {pipeline_mode = #tpu.pipeline_mode<synchronous>, transform_indices = @transform_2, window_bounds = array<i64: 15, 96>}, {pipeline_mode = #tpu.pipeline_mode<synchronous>, transform_indices = @transform_3, window_bounds = array<i64: 24, 32>}, {transform_indices = @transform_4, window_bounds = array<i64: 2, 2, 3>}]} {
    %c0 = arith.constant 0 : index
    %c0_0 = arith.constant 0 : index
    %c0_1 = arith.constant 0 : index
    %0 = vector.load %arg1[%c0, %c0_0, %c0_1] : memref<2x8x4xbf16, #tpu.memory_space<vmem>>, vector<2x8x4xbf16>
    %1 = vector.shape_cast %0 : vector<2x8x4xbf16> to vector<16x4xbf16>
    %c0_2 = arith.constant 0 : index
    %c0_3 = arith.constant 0 : index
    %2 = vector.load %arg2[%c0_2, %c0_3] : memref<456x96xbf16, #tpu.memory_space<vmem>>, vector<4x96xbf16>
    %cst = arith.constant dense<0.000000e+00> : vector<16x96xf32>
    %3 = tpu.matmul %1, %2, %cst {dimension_numbers = #tpu.dot_dimension_numbers<[1], [0], [0], [1], [0, 0, 1, 1], [], []>} : vector<16x4xbf16>, vector<4x96xbf16>, vector<16x96xf32> -> vector<16x96xf32>
    %c0_4 = arith.constant 0 : index
    %c0_5 = arith.constant 0 : index
    %4 = vector.load %arg3[%c0_4, %c0_5] : memref<15x96xf32, #tpu.memory_space<vmem>>, vector<1x96xf32>
    %5 = vector.broadcast %4 : vector<1x96xf32> to vector<16x96xf32>
    %6 = arith.addf %3, %5 : vector<16x96xf32>
    %7 = vector.extract_strided_slice %6 {offsets = [0, 0], sizes = [16, 32], strides = [1, 1]} : vector<16x96xf32> to vector<16x32xf32>
    %8 = vector.shape_cast %7 : vector<16x32xf32> to vector<2x8x32xf32>
    %9 = vector.extract_strided_slice %6 {offsets = [0, 32], sizes = [16, 32], strides = [1, 1]} : vector<16x96xf32> to vector<16x32xf32>
    %10 = vector.shape_cast %9 : vector<16x32xf32> to vector<2x8x32xf32>
    %11 = vector.extract_strided_slice %6 {offsets = [0, 64], sizes = [16, 32], strides = [1, 1]} : vector<16x96xf32> to vector<16x32xf32>
    %12 = vector.shape_cast %11 : vector<16x32xf32> to vector<2x8x32xf32>
    %c0_6 = arith.constant 0 : index
    %c0_7 = arith.constant 0 : index
    %13 = vector.load %arg4[%c0_6, %c0_7] : memref<24x32xf32, #tpu.memory_space<vmem>>, vector<8x32xf32>
    %14 = vector.shape_cast %13 : vector<8x32xf32> to vector<1x8x32xf32>
    %15 = vector.shape_cast %14 : vector<1x8x32xf32> to vector<1x8x32xf32>
    %16 = vector.broadcast %15 : vector<1x8x32xf32> to vector<2x8x32xf32>
    %17 = arith.truncf %16 : vector<2x8x32xf32> to vector<2x8x32xbf16>
    %18 = arith.truncf %8 : vector<2x8x32xf32> to vector<2x8x32xbf16>
    %19 = arith.truncf %10 : vector<2x8x32xf32> to vector<2x8x32xbf16>
    %20 = vector.extract_strided_slice %17 {offsets = [0, 0, 0], sizes = [2, 8, 8], strides = [1, 1, 1]} : vector<2x8x32xbf16> to vector<2x8x8xbf16>
    %21 = vector.extract_strided_slice %18 {offsets = [0, 0, 0], sizes = [2, 8, 8], strides = [1, 1, 1]} : vector<2x8x32xbf16> to vector<2x8x8xbf16>
    "tpu.trace_start"() <{level = 10 : i32, message = "bqd,bkd->bqk"}> : () -> ()
    %cst_8 = arith.constant dense<0.000000e+00> : vector<2x8x8xf32>
    %22 = tpu.matmul %20, %21, %cst_8 {dimension_numbers = #tpu.dot_dimension_numbers<[2], [2], [1], [1], [0, 0, 0, 1, 1, 1], [0], [0]>} : vector<2x8x8xbf16>, vector<2x8x8xbf16>, vector<2x8x8xf32> -> vector<2x8x8xf32>
    "tpu.trace_stop"() : () -> ()
    %cst_9 = arith.constant dense<0xFF800000> : vector<2x8xf32>
    %23 = vector.multi_reduction <maximumf>, %22, %cst_9 [2] : vector<2x8x8xf32> to vector<2x8xf32>
    %24 = vector.shape_cast %23 : vector<2x8xf32> to vector<2x8x1xf32>
    %25 = vector.broadcast %24 : vector<2x8x1xf32> to vector<2x8x8xf32>
    %26 = arith.subf %22, %25 : vector<2x8x8xf32>
    %27 = math.exp %26 : vector<2x8x8xf32>
    %cst_10 = arith.constant dense<0.000000e+00> : vector<2x8xf32>
    %28 = vector.multi_reduction <add>, %27, %cst_10 [2] : vector<2x8x8xf32> to vector<2x8xf32>
    %29 = vector.shape_cast %28 : vector<2x8xf32> to vector<2x8x1xf32>
    %30 = tpu.reciprocal %29 {approx = true} : vector<2x8x1xf32> -> vector<2x8x1xf32>
    %31 = vector.broadcast %30 : vector<2x8x1xf32> to vector<2x8x8xf32>
    %32 = arith.mulf %27, %31 : vector<2x8x8xf32>
    %33 = arith.truncf %32 : vector<2x8x8xf32> to vector<2x8x8xbf16>
    %34 = vector.extract_strided_slice %19 {offsets = [0, 0, 0], sizes = [2, 8, 8], strides = [1, 1, 1]} : vector<2x8x32xbf16> to vector<2x8x8xbf16>
    "tpu.trace_start"() <{level = 10 : i32, message = "bqk,bkd->bqd"}> : () -> ()
    %cst_11 = arith.constant dense<0.000000e+00> : vector<2x8x8xf32>
    %35 = tpu.matmul %33, %34, %cst_11 {dimension_numbers = #tpu.dot_dimension_numbers<[2], [1], [1], [2], [0, 0, 0, 1, 1, 2], [0], [0]>} : vector<2x8x8xbf16>, vector<2x8x8xbf16>, vector<2x8x8xf32> -> vector<2x8x8xf32>
    "tpu.trace_stop"() : () -> ()
    %36 = vector.extract_strided_slice %17 {offsets = [0, 0, 8], sizes = [2, 8, 8], strides = [1, 1, 1]} : vector<2x8x32xbf16> to vector<2x8x8xbf16>
    %37 = vector.extract_strided_slice %18 {offsets = [0, 0, 8], sizes = [2, 8, 8], strides = [1, 1, 1]} : vector<2x8x32xbf16> to vector<2x8x8xbf16>
    "tpu.trace_start"() <{level = 10 : i32, message = "bqd,bkd->bqk"}> : () -> ()
    %cst_12 = arith.constant dense<0.000000e+00> : vector<2x8x8xf32>
    %38 = tpu.matmul %36, %37, %cst_12 {dimension_numbers = #tpu.dot_dimension_numbers<[2], [2], [1], [1], [0, 0, 0, 1, 1, 1], [0], [0]>} : vector<2x8x8xbf16>, vector<2x8x8xbf16>, vector<2x8x8xf32> -> vector<2x8x8xf32>
    "tpu.trace_stop"() : () -> ()
    %cst_13 = arith.constant dense<0xFF800000> : vector<2x8xf32>
    %39 = vector.multi_reduction <maximumf>, %38, %cst_13 [2] : vector<2x8x8xf32> to vector<2x8xf32>
    %40 = vector.shape_cast %39 : vector<2x8xf32> to vector<2x8x1xf32>
    %41 = vector.broadcast %40 : vector<2x8x1xf32> to vector<2x8x8xf32>
    %42 = arith.subf %38, %41 : vector<2x8x8xf32>
    %43 = math.exp %42 : vector<2x8x8xf32>
    %cst_14 = arith.constant dense<0.000000e+00> : vector<2x8xf32>
    %44 = vector.multi_reduction <add>, %43, %cst_14 [2] : vector<2x8x8xf32> to vector<2x8xf32>
    %45 = vector.shape_cast %44 : vector<2x8xf32> to vector<2x8x1xf32>
    %46 = tpu.reciprocal %45 {approx = true} : vector<2x8x1xf32> -> vector<2x8x1xf32>
    %47 = vector.broadcast %46 : vector<2x8x1xf32> to vector<2x8x8xf32>
    %48 = arith.mulf %43, %47 : vector<2x8x8xf32>
    %49 = arith.truncf %48 : vector<2x8x8xf32> to vector<2x8x8xbf16>
    %50 = vector.extract_strided_slice %19 {offsets = [0, 0, 8], sizes = [2, 8, 8], strides = [1, 1, 1]} : vector<2x8x32xbf16> to vector<2x8x8xbf16>
    "tpu.trace_start"() <{level = 10 : i32, message = "bqk,bkd->bqd"}> : () -> ()
    %cst_15 = arith.constant dense<0.000000e+00> : vector<2x8x8xf32>
    %51 = tpu.matmul %49, %50, %cst_15 {dimension_numbers = #tpu.dot_dimension_numbers<[2], [1], [1], [2], [0, 0, 0, 1, 1, 2], [0], [0]>} : vector<2x8x8xbf16>, vector<2x8x8xbf16>, vector<2x8x8xf32> -> vector<2x8x8xf32>
    "tpu.trace_stop"() : () -> ()
    %52 = vector.extract_strided_slice %17 {offsets = [0, 0, 16], sizes = [2, 8, 8], strides = [1, 1, 1]} : vector<2x8x32xbf16> to vector<2x8x8xbf16>
    %53 = vector.extract_strided_slice %18 {offsets = [0, 0, 16], sizes = [2, 8, 8], strides = [1, 1, 1]} : vector<2x8x32xbf16> to vector<2x8x8xbf16>
    "tpu.trace_start"() <{level = 10 : i32, message = "bqd,bkd->bqk"}> : () -> ()
    %cst_16 = arith.constant dense<0.000000e+00> : vector<2x8x8xf32>
    %54 = tpu.matmul %52, %53, %cst_16 {dimension_numbers = #tpu.dot_dimension_numbers<[2], [2], [1], [1], [0, 0, 0, 1, 1, 1], [0], [0]>} : vector<2x8x8xbf16>, vector<2x8x8xbf16>, vector<2x8x8xf32> -> vector<2x8x8xf32>
    "tpu.trace_stop"() : () -> ()
    %cst_17 = arith.constant dense<0xFF800000> : vector<2x8xf32>
    %55 = vector.multi_reduction <maximumf>, %54, %cst_17 [2] : vector<2x8x8xf32> to vector<2x8xf32>
    %56 = vector.shape_cast %55 : vector<2x8xf32> to vector<2x8x1xf32>
    %57 = vector.broadcast %56 : vector<2x8x1xf32> to vector<2x8x8xf32>
    %58 = arith.subf %54, %57 : vector<2x8x8xf32>
    %59 = math.exp %58 : vector<2x8x8xf32>
    %cst_18 = arith.constant dense<0.000000e+00> : vector<2x8xf32>
    %60 = vector.multi_reduction <add>, %59, %cst_18 [2] : vector<2x8x8xf32> to vector<2x8xf32>
    %61 = vector.shape_cast %60 : vector<2x8xf32> to vector<2x8x1xf32>
    %62 = tpu.reciprocal %61 {approx = true} : vector<2x8x1xf32> -> vector<2x8x1xf32>
    %63 = vector.broadcast %62 : vector<2x8x1xf32> to vector<2x8x8xf32>
    %64 = arith.mulf %59, %63 : vector<2x8x8xf32>
    %65 = arith.truncf %64 : vector<2x8x8xf32> to vector<2x8x8xbf16>
    %66 = vector.extract_strided_slice %19 {offsets = [0, 0, 16], sizes = [2, 8, 8], strides = [1, 1, 1]} : vector<2x8x32xbf16> to vector<2x8x8xbf16>
    "tpu.trace_start"() <{level = 10 : i32, message = "bqk,bkd->bqd"}> : () -> ()
    %cst_19 = arith.constant dense<0.000000e+00> : vector<2x8x8xf32>
    %67 = tpu.matmul %65, %66, %cst_19 {dimension_numbers = #tpu.dot_dimension_numbers<[2], [1], [1], [2], [0, 0, 0, 1, 1, 2], [0], [0]>} : vector<2x8x8xbf16>, vector<2x8x8xbf16>, vector<2x8x8xf32> -> vector<2x8x8xf32>
    "tpu.trace_stop"() : () -> ()
    %68 = vector.extract_strided_slice %17 {offsets = [0, 0, 24], sizes = [2, 8, 8], strides = [1, 1, 1]} : vector<2x8x32xbf16> to vector<2x8x8xbf16>
    %69 = vector.extract_strided_slice %18 {offsets = [0, 0, 24], sizes = [2, 8, 8], strides = [1, 1, 1]} : vector<2x8x32xbf16> to vector<2x8x8xbf16>
    "tpu.trace_start"() <{level = 10 : i32, message = "bqd,bkd->bqk"}> : () -> ()
    %cst_20 = arith.constant dense<0.000000e+00> : vector<2x8x8xf32>
    %70 = tpu.matmul %68, %69, %cst_20 {dimension_numbers = #tpu.dot_dimension_numbers<[2], [2], [1], [1], [0, 0, 0, 1, 1, 1], [0], [0]>} : vector<2x8x8xbf16>, vector<2x8x8xbf16>, vector<2x8x8xf32> -> vector<2x8x8xf32>
    "tpu.trace_stop"() : () -> ()
    %cst_21 = arith.constant dense<0xFF800000> : vector<2x8xf32>
    %71 = vector.multi_reduction <maximumf>, %70, %cst_21 [2] : vector<2x8x8xf32> to vector<2x8xf32>
    %72 = vector.shape_cast %71 : vector<2x8xf32> to vector<2x8x1xf32>
    %73 = vector.broadcast %72 : vector<2x8x1xf32> to vector<2x8x8xf32>
    %74 = arith.subf %70, %73 : vector<2x8x8xf32>
    %75 = math.exp %74 : vector<2x8x8xf32>
    %cst_22 = arith.constant dense<0.000000e+00> : vector<2x8xf32>
    %76 = vector.multi_reduction <add>, %75, %cst_22 [2] : vector<2x8x8xf32> to vector<2x8xf32>
    %77 = vector.shape_cast %76 : vector<2x8xf32> to vector<2x8x1xf32>
    %78 = tpu.reciprocal %77 {approx = true} : vector<2x8x1xf32> -> vector<2x8x1xf32>
    %79 = vector.broadcast %78 : vector<2x8x1xf32> to vector<2x8x8xf32>
    %80 = arith.mulf %75, %79 : vector<2x8x8xf32>
    %81 = arith.truncf %80 : vector<2x8x8xf32> to vector<2x8x8xbf16>
    %82 = vector.extract_strided_slice %19 {offsets = [0, 0, 24], sizes = [2, 8, 8], strides = [1, 1, 1]} : vector<2x8x32xbf16> to vector<2x8x8xbf16>
    "tpu.trace_start"() <{level = 10 : i32, message = "bqk,bkd->bqd"}> : () -> ()
    %cst_23 = arith.constant dense<0.000000e+00> : vector<2x8x8xf32>
    %83 = tpu.matmul %81, %82, %cst_23 {dimension_numbers = #tpu.dot_dimension_numbers<[2], [1], [1], [2], [0, 0, 0, 1, 1, 2], [0], [0]>} : vector<2x8x8xbf16>, vector<2x8x8xbf16>, vector<2x8x8xf32> -> vector<2x8x8xf32>
    "tpu.trace_stop"() : () -> ()
    %84 = tpu.concatenate %35, %51, %67, %83 in 2 : vector<2x8x8xf32>, vector<2x8x8xf32>, vector<2x8x8xf32>, vector<2x8x8xf32> -> vector<2x8x32xf32>
    %85 = arith.addf %16, %84 : vector<2x8x32xf32>
    %86 = vector.shape_cast %85 : vector<2x8x32xf32> to vector<16x32xf32>
    %87 = arith.truncf %86 : vector<16x32xf32> to vector<16x32xbf16>
    %c8 = arith.constant 8 : index
    %c0_24 = arith.constant 0 : index
    %88 = vector.load %arg2[%c8, %c0_24] : memref<456x96xbf16, #tpu.memory_space<vmem>>, vector<32x32xbf16>
    %cst_25 = arith.constant dense<0.000000e+00> : vector<16x32xf32>
    %89 = tpu.matmul %87, %88, %cst_25 {dimension_numbers = #tpu.dot_dimension_numbers<[1], [0], [0], [1], [0, 0, 1, 1], [], []>} : vector<16x32xbf16>, vector<32x32xbf16>, vector<16x32xf32> -> vector<16x32xf32>
    %c1 = arith.constant 1 : index
    %c0_26 = arith.constant 0 : index
    %90 = vector.load %arg3[%c1, %c0_26] : memref<15x96xf32, #tpu.memory_space<vmem>>, vector<1x32xf32>
    %91 = vector.broadcast %90 : vector<1x32xf32> to vector<16x32xf32>
    %92 = arith.addf %89, %91 : vector<16x32xf32>
    %cst_27 = arith.constant 0.000000e+00 : f32
    %93 = vector.broadcast %cst_27 : f32 to vector<16x32xf32>
    %94 = arith.maximumf %92, %93 : vector<16x32xf32>
    %95 = arith.addf %86, %94 : vector<16x32xf32>
    %96 = vector.shape_cast %95 : vector<16x32xf32> to vector<2x8x32xf32>
    %97 = vector.shape_cast %96 : vector<2x8x32xf32> to vector<16x32xf32>
    %98 = arith.truncf %97 : vector<16x32xf32> to vector<16x32xbf16>
    %c40 = arith.constant 40 : index
    %c0_28 = arith.constant 0 : index
    %99 = vector.load %arg2[%c40, %c0_28] : memref<456x96xbf16, #tpu.memory_space<vmem>>, vector<32x64xbf16>
    %cst_29 = arith.constant dense<0.000000e+00> : vector<16x64xf32>
    %100 = tpu.matmul %98, %99, %cst_29 {dimension_numbers = #tpu.dot_dimension_numbers<[1], [0], [0], [1], [0, 0, 1, 1], [], []>} : vector<16x32xbf16>, vector<32x64xbf16>, vector<16x64xf32> -> vector<16x64xf32>
    %c2 = arith.constant 2 : index
    %c0_30 = arith.constant 0 : index
    %101 = vector.load %arg3[%c2, %c0_30] : memref<15x96xf32, #tpu.memory_space<vmem>>, vector<1x64xf32>
    %102 = vector.broadcast %101 : vector<1x64xf32> to vector<16x64xf32>
    %103 = arith.addf %100, %102 : vector<16x64xf32>
    %104 = vector.extract_strided_slice %103 {offsets = [0, 0], sizes = [16, 32], strides = [1, 1]} : vector<16x64xf32> to vector<16x32xf32>
    %105 = vector.shape_cast %104 : vector<16x32xf32> to vector<2x8x32xf32>
    %106 = vector.extract_strided_slice %103 {offsets = [0, 32], sizes = [16, 32], strides = [1, 1]} : vector<16x64xf32> to vector<16x32xf32>
    %107 = vector.shape_cast %106 : vector<16x32xf32> to vector<2x8x32xf32>
    %108 = arith.truncf %12 : vector<2x8x32xf32> to vector<2x8x32xbf16>
    %109 = arith.truncf %105 : vector<2x8x32xf32> to vector<2x8x32xbf16>
    %110 = arith.truncf %107 : vector<2x8x32xf32> to vector<2x8x32xbf16>
    %111 = vector.extract_strided_slice %108 {offsets = [0, 0, 0], sizes = [2, 8, 8], strides = [1, 1, 1]} : vector<2x8x32xbf16> to vector<2x8x8xbf16>
    %112 = vector.extract_strided_slice %109 {offsets = [0, 0, 0], sizes = [2, 8, 8], strides = [1, 1, 1]} : vector<2x8x32xbf16> to vector<2x8x8xbf16>
    "tpu.trace_start"() <{level = 10 : i32, message = "bqd,bkd->bqk"}> : () -> ()
    %cst_31 = arith.constant dense<0.000000e+00> : vector<2x8x8xf32>
    %113 = tpu.matmul %111, %112, %cst_31 {dimension_numbers = #tpu.dot_dimension_numbers<[2], [2], [1], [1], [0, 0, 0, 1, 1, 1], [0], [0]>} : vector<2x8x8xbf16>, vector<2x8x8xbf16>, vector<2x8x8xf32> -> vector<2x8x8xf32>
    "tpu.trace_stop"() : () -> ()
    %cst_32 = arith.constant dense<0xFF800000> : vector<2x8xf32>
    %114 = vector.multi_reduction <maximumf>, %113, %cst_32 [2] : vector<2x8x8xf32> to vector<2x8xf32>
    %115 = vector.shape_cast %114 : vector<2x8xf32> to vector<2x8x1xf32>
    %116 = vector.broadcast %115 : vector<2x8x1xf32> to vector<2x8x8xf32>
    %117 = arith.subf %113, %116 : vector<2x8x8xf32>
    %118 = math.exp %117 : vector<2x8x8xf32>
    %cst_33 = arith.constant dense<0.000000e+00> : vector<2x8xf32>
    %119 = vector.multi_reduction <add>, %118, %cst_33 [2] : vector<2x8x8xf32> to vector<2x8xf32>
    %120 = vector.shape_cast %119 : vector<2x8xf32> to vector<2x8x1xf32>
    %121 = tpu.reciprocal %120 {approx = true} : vector<2x8x1xf32> -> vector<2x8x1xf32>
    %122 = vector.broadcast %121 : vector<2x8x1xf32> to vector<2x8x8xf32>
    %123 = arith.mulf %118, %122 : vector<2x8x8xf32>
    %124 = arith.truncf %123 : vector<2x8x8xf32> to vector<2x8x8xbf16>
    %125 = vector.extract_strided_slice %110 {offsets = [0, 0, 0], sizes = [2, 8, 8], strides = [1, 1, 1]} : vector<2x8x32xbf16> to vector<2x8x8xbf16>
    "tpu.trace_start"() <{level = 10 : i32, message = "bqk,bkd->bqd"}> : () -> ()
    %cst_34 = arith.constant dense<0.000000e+00> : vector<2x8x8xf32>
    %126 = tpu.matmul %124, %125, %cst_34 {dimension_numbers = #tpu.dot_dimension_numbers<[2], [1], [1], [2], [0, 0, 0, 1, 1, 2], [0], [0]>} : vector<2x8x8xbf16>, vector<2x8x8xbf16>, vector<2x8x8xf32> -> vector<2x8x8xf32>
    "tpu.trace_stop"() : () -> ()
    %127 = vector.extract_strided_slice %108 {offsets = [0, 0, 8], sizes = [2, 8, 8], strides = [1, 1, 1]} : vector<2x8x32xbf16> to vector<2x8x8xbf16>
    %128 = vector.extract_strided_slice %109 {offsets = [0, 0, 8], sizes = [2, 8, 8], strides = [1, 1, 1]} : vector<2x8x32xbf16> to vector<2x8x8xbf16>
    "tpu.trace_start"() <{level = 10 : i32, message = "bqd,bkd->bqk"}> : () -> ()
    %cst_35 = arith.constant dense<0.000000e+00> : vector<2x8x8xf32>
    %129 = tpu.matmul %127, %128, %cst_35 {dimension_numbers = #tpu.dot_dimension_numbers<[2], [2], [1], [1], [0, 0, 0, 1, 1, 1], [0], [0]>} : vector<2x8x8xbf16>, vector<2x8x8xbf16>, vector<2x8x8xf32> -> vector<2x8x8xf32>
    "tpu.trace_stop"() : () -> ()
    %cst_36 = arith.constant dense<0xFF800000> : vector<2x8xf32>
    %130 = vector.multi_reduction <maximumf>, %129, %cst_36 [2] : vector<2x8x8xf32> to vector<2x8xf32>
    %131 = vector.shape_cast %130 : vector<2x8xf32> to vector<2x8x1xf32>
    %132 = vector.broadcast %131 : vector<2x8x1xf32> to vector<2x8x8xf32>
    %133 = arith.subf %129, %132 : vector<2x8x8xf32>
    %134 = math.exp %133 : vector<2x8x8xf32>
    %cst_37 = arith.constant dense<0.000000e+00> : vector<2x8xf32>
    %135 = vector.multi_reduction <add>, %134, %cst_37 [2] : vector<2x8x8xf32> to vector<2x8xf32>
    %136 = vector.shape_cast %135 : vector<2x8xf32> to vector<2x8x1xf32>
    %137 = tpu.reciprocal %136 {approx = true} : vector<2x8x1xf32> -> vector<2x8x1xf32>
    %138 = vector.broadcast %137 : vector<2x8x1xf32> to vector<2x8x8xf32>
    %139 = arith.mulf %134, %138 : vector<2x8x8xf32>
    %140 = arith.truncf %139 : vector<2x8x8xf32> to vector<2x8x8xbf16>
    %141 = vector.extract_strided_slice %110 {offsets = [0, 0, 8], sizes = [2, 8, 8], strides = [1, 1, 1]} : vector<2x8x32xbf16> to vector<2x8x8xbf16>
    "tpu.trace_start"() <{level = 10 : i32, message = "bqk,bkd->bqd"}> : () -> ()
    %cst_38 = arith.constant dense<0.000000e+00> : vector<2x8x8xf32>
    %142 = tpu.matmul %140, %141, %cst_38 {dimension_numbers = #tpu.dot_dimension_numbers<[2], [1], [1], [2], [0, 0, 0, 1, 1, 2], [0], [0]>} : vector<2x8x8xbf16>, vector<2x8x8xbf16>, vector<2x8x8xf32> -> vector<2x8x8xf32>
    "tpu.trace_stop"() : () -> ()
    %143 = vector.extract_strided_slice %108 {offsets = [0, 0, 16], sizes = [2, 8, 8], strides = [1, 1, 1]} : vector<2x8x32xbf16> to vector<2x8x8xbf16>
    %144 = vector.extract_strided_slice %109 {offsets = [0, 0, 16], sizes = [2, 8, 8], strides = [1, 1, 1]} : vector<2x8x32xbf16> to vector<2x8x8xbf16>
    "tpu.trace_start"() <{level = 10 : i32, message = "bqd,bkd->bqk"}> : () -> ()
    %cst_39 = arith.constant dense<0.000000e+00> : vector<2x8x8xf32>
    %145 = tpu.matmul %143, %144, %cst_39 {dimension_numbers = #tpu.dot_dimension_numbers<[2], [2], [1], [1], [0, 0, 0, 1, 1, 1], [0], [0]>} : vector<2x8x8xbf16>, vector<2x8x8xbf16>, vector<2x8x8xf32> -> vector<2x8x8xf32>
    "tpu.trace_stop"() : () -> ()
    %cst_40 = arith.constant dense<0xFF800000> : vector<2x8xf32>
    %146 = vector.multi_reduction <maximumf>, %145, %cst_40 [2] : vector<2x8x8xf32> to vector<2x8xf32>
    %147 = vector.shape_cast %146 : vector<2x8xf32> to vector<2x8x1xf32>
    %148 = vector.broadcast %147 : vector<2x8x1xf32> to vector<2x8x8xf32>
    %149 = arith.subf %145, %148 : vector<2x8x8xf32>
    %150 = math.exp %149 : vector<2x8x8xf32>
    %cst_41 = arith.constant dense<0.000000e+00> : vector<2x8xf32>
    %151 = vector.multi_reduction <add>, %150, %cst_41 [2] : vector<2x8x8xf32> to vector<2x8xf32>
    %152 = vector.shape_cast %151 : vector<2x8xf32> to vector<2x8x1xf32>
    %153 = tpu.reciprocal %152 {approx = true} : vector<2x8x1xf32> -> vector<2x8x1xf32>
    %154 = vector.broadcast %153 : vector<2x8x1xf32> to vector<2x8x8xf32>
    %155 = arith.mulf %150, %154 : vector<2x8x8xf32>
    %156 = arith.truncf %155 : vector<2x8x8xf32> to vector<2x8x8xbf16>
    %157 = vector.extract_strided_slice %110 {offsets = [0, 0, 16], sizes = [2, 8, 8], strides = [1, 1, 1]} : vector<2x8x32xbf16> to vector<2x8x8xbf16>
    "tpu.trace_start"() <{level = 10 : i32, message = "bqk,bkd->bqd"}> : () -> ()
    %cst_42 = arith.constant dense<0.000000e+00> : vector<2x8x8xf32>
    %158 = tpu.matmul %156, %157, %cst_42 {dimension_numbers = #tpu.dot_dimension_numbers<[2], [1], [1], [2], [0, 0, 0, 1, 1, 2], [0], [0]>} : vector<2x8x8xbf16>, vector<2x8x8xbf16>, vector<2x8x8xf32> -> vector<2x8x8xf32>
    "tpu.trace_stop"() : () -> ()
    %159 = vector.extract_strided_slice %108 {offsets = [0, 0, 24], sizes = [2, 8, 8], strides = [1, 1, 1]} : vector<2x8x32xbf16> to vector<2x8x8xbf16>
    %160 = vector.extract_strided_slice %109 {offsets = [0, 0, 24], sizes = [2, 8, 8], strides = [1, 1, 1]} : vector<2x8x32xbf16> to vector<2x8x8xbf16>
    "tpu.trace_start"() <{level = 10 : i32, message = "bqd,bkd->bqk"}> : () -> ()
    %cst_43 = arith.constant dense<0.000000e+00> : vector<2x8x8xf32>
    %161 = tpu.matmul %159, %160, %cst_43 {dimension_numbers = #tpu.dot_dimension_numbers<[2], [2], [1], [1], [0, 0, 0, 1, 1, 1], [0], [0]>} : vector<2x8x8xbf16>, vector<2x8x8xbf16>, vector<2x8x8xf32> -> vector<2x8x8xf32>
    "tpu.trace_stop"() : () -> ()
    %cst_44 = arith.constant dense<0xFF800000> : vector<2x8xf32>
    %162 = vector.multi_reduction <maximumf>, %161, %cst_44 [2] : vector<2x8x8xf32> to vector<2x8xf32>
    %163 = vector.shape_cast %162 : vector<2x8xf32> to vector<2x8x1xf32>
    %164 = vector.broadcast %163 : vector<2x8x1xf32> to vector<2x8x8xf32>
    %165 = arith.subf %161, %164 : vector<2x8x8xf32>
    %166 = math.exp %165 : vector<2x8x8xf32>
    %cst_45 = arith.constant dense<0.000000e+00> : vector<2x8xf32>
    %167 = vector.multi_reduction <add>, %166, %cst_45 [2] : vector<2x8x8xf32> to vector<2x8xf32>
    %168 = vector.shape_cast %167 : vector<2x8xf32> to vector<2x8x1xf32>
    %169 = tpu.reciprocal %168 {approx = true} : vector<2x8x1xf32> -> vector<2x8x1xf32>
    %170 = vector.broadcast %169 : vector<2x8x1xf32> to vector<2x8x8xf32>
    %171 = arith.mulf %166, %170 : vector<2x8x8xf32>
    %172 = arith.truncf %171 : vector<2x8x8xf32> to vector<2x8x8xbf16>
    %173 = vector.extract_strided_slice %110 {offsets = [0, 0, 24], sizes = [2, 8, 8], strides = [1, 1, 1]} : vector<2x8x32xbf16> to vector<2x8x8xbf16>
    "tpu.trace_start"() <{level = 10 : i32, message = "bqk,bkd->bqd"}> : () -> ()
    %cst_46 = arith.constant dense<0.000000e+00> : vector<2x8x8xf32>
    %174 = tpu.matmul %172, %173, %cst_46 {dimension_numbers = #tpu.dot_dimension_numbers<[2], [1], [1], [2], [0, 0, 0, 1, 1, 2], [0], [0]>} : vector<2x8x8xbf16>, vector<2x8x8xbf16>, vector<2x8x8xf32> -> vector<2x8x8xf32>
    "tpu.trace_stop"() : () -> ()
    %175 = tpu.concatenate %126, %142, %158, %174 in 2 : vector<2x8x8xf32>, vector<2x8x8xf32>, vector<2x8x8xf32>, vector<2x8x8xf32> -> vector<2x8x32xf32>
    %176 = arith.addf %12, %175 : vector<2x8x32xf32>
    %177 = vector.shape_cast %176 : vector<2x8x32xf32> to vector<16x32xf32>
    %178 = arith.truncf %177 : vector<16x32xf32> to vector<16x32xbf16>
    %c72 = arith.constant 72 : index
    %c0_47 = arith.constant 0 : index
    %179 = vector.load %arg2[%c72, %c0_47] : memref<456x96xbf16, #tpu.memory_space<vmem>>, vector<32x32xbf16>
    %cst_48 = arith.constant dense<0.000000e+00> : vector<16x32xf32>
    %180 = tpu.matmul %178, %179, %cst_48 {dimension_numbers = #tpu.dot_dimension_numbers<[1], [0], [0], [1], [0, 0, 1, 1], [], []>} : vector<16x32xbf16>, vector<32x32xbf16>, vector<16x32xf32> -> vector<16x32xf32>
    %c3 = arith.constant 3 : index
    %c0_49 = arith.constant 0 : index
    %181 = vector.load %arg3[%c3, %c0_49] : memref<15x96xf32, #tpu.memory_space<vmem>>, vector<1x32xf32>
    %182 = vector.broadcast %181 : vector<1x32xf32> to vector<16x32xf32>
    %183 = arith.addf %180, %182 : vector<16x32xf32>
    %cst_50 = arith.constant 0.000000e+00 : f32
    %184 = vector.broadcast %cst_50 : f32 to vector<16x32xf32>
    %185 = arith.maximumf %183, %184 : vector<16x32xf32>
    %186 = arith.addf %177, %185 : vector<16x32xf32>
    %187 = vector.shape_cast %186 : vector<16x32xf32> to vector<2x8x32xf32>
    %188 = vector.shape_cast %187 : vector<2x8x32xf32> to vector<16x32xf32>
    %189 = arith.truncf %188 : vector<16x32xf32> to vector<16x32xbf16>
    %c104 = arith.constant 104 : index
    %c0_51 = arith.constant 0 : index
    %190 = vector.load %arg2[%c104, %c0_51] : memref<456x96xbf16, #tpu.memory_space<vmem>>, vector<32x96xbf16>
    %cst_52 = arith.constant dense<0.000000e+00> : vector<16x96xf32>
    %191 = tpu.matmul %189, %190, %cst_52 {dimension_numbers = #tpu.dot_dimension_numbers<[1], [0], [0], [1], [0, 0, 1, 1], [], []>} : vector<16x32xbf16>, vector<32x96xbf16>, vector<16x96xf32> -> vector<16x96xf32>
    %c4 = arith.constant 4 : index
    %c0_53 = arith.constant 0 : index
    %192 = vector.load %arg3[%c4, %c0_53] : memref<15x96xf32, #tpu.memory_space<vmem>>, vector<1x96xf32>
    %193 = vector.broadcast %192 : vector<1x96xf32> to vector<16x96xf32>
    %194 = arith.addf %191, %193 : vector<16x96xf32>
    %195 = vector.extract_strided_slice %194 {offsets = [0, 0], sizes = [16, 32], strides = [1, 1]} : vector<16x96xf32> to vector<16x32xf32>
    %196 = vector.shape_cast %195 : vector<16x32xf32> to vector<2x8x32xf32>
    %197 = vector.extract_strided_slice %194 {offsets = [0, 32], sizes = [16, 32], strides = [1, 1]} : vector<16x96xf32> to vector<16x32xf32>
    %198 = vector.shape_cast %197 : vector<16x32xf32> to vector<2x8x32xf32>
    %199 = vector.extract_strided_slice %194 {offsets = [0, 64], sizes = [16, 32], strides = [1, 1]} : vector<16x96xf32> to vector<16x32xf32>
    %200 = vector.shape_cast %199 : vector<16x32xf32> to vector<2x8x32xf32>
    %c8_54 = arith.constant 8 : index
    %c0_55 = arith.constant 0 : index
    %201 = vector.load %arg4[%c8_54, %c0_55] : memref<24x32xf32, #tpu.memory_space<vmem>>, vector<8x32xf32>
    %202 = vector.shape_cast %201 : vector<8x32xf32> to vector<1x8x32xf32>
    %203 = vector.shape_cast %202 : vector<1x8x32xf32> to vector<1x8x32xf32>
    %204 = vector.broadcast %203 : vector<1x8x32xf32> to vector<2x8x32xf32>
    %205 = arith.truncf %204 : vector<2x8x32xf32> to vector<2x8x32xbf16>
    %206 = arith.truncf %196 : vector<2x8x32xf32> to vector<2x8x32xbf16>
    %207 = arith.truncf %198 : vector<2x8x32xf32> to vector<2x8x32xbf16>
    %208 = vector.extract_strided_slice %205 {offsets = [0, 0, 0], sizes = [2, 8, 8], strides = [1, 1, 1]} : vector<2x8x32xbf16> to vector<2x8x8xbf16>
    %209 = vector.extract_strided_slice %206 {offsets = [0, 0, 0], sizes = [2, 8, 8], strides = [1, 1, 1]} : vector<2x8x32xbf16> to vector<2x8x8xbf16>
    "tpu.trace_start"() <{level = 10 : i32, message = "bqd,bkd->bqk"}> : () -> ()
    %cst_56 = arith.constant dense<0.000000e+00> : vector<2x8x8xf32>
    %210 = tpu.matmul %208, %209, %cst_56 {dimension_numbers = #tpu.dot_dimension_numbers<[2], [2], [1], [1], [0, 0, 0, 1, 1, 1], [0], [0]>} : vector<2x8x8xbf16>, vector<2x8x8xbf16>, vector<2x8x8xf32> -> vector<2x8x8xf32>
    "tpu.trace_stop"() : () -> ()
    %cst_57 = arith.constant dense<0xFF800000> : vector<2x8xf32>
    %211 = vector.multi_reduction <maximumf>, %210, %cst_57 [2] : vector<2x8x8xf32> to vector<2x8xf32>
    %212 = vector.shape_cast %211 : vector<2x8xf32> to vector<2x8x1xf32>
    %213 = vector.broadcast %212 : vector<2x8x1xf32> to vector<2x8x8xf32>
    %214 = arith.subf %210, %213 : vector<2x8x8xf32>
    %215 = math.exp %214 : vector<2x8x8xf32>
    %cst_58 = arith.constant dense<0.000000e+00> : vector<2x8xf32>
    %216 = vector.multi_reduction <add>, %215, %cst_58 [2] : vector<2x8x8xf32> to vector<2x8xf32>
    %217 = vector.shape_cast %216 : vector<2x8xf32> to vector<2x8x1xf32>
    %218 = tpu.reciprocal %217 {approx = true} : vector<2x8x1xf32> -> vector<2x8x1xf32>
    %219 = vector.broadcast %218 : vector<2x8x1xf32> to vector<2x8x8xf32>
    %220 = arith.mulf %215, %219 : vector<2x8x8xf32>
    %221 = arith.truncf %220 : vector<2x8x8xf32> to vector<2x8x8xbf16>
    %222 = vector.extract_strided_slice %207 {offsets = [0, 0, 0], sizes = [2, 8, 8], strides = [1, 1, 1]} : vector<2x8x32xbf16> to vector<2x8x8xbf16>
    "tpu.trace_start"() <{level = 10 : i32, message = "bqk,bkd->bqd"}> : () -> ()
    %cst_59 = arith.constant dense<0.000000e+00> : vector<2x8x8xf32>
    %223 = tpu.matmul %221, %222, %cst_59 {dimension_numbers = #tpu.dot_dimension_numbers<[2], [1], [1], [2], [0, 0, 0, 1, 1, 2], [0], [0]>} : vector<2x8x8xbf16>, vector<2x8x8xbf16>, vector<2x8x8xf32> -> vector<2x8x8xf32>
    "tpu.trace_stop"() : () -> ()
    %224 = vector.extract_strided_slice %205 {offsets = [0, 0, 8], sizes = [2, 8, 8], strides = [1, 1, 1]} : vector<2x8x32xbf16> to vector<2x8x8xbf16>
    %225 = vector.extract_strided_slice %206 {offsets = [0, 0, 8], sizes = [2, 8, 8], strides = [1, 1, 1]} : vector<2x8x32xbf16> to vector<2x8x8xbf16>
    "tpu.trace_start"() <{level = 10 : i32, message = "bqd,bkd->bqk"}> : () -> ()
    %cst_60 = arith.constant dense<0.000000e+00> : vector<2x8x8xf32>
    %226 = tpu.matmul %224, %225, %cst_60 {dimension_numbers = #tpu.dot_dimension_numbers<[2], [2], [1], [1], [0, 0, 0, 1, 1, 1], [0], [0]>} : vector<2x8x8xbf16>, vector<2x8x8xbf16>, vector<2x8x8xf32> -> vector<2x8x8xf32>
    "tpu.trace_stop"() : () -> ()
    %cst_61 = arith.constant dense<0xFF800000> : vector<2x8xf32>
    %227 = vector.multi_reduction <maximumf>, %226, %cst_61 [2] : vector<2x8x8xf32> to vector<2x8xf32>
    %228 = vector.shape_cast %227 : vector<2x8xf32> to vector<2x8x1xf32>
    %229 = vector.broadcast %228 : vector<2x8x1xf32> to vector<2x8x8xf32>
    %230 = arith.subf %226, %229 : vector<2x8x8xf32>
    %231 = math.exp %230 : vector<2x8x8xf32>
    %cst_62 = arith.constant dense<0.000000e+00> : vector<2x8xf32>
    %232 = vector.multi_reduction <add>, %231, %cst_62 [2] : vector<2x8x8xf32> to vector<2x8xf32>
    %233 = vector.shape_cast %232 : vector<2x8xf32> to vector<2x8x1xf32>
    %234 = tpu.reciprocal %233 {approx = true} : vector<2x8x1xf32> -> vector<2x8x1xf32>
    %235 = vector.broadcast %234 : vector<2x8x1xf32> to vector<2x8x8xf32>
    %236 = arith.mulf %231, %235 : vector<2x8x8xf32>
    %237 = arith.truncf %236 : vector<2x8x8xf32> to vector<2x8x8xbf16>
    %238 = vector.extract_strided_slice %207 {offsets = [0, 0, 8], sizes = [2, 8, 8], strides = [1, 1, 1]} : vector<2x8x32xbf16> to vector<2x8x8xbf16>
    "tpu.trace_start"() <{level = 10 : i32, message = "bqk,bkd->bqd"}> : () -> ()
    %cst_63 = arith.constant dense<0.000000e+00> : vector<2x8x8xf32>
    %239 = tpu.matmul %237, %238, %cst_63 {dimension_numbers = #tpu.dot_dimension_numbers<[2], [1], [1], [2], [0, 0, 0, 1, 1, 2], [0], [0]>} : vector<2x8x8xbf16>, vector<2x8x8xbf16>, vector<2x8x8xf32> -> vector<2x8x8xf32>
    "tpu.trace_stop"() : () -> ()
    %240 = vector.extract_strided_slice %205 {offsets = [0, 0, 16], sizes = [2, 8, 8], strides = [1, 1, 1]} : vector<2x8x32xbf16> to vector<2x8x8xbf16>
    %241 = vector.extract_strided_slice %206 {offsets = [0, 0, 16], sizes = [2, 8, 8], strides = [1, 1, 1]} : vector<2x8x32xbf16> to vector<2x8x8xbf16>
    "tpu.trace_start"() <{level = 10 : i32, message = "bqd,bkd->bqk"}> : () -> ()
    %cst_64 = arith.constant dense<0.000000e+00> : vector<2x8x8xf32>
    %242 = tpu.matmul %240, %241, %cst_64 {dimension_numbers = #tpu.dot_dimension_numbers<[2], [2], [1], [1], [0, 0, 0, 1, 1, 1], [0], [0]>} : vector<2x8x8xbf16>, vector<2x8x8xbf16>, vector<2x8x8xf32> -> vector<2x8x8xf32>
    "tpu.trace_stop"() : () -> ()
    %cst_65 = arith.constant dense<0xFF800000> : vector<2x8xf32>
    %243 = vector.multi_reduction <maximumf>, %242, %cst_65 [2] : vector<2x8x8xf32> to vector<2x8xf32>
    %244 = vector.shape_cast %243 : vector<2x8xf32> to vector<2x8x1xf32>
    %245 = vector.broadcast %244 : vector<2x8x1xf32> to vector<2x8x8xf32>
    %246 = arith.subf %242, %245 : vector<2x8x8xf32>
    %247 = math.exp %246 : vector<2x8x8xf32>
    %cst_66 = arith.constant dense<0.000000e+00> : vector<2x8xf32>
    %248 = vector.multi_reduction <add>, %247, %cst_66 [2] : vector<2x8x8xf32> to vector<2x8xf32>
    %249 = vector.shape_cast %248 : vector<2x8xf32> to vector<2x8x1xf32>
    %250 = tpu.reciprocal %249 {approx = true} : vector<2x8x1xf32> -> vector<2x8x1xf32>
    %251 = vector.broadcast %250 : vector<2x8x1xf32> to vector<2x8x8xf32>
    %252 = arith.mulf %247, %251 : vector<2x8x8xf32>
    %253 = arith.truncf %252 : vector<2x8x8xf32> to vector<2x8x8xbf16>
    %254 = vector.extract_strided_slice %207 {offsets = [0, 0, 16], sizes = [2, 8, 8], strides = [1, 1, 1]} : vector<2x8x32xbf16> to vector<2x8x8xbf16>
    "tpu.trace_start"() <{level = 10 : i32, message = "bqk,bkd->bqd"}> : () -> ()
    %cst_67 = arith.constant dense<0.000000e+00> : vector<2x8x8xf32>
    %255 = tpu.matmul %253, %254, %cst_67 {dimension_numbers = #tpu.dot_dimension_numbers<[2], [1], [1], [2], [0, 0, 0, 1, 1, 2], [0], [0]>} : vector<2x8x8xbf16>, vector<2x8x8xbf16>, vector<2x8x8xf32> -> vector<2x8x8xf32>
    "tpu.trace_stop"() : () -> ()
    %256 = vector.extract_strided_slice %205 {offsets = [0, 0, 24], sizes = [2, 8, 8], strides = [1, 1, 1]} : vector<2x8x32xbf16> to vector<2x8x8xbf16>
    %257 = vector.extract_strided_slice %206 {offsets = [0, 0, 24], sizes = [2, 8, 8], strides = [1, 1, 1]} : vector<2x8x32xbf16> to vector<2x8x8xbf16>
    "tpu.trace_start"() <{level = 10 : i32, message = "bqd,bkd->bqk"}> : () -> ()
    %cst_68 = arith.constant dense<0.000000e+00> : vector<2x8x8xf32>
    %258 = tpu.matmul %256, %257, %cst_68 {dimension_numbers = #tpu.dot_dimension_numbers<[2], [2], [1], [1], [0, 0, 0, 1, 1, 1], [0], [0]>} : vector<2x8x8xbf16>, vector<2x8x8xbf16>, vector<2x8x8xf32> -> vector<2x8x8xf32>
    "tpu.trace_stop"() : () -> ()
    %cst_69 = arith.constant dense<0xFF800000> : vector<2x8xf32>
    %259 = vector.multi_reduction <maximumf>, %258, %cst_69 [2] : vector<2x8x8xf32> to vector<2x8xf32>
    %260 = vector.shape_cast %259 : vector<2x8xf32> to vector<2x8x1xf32>
    %261 = vector.broadcast %260 : vector<2x8x1xf32> to vector<2x8x8xf32>
    %262 = arith.subf %258, %261 : vector<2x8x8xf32>
    %263 = math.exp %262 : vector<2x8x8xf32>
    %cst_70 = arith.constant dense<0.000000e+00> : vector<2x8xf32>
    %264 = vector.multi_reduction <add>, %263, %cst_70 [2] : vector<2x8x8xf32> to vector<2x8xf32>
    %265 = vector.shape_cast %264 : vector<2x8xf32> to vector<2x8x1xf32>
    %266 = tpu.reciprocal %265 {approx = true} : vector<2x8x1xf32> -> vector<2x8x1xf32>
    %267 = vector.broadcast %266 : vector<2x8x1xf32> to vector<2x8x8xf32>
    %268 = arith.mulf %263, %267 : vector<2x8x8xf32>
    %269 = arith.truncf %268 : vector<2x8x8xf32> to vector<2x8x8xbf16>
    %270 = vector.extract_strided_slice %207 {offsets = [0, 0, 24], sizes = [2, 8, 8], strides = [1, 1, 1]} : vector<2x8x32xbf16> to vector<2x8x8xbf16>
    "tpu.trace_start"() <{level = 10 : i32, message = "bqk,bkd->bqd"}> : () -> ()
    %cst_71 = arith.constant dense<0.000000e+00> : vector<2x8x8xf32>
    %271 = tpu.matmul %269, %270, %cst_71 {dimension_numbers = #tpu.dot_dimension_numbers<[2], [1], [1], [2], [0, 0, 0, 1, 1, 2], [0], [0]>} : vector<2x8x8xbf16>, vector<2x8x8xbf16>, vector<2x8x8xf32> -> vector<2x8x8xf32>
    "tpu.trace_stop"() : () -> ()
    %272 = tpu.concatenate %223, %239, %255, %271 in 2 : vector<2x8x8xf32>, vector<2x8x8xf32>, vector<2x8x8xf32>, vector<2x8x8xf32> -> vector<2x8x32xf32>
    %273 = arith.addf %204, %272 : vector<2x8x32xf32>
    %274 = vector.shape_cast %273 : vector<2x8x32xf32> to vector<16x32xf32>
    %275 = arith.truncf %274 : vector<16x32xf32> to vector<16x32xbf16>
    %c136 = arith.constant 136 : index
    %c0_72 = arith.constant 0 : index
    %276 = vector.load %arg2[%c136, %c0_72] : memref<456x96xbf16, #tpu.memory_space<vmem>>, vector<32x32xbf16>
    %cst_73 = arith.constant dense<0.000000e+00> : vector<16x32xf32>
    %277 = tpu.matmul %275, %276, %cst_73 {dimension_numbers = #tpu.dot_dimension_numbers<[1], [0], [0], [1], [0, 0, 1, 1], [], []>} : vector<16x32xbf16>, vector<32x32xbf16>, vector<16x32xf32> -> vector<16x32xf32>
    %c5 = arith.constant 5 : index
    %c0_74 = arith.constant 0 : index
    %278 = vector.load %arg3[%c5, %c0_74] : memref<15x96xf32, #tpu.memory_space<vmem>>, vector<1x32xf32>
    %279 = vector.broadcast %278 : vector<1x32xf32> to vector<16x32xf32>
    %280 = arith.addf %277, %279 : vector<16x32xf32>
    %cst_75 = arith.constant 0.000000e+00 : f32
    %281 = vector.broadcast %cst_75 : f32 to vector<16x32xf32>
    %282 = arith.maximumf %280, %281 : vector<16x32xf32>
    %283 = arith.addf %274, %282 : vector<16x32xf32>
    %284 = vector.shape_cast %283 : vector<16x32xf32> to vector<2x8x32xf32>
    %285 = vector.shape_cast %284 : vector<2x8x32xf32> to vector<16x32xf32>
    %286 = arith.truncf %285 : vector<16x32xf32> to vector<16x32xbf16>
    %c168 = arith.constant 168 : index
    %c0_76 = arith.constant 0 : index
    %287 = vector.load %arg2[%c168, %c0_76] : memref<456x96xbf16, #tpu.memory_space<vmem>>, vector<32x64xbf16>
    %cst_77 = arith.constant dense<0.000000e+00> : vector<16x64xf32>
    %288 = tpu.matmul %286, %287, %cst_77 {dimension_numbers = #tpu.dot_dimension_numbers<[1], [0], [0], [1], [0, 0, 1, 1], [], []>} : vector<16x32xbf16>, vector<32x64xbf16>, vector<16x64xf32> -> vector<16x64xf32>
    %c6 = arith.constant 6 : index
    %c0_78 = arith.constant 0 : index
    %289 = vector.load %arg3[%c6, %c0_78] : memref<15x96xf32, #tpu.memory_space<vmem>>, vector<1x64xf32>
    %290 = vector.broadcast %289 : vector<1x64xf32> to vector<16x64xf32>
    %291 = arith.addf %288, %290 : vector<16x64xf32>
    %292 = vector.extract_strided_slice %291 {offsets = [0, 0], sizes = [16, 32], strides = [1, 1]} : vector<16x64xf32> to vector<16x32xf32>
    %293 = vector.shape_cast %292 : vector<16x32xf32> to vector<2x8x32xf32>
    %294 = vector.extract_strided_slice %291 {offsets = [0, 32], sizes = [16, 32], strides = [1, 1]} : vector<16x64xf32> to vector<16x32xf32>
    %295 = vector.shape_cast %294 : vector<16x32xf32> to vector<2x8x32xf32>
    %296 = arith.truncf %200 : vector<2x8x32xf32> to vector<2x8x32xbf16>
    %297 = arith.truncf %293 : vector<2x8x32xf32> to vector<2x8x32xbf16>
    %298 = arith.truncf %295 : vector<2x8x32xf32> to vector<2x8x32xbf16>
    %299 = vector.extract_strided_slice %296 {offsets = [0, 0, 0], sizes = [2, 8, 8], strides = [1, 1, 1]} : vector<2x8x32xbf16> to vector<2x8x8xbf16>
    %300 = vector.extract_strided_slice %297 {offsets = [0, 0, 0], sizes = [2, 8, 8], strides = [1, 1, 1]} : vector<2x8x32xbf16> to vector<2x8x8xbf16>
    "tpu.trace_start"() <{level = 10 : i32, message = "bqd,bkd->bqk"}> : () -> ()
    %cst_79 = arith.constant dense<0.000000e+00> : vector<2x8x8xf32>
    %301 = tpu.matmul %299, %300, %cst_79 {dimension_numbers = #tpu.dot_dimension_numbers<[2], [2], [1], [1], [0, 0, 0, 1, 1, 1], [0], [0]>} : vector<2x8x8xbf16>, vector<2x8x8xbf16>, vector<2x8x8xf32> -> vector<2x8x8xf32>
    "tpu.trace_stop"() : () -> ()
    %cst_80 = arith.constant dense<0xFF800000> : vector<2x8xf32>
    %302 = vector.multi_reduction <maximumf>, %301, %cst_80 [2] : vector<2x8x8xf32> to vector<2x8xf32>
    %303 = vector.shape_cast %302 : vector<2x8xf32> to vector<2x8x1xf32>
    %304 = vector.broadcast %303 : vector<2x8x1xf32> to vector<2x8x8xf32>
    %305 = arith.subf %301, %304 : vector<2x8x8xf32>
    %306 = math.exp %305 : vector<2x8x8xf32>
    %cst_81 = arith.constant dense<0.000000e+00> : vector<2x8xf32>
    %307 = vector.multi_reduction <add>, %306, %cst_81 [2] : vector<2x8x8xf32> to vector<2x8xf32>
    %308 = vector.shape_cast %307 : vector<2x8xf32> to vector<2x8x1xf32>
    %309 = tpu.reciprocal %308 {approx = true} : vector<2x8x1xf32> -> vector<2x8x1xf32>
    %310 = vector.broadcast %309 : vector<2x8x1xf32> to vector<2x8x8xf32>
    %311 = arith.mulf %306, %310 : vector<2x8x8xf32>
    %312 = arith.truncf %311 : vector<2x8x8xf32> to vector<2x8x8xbf16>
    %313 = vector.extract_strided_slice %298 {offsets = [0, 0, 0], sizes = [2, 8, 8], strides = [1, 1, 1]} : vector<2x8x32xbf16> to vector<2x8x8xbf16>
    "tpu.trace_start"() <{level = 10 : i32, message = "bqk,bkd->bqd"}> : () -> ()
    %cst_82 = arith.constant dense<0.000000e+00> : vector<2x8x8xf32>
    %314 = tpu.matmul %312, %313, %cst_82 {dimension_numbers = #tpu.dot_dimension_numbers<[2], [1], [1], [2], [0, 0, 0, 1, 1, 2], [0], [0]>} : vector<2x8x8xbf16>, vector<2x8x8xbf16>, vector<2x8x8xf32> -> vector<2x8x8xf32>
    "tpu.trace_stop"() : () -> ()
    %315 = vector.extract_strided_slice %296 {offsets = [0, 0, 8], sizes = [2, 8, 8], strides = [1, 1, 1]} : vector<2x8x32xbf16> to vector<2x8x8xbf16>
    %316 = vector.extract_strided_slice %297 {offsets = [0, 0, 8], sizes = [2, 8, 8], strides = [1, 1, 1]} : vector<2x8x32xbf16> to vector<2x8x8xbf16>
    "tpu.trace_start"() <{level = 10 : i32, message = "bqd,bkd->bqk"}> : () -> ()
    %cst_83 = arith.constant dense<0.000000e+00> : vector<2x8x8xf32>
    %317 = tpu.matmul %315, %316, %cst_83 {dimension_numbers = #tpu.dot_dimension_numbers<[2], [2], [1], [1], [0, 0, 0, 1, 1, 1], [0], [0]>} : vector<2x8x8xbf16>, vector<2x8x8xbf16>, vector<2x8x8xf32> -> vector<2x8x8xf32>
    "tpu.trace_stop"() : () -> ()
    %cst_84 = arith.constant dense<0xFF800000> : vector<2x8xf32>
    %318 = vector.multi_reduction <maximumf>, %317, %cst_84 [2] : vector<2x8x8xf32> to vector<2x8xf32>
    %319 = vector.shape_cast %318 : vector<2x8xf32> to vector<2x8x1xf32>
    %320 = vector.broadcast %319 : vector<2x8x1xf32> to vector<2x8x8xf32>
    %321 = arith.subf %317, %320 : vector<2x8x8xf32>
    %322 = math.exp %321 : vector<2x8x8xf32>
    %cst_85 = arith.constant dense<0.000000e+00> : vector<2x8xf32>
    %323 = vector.multi_reduction <add>, %322, %cst_85 [2] : vector<2x8x8xf32> to vector<2x8xf32>
    %324 = vector.shape_cast %323 : vector<2x8xf32> to vector<2x8x1xf32>
    %325 = tpu.reciprocal %324 {approx = true} : vector<2x8x1xf32> -> vector<2x8x1xf32>
    %326 = vector.broadcast %325 : vector<2x8x1xf32> to vector<2x8x8xf32>
    %327 = arith.mulf %322, %326 : vector<2x8x8xf32>
    %328 = arith.truncf %327 : vector<2x8x8xf32> to vector<2x8x8xbf16>
    %329 = vector.extract_strided_slice %298 {offsets = [0, 0, 8], sizes = [2, 8, 8], strides = [1, 1, 1]} : vector<2x8x32xbf16> to vector<2x8x8xbf16>
    "tpu.trace_start"() <{level = 10 : i32, message = "bqk,bkd->bqd"}> : () -> ()
    %cst_86 = arith.constant dense<0.000000e+00> : vector<2x8x8xf32>
    %330 = tpu.matmul %328, %329, %cst_86 {dimension_numbers = #tpu.dot_dimension_numbers<[2], [1], [1], [2], [0, 0, 0, 1, 1, 2], [0], [0]>} : vector<2x8x8xbf16>, vector<2x8x8xbf16>, vector<2x8x8xf32> -> vector<2x8x8xf32>
    "tpu.trace_stop"() : () -> ()
    %331 = vector.extract_strided_slice %296 {offsets = [0, 0, 16], sizes = [2, 8, 8], strides = [1, 1, 1]} : vector<2x8x32xbf16> to vector<2x8x8xbf16>
    %332 = vector.extract_strided_slice %297 {offsets = [0, 0, 16], sizes = [2, 8, 8], strides = [1, 1, 1]} : vector<2x8x32xbf16> to vector<2x8x8xbf16>
    "tpu.trace_start"() <{level = 10 : i32, message = "bqd,bkd->bqk"}> : () -> ()
    %cst_87 = arith.constant dense<0.000000e+00> : vector<2x8x8xf32>
    %333 = tpu.matmul %331, %332, %cst_87 {dimension_numbers = #tpu.dot_dimension_numbers<[2], [2], [1], [1], [0, 0, 0, 1, 1, 1], [0], [0]>} : vector<2x8x8xbf16>, vector<2x8x8xbf16>, vector<2x8x8xf32> -> vector<2x8x8xf32>
    "tpu.trace_stop"() : () -> ()
    %cst_88 = arith.constant dense<0xFF800000> : vector<2x8xf32>
    %334 = vector.multi_reduction <maximumf>, %333, %cst_88 [2] : vector<2x8x8xf32> to vector<2x8xf32>
    %335 = vector.shape_cast %334 : vector<2x8xf32> to vector<2x8x1xf32>
    %336 = vector.broadcast %335 : vector<2x8x1xf32> to vector<2x8x8xf32>
    %337 = arith.subf %333, %336 : vector<2x8x8xf32>
    %338 = math.exp %337 : vector<2x8x8xf32>
    %cst_89 = arith.constant dense<0.000000e+00> : vector<2x8xf32>
    %339 = vector.multi_reduction <add>, %338, %cst_89 [2] : vector<2x8x8xf32> to vector<2x8xf32>
    %340 = vector.shape_cast %339 : vector<2x8xf32> to vector<2x8x1xf32>
    %341 = tpu.reciprocal %340 {approx = true} : vector<2x8x1xf32> -> vector<2x8x1xf32>
    %342 = vector.broadcast %341 : vector<2x8x1xf32> to vector<2x8x8xf32>
    %343 = arith.mulf %338, %342 : vector<2x8x8xf32>
    %344 = arith.truncf %343 : vector<2x8x8xf32> to vector<2x8x8xbf16>
    %345 = vector.extract_strided_slice %298 {offsets = [0, 0, 16], sizes = [2, 8, 8], strides = [1, 1, 1]} : vector<2x8x32xbf16> to vector<2x8x8xbf16>
    "tpu.trace_start"() <{level = 10 : i32, message = "bqk,bkd->bqd"}> : () -> ()
    %cst_90 = arith.constant dense<0.000000e+00> : vector<2x8x8xf32>
    %346 = tpu.matmul %344, %345, %cst_90 {dimension_numbers = #tpu.dot_dimension_numbers<[2], [1], [1], [2], [0, 0, 0, 1, 1, 2], [0], [0]>} : vector<2x8x8xbf16>, vector<2x8x8xbf16>, vector<2x8x8xf32> -> vector<2x8x8xf32>
    "tpu.trace_stop"() : () -> ()
    %347 = vector.extract_strided_slice %296 {offsets = [0, 0, 24], sizes = [2, 8, 8], strides = [1, 1, 1]} : vector<2x8x32xbf16> to vector<2x8x8xbf16>
    %348 = vector.extract_strided_slice %297 {offsets = [0, 0, 24], sizes = [2, 8, 8], strides = [1, 1, 1]} : vector<2x8x32xbf16> to vector<2x8x8xbf16>
    "tpu.trace_start"() <{level = 10 : i32, message = "bqd,bkd->bqk"}> : () -> ()
    %cst_91 = arith.constant dense<0.000000e+00> : vector<2x8x8xf32>
    %349 = tpu.matmul %347, %348, %cst_91 {dimension_numbers = #tpu.dot_dimension_numbers<[2], [2], [1], [1], [0, 0, 0, 1, 1, 1], [0], [0]>} : vector<2x8x8xbf16>, vector<2x8x8xbf16>, vector<2x8x8xf32> -> vector<2x8x8xf32>
    "tpu.trace_stop"() : () -> ()
    %cst_92 = arith.constant dense<0xFF800000> : vector<2x8xf32>
    %350 = vector.multi_reduction <maximumf>, %349, %cst_92 [2] : vector<2x8x8xf32> to vector<2x8xf32>
    %351 = vector.shape_cast %350 : vector<2x8xf32> to vector<2x8x1xf32>
    %352 = vector.broadcast %351 : vector<2x8x1xf32> to vector<2x8x8xf32>
    %353 = arith.subf %349, %352 : vector<2x8x8xf32>
    %354 = math.exp %353 : vector<2x8x8xf32>
    %cst_93 = arith.constant dense<0.000000e+00> : vector<2x8xf32>
    %355 = vector.multi_reduction <add>, %354, %cst_93 [2] : vector<2x8x8xf32> to vector<2x8xf32>
    %356 = vector.shape_cast %355 : vector<2x8xf32> to vector<2x8x1xf32>
    %357 = tpu.reciprocal %356 {approx = true} : vector<2x8x1xf32> -> vector<2x8x1xf32>
    %358 = vector.broadcast %357 : vector<2x8x1xf32> to vector<2x8x8xf32>
    %359 = arith.mulf %354, %358 : vector<2x8x8xf32>
    %360 = arith.truncf %359 : vector<2x8x8xf32> to vector<2x8x8xbf16>
    %361 = vector.extract_strided_slice %298 {offsets = [0, 0, 24], sizes = [2, 8, 8], strides = [1, 1, 1]} : vector<2x8x32xbf16> to vector<2x8x8xbf16>
    "tpu.trace_start"() <{level = 10 : i32, message = "bqk,bkd->bqd"}> : () -> ()
    %cst_94 = arith.constant dense<0.000000e+00> : vector<2x8x8xf32>
    %362 = tpu.matmul %360, %361, %cst_94 {dimension_numbers = #tpu.dot_dimension_numbers<[2], [1], [1], [2], [0, 0, 0, 1, 1, 2], [0], [0]>} : vector<2x8x8xbf16>, vector<2x8x8xbf16>, vector<2x8x8xf32> -> vector<2x8x8xf32>
    "tpu.trace_stop"() : () -> ()
    %363 = tpu.concatenate %314, %330, %346, %362 in 2 : vector<2x8x8xf32>, vector<2x8x8xf32>, vector<2x8x8xf32>, vector<2x8x8xf32> -> vector<2x8x32xf32>
    %364 = arith.addf %200, %363 : vector<2x8x32xf32>
    %365 = vector.shape_cast %364 : vector<2x8x32xf32> to vector<16x32xf32>
    %366 = arith.truncf %365 : vector<16x32xf32> to vector<16x32xbf16>
    %c200 = arith.constant 200 : index
    %c0_95 = arith.constant 0 : index
    %367 = vector.load %arg2[%c200, %c0_95] : memref<456x96xbf16, #tpu.memory_space<vmem>>, vector<32x32xbf16>
    %cst_96 = arith.constant dense<0.000000e+00> : vector<16x32xf32>
    %368 = tpu.matmul %366, %367, %cst_96 {dimension_numbers = #tpu.dot_dimension_numbers<[1], [0], [0], [1], [0, 0, 1, 1], [], []>} : vector<16x32xbf16>, vector<32x32xbf16>, vector<16x32xf32> -> vector<16x32xf32>
    %c7 = arith.constant 7 : index
    %c0_97 = arith.constant 0 : index
    %369 = vector.load %arg3[%c7, %c0_97] : memref<15x96xf32, #tpu.memory_space<vmem>>, vector<1x32xf32>
    %370 = vector.broadcast %369 : vector<1x32xf32> to vector<16x32xf32>
    %371 = arith.addf %368, %370 : vector<16x32xf32>
    %cst_98 = arith.constant 0.000000e+00 : f32
    %372 = vector.broadcast %cst_98 : f32 to vector<16x32xf32>
    %373 = arith.maximumf %371, %372 : vector<16x32xf32>
    %374 = arith.addf %365, %373 : vector<16x32xf32>
    %375 = vector.shape_cast %374 : vector<16x32xf32> to vector<2x8x32xf32>
    %376 = vector.shape_cast %375 : vector<2x8x32xf32> to vector<16x32xf32>
    %377 = arith.truncf %376 : vector<16x32xf32> to vector<16x32xbf16>
    %c232 = arith.constant 232 : index
    %c0_99 = arith.constant 0 : index
    %378 = vector.load %arg2[%c232, %c0_99] : memref<456x96xbf16, #tpu.memory_space<vmem>>, vector<32x64xbf16>
    %cst_100 = arith.constant dense<0.000000e+00> : vector<16x64xf32>
    %379 = tpu.matmul %377, %378, %cst_100 {dimension_numbers = #tpu.dot_dimension_numbers<[1], [0], [0], [1], [0, 0, 1, 1], [], []>} : vector<16x32xbf16>, vector<32x64xbf16>, vector<16x64xf32> -> vector<16x64xf32>
    %c8_101 = arith.constant 8 : index
    %c0_102 = arith.constant 0 : index
    %380 = vector.load %arg3[%c8_101, %c0_102] : memref<15x96xf32, #tpu.memory_space<vmem>>, vector<1x64xf32>
    %381 = vector.broadcast %380 : vector<1x64xf32> to vector<16x64xf32>
    %382 = arith.addf %379, %381 : vector<16x64xf32>
    %383 = vector.extract_strided_slice %382 {offsets = [0, 0], sizes = [16, 32], strides = [1, 1]} : vector<16x64xf32> to vector<16x32xf32>
    %384 = vector.shape_cast %383 : vector<16x32xf32> to vector<2x8x32xf32>
    %385 = vector.extract_strided_slice %382 {offsets = [0, 32], sizes = [16, 32], strides = [1, 1]} : vector<16x64xf32> to vector<16x32xf32>
    %386 = vector.shape_cast %385 : vector<16x32xf32> to vector<2x8x32xf32>
    %c16 = arith.constant 16 : index
    %c0_103 = arith.constant 0 : index
    %387 = vector.load %arg4[%c16, %c0_103] : memref<24x32xf32, #tpu.memory_space<vmem>>, vector<2x32xf32>
    %388 = vector.shape_cast %387 : vector<2x32xf32> to vector<1x2x32xf32>
    %389 = vector.shape_cast %388 : vector<1x2x32xf32> to vector<1x2x32xf32>
    %390 = vector.broadcast %389 : vector<1x2x32xf32> to vector<2x2x32xf32>
    %391 = arith.truncf %390 : vector<2x2x32xf32> to vector<2x2x32xbf16>
    %392 = arith.truncf %384 : vector<2x8x32xf32> to vector<2x8x32xbf16>
    %393 = arith.truncf %386 : vector<2x8x32xf32> to vector<2x8x32xbf16>
    %394 = vector.extract_strided_slice %391 {offsets = [0, 0, 0], sizes = [2, 2, 8], strides = [1, 1, 1]} : vector<2x2x32xbf16> to vector<2x2x8xbf16>
    %395 = vector.extract_strided_slice %392 {offsets = [0, 0, 0], sizes = [2, 8, 8], strides = [1, 1, 1]} : vector<2x8x32xbf16> to vector<2x8x8xbf16>
    "tpu.trace_start"() <{level = 10 : i32, message = "bqd,bkd->bqk"}> : () -> ()
    %cst_104 = arith.constant dense<0.000000e+00> : vector<2x2x8xf32>
    %396 = tpu.matmul %394, %395, %cst_104 {dimension_numbers = #tpu.dot_dimension_numbers<[2], [2], [1], [1], [0, 0, 0, 1, 1, 1], [0], [0]>} : vector<2x2x8xbf16>, vector<2x8x8xbf16>, vector<2x2x8xf32> -> vector<2x2x8xf32>
    "tpu.trace_stop"() : () -> ()
    %cst_105 = arith.constant dense<0xFF800000> : vector<2x2xf32>
    %397 = vector.multi_reduction <maximumf>, %396, %cst_105 [2] : vector<2x2x8xf32> to vector<2x2xf32>
    %398 = vector.shape_cast %397 : vector<2x2xf32> to vector<2x2x1xf32>
    %399 = vector.broadcast %398 : vector<2x2x1xf32> to vector<2x2x8xf32>
    %400 = arith.subf %396, %399 : vector<2x2x8xf32>
    %401 = math.exp %400 : vector<2x2x8xf32>
    %cst_106 = arith.constant dense<0.000000e+00> : vector<2x2xf32>
    %402 = vector.multi_reduction <add>, %401, %cst_106 [2] : vector<2x2x8xf32> to vector<2x2xf32>
    %403 = vector.shape_cast %402 : vector<2x2xf32> to vector<2x2x1xf32>
    %404 = tpu.reciprocal %403 {approx = true} : vector<2x2x1xf32> -> vector<2x2x1xf32>
    %405 = vector.broadcast %404 : vector<2x2x1xf32> to vector<2x2x8xf32>
    %406 = arith.mulf %401, %405 : vector<2x2x8xf32>
    %407 = arith.truncf %406 : vector<2x2x8xf32> to vector<2x2x8xbf16>
    %408 = vector.extract_strided_slice %393 {offsets = [0, 0, 0], sizes = [2, 8, 8], strides = [1, 1, 1]} : vector<2x8x32xbf16> to vector<2x8x8xbf16>
    "tpu.trace_start"() <{level = 10 : i32, message = "bqk,bkd->bqd"}> : () -> ()
    %cst_107 = arith.constant dense<0.000000e+00> : vector<2x2x8xf32>
    %409 = tpu.matmul %407, %408, %cst_107 {dimension_numbers = #tpu.dot_dimension_numbers<[2], [1], [1], [2], [0, 0, 0, 1, 1, 2], [0], [0]>} : vector<2x2x8xbf16>, vector<2x8x8xbf16>, vector<2x2x8xf32> -> vector<2x2x8xf32>
    "tpu.trace_stop"() : () -> ()
    %410 = vector.extract_strided_slice %391 {offsets = [0, 0, 8], sizes = [2, 2, 8], strides = [1, 1, 1]} : vector<2x2x32xbf16> to vector<2x2x8xbf16>
    %411 = vector.extract_strided_slice %392 {offsets = [0, 0, 8], sizes = [2, 8, 8], strides = [1, 1, 1]} : vector<2x8x32xbf16> to vector<2x8x8xbf16>
    "tpu.trace_start"() <{level = 10 : i32, message = "bqd,bkd->bqk"}> : () -> ()
    %cst_108 = arith.constant dense<0.000000e+00> : vector<2x2x8xf32>
    %412 = tpu.matmul %410, %411, %cst_108 {dimension_numbers = #tpu.dot_dimension_numbers<[2], [2], [1], [1], [0, 0, 0, 1, 1, 1], [0], [0]>} : vector<2x2x8xbf16>, vector<2x8x8xbf16>, vector<2x2x8xf32> -> vector<2x2x8xf32>
    "tpu.trace_stop"() : () -> ()
    %cst_109 = arith.constant dense<0xFF800000> : vector<2x2xf32>
    %413 = vector.multi_reduction <maximumf>, %412, %cst_109 [2] : vector<2x2x8xf32> to vector<2x2xf32>
    %414 = vector.shape_cast %413 : vector<2x2xf32> to vector<2x2x1xf32>
    %415 = vector.broadcast %414 : vector<2x2x1xf32> to vector<2x2x8xf32>
    %416 = arith.subf %412, %415 : vector<2x2x8xf32>
    %417 = math.exp %416 : vector<2x2x8xf32>
    %cst_110 = arith.constant dense<0.000000e+00> : vector<2x2xf32>
    %418 = vector.multi_reduction <add>, %417, %cst_110 [2] : vector<2x2x8xf32> to vector<2x2xf32>
    %419 = vector.shape_cast %418 : vector<2x2xf32> to vector<2x2x1xf32>
    %420 = tpu.reciprocal %419 {approx = true} : vector<2x2x1xf32> -> vector<2x2x1xf32>
    %421 = vector.broadcast %420 : vector<2x2x1xf32> to vector<2x2x8xf32>
    %422 = arith.mulf %417, %421 : vector<2x2x8xf32>
    %423 = arith.truncf %422 : vector<2x2x8xf32> to vector<2x2x8xbf16>
    %424 = vector.extract_strided_slice %393 {offsets = [0, 0, 8], sizes = [2, 8, 8], strides = [1, 1, 1]} : vector<2x8x32xbf16> to vector<2x8x8xbf16>
    "tpu.trace_start"() <{level = 10 : i32, message = "bqk,bkd->bqd"}> : () -> ()
    %cst_111 = arith.constant dense<0.000000e+00> : vector<2x2x8xf32>
    %425 = tpu.matmul %423, %424, %cst_111 {dimension_numbers = #tpu.dot_dimension_numbers<[2], [1], [1], [2], [0, 0, 0, 1, 1, 2], [0], [0]>} : vector<2x2x8xbf16>, vector<2x8x8xbf16>, vector<2x2x8xf32> -> vector<2x2x8xf32>
    "tpu.trace_stop"() : () -> ()
    %426 = vector.extract_strided_slice %391 {offsets = [0, 0, 16], sizes = [2, 2, 8], strides = [1, 1, 1]} : vector<2x2x32xbf16> to vector<2x2x8xbf16>
    %427 = vector.extract_strided_slice %392 {offsets = [0, 0, 16], sizes = [2, 8, 8], strides = [1, 1, 1]} : vector<2x8x32xbf16> to vector<2x8x8xbf16>
    "tpu.trace_start"() <{level = 10 : i32, message = "bqd,bkd->bqk"}> : () -> ()
    %cst_112 = arith.constant dense<0.000000e+00> : vector<2x2x8xf32>
    %428 = tpu.matmul %426, %427, %cst_112 {dimension_numbers = #tpu.dot_dimension_numbers<[2], [2], [1], [1], [0, 0, 0, 1, 1, 1], [0], [0]>} : vector<2x2x8xbf16>, vector<2x8x8xbf16>, vector<2x2x8xf32> -> vector<2x2x8xf32>
    "tpu.trace_stop"() : () -> ()
    %cst_113 = arith.constant dense<0xFF800000> : vector<2x2xf32>
    %429 = vector.multi_reduction <maximumf>, %428, %cst_113 [2] : vector<2x2x8xf32> to vector<2x2xf32>
    %430 = vector.shape_cast %429 : vector<2x2xf32> to vector<2x2x1xf32>
    %431 = vector.broadcast %430 : vector<2x2x1xf32> to vector<2x2x8xf32>
    %432 = arith.subf %428, %431 : vector<2x2x8xf32>
    %433 = math.exp %432 : vector<2x2x8xf32>
    %cst_114 = arith.constant dense<0.000000e+00> : vector<2x2xf32>
    %434 = vector.multi_reduction <add>, %433, %cst_114 [2] : vector<2x2x8xf32> to vector<2x2xf32>
    %435 = vector.shape_cast %434 : vector<2x2xf32> to vector<2x2x1xf32>
    %436 = tpu.reciprocal %435 {approx = true} : vector<2x2x1xf32> -> vector<2x2x1xf32>
    %437 = vector.broadcast %436 : vector<2x2x1xf32> to vector<2x2x8xf32>
    %438 = arith.mulf %433, %437 : vector<2x2x8xf32>
    %439 = arith.truncf %438 : vector<2x2x8xf32> to vector<2x2x8xbf16>
    %440 = vector.extract_strided_slice %393 {offsets = [0, 0, 16], sizes = [2, 8, 8], strides = [1, 1, 1]} : vector<2x8x32xbf16> to vector<2x8x8xbf16>
    "tpu.trace_start"() <{level = 10 : i32, message = "bqk,bkd->bqd"}> : () -> ()
    %cst_115 = arith.constant dense<0.000000e+00> : vector<2x2x8xf32>
    %441 = tpu.matmul %439, %440, %cst_115 {dimension_numbers = #tpu.dot_dimension_numbers<[2], [1], [1], [2], [0, 0, 0, 1, 1, 2], [0], [0]>} : vector<2x2x8xbf16>, vector<2x8x8xbf16>, vector<2x2x8xf32> -> vector<2x2x8xf32>
    "tpu.trace_stop"() : () -> ()
    %442 = vector.extract_strided_slice %391 {offsets = [0, 0, 24], sizes = [2, 2, 8], strides = [1, 1, 1]} : vector<2x2x32xbf16> to vector<2x2x8xbf16>
    %443 = vector.extract_strided_slice %392 {offsets = [0, 0, 24], sizes = [2, 8, 8], strides = [1, 1, 1]} : vector<2x8x32xbf16> to vector<2x8x8xbf16>
    "tpu.trace_start"() <{level = 10 : i32, message = "bqd,bkd->bqk"}> : () -> ()
    %cst_116 = arith.constant dense<0.000000e+00> : vector<2x2x8xf32>
    %444 = tpu.matmul %442, %443, %cst_116 {dimension_numbers = #tpu.dot_dimension_numbers<[2], [2], [1], [1], [0, 0, 0, 1, 1, 1], [0], [0]>} : vector<2x2x8xbf16>, vector<2x8x8xbf16>, vector<2x2x8xf32> -> vector<2x2x8xf32>
    "tpu.trace_stop"() : () -> ()
    %cst_117 = arith.constant dense<0xFF800000> : vector<2x2xf32>
    %445 = vector.multi_reduction <maximumf>, %444, %cst_117 [2] : vector<2x2x8xf32> to vector<2x2xf32>
    %446 = vector.shape_cast %445 : vector<2x2xf32> to vector<2x2x1xf32>
    %447 = vector.broadcast %446 : vector<2x2x1xf32> to vector<2x2x8xf32>
    %448 = arith.subf %444, %447 : vector<2x2x8xf32>
    %449 = math.exp %448 : vector<2x2x8xf32>
    %cst_118 = arith.constant dense<0.000000e+00> : vector<2x2xf32>
    %450 = vector.multi_reduction <add>, %449, %cst_118 [2] : vector<2x2x8xf32> to vector<2x2xf32>
    %451 = vector.shape_cast %450 : vector<2x2xf32> to vector<2x2x1xf32>
    %452 = tpu.reciprocal %451 {approx = true} : vector<2x2x1xf32> -> vector<2x2x1xf32>
    %453 = vector.broadcast %452 : vector<2x2x1xf32> to vector<2x2x8xf32>
    %454 = arith.mulf %449, %453 : vector<2x2x8xf32>
    %455 = arith.truncf %454 : vector<2x2x8xf32> to vector<2x2x8xbf16>
    %456 = vector.extract_strided_slice %393 {offsets = [0, 0, 24], sizes = [2, 8, 8], strides = [1, 1, 1]} : vector<2x8x32xbf16> to vector<2x8x8xbf16>
    "tpu.trace_start"() <{level = 10 : i32, message = "bqk,bkd->bqd"}> : () -> ()
    %cst_119 = arith.constant dense<0.000000e+00> : vector<2x2x8xf32>
    %457 = tpu.matmul %455, %456, %cst_119 {dimension_numbers = #tpu.dot_dimension_numbers<[2], [1], [1], [2], [0, 0, 0, 1, 1, 2], [0], [0]>} : vector<2x2x8xbf16>, vector<2x8x8xbf16>, vector<2x2x8xf32> -> vector<2x2x8xf32>
    "tpu.trace_stop"() : () -> ()
    %458 = tpu.concatenate %409, %425, %441, %457 in 2 : vector<2x2x8xf32>, vector<2x2x8xf32>, vector<2x2x8xf32>, vector<2x2x8xf32> -> vector<2x2x32xf32>
    %459 = arith.addf %390, %458 : vector<2x2x32xf32>
    %460 = vector.shape_cast %459 : vector<2x2x32xf32> to vector<4x32xf32>
    %461 = arith.truncf %460 : vector<4x32xf32> to vector<4x32xbf16>
    %c264 = arith.constant 264 : index
    %c0_120 = arith.constant 0 : index
    %462 = vector.load %arg2[%c264, %c0_120] : memref<456x96xbf16, #tpu.memory_space<vmem>>, vector<32x32xbf16>
    %cst_121 = arith.constant dense<0.000000e+00> : vector<4x32xf32>
    %463 = tpu.matmul %461, %462, %cst_121 {dimension_numbers = #tpu.dot_dimension_numbers<[1], [0], [0], [1], [0, 0, 1, 1], [], []>} : vector<4x32xbf16>, vector<32x32xbf16>, vector<4x32xf32> -> vector<4x32xf32>
    %c9 = arith.constant 9 : index
    %c0_122 = arith.constant 0 : index
    %464 = vector.load %arg3[%c9, %c0_122] : memref<15x96xf32, #tpu.memory_space<vmem>>, vector<1x32xf32>
    %465 = vector.broadcast %464 : vector<1x32xf32> to vector<4x32xf32>
    %466 = arith.addf %463, %465 : vector<4x32xf32>
    %cst_123 = arith.constant 0.000000e+00 : f32
    %467 = vector.broadcast %cst_123 : f32 to vector<4x32xf32>
    %468 = arith.maximumf %466, %467 : vector<4x32xf32>
    %469 = arith.addf %460, %468 : vector<4x32xf32>
    %470 = vector.shape_cast %469 : vector<4x32xf32> to vector<2x2x32xf32>
    %471 = vector.shape_cast %470 : vector<2x2x32xf32> to vector<4x32xf32>
    %472 = arith.truncf %471 : vector<4x32xf32> to vector<4x32xbf16>
    %c296 = arith.constant 296 : index
    %c0_124 = arith.constant 0 : index
    %473 = vector.load %arg2[%c296, %c0_124] : memref<456x96xbf16, #tpu.memory_space<vmem>>, vector<32x96xbf16>
    %cst_125 = arith.constant dense<0.000000e+00> : vector<4x96xf32>
    %474 = tpu.matmul %472, %473, %cst_125 {dimension_numbers = #tpu.dot_dimension_numbers<[1], [0], [0], [1], [0, 0, 1, 1], [], []>} : vector<4x32xbf16>, vector<32x96xbf16>, vector<4x96xf32> -> vector<4x96xf32>
    %c10 = arith.constant 10 : index
    %c0_126 = arith.constant 0 : index
    %475 = vector.load %arg3[%c10, %c0_126] : memref<15x96xf32, #tpu.memory_space<vmem>>, vector<1x96xf32>
    %476 = vector.broadcast %475 : vector<1x96xf32> to vector<4x96xf32>
    %477 = arith.addf %474, %476 : vector<4x96xf32>
    %478 = vector.extract_strided_slice %477 {offsets = [0, 0], sizes = [4, 32], strides = [1, 1]} : vector<4x96xf32> to vector<4x32xf32>
    %479 = vector.shape_cast %478 : vector<4x32xf32> to vector<2x2x32xf32>
    %480 = vector.extract_strided_slice %477 {offsets = [0, 32], sizes = [4, 32], strides = [1, 1]} : vector<4x96xf32> to vector<4x32xf32>
    %481 = vector.shape_cast %480 : vector<4x32xf32> to vector<2x2x32xf32>
    %482 = vector.extract_strided_slice %477 {offsets = [0, 64], sizes = [4, 32], strides = [1, 1]} : vector<4x96xf32> to vector<4x32xf32>
    %483 = vector.shape_cast %482 : vector<4x32xf32> to vector<2x2x32xf32>
    %484 = arith.truncf %479 : vector<2x2x32xf32> to vector<2x2x32xbf16>
    %485 = arith.truncf %481 : vector<2x2x32xf32> to vector<2x2x32xbf16>
    %486 = arith.truncf %483 : vector<2x2x32xf32> to vector<2x2x32xbf16>
    %487 = vector.extract_strided_slice %484 {offsets = [0, 0, 0], sizes = [2, 2, 8], strides = [1, 1, 1]} : vector<2x2x32xbf16> to vector<2x2x8xbf16>
    %488 = vector.extract_strided_slice %485 {offsets = [0, 0, 0], sizes = [2, 2, 8], strides = [1, 1, 1]} : vector<2x2x32xbf16> to vector<2x2x8xbf16>
    "tpu.trace_start"() <{level = 10 : i32, message = "bqd,bkd->bqk"}> : () -> ()
    %cst_127 = arith.constant dense<0.000000e+00> : vector<2x2x2xf32>
    %489 = tpu.matmul %487, %488, %cst_127 {dimension_numbers = #tpu.dot_dimension_numbers<[2], [2], [1], [1], [0, 0, 0, 1, 1, 1], [0], [0]>} : vector<2x2x8xbf16>, vector<2x2x8xbf16>, vector<2x2x2xf32> -> vector<2x2x2xf32>
    "tpu.trace_stop"() : () -> ()
    %cst_128 = arith.constant dense<0xFF800000> : vector<2x2xf32>
    %490 = vector.multi_reduction <maximumf>, %489, %cst_128 [2] : vector<2x2x2xf32> to vector<2x2xf32>
    %491 = vector.shape_cast %490 : vector<2x2xf32> to vector<2x2x1xf32>
    %492 = vector.broadcast %491 : vector<2x2x1xf32> to vector<2x2x2xf32>
    %493 = arith.subf %489, %492 : vector<2x2x2xf32>
    %494 = math.exp %493 : vector<2x2x2xf32>
    %cst_129 = arith.constant dense<0.000000e+00> : vector<2x2xf32>
    %495 = vector.multi_reduction <add>, %494, %cst_129 [2] : vector<2x2x2xf32> to vector<2x2xf32>
    %496 = vector.shape_cast %495 : vector<2x2xf32> to vector<2x2x1xf32>
    %497 = tpu.reciprocal %496 {approx = true} : vector<2x2x1xf32> -> vector<2x2x1xf32>
    %498 = vector.broadcast %497 : vector<2x2x1xf32> to vector<2x2x2xf32>
    %499 = arith.mulf %494, %498 : vector<2x2x2xf32>
    %500 = arith.truncf %499 : vector<2x2x2xf32> to vector<2x2x2xbf16>
    %501 = vector.extract_strided_slice %486 {offsets = [0, 0, 0], sizes = [2, 2, 8], strides = [1, 1, 1]} : vector<2x2x32xbf16> to vector<2x2x8xbf16>
    "tpu.trace_start"() <{level = 10 : i32, message = "bqk,bkd->bqd"}> : () -> ()
    %cst_130 = arith.constant dense<0.000000e+00> : vector<2x2x8xf32>
    %502 = tpu.matmul %500, %501, %cst_130 {dimension_numbers = #tpu.dot_dimension_numbers<[2], [1], [1], [2], [0, 0, 0, 1, 1, 2], [0], [0]>} : vector<2x2x2xbf16>, vector<2x2x8xbf16>, vector<2x2x8xf32> -> vector<2x2x8xf32>
    "tpu.trace_stop"() : () -> ()
    %503 = vector.extract_strided_slice %484 {offsets = [0, 0, 8], sizes = [2, 2, 8], strides = [1, 1, 1]} : vector<2x2x32xbf16> to vector<2x2x8xbf16>
    %504 = vector.extract_strided_slice %485 {offsets = [0, 0, 8], sizes = [2, 2, 8], strides = [1, 1, 1]} : vector<2x2x32xbf16> to vector<2x2x8xbf16>
    "tpu.trace_start"() <{level = 10 : i32, message = "bqd,bkd->bqk"}> : () -> ()
    %cst_131 = arith.constant dense<0.000000e+00> : vector<2x2x2xf32>
    %505 = tpu.matmul %503, %504, %cst_131 {dimension_numbers = #tpu.dot_dimension_numbers<[2], [2], [1], [1], [0, 0, 0, 1, 1, 1], [0], [0]>} : vector<2x2x8xbf16>, vector<2x2x8xbf16>, vector<2x2x2xf32> -> vector<2x2x2xf32>
    "tpu.trace_stop"() : () -> ()
    %cst_132 = arith.constant dense<0xFF800000> : vector<2x2xf32>
    %506 = vector.multi_reduction <maximumf>, %505, %cst_132 [2] : vector<2x2x2xf32> to vector<2x2xf32>
    %507 = vector.shape_cast %506 : vector<2x2xf32> to vector<2x2x1xf32>
    %508 = vector.broadcast %507 : vector<2x2x1xf32> to vector<2x2x2xf32>
    %509 = arith.subf %505, %508 : vector<2x2x2xf32>
    %510 = math.exp %509 : vector<2x2x2xf32>
    %cst_133 = arith.constant dense<0.000000e+00> : vector<2x2xf32>
    %511 = vector.multi_reduction <add>, %510, %cst_133 [2] : vector<2x2x2xf32> to vector<2x2xf32>
    %512 = vector.shape_cast %511 : vector<2x2xf32> to vector<2x2x1xf32>
    %513 = tpu.reciprocal %512 {approx = true} : vector<2x2x1xf32> -> vector<2x2x1xf32>
    %514 = vector.broadcast %513 : vector<2x2x1xf32> to vector<2x2x2xf32>
    %515 = arith.mulf %510, %514 : vector<2x2x2xf32>
    %516 = arith.truncf %515 : vector<2x2x2xf32> to vector<2x2x2xbf16>
    %517 = vector.extract_strided_slice %486 {offsets = [0, 0, 8], sizes = [2, 2, 8], strides = [1, 1, 1]} : vector<2x2x32xbf16> to vector<2x2x8xbf16>
    "tpu.trace_start"() <{level = 10 : i32, message = "bqk,bkd->bqd"}> : () -> ()
    %cst_134 = arith.constant dense<0.000000e+00> : vector<2x2x8xf32>
    %518 = tpu.matmul %516, %517, %cst_134 {dimension_numbers = #tpu.dot_dimension_numbers<[2], [1], [1], [2], [0, 0, 0, 1, 1, 2], [0], [0]>} : vector<2x2x2xbf16>, vector<2x2x8xbf16>, vector<2x2x8xf32> -> vector<2x2x8xf32>
    "tpu.trace_stop"() : () -> ()
    %519 = vector.extract_strided_slice %484 {offsets = [0, 0, 16], sizes = [2, 2, 8], strides = [1, 1, 1]} : vector<2x2x32xbf16> to vector<2x2x8xbf16>
    %520 = vector.extract_strided_slice %485 {offsets = [0, 0, 16], sizes = [2, 2, 8], strides = [1, 1, 1]} : vector<2x2x32xbf16> to vector<2x2x8xbf16>
    "tpu.trace_start"() <{level = 10 : i32, message = "bqd,bkd->bqk"}> : () -> ()
    %cst_135 = arith.constant dense<0.000000e+00> : vector<2x2x2xf32>
    %521 = tpu.matmul %519, %520, %cst_135 {dimension_numbers = #tpu.dot_dimension_numbers<[2], [2], [1], [1], [0, 0, 0, 1, 1, 1], [0], [0]>} : vector<2x2x8xbf16>, vector<2x2x8xbf16>, vector<2x2x2xf32> -> vector<2x2x2xf32>
    "tpu.trace_stop"() : () -> ()
    %cst_136 = arith.constant dense<0xFF800000> : vector<2x2xf32>
    %522 = vector.multi_reduction <maximumf>, %521, %cst_136 [2] : vector<2x2x2xf32> to vector<2x2xf32>
    %523 = vector.shape_cast %522 : vector<2x2xf32> to vector<2x2x1xf32>
    %524 = vector.broadcast %523 : vector<2x2x1xf32> to vector<2x2x2xf32>
    %525 = arith.subf %521, %524 : vector<2x2x2xf32>
    %526 = math.exp %525 : vector<2x2x2xf32>
    %cst_137 = arith.constant dense<0.000000e+00> : vector<2x2xf32>
    %527 = vector.multi_reduction <add>, %526, %cst_137 [2] : vector<2x2x2xf32> to vector<2x2xf32>
    %528 = vector.shape_cast %527 : vector<2x2xf32> to vector<2x2x1xf32>
    %529 = tpu.reciprocal %528 {approx = true} : vector<2x2x1xf32> -> vector<2x2x1xf32>
    %530 = vector.broadcast %529 : vector<2x2x1xf32> to vector<2x2x2xf32>
    %531 = arith.mulf %526, %530 : vector<2x2x2xf32>
    %532 = arith.truncf %531 : vector<2x2x2xf32> to vector<2x2x2xbf16>
    %533 = vector.extract_strided_slice %486 {offsets = [0, 0, 16], sizes = [2, 2, 8], strides = [1, 1, 1]} : vector<2x2x32xbf16> to vector<2x2x8xbf16>
    "tpu.trace_start"() <{level = 10 : i32, message = "bqk,bkd->bqd"}> : () -> ()
    %cst_138 = arith.constant dense<0.000000e+00> : vector<2x2x8xf32>
    %534 = tpu.matmul %532, %533, %cst_138 {dimension_numbers = #tpu.dot_dimension_numbers<[2], [1], [1], [2], [0, 0, 0, 1, 1, 2], [0], [0]>} : vector<2x2x2xbf16>, vector<2x2x8xbf16>, vector<2x2x8xf32> -> vector<2x2x8xf32>
    "tpu.trace_stop"() : () -> ()
    %535 = vector.extract_strided_slice %484 {offsets = [0, 0, 24], sizes = [2, 2, 8], strides = [1, 1, 1]} : vector<2x2x32xbf16> to vector<2x2x8xbf16>
    %536 = vector.extract_strided_slice %485 {offsets = [0, 0, 24], sizes = [2, 2, 8], strides = [1, 1, 1]} : vector<2x2x32xbf16> to vector<2x2x8xbf16>
    "tpu.trace_start"() <{level = 10 : i32, message = "bqd,bkd->bqk"}> : () -> ()
    %cst_139 = arith.constant dense<0.000000e+00> : vector<2x2x2xf32>
    %537 = tpu.matmul %535, %536, %cst_139 {dimension_numbers = #tpu.dot_dimension_numbers<[2], [2], [1], [1], [0, 0, 0, 1, 1, 1], [0], [0]>} : vector<2x2x8xbf16>, vector<2x2x8xbf16>, vector<2x2x2xf32> -> vector<2x2x2xf32>
    "tpu.trace_stop"() : () -> ()
    %cst_140 = arith.constant dense<0xFF800000> : vector<2x2xf32>
    %538 = vector.multi_reduction <maximumf>, %537, %cst_140 [2] : vector<2x2x2xf32> to vector<2x2xf32>
    %539 = vector.shape_cast %538 : vector<2x2xf32> to vector<2x2x1xf32>
    %540 = vector.broadcast %539 : vector<2x2x1xf32> to vector<2x2x2xf32>
    %541 = arith.subf %537, %540 : vector<2x2x2xf32>
    %542 = math.exp %541 : vector<2x2x2xf32>
    %cst_141 = arith.constant dense<0.000000e+00> : vector<2x2xf32>
    %543 = vector.multi_reduction <add>, %542, %cst_141 [2] : vector<2x2x2xf32> to vector<2x2xf32>
    %544 = vector.shape_cast %543 : vector<2x2xf32> to vector<2x2x1xf32>
    %545 = tpu.reciprocal %544 {approx = true} : vector<2x2x1xf32> -> vector<2x2x1xf32>
    %546 = vector.broadcast %545 : vector<2x2x1xf32> to vector<2x2x2xf32>
    %547 = arith.mulf %542, %546 : vector<2x2x2xf32>
    %548 = arith.truncf %547 : vector<2x2x2xf32> to vector<2x2x2xbf16>
    %549 = vector.extract_strided_slice %486 {offsets = [0, 0, 24], sizes = [2, 2, 8], strides = [1, 1, 1]} : vector<2x2x32xbf16> to vector<2x2x8xbf16>
    "tpu.trace_start"() <{level = 10 : i32, message = "bqk,bkd->bqd"}> : () -> ()
    %cst_142 = arith.constant dense<0.000000e+00> : vector<2x2x8xf32>
    %550 = tpu.matmul %548, %549, %cst_142 {dimension_numbers = #tpu.dot_dimension_numbers<[2], [1], [1], [2], [0, 0, 0, 1, 1, 2], [0], [0]>} : vector<2x2x2xbf16>, vector<2x2x8xbf16>, vector<2x2x8xf32> -> vector<2x2x8xf32>
    "tpu.trace_stop"() : () -> ()
    %551 = tpu.concatenate %502, %518, %534, %550 in 2 : vector<2x2x8xf32>, vector<2x2x8xf32>, vector<2x2x8xf32>, vector<2x2x8xf32> -> vector<2x2x32xf32>
    %552 = arith.addf %479, %551 : vector<2x2x32xf32>
    %553 = vector.shape_cast %552 : vector<2x2x32xf32> to vector<4x32xf32>
    %554 = arith.truncf %553 : vector<4x32xf32> to vector<4x32xbf16>
    %c328 = arith.constant 328 : index
    %c0_143 = arith.constant 0 : index
    %555 = vector.load %arg2[%c328, %c0_143] : memref<456x96xbf16, #tpu.memory_space<vmem>>, vector<32x32xbf16>
    %cst_144 = arith.constant dense<0.000000e+00> : vector<4x32xf32>
    %556 = tpu.matmul %554, %555, %cst_144 {dimension_numbers = #tpu.dot_dimension_numbers<[1], [0], [0], [1], [0, 0, 1, 1], [], []>} : vector<4x32xbf16>, vector<32x32xbf16>, vector<4x32xf32> -> vector<4x32xf32>
    %c11 = arith.constant 11 : index
    %c0_145 = arith.constant 0 : index
    %557 = vector.load %arg3[%c11, %c0_145] : memref<15x96xf32, #tpu.memory_space<vmem>>, vector<1x32xf32>
    %558 = vector.broadcast %557 : vector<1x32xf32> to vector<4x32xf32>
    %559 = arith.addf %556, %558 : vector<4x32xf32>
    %cst_146 = arith.constant 0.000000e+00 : f32
    %560 = vector.broadcast %cst_146 : f32 to vector<4x32xf32>
    %561 = arith.maximumf %559, %560 : vector<4x32xf32>
    %562 = arith.addf %553, %561 : vector<4x32xf32>
    %563 = vector.shape_cast %562 : vector<4x32xf32> to vector<2x2x32xf32>
    %564 = vector.shape_cast %563 : vector<2x2x32xf32> to vector<4x32xf32>
    %565 = arith.truncf %564 : vector<4x32xf32> to vector<4x32xbf16>
    %c360 = arith.constant 360 : index
    %c0_147 = arith.constant 0 : index
    %566 = vector.load %arg2[%c360, %c0_147] : memref<456x96xbf16, #tpu.memory_space<vmem>>, vector<32x96xbf16>
    %cst_148 = arith.constant dense<0.000000e+00> : vector<4x96xf32>
    %567 = tpu.matmul %565, %566, %cst_148 {dimension_numbers = #tpu.dot_dimension_numbers<[1], [0], [0], [1], [0, 0, 1, 1], [], []>} : vector<4x32xbf16>, vector<32x96xbf16>, vector<4x96xf32> -> vector<4x96xf32>
    %c12 = arith.constant 12 : index
    %c0_149 = arith.constant 0 : index
    %568 = vector.load %arg3[%c12, %c0_149] : memref<15x96xf32, #tpu.memory_space<vmem>>, vector<1x96xf32>
    %569 = vector.broadcast %568 : vector<1x96xf32> to vector<4x96xf32>
    %570 = arith.addf %567, %569 : vector<4x96xf32>
    %571 = vector.extract_strided_slice %570 {offsets = [0, 0], sizes = [4, 32], strides = [1, 1]} : vector<4x96xf32> to vector<4x32xf32>
    %572 = vector.shape_cast %571 : vector<4x32xf32> to vector<2x2x32xf32>
    %573 = vector.extract_strided_slice %570 {offsets = [0, 32], sizes = [4, 32], strides = [1, 1]} : vector<4x96xf32> to vector<4x32xf32>
    %574 = vector.shape_cast %573 : vector<4x32xf32> to vector<2x2x32xf32>
    %575 = vector.extract_strided_slice %570 {offsets = [0, 64], sizes = [4, 32], strides = [1, 1]} : vector<4x96xf32> to vector<4x32xf32>
    %576 = vector.shape_cast %575 : vector<4x32xf32> to vector<2x2x32xf32>
    %577 = arith.truncf %572 : vector<2x2x32xf32> to vector<2x2x32xbf16>
    %578 = arith.truncf %574 : vector<2x2x32xf32> to vector<2x2x32xbf16>
    %579 = arith.truncf %576 : vector<2x2x32xf32> to vector<2x2x32xbf16>
    %580 = vector.extract_strided_slice %577 {offsets = [0, 0, 0], sizes = [2, 2, 8], strides = [1, 1, 1]} : vector<2x2x32xbf16> to vector<2x2x8xbf16>
    %581 = vector.extract_strided_slice %578 {offsets = [0, 0, 0], sizes = [2, 2, 8], strides = [1, 1, 1]} : vector<2x2x32xbf16> to vector<2x2x8xbf16>
    "tpu.trace_start"() <{level = 10 : i32, message = "bqd,bkd->bqk"}> : () -> ()
    %cst_150 = arith.constant dense<0.000000e+00> : vector<2x2x2xf32>
    %582 = tpu.matmul %580, %581, %cst_150 {dimension_numbers = #tpu.dot_dimension_numbers<[2], [2], [1], [1], [0, 0, 0, 1, 1, 1], [0], [0]>} : vector<2x2x8xbf16>, vector<2x2x8xbf16>, vector<2x2x2xf32> -> vector<2x2x2xf32>
    "tpu.trace_stop"() : () -> ()
    %cst_151 = arith.constant dense<0xFF800000> : vector<2x2xf32>
    %583 = vector.multi_reduction <maximumf>, %582, %cst_151 [2] : vector<2x2x2xf32> to vector<2x2xf32>
    %584 = vector.shape_cast %583 : vector<2x2xf32> to vector<2x2x1xf32>
    %585 = vector.broadcast %584 : vector<2x2x1xf32> to vector<2x2x2xf32>
    %586 = arith.subf %582, %585 : vector<2x2x2xf32>
    %587 = math.exp %586 : vector<2x2x2xf32>
    %cst_152 = arith.constant dense<0.000000e+00> : vector<2x2xf32>
    %588 = vector.multi_reduction <add>, %587, %cst_152 [2] : vector<2x2x2xf32> to vector<2x2xf32>
    %589 = vector.shape_cast %588 : vector<2x2xf32> to vector<2x2x1xf32>
    %590 = tpu.reciprocal %589 {approx = true} : vector<2x2x1xf32> -> vector<2x2x1xf32>
    %591 = vector.broadcast %590 : vector<2x2x1xf32> to vector<2x2x2xf32>
    %592 = arith.mulf %587, %591 : vector<2x2x2xf32>
    %593 = arith.truncf %592 : vector<2x2x2xf32> to vector<2x2x2xbf16>
    %594 = vector.extract_strided_slice %579 {offsets = [0, 0, 0], sizes = [2, 2, 8], strides = [1, 1, 1]} : vector<2x2x32xbf16> to vector<2x2x8xbf16>
    "tpu.trace_start"() <{level = 10 : i32, message = "bqk,bkd->bqd"}> : () -> ()
    %cst_153 = arith.constant dense<0.000000e+00> : vector<2x2x8xf32>
    %595 = tpu.matmul %593, %594, %cst_153 {dimension_numbers = #tpu.dot_dimension_numbers<[2], [1], [1], [2], [0, 0, 0, 1, 1, 2], [0], [0]>} : vector<2x2x2xbf16>, vector<2x2x8xbf16>, vector<2x2x8xf32> -> vector<2x2x8xf32>
    "tpu.trace_stop"() : () -> ()
    %596 = vector.extract_strided_slice %577 {offsets = [0, 0, 8], sizes = [2, 2, 8], strides = [1, 1, 1]} : vector<2x2x32xbf16> to vector<2x2x8xbf16>
    %597 = vector.extract_strided_slice %578 {offsets = [0, 0, 8], sizes = [2, 2, 8], strides = [1, 1, 1]} : vector<2x2x32xbf16> to vector<2x2x8xbf16>
    "tpu.trace_start"() <{level = 10 : i32, message = "bqd,bkd->bqk"}> : () -> ()
    %cst_154 = arith.constant dense<0.000000e+00> : vector<2x2x2xf32>
    %598 = tpu.matmul %596, %597, %cst_154 {dimension_numbers = #tpu.dot_dimension_numbers<[2], [2], [1], [1], [0, 0, 0, 1, 1, 1], [0], [0]>} : vector<2x2x8xbf16>, vector<2x2x8xbf16>, vector<2x2x2xf32> -> vector<2x2x2xf32>
    "tpu.trace_stop"() : () -> ()
    %cst_155 = arith.constant dense<0xFF800000> : vector<2x2xf32>
    %599 = vector.multi_reduction <maximumf>, %598, %cst_155 [2] : vector<2x2x2xf32> to vector<2x2xf32>
    %600 = vector.shape_cast %599 : vector<2x2xf32> to vector<2x2x1xf32>
    %601 = vector.broadcast %600 : vector<2x2x1xf32> to vector<2x2x2xf32>
    %602 = arith.subf %598, %601 : vector<2x2x2xf32>
    %603 = math.exp %602 : vector<2x2x2xf32>
    %cst_156 = arith.constant dense<0.000000e+00> : vector<2x2xf32>
    %604 = vector.multi_reduction <add>, %603, %cst_156 [2] : vector<2x2x2xf32> to vector<2x2xf32>
    %605 = vector.shape_cast %604 : vector<2x2xf32> to vector<2x2x1xf32>
    %606 = tpu.reciprocal %605 {approx = true} : vector<2x2x1xf32> -> vector<2x2x1xf32>
    %607 = vector.broadcast %606 : vector<2x2x1xf32> to vector<2x2x2xf32>
    %608 = arith.mulf %603, %607 : vector<2x2x2xf32>
    %609 = arith.truncf %608 : vector<2x2x2xf32> to vector<2x2x2xbf16>
    %610 = vector.extract_strided_slice %579 {offsets = [0, 0, 8], sizes = [2, 2, 8], strides = [1, 1, 1]} : vector<2x2x32xbf16> to vector<2x2x8xbf16>
    "tpu.trace_start"() <{level = 10 : i32, message = "bqk,bkd->bqd"}> : () -> ()
    %cst_157 = arith.constant dense<0.000000e+00> : vector<2x2x8xf32>
    %611 = tpu.matmul %609, %610, %cst_157 {dimension_numbers = #tpu.dot_dimension_numbers<[2], [1], [1], [2], [0, 0, 0, 1, 1, 2], [0], [0]>} : vector<2x2x2xbf16>, vector<2x2x8xbf16>, vector<2x2x8xf32> -> vector<2x2x8xf32>
    "tpu.trace_stop"() : () -> ()
    %612 = vector.extract_strided_slice %577 {offsets = [0, 0, 16], sizes = [2, 2, 8], strides = [1, 1, 1]} : vector<2x2x32xbf16> to vector<2x2x8xbf16>
    %613 = vector.extract_strided_slice %578 {offsets = [0, 0, 16], sizes = [2, 2, 8], strides = [1, 1, 1]} : vector<2x2x32xbf16> to vector<2x2x8xbf16>
    "tpu.trace_start"() <{level = 10 : i32, message = "bqd,bkd->bqk"}> : () -> ()
    %cst_158 = arith.constant dense<0.000000e+00> : vector<2x2x2xf32>
    %614 = tpu.matmul %612, %613, %cst_158 {dimension_numbers = #tpu.dot_dimension_numbers<[2], [2], [1], [1], [0, 0, 0, 1, 1, 1], [0], [0]>} : vector<2x2x8xbf16>, vector<2x2x8xbf16>, vector<2x2x2xf32> -> vector<2x2x2xf32>
    "tpu.trace_stop"() : () -> ()
    %cst_159 = arith.constant dense<0xFF800000> : vector<2x2xf32>
    %615 = vector.multi_reduction <maximumf>, %614, %cst_159 [2] : vector<2x2x2xf32> to vector<2x2xf32>
    %616 = vector.shape_cast %615 : vector<2x2xf32> to vector<2x2x1xf32>
    %617 = vector.broadcast %616 : vector<2x2x1xf32> to vector<2x2x2xf32>
    %618 = arith.subf %614, %617 : vector<2x2x2xf32>
    %619 = math.exp %618 : vector<2x2x2xf32>
    %cst_160 = arith.constant dense<0.000000e+00> : vector<2x2xf32>
    %620 = vector.multi_reduction <add>, %619, %cst_160 [2] : vector<2x2x2xf32> to vector<2x2xf32>
    %621 = vector.shape_cast %620 : vector<2x2xf32> to vector<2x2x1xf32>
    %622 = tpu.reciprocal %621 {approx = true} : vector<2x2x1xf32> -> vector<2x2x1xf32>
    %623 = vector.broadcast %622 : vector<2x2x1xf32> to vector<2x2x2xf32>
    %624 = arith.mulf %619, %623 : vector<2x2x2xf32>
    %625 = arith.truncf %624 : vector<2x2x2xf32> to vector<2x2x2xbf16>
    %626 = vector.extract_strided_slice %579 {offsets = [0, 0, 16], sizes = [2, 2, 8], strides = [1, 1, 1]} : vector<2x2x32xbf16> to vector<2x2x8xbf16>
    "tpu.trace_start"() <{level = 10 : i32, message = "bqk,bkd->bqd"}> : () -> ()
    %cst_161 = arith.constant dense<0.000000e+00> : vector<2x2x8xf32>
    %627 = tpu.matmul %625, %626, %cst_161 {dimension_numbers = #tpu.dot_dimension_numbers<[2], [1], [1], [2], [0, 0, 0, 1, 1, 2], [0], [0]>} : vector<2x2x2xbf16>, vector<2x2x8xbf16>, vector<2x2x8xf32> -> vector<2x2x8xf32>
    "tpu.trace_stop"() : () -> ()
    %628 = vector.extract_strided_slice %577 {offsets = [0, 0, 24], sizes = [2, 2, 8], strides = [1, 1, 1]} : vector<2x2x32xbf16> to vector<2x2x8xbf16>
    %629 = vector.extract_strided_slice %578 {offsets = [0, 0, 24], sizes = [2, 2, 8], strides = [1, 1, 1]} : vector<2x2x32xbf16> to vector<2x2x8xbf16>
    "tpu.trace_start"() <{level = 10 : i32, message = "bqd,bkd->bqk"}> : () -> ()
    %cst_162 = arith.constant dense<0.000000e+00> : vector<2x2x2xf32>
    %630 = tpu.matmul %628, %629, %cst_162 {dimension_numbers = #tpu.dot_dimension_numbers<[2], [2], [1], [1], [0, 0, 0, 1, 1, 1], [0], [0]>} : vector<2x2x8xbf16>, vector<2x2x8xbf16>, vector<2x2x2xf32> -> vector<2x2x2xf32>
    "tpu.trace_stop"() : () -> ()
    %cst_163 = arith.constant dense<0xFF800000> : vector<2x2xf32>
    %631 = vector.multi_reduction <maximumf>, %630, %cst_163 [2] : vector<2x2x2xf32> to vector<2x2xf32>
    %632 = vector.shape_cast %631 : vector<2x2xf32> to vector<2x2x1xf32>
    %633 = vector.broadcast %632 : vector<2x2x1xf32> to vector<2x2x2xf32>
    %634 = arith.subf %630, %633 : vector<2x2x2xf32>
    %635 = math.exp %634 : vector<2x2x2xf32>
    %cst_164 = arith.constant dense<0.000000e+00> : vector<2x2xf32>
    %636 = vector.multi_reduction <add>, %635, %cst_164 [2] : vector<2x2x2xf32> to vector<2x2xf32>
    %637 = vector.shape_cast %636 : vector<2x2xf32> to vector<2x2x1xf32>
    %638 = tpu.reciprocal %637 {approx = true} : vector<2x2x1xf32> -> vector<2x2x1xf32>
    %639 = vector.broadcast %638 : vector<2x2x1xf32> to vector<2x2x2xf32>
    %640 = arith.mulf %635, %639 : vector<2x2x2xf32>
    %641 = arith.truncf %640 : vector<2x2x2xf32> to vector<2x2x2xbf16>
    %642 = vector.extract_strided_slice %579 {offsets = [0, 0, 24], sizes = [2, 2, 8], strides = [1, 1, 1]} : vector<2x2x32xbf16> to vector<2x2x8xbf16>
    "tpu.trace_start"() <{level = 10 : i32, message = "bqk,bkd->bqd"}> : () -> ()
    %cst_165 = arith.constant dense<0.000000e+00> : vector<2x2x8xf32>
    %643 = tpu.matmul %641, %642, %cst_165 {dimension_numbers = #tpu.dot_dimension_numbers<[2], [1], [1], [2], [0, 0, 0, 1, 1, 2], [0], [0]>} : vector<2x2x2xbf16>, vector<2x2x8xbf16>, vector<2x2x8xf32> -> vector<2x2x8xf32>
    "tpu.trace_stop"() : () -> ()
    %644 = tpu.concatenate %595, %611, %627, %643 in 2 : vector<2x2x8xf32>, vector<2x2x8xf32>, vector<2x2x8xf32>, vector<2x2x8xf32> -> vector<2x2x32xf32>
    %645 = arith.addf %572, %644 : vector<2x2x32xf32>
    %646 = vector.shape_cast %645 : vector<2x2x32xf32> to vector<4x32xf32>
    %647 = arith.truncf %646 : vector<4x32xf32> to vector<4x32xbf16>
    %c392 = arith.constant 392 : index
    %c0_166 = arith.constant 0 : index
    %648 = vector.load %arg2[%c392, %c0_166] : memref<456x96xbf16, #tpu.memory_space<vmem>>, vector<32x32xbf16>
    %cst_167 = arith.constant dense<0.000000e+00> : vector<4x32xf32>
    %649 = tpu.matmul %647, %648, %cst_167 {dimension_numbers = #tpu.dot_dimension_numbers<[1], [0], [0], [1], [0, 0, 1, 1], [], []>} : vector<4x32xbf16>, vector<32x32xbf16>, vector<4x32xf32> -> vector<4x32xf32>
    %c13 = arith.constant 13 : index
    %c0_168 = arith.constant 0 : index
    %650 = vector.load %arg3[%c13, %c0_168] : memref<15x96xf32, #tpu.memory_space<vmem>>, vector<1x32xf32>
    %651 = vector.broadcast %650 : vector<1x32xf32> to vector<4x32xf32>
    %652 = arith.addf %649, %651 : vector<4x32xf32>
    %cst_169 = arith.constant 0.000000e+00 : f32
    %653 = vector.broadcast %cst_169 : f32 to vector<4x32xf32>
    %654 = arith.maximumf %652, %653 : vector<4x32xf32>
    %655 = arith.addf %646, %654 : vector<4x32xf32>
    %656 = vector.shape_cast %655 : vector<4x32xf32> to vector<2x2x32xf32>
    %657 = vector.shape_cast %656 : vector<2x2x32xf32> to vector<4x32xf32>
    %658 = arith.truncf %657 : vector<4x32xf32> to vector<4x32xbf16>
    %c424 = arith.constant 424 : index
    %c0_170 = arith.constant 0 : index
    %659 = vector.load %arg2[%c424, %c0_170] : memref<456x96xbf16, #tpu.memory_space<vmem>>, vector<32x3xbf16>
    %cst_171 = arith.constant dense<0.000000e+00> : vector<4x3xf32>
    %660 = tpu.matmul %658, %659, %cst_171 {dimension_numbers = #tpu.dot_dimension_numbers<[1], [0], [0], [1], [0, 0, 1, 1], [], []>} : vector<4x32xbf16>, vector<32x3xbf16>, vector<4x3xf32> -> vector<4x3xf32>
    %c14 = arith.constant 14 : index
    %c0_172 = arith.constant 0 : index
    %661 = vector.load %arg3[%c14, %c0_172] : memref<15x96xf32, #tpu.memory_space<vmem>>, vector<1x3xf32>
    %662 = vector.broadcast %661 : vector<1x3xf32> to vector<4x3xf32>
    %663 = arith.addf %660, %662 : vector<4x3xf32>
    %664 = vector.shape_cast %663 : vector<4x3xf32> to vector<2x2x3xf32>
    %c0_173 = arith.constant 0 : index
    %c0_174 = arith.constant 0 : index
    %c0_175 = arith.constant 0 : index
    %665 = vector.load %arg5[%c0_173, %c0_174, %c0_175] : memref<2x2x3xf32, #tpu.memory_space<vmem>>, vector<2x2x3xf32>
    tpu.vector_store %arg5[%c0_173, %c0_174, %c0_175], %664 {strides = array<i32>} : memref<2x2x3xf32, #tpu.memory_space<vmem>>, vector<2x2x3xf32>,
    return
  }
  func.func @transform_0(%arg0: i32) -> (i32, i32, i32) {
    %c0_i32 = arith.constant 0 : i32
    %c0_i32_0 = arith.constant 0 : i32
    %c0_i32_1 = arith.constant 0 : i32
    return %arg0, %c0_i32, %c0_i32_0 : i32, i32, i32
  }
  func.func @transform_1(%arg0: i32) -> (i32, i32) {
    %c0_i32 = arith.constant 0 : i32
    %c0_i32_0 = arith.constant 0 : i32
    %c0_i32_1 = arith.constant 0 : i32
    return %c0_i32, %c0_i32_0 : i32, i32
  }
  func.func @transform_2(%arg0: i32) -> (i32, i32) {
    %c0_i32 = arith.constant 0 : i32
    %c0_i32_0 = arith.constant 0 : i32
    %c0_i32_1 = arith.constant 0 : i32
    return %c0_i32, %c0_i32_0 : i32, i32
  }
  func.func @transform_3(%arg0: i32) -> (i32, i32) {
    %c0_i32 = arith.constant 0 : i32
    %c0_i32_0 = arith.constant 0 : i32
    %c0_i32_1 = arith.constant 0 : i32
    return %c0_i32, %c0_i32_0 : i32, i32
  }
  func.func @transform_4(%arg0: i32) -> (i32, i32, i32) {
    %c0_i32 = arith.constant 0 : i32
    %c0_i32_0 = arith.constant 0 : i32
    %c0_i32_1 = arith.constant 0 : i32
    return %arg0, %c0_i32, %c0_i32_0 : i32, i32, i32
  }
}

</mosaic_0001>

<llo_original>
// kernel: tpu_custom_call.1
$region0: #{tpu_custom_call.1}
  #allocation0 [shape = 'u32[]', space=smem, size = 0x4, offset = 0x4, fixed_abs, tag = 'smem constant byte address 0x4 - core index']
  #allocation1 [shape = 'u32[144,128]{1,0:T(1,128)}', space=vmem, size = 0x12000, scoped, tag = 'internal scratch']
  %s0 = inlined_call_operand.vmem [shape: bf16[2,8,4], index: 0, kind: input, shape index: {}]
  %s1 = inlined_call_operand.vmem [shape: bf16[456,96], index: 1, kind: input, shape index: {}]
  %s2 = inlined_call_operand.vmem [shape: f32[15,96], index: 2, kind: input, shape index: {}]
  %s3 = inlined_call_operand.vmem [shape: f32[24,32], index: 3, kind: input, shape index: {}]
  %s4 = inlined_call_operand.hbm [shape: f32[2,2,3], index: 4, kind: output, shape index: {}]
  %s5 = sld [smem:[#allocation0]]
  $region26: #{tpu_custom_call.1} parent=0
    _
  %s7 = ssub.s32 1, %s5
  %s8 = scalar_select 0, %s7, %s5
  $region1: #{tpu_custom_call.1} parent=0
    #allocation2 [shape = 'u8[2048]{0}', space=vmem, size = 0x800, scoped, tag = 'output window, operand 0, single buffered']
    #allocation3 [shape = 's32[1]{0}', space=sflag, size = 0x4, scoped, tag = 'scoped memory for tpu_custom_call.1']
    %9 = vsyncpa [#allocation3], 0
    // Predicated region
    $region2: #{tpu_custom_call.1} parent=1 // pred_check
      _
    $region3: #{tpu_custom_call.1} parent=1 // pred_check_branch
      %11 = sbr.rel (0) target = $region5
    $region4: #{tpu_custom_call.1} parent=1 // pred_region
      _
    $region5: #{tpu_custom_call.1} parent=1 // pred_fallthru
      _
    // Predicated region
    $region6: #{tpu_custom_call.1} parent=1 // pred_check
      _
    $region7: #{tpu_custom_call.1} parent=1 // pred_check_branch
      %13 = sbr.rel (0) target = $region9
    $region8: #{tpu_custom_call.1} parent=1 // pred_region
      _
    $region9: #{tpu_custom_call.1} parent=1 // pred_fallthru
      _
    // Predicated region
    $region10: #{tpu_custom_call.1} parent=1 // pred_check
      _
    $region11: #{tpu_custom_call.1} parent=1 // pred_check_branch
      %15 = sbr.rel (0) target = $region13
    $region12: #{tpu_custom_call.1} parent=1 // pred_region
      _
    $region13: #{tpu_custom_call.1} parent=1 // pred_fallthru
      _
    // Predicated region
    $region14: #{tpu_custom_call.1} parent=1 // pred_check
      _
    $region15: #{tpu_custom_call.1} parent=1 // pred_check_branch
      %17 = sbr.rel (0) target = $region17
    $region16: #{tpu_custom_call.1} parent=1 // pred_region
      _
    $region17: #{tpu_custom_call.1} parent=1 // pred_fallthru
      _
    %v19 = vld [vmem:[%s0] sm:$0xf]
    %v20 = vld [vmem:[%s0 + $0x4] sm:$0xf]
    %v21 = vld [vmem:[%s1] sm:$0x3]
    %v22 = vld [vmem:[%s2] sm:$0x1]
    %v23 = vlaneseq
    %v24 = vshrl.u32 %v23, 7
    %v25 = vsub.s32 0, %v24
    %v26 = vrot.slane %v22, %v25
    %v29 = vunpack.c.l.b16 %v19
    %v30 = vunpack.c.l.b16 %v20
    %v31 = vpack.c.b16 %v30, %v29
    %vm32 = vcmask 31744
    %v34 = vsel %vm32, %v31, 0
    %vm36 = vcmask 1041408
    %v38 = vsel %vm36, %v21, 0
    %40 = vmatprep.subr.bf16.mxu0 0
    %41 = vmatpush1.bf16.msra.mxu0 %v38
    %42 = vmatprep.subr.bf16.mxu0 0
    %43 = vmatpush1.bf16.msra.mxu0 0
    %44 = vmatprep.subr.bf16.mxu0 0
    %45 = vmatpush1.bf16.msra.mxu0 0
    %46 = vmatprep.subr.bf16.mxu0 0
    %47 = vmatpush1.bf16.msra.mxu0 0
    %48 = vmatprep.subr.bf16.mxu0 0
    %49 = vmatpush1.bf16.msra.mxu0 0
    %50 = vmatprep.subr.bf16.mxu0 0
    %51 = vmatpush1.bf16.msra.mxu0 0
    %52 = vmatprep.subr.bf16.mxu0 0
    %53 = vmatpush1.bf16.msra.mxu0 0
    %54 = vmatprep.subr.bf16.mxu0 0
    %55 = vmatpush1.bf16.msra.mxu0 0
    %56 = vmatprep.subr.bf16.mxu0 0
    %57 = vmatpush1.bf16.msra.mxu0 0
    %58 = vmatprep.subr.bf16.mxu0 0
    %59 = vmatpush1.bf16.msra.mxu0 0
    %60 = vmatprep.subr.bf16.mxu0 0
    %61 = vmatpush1.bf16.msra.mxu0 0
    %62 = vmatprep.subr.bf16.mxu0 0
    %63 = vmatpush1.bf16.msra.mxu0 0
    %64 = vmatprep.subr.bf16.mxu0 0
    %65 = vmatpush1.bf16.msra.mxu0 0
    %66 = vmatprep.subr.bf16.mxu0 0
    %67 = vmatpush1.bf16.msra.mxu0 0
    %68 = vmatprep.subr.bf16.mxu0 0
    %69 = vmatpush1.bf16.msra.mxu0 0
    %70 = vmatprep.subr.bf16.mxu0 0
    %71 = vmatpush1.bf16.msra.mxu0 0
    %72 = vmatprep.mubr.bf16.mxu0 0
    %73 = vmatmul.mubr.bf16.gmra.mrb[0].mxu0 %v34
    %v74 = vpop.f32.mrb[0].mxu0
    %v75 = vadd.f32 %v26, %v74
    %v76 = vpop.f32.mrb[0].mxu0
    %v77 = vpop.f32.mrb[0].mxu0
    %v78 = vadd.f32 %v26, %v77
    %v79 = vpop.f32.mrb[0].mxu0
    %80 = vdwg.mxu0
    %v81 = vld [vmem:[%s3] sm:$0xff]
    %v82 = vpack.c.bf16 %v81, %v81
    %v83 = vpack.c.bf16 %v75, %v75
    %v84 = vpack.c.bf16 %v78, %v78
    %vm85 = vcmask 64512
    %v87 = vsel %vm85, %v82, 0
    %v90 = vsel %vm85, %v83, 0
    %92 = vmatprep.subr.bf16.mxu0 0
    %93 = vmatpush1.bf16.xpose.msra.mxu0 %v90
    %94 = vmatprep.subr.bf16.mxu0 0
    %95 = vmatpush1.bf16.xpose.msra.mxu0 0
    %96 = vmatprep.subr.bf16.mxu0 0
    %97 = vmatpush1.bf16.xpose.msra.mxu0 0
    %98 = vmatprep.subr.bf16.mxu0 0
    %99 = vmatpush1.bf16.xpose.msra.mxu0 0
    %100 = vmatprep.subr.bf16.mxu0 0
    %101 = vmatpush1.bf16.xpose.msra.mxu0 0
    %102 = vmatprep.subr.bf16.mxu0 0
    %103 = vmatpush1.bf16.xpose.msra.mxu0 0
    %104 = vmatprep.subr.bf16.mxu0 0
    %105 = vmatpush1.bf16.xpose.msra.mxu0 0
    %106 = vmatprep.subr.bf16.mxu0 0
    %107 = vmatpush1.bf16.xpose.msra.mxu0 0
    %108 = vmatprep.subr.bf16.mxu0 0
    %109 = vmatpush1.bf16.xpose.msra.mxu0 0
    %110 = vmatprep.subr.bf16.mxu0 0
    %111 = vmatpush1.bf16.xpose.msra.mxu0 0
    %112 = vmatprep.subr.bf16.mxu0 0
    %113 = vmatpush1.bf16.xpose.msra.mxu0 0
    %114 = vmatprep.subr.bf16.mxu0 0
    %115 = vmatpush1.bf16.xpose.msra.mxu0 0
    %116 = vmatprep.subr.bf16.mxu0 0
    %117 = vmatpush1.bf16.xpose.msra.mxu0 0
    %118 = vmatprep.subr.bf16.mxu0 0
    %119 = vmatpush1.bf16.xpose.msra.mxu0 0
    %120 = vmatprep.subr.bf16.mxu0 0
    %121 = vmatpush1.bf16.xpose.msra.mxu0 0
    %122 = vmatprep.subr.bf16.mxu0 0
    %123 = vmatpush1.bf16.xpose.msra.mxu0 0
    %124 = vmatprep.mubr.bf16.mxu0 0
    %125 = vmatmul.mubr.bf16.gmra.mrb[0].mxu0 %v87
    %v126 = vpop.f32.mrb[0].mxu0
    %v127 = vadd.f32 0.0, %v126
    %v128 = vpop.f32.mrb[0].mxu0
    %v129 = vpop.f32.mrb[0].mxu0
    %v130 = vpop.f32.mrb[0].mxu0
    %131 = vdwg.mxu0
    %v133 = vsel %vm85, %v84, 0
    %135 = vmatprep.subr.bf16.mxu0 0
    %136 = vmatpush1.bf16.xpose.msra.mxu0 %v133
    %137 = vmatprep.subr.bf16.mxu0 0
    %138 = vmatpush1.bf16.xpose.msra.mxu0 0
    %139 = vmatprep.subr.bf16.mxu0 0
    %140 = vmatpush1.bf16.xpose.msra.mxu0 0
    %141 = vmatprep.subr.bf16.mxu0 0
    %142 = vmatpush1.bf16.xpose.msra.mxu0 0
    %143 = vmatprep.subr.bf16.mxu0 0
    %144 = vmatpush1.bf16.xpose.msra.mxu0 0
    %145 = vmatprep.subr.bf16.mxu0 0
    %146 = vmatpush1.bf16.xpose.msra.mxu0 0
    %147 = vmatprep.subr.bf16.mxu0 0
    %148 = vmatpush1.bf16.xpose.msra.mxu0 0
    %149 = vmatprep.subr.bf16.mxu0 0
    %150 = vmatpush1.bf16.xpose.msra.mxu0 0
    %151 = vmatprep.subr.bf16.mxu0 0
    %152 = vmatpush1.bf16.xpose.msra.mxu0 0
    %153 = vmatprep.subr.bf16.mxu0 0
    %154 = vmatpush1.bf16.xpose.msra.mxu0 0
    %155 = vmatprep.subr.bf16.mxu0 0
    %156 = vmatpush1.bf16.xpose.msra.mxu0 0
    %157 = vmatprep.subr.bf16.mxu0 0
    %158 = vmatpush1.bf16.xpose.msra.mxu0 0
    %159 = vmatprep.subr.bf16.mxu0 0
    %160 = vmatpush1.bf16.xpose.msra.mxu0 0
    %161 = vmatprep.subr.bf16.mxu0 0
    %162 = vmatpush1.bf16.xpose.msra.mxu0 0
    %163 = vmatprep.subr.bf16.mxu0 0
    %164 = vmatpush1.bf16.xpose.msra.mxu0 0
    %165 = vmatprep.subr.bf16.mxu0 0
    %166 = vmatpush1.bf16.xpose.msra.mxu0 0
    %167 = vmatprep.mubr.bf16.mxu0 0
    %168 = vmatmul.mubr.bf16.gmra.mrb[0].mxu0 %v87
    %v169 = vpop.f32.mrb[0].mxu0
    %v170 = vadd.f32 0.0, %v169
    %v171 = vpop.f32.mrb[0].mxu0
    %v172 = vpop.f32.mrb[0].mxu0
    %v173 = vpop.f32.mrb[0].mxu0
    %174 = vdwg.mxu0
    %v175 = vsel %vm85, %v127, -inf
    %176 = vmax.xlane.f32.xlu0 %v175
    %v177 = vpop.xlane.xlu0 %176
    %v178 = vsel %vm85, %v170, -inf
    %179 = vmax.xlane.f32.xlu0 %v178
    %v180 = vpop.xlane.xlu0 %179
    %v181 = vsub.f32 %v127, %v177
    %v182 = vsub.f32 %v170, %v180
    %v183 = vmul.f32 %v181, 1.442695
    %v184 = vpow.pop %v183
    %v185 = vmul.f32 %v182, 1.442695
    %v186 = vpow.pop %v185
    %v187 = vsel %vm85, %v184, 0.0
    %188 = vadd.xlane.f32.xlu0 %v187
    %v189 = vpop.xlane.xlu0 %188
    %v190 = vsel %vm85, %v186, 0.0
    %191 = vadd.xlane.f32.xlu0 %v190
    %v192 = vpop.xlane.xlu0 %191
    %v193 = vrcp.pop %v189
    %v194 = vrcp.pop %v192
    %v195 = vmul.f32 %v184, %v193
    %v196 = vmul.f32 %v186, %v194
    %v197 = vpack.c.bf16 %v195, %v195
    %v198 = vpack.c.bf16 %v196, %v196
    %200 = vrot.lane.b32.xlu0 %v83, 96
    %v201 = vpop.permute.xlu0 %200
    %v203 = vsel %vm85, %v197, 0
    %vm205 = vcmask 1043456
    %v207 = vsel %vm205, %v201, 0
    %209 = vmatprep.subr.bf16.mxu0 0
    %210 = vmatpush1.bf16.msra.mxu0 %v207
    %211 = vmatprep.subr.bf16.mxu0 0
    %212 = vmatpush1.bf16.msra.mxu0 0
    %213 = vmatprep.subr.bf16.mxu0 0
    %214 = vmatpush1.bf16.msra.mxu0 0
    %215 = vmatprep.subr.bf16.mxu0 0
    %216 = vmatpush1.bf16.msra.mxu0 0
    %217 = vmatprep.subr.bf16.mxu0 0
    %218 = vmatpush1.bf16.msra.mxu0 0
    %219 = vmatprep.subr.bf16.mxu0 0
    %220 = vmatpush1.bf16.msra.mxu0 0
    %221 = vmatprep.subr.bf16.mxu0 0
    %222 = vmatpush1.bf16.msra.mxu0 0
    %223 = vmatprep.subr.bf16.mxu0 0
    %224 = vmatpush1.bf16.msra.mxu0 0
    %225 = vmatprep.subr.bf16.mxu0 0
    %226 = vmatpush1.bf16.msra.mxu0 0
    %227 = vmatprep.subr.bf16.mxu0 0
    %228 = vmatpush1.bf16.msra.mxu0 0
    %229 = vmatprep.subr.bf16.mxu0 0
    %230 = vmatpush1.bf16.msra.mxu0 0
    %231 = vmatprep.subr.bf16.mxu0 0
    %232 = vmatpush1.bf16.msra.mxu0 0
    %233 = vmatprep.subr.bf16.mxu0 0
    %234 = vmatpush1.bf16.msra.mxu0 0
    %235 = vmatprep.subr.bf16.mxu0 0
    %236 = vmatpush1.bf16.msra.mxu0 0
    %237 = vmatprep.subr.bf16.mxu0 0
    %238 = vmatpush1.bf16.msra.mxu0 0
    %239 = vmatprep.subr.bf16.mxu0 0
    %240 = vmatpush1.bf16.msra.mxu0 0
    %241 = vmatprep.mubr.bf16.mxu0 0
    %242 = vmatmul.mubr.bf16.gmra.mrb[0].mxu0 %v203
    %v243 = vpop.f32.mrb[0].mxu0
    %v244 = vadd.f32 0.0, %v243
    %v245 = vpop.f32.mrb[0].mxu0
    %v246 = vpop.f32.mrb[0].mxu0
    %v247 = vpop.f32.mrb[0].mxu0
    %248 = vdwg.mxu0
    %250 = vrot.lane.b32.xlu0 %v84, 96
    %v251 = vpop.permute.xlu0 %250
    %v253 = vsel %vm85, %v198, 0
    %v256 = vsel %vm205, %v251, 0
    %258 = vmatprep.subr.bf16.mxu0 0
    %259 = vmatpush1.bf16.msra.mxu0 %v256
    %260 = vmatprep.subr.bf16.mxu0 0
    %261 = vmatpush1.bf16.msra.mxu0 0
    %262 = vmatprep.subr.bf16.mxu0 0
    %263 = vmatpush1.bf16.msra.mxu0 0
    %264 = vmatprep.subr.bf16.mxu0 0
    %265 = vmatpush1.bf16.msra.mxu0 0
    %266 = vmatprep.subr.bf16.mxu0 0
    %267 = vmatpush1.bf16.msra.mxu0 0
    %268 = vmatprep.subr.bf16.mxu0 0
    %269 = vmatpush1.bf16.msra.mxu0 0
    %270 = vmatprep.subr.bf16.mxu0 0
    %271 = vmatpush1.bf16.msra.mxu0 0
    %272 = vmatprep.subr.bf16.mxu0 0
    %273 = vmatpush1.bf16.msra.mxu0 0
    %274 = vmatprep.subr.bf16.mxu0 0
    %275 = vmatpush1.bf16.msra.mxu0 0
    %276 = vmatprep.subr.bf16.mxu0 0
    %277 = vmatpush1.bf16.msra.mxu0 0
    %278 = vmatprep.subr.bf16.mxu0 0
    %279 = vmatpush1.bf16.msra.mxu0 0
    %280 = vmatprep.subr.bf16.mxu0 0
    %281 = vmatpush1.bf16.msra.mxu0 0
    %282 = vmatprep.subr.bf16.mxu0 0
    %283 = vmatpush1.bf16.msra.mxu0 0
    %284 = vmatprep.subr.bf16.mxu0 0
    %285 = vmatpush1.bf16.msra.mxu0 0
    %286 = vmatprep.subr.bf16.mxu0 0
    %287 = vmatpush1.bf16.msra.mxu0 0
    %288 = vmatprep.subr.bf16.mxu0 0
    %289 = vmatpush1.bf16.msra.mxu0 0
    %290 = vmatprep.mubr.bf16.mxu0 0
    %291 = vmatmul.mubr.bf16.gmra.mrb[0].mxu0 %v253
    %v292 = vpop.f32.mrb[0].mxu0
    %v293 = vadd.f32 0.0, %v292
    %v294 = vpop.f32.mrb[0].mxu0
    %v295 = vpop.f32.mrb[0].mxu0
    %v296 = vpop.f32.mrb[0].mxu0
    %297 = vdwg.mxu0
    %299 = vrot.lane.b32.xlu0 %v82, 120
    %v300 = vpop.permute.xlu0 %299
    %301 = vrot.lane.b32.xlu0 %v83, 120
    %v302 = vpop.permute.xlu0 %301
    %v304 = vsel %vm85, %v300, 0
    %v307 = vsel %vm85, %v302, 0
    %309 = vmatprep.subr.bf16.mxu0 0
    %310 = vmatpush1.bf16.xpose.msra.mxu0 %v307
    %311 = vmatprep.subr.bf16.mxu0 0
    %312 = vmatpush1.bf16.xpose.msra.mxu0 0
    %313 = vmatprep.subr.bf16.mxu0 0
    %314 = vmatpush1.bf16.xpose.msra.mxu0 0
    %315 = vmatprep.subr.bf16.mxu0 0
    %316 = vmatpush1.bf16.xpose.msra.mxu0 0
    %317 = vmatprep.subr.bf16.mxu0 0
    %318 = vmatpush1.bf16.xpose.msra.mxu0 0
    %319 = vmatprep.subr.bf16.mxu0 0
    %320 = vmatpush1.bf16.xpose.msra.mxu0 0
    %321 = vmatprep.subr.bf16.mxu0 0
    %322 = vmatpush1.bf16.xpose.msra.mxu0 0
    %323 = vmatprep.subr.bf16.mxu0 0
    %324 = vmatpush1.bf16.xpose.msra.mxu0 0
    %325 = vmatprep.subr.bf16.mxu0 0
    %326 = vmatpush1.bf16.xpose.msra.mxu0 0
    %327 = vmatprep.subr.bf16.mxu0 0
    %328 = vmatpush1.bf16.xpose.msra.mxu0 0
    %329 = vmatprep.subr.bf16.mxu0 0
    %330 = vmatpush1.bf16.xpose.msra.mxu0 0
    %331 = vmatprep.subr.bf16.mxu0 0
    %332 = vmatpush1.bf16.xpose.msra.mxu0 0
    %333 = vmatprep.subr.bf16.mxu0 0
    %334 = vmatpush1.bf16.xpose.msra.mxu0 0
    %335 = vmatprep.subr.bf16.mxu0 0
    %336 = vmatpush1.bf16.xpose.msra.mxu0 0
    %337 = vmatprep.subr.bf16.mxu0 0
    %338 = vmatpush1.bf16.xpose.msra.mxu0 0
    %339 = vmatprep.subr.bf16.mxu0 0
    %340 = vmatpush1.bf16.xpose.msra.mxu0 0
    %341 = vmatprep.mubr.bf16.mxu0 0
    %342 = vmatmul.mubr.bf16.gmra.mrb[0].mxu0 %v304
    %v343 = vpop.f32.mrb[0].mxu0
    %v344 = vadd.f32 0.0, %v343
    %v345 = vpop.f32.mrb[0].mxu0
    %v346 = vpop.f32.mrb[0].mxu0
    %v347 = vpop.f32.mrb[0].mxu0
    %348 = vdwg.mxu0
    %349 = vrot.lane.b32.xlu0 %v84, 120
    %v350 = vpop.permute.xlu0 %349
    %v352 = vsel %vm85, %v350, 0
    %354 = vmatprep.subr.bf16.mxu0 0
    %355 = vmatpush1.bf16.xpose.msra.mxu0 %v352
    %356 = vmatprep.subr.bf16.mxu0 0
    %357 = vmatpush1.bf16.xpose.msra.mxu0 0
    %358 = vmatprep.subr.bf16.mxu0 0
    %359 = vmatpush1.bf16.xpose.msra.mxu0 0
    %360 = vmatprep.subr.bf16.mxu0 0
    %361 = vmatpush1.bf16.xpose.msra.mxu0 0
    %362 = vmatprep.subr.bf16.mxu0 0
    %363 = vmatpush1.bf16.xpose.msra.mxu0 0
    %364 = vmatprep.subr.bf16.mxu0 0
    %365 = vmatpush1.bf16.xpose.msra.mxu0 0
    %366 = vmatprep.subr.bf16.mxu0 0
    %367 = vmatpush1.bf16.xpose.msra.mxu0 0
    %368 = vmatprep.subr.bf16.mxu0 0
    %369 = vmatpush1.bf16.xpose.msra.mxu0 0
    %370 = vmatprep.subr.bf16.mxu0 0
    %371 = vmatpush1.bf16.xpose.msra.mxu0 0
    %372 = vmatprep.subr.bf16.mxu0 0
    %373 = vmatpush1.bf16.xpose.msra.mxu0 0
    %374 = vmatprep.subr.bf16.mxu0 0
    %375 = vmatpush1.bf16.xpose.msra.mxu0 0
    %376 = vmatprep.subr.bf16.mxu0 0
    %377 = vmatpush1.bf16.xpose.msra.mxu0 0
    %378 = vmatprep.subr.bf16.mxu0 0
    %379 = vmatpush1.bf16.xpose.msra.mxu0 0
    %380 = vmatprep.subr.bf16.mxu0 0
    %381 = vmatpush1.bf16.xpose.msra.mxu0 0
    %382 = vmatprep.subr.bf16.mxu0 0
    %383 = vmatpush1.bf16.xpose.msra.mxu0 0
    %384 = vmatprep.subr.bf16.mxu0 0
    %385 = vmatpush1.bf16.xpose.msra.mxu0 0
    %386 = vmatprep.mubr.bf16.mxu0 0
    %387 = vmatmul.mubr.bf16.gmra.mrb[0].mxu0 %v304
    %v388 = vpop.f32.mrb[0].mxu0
    %v389 = vadd.f32 0.0, %v388
    %v390 = vpop.f32.mrb[0].mxu0
    %v391 = vpop.f32.mrb[0].mxu0
    %v392 = vpop.f32.mrb[0].mxu0
    %393 = vdwg.mxu0
    %v394 = vsel %vm85, %v344, -inf
    %395 = vmax.xlane.f32.xlu0 %v394
    %v396 = vpop.xlane.xlu0 %395
    %v397 = vsel %vm85, %v389, -inf
    %398 = vmax.xlane.f32.xlu0 %v397
    %v399 = vpop.xlane.xlu0 %398
    %v400 = vsub.f32 %v344, %v396
    %v401 = vsub.f32 %v389, %v399
    %v402 = vmul.f32 %v400, 1.442695
    %v403 = vpow.pop %v402
    %v404 = vmul.f32 %v401, 1.442695
    %v405 = vpow.pop %v404
    %v406 = vsel %vm85, %v403, 0.0
    %407 = vadd.xlane.f32.xlu0 %v406
    %v408 = vpop.xlane.xlu0 %407
    %v409 = vsel %vm85, %v405, 0.0
    %410 = vadd.xlane.f32.xlu0 %v409
    %v411 = vpop.xlane.xlu0 %410
    %v412 = vrcp.pop %v408
    %v413 = vrcp.pop %v411
    %v414 = vmul.f32 %v403, %v412
    %v415 = vmul.f32 %v405, %v413
    %v416 = vpack.c.bf16 %v414, %v414
    %v417 = vpack.c.bf16 %v415, %v415
    %418 = vrot.lane.b32.xlu0 %v83, 88
    %v419 = vpop.permute.xlu0 %418
    %v421 = vsel %vm85, %v416, 0
    %v424 = vsel %vm205, %v419, 0
    %426 = vmatprep.subr.bf16.mxu0 0
    %427 = vmatpush1.bf16.msra.mxu0 %v424
    %428 = vmatprep.subr.bf16.mxu0 0
    %429 = vmatpush1.bf16.msra.mxu0 0
    %430 = vmatprep.subr.bf16.mxu0 0
    %431 = vmatpush1.bf16.msra.mxu0 0
    %432 = vmatprep.subr.bf16.mxu0 0
    %433 = vmatpush1.bf16.msra.mxu0 0
    %434 = vmatprep.subr.bf16.mxu0 0
    %435 = vmatpush1.bf16.msra.mxu0 0
    %436 = vmatprep.subr.bf16.mxu0 0
    %437 = vmatpush1.bf16.msra.mxu0 0
    %438 = vmatprep.subr.bf16.mxu0 0
    %439 = vmatpush1.bf16.msra.mxu0 0
    %440 = vmatprep.subr.bf16.mxu0 0
    %441 = vmatpush1.bf16.msra.mxu0 0
    %442 = vmatprep.subr.bf16.mxu0 0
    %443 = vmatpush1.bf16.msra.mxu0 0
    %444 = vmatprep.subr.bf16.mxu0 0
    %445 = vmatpush1.bf16.msra.mxu0 0
    %446 = vmatprep.subr.bf16.mxu0 0
    %447 = vmatpush1.bf16.msra.mxu0 0
    %448 = vmatprep.subr.bf16.mxu0 0
    %449 = vmatpush1.bf16.msra.mxu0 0
    %450 = vmatprep.subr.bf16.mxu0 0
    %451 = vmatpush1.bf16.msra.mxu0 0
    %452 = vmatprep.subr.bf16.mxu0 0
    %453 = vmatpush1.bf16.msra.mxu0 0
    %454 = vmatprep.subr.bf16.mxu0 0
    %455 = vmatpush1.bf16.msra.mxu0 0
    %456 = vmatprep.subr.bf16.mxu0 0
    %457 = vmatpush1.bf16.msra.mxu0 0
    %458 = vmatprep.mubr.bf16.mxu0 0
    %459 = vmatmul.mubr.bf16.gmra.mrb[0].mxu0 %v421
    %v460 = vpop.f32.mrb[0].mxu0
    %v461 = vadd.f32 0.0, %v460
    %v462 = vpop.f32.mrb[0].mxu0
    %v463 = vpop.f32.mrb[0].mxu0
    %v464 = vpop.f32.mrb[0].mxu0
    %465 = vdwg.mxu0
    %466 = vrot.lane.b32.xlu0 %v84, 88
    %v467 = vpop.permute.xlu0 %466
    %v469 = vsel %vm85, %v417, 0
    %v472 = vsel %vm205, %v467, 0
    %474 = vmatprep.subr.bf16.mxu0 0
    %475 = vmatpush1.bf16.msra.mxu0 %v472
    %476 = vmatprep.subr.bf16.mxu0 0
    %477 = vmatpush1.bf16.msra.mxu0 0
    %478 = vmatprep.subr.bf16.mxu0 0
    %479 = vmatpush1.bf16.msra.mxu0 0
    %480 = vmatprep.subr.bf16.mxu0 0
    %481 = vmatpush1.bf16.msra.mxu0 0
    %482 = vmatprep.subr.bf16.mxu0 0
    %483 = vmatpush1.bf16.msra.mxu0 0
    %484 = vmatprep.subr.bf16.mxu0 0
    %485 = vmatpush1.bf16.msra.mxu0 0
    %486 = vmatprep.subr.bf16.mxu0 0
    %487 = vmatpush1.bf16.msra.mxu0 0
    %488 = vmatprep.subr.bf16.mxu0 0
    %489 = vmatpush1.bf16.msra.mxu0 0
    %490 = vmatprep.subr.bf16.mxu0 0
    %491 = vmatpush1.bf16.msra.mxu0 0
    %492 = vmatprep.subr.bf16.mxu0 0
    %493 = vmatpush1.bf16.msra.mxu0 0
    %494 = vmatprep.subr.bf16.mxu0 0
    %495 = vmatpush1.bf16.msra.mxu0 0
    %496 = vmatprep.subr.bf16.mxu0 0
    %497 = vmatpush1.bf16.msra.mxu0 0
    %498 = vmatprep.subr.bf16.mxu0 0
    %499 = vmatpush1.bf16.msra.mxu0 0
    %500 = vmatprep.subr.bf16.mxu0 0
    %501 = vmatpush1.bf16.msra.mxu0 0
    %502 = vmatprep.subr.bf16.mxu0 0
    %503 = vmatpush1.bf16.msra.mxu0 0
    %504 = vmatprep.subr.bf16.mxu0 0
    %505 = vmatpush1.bf16.msra.mxu0 0
    %506 = vmatprep.mubr.bf16.mxu0 0
    %507 = vmatmul.mubr.bf16.gmra.mrb[0].mxu0 %v469
    %v508 = vpop.f32.mrb[0].mxu0
    %v509 = vadd.f32 0.0, %v508
    %v510 = vpop.f32.mrb[0].mxu0
    %v511 = vpop.f32.mrb[0].mxu0
    %v512 = vpop.f32.mrb[0].mxu0
    %513 = vdwg.mxu0
    %514 = vrot.lane.b32.xlu0 %v82, 112
    %v515 = vpop.permute.xlu0 %514
    %516 = vrot.lane.b32.xlu0 %v83, 112
    %v517 = vpop.permute.xlu0 %516
    %v519 = vsel %vm85, %v515, 0
    %v522 = vsel %vm85, %v517, 0
    %524 = vmatprep.subr.bf16.mxu0 0
    %525 = vmatpush1.bf16.xpose.msra.mxu0 %v522
    %526 = vmatprep.subr.bf16.mxu0 0
    %527 = vmatpush1.bf16.xpose.msra.mxu0 0
    %528 = vmatprep.subr.bf16.mxu0 0
    %529 = vmatpush1.bf16.xpose.msra.mxu0 0
    %530 = vmatprep.subr.bf16.mxu0 0
    %531 = vmatpush1.bf16.xpose.msra.mxu0 0
    %532 = vmatprep.subr.bf16.mxu0 0
    %533 = vmatpush1.bf16.xpose.msra.mxu0 0
    %534 = vmatprep.subr.bf16.mxu0 0
    %535 = vmatpush1.bf16.xpose.msra.mxu0 0
    %536 = vmatprep.subr.bf16.mxu0 0
    %537 = vmatpush1.bf16.xpose.msra.mxu0 0
    %538 = vmatprep.subr.bf16.mxu0 0
    %539 = vmatpush1.bf16.xpose.msra.mxu0 0
    %540 = vmatprep.subr.bf16.mxu0 0
    %541 = vmatpush1.bf16.xpose.msra.mxu0 0
    %542 = vmatprep.subr.bf16.mxu0 0
    %543 = vmatpush1.bf16.xpose.msra.mxu0 0
    %544 = vmatprep.subr.bf16.mxu0 0
    %545 = vmatpush1.bf16.xpose.msra.mxu0 0
    %546 = vmatprep.subr.bf16.mxu0 0
    %547 = vmatpush1.bf16.xpose.msra.mxu0 0
    %548 = vmatprep.subr.bf16.mxu0 0
    %549 = vmatpush1.bf16.xpose.msra.mxu0 0
    %550 = vmatprep.subr.bf16.mxu0 0
    %551 = vmatpush1.bf16.xpose.msra.mxu0 0
    %552 = vmatprep.subr.bf16.mxu0 0
    %553 = vmatpush1.bf16.xpose.msra.mxu0 0
    %554 = vmatprep.subr.bf16.mxu0 0
    %555 = vmatpush1.bf16.xpose.msra.mxu0 0
    %556 = vmatprep.mubr.bf16.mxu0 0
    %557 = vmatmul.mubr.bf16.gmra.mrb[0].mxu0 %v519
    %v558 = vpop.f32.mrb[0].mxu0
    %v559 = vadd.f32 0.0, %v558
    %v560 = vpop.f32.mrb[0].mxu0
    %v561 = vpop.f32.mrb[0].mxu0
    %v562 = vpop.f32.mrb[0].mxu0
    %563 = vdwg.mxu0
    %564 = vrot.lane.b32.xlu0 %v84, 112
    %v565 = vpop.permute.xlu0 %564
    %v567 = vsel %vm85, %v565, 0
    %569 = vmatprep.subr.bf16.mxu0 0
    %570 = vmatpush1.bf16.xpose.msra.mxu0 %v567
    %571 = vmatprep.subr.bf16.mxu0 0
    %572 = vmatpush1.bf16.xpose.msra.mxu0 0
    %573 = vmatprep.subr.bf16.mxu0 0
    %574 = vmatpush1.bf16.xpose.msra.mxu0 0
    %575 = vmatprep.subr.bf16.mxu0 0
    %576 = vmatpush1.bf16.xpose.msra.mxu0 0
    %577 = vmatprep.subr.bf16.mxu0 0
    %578 = vmatpush1.bf16.xpose.msra.mxu0 0
    %579 = vmatprep.subr.bf16.mxu0 0
    %580 = vmatpush1.bf16.xpose.msra.mxu0 0
    %581 = vmatprep.subr.bf16.mxu0 0
    %582 = vmatpush1.bf16.xpose.msra.mxu0 0
    %583 = vmatprep.subr.bf16.mxu0 0
    %584 = vmatpush1.bf16.xpose.msra.mxu0 0
    %585 = vmatprep.subr.bf16.mxu0 0
    %586 = vmatpush1.bf16.xpose.msra.mxu0 0
    %587 = vmatprep.subr.bf16.mxu0 0
    %588 = vmatpush1.bf16.xpose.msra.mxu0 0
    %589 = vmatprep.subr.bf16.mxu0 0
    %590 = vmatpush1.bf16.xpose.msra.mxu0 0
    %591 = vmatprep.subr.bf16.mxu0 0
    %592 = vmatpush1.bf16.xpose.msra.mxu0 0
    %593 = vmatprep.subr.bf16.mxu0 0
    %594 = vmatpush1.bf16.xpose.msra.mxu0 0
    %595 = vmatprep.subr.bf16.mxu0 0
    %596 = vmatpush1.bf16.xpose.msra.mxu0 0
    %597 = vmatprep.subr.bf16.mxu0 0
    %598 = vmatpush1.bf16.xpose.msra.mxu0 0
    %599 = vmatprep.subr.bf16.mxu0 0
    %600 = vmatpush1.bf16.xpose.msra.mxu0 0
    %601 = vmatprep.mubr.bf16.mxu0 0
    %602 = vmatmul.mubr.bf16.gmra.mrb[0].mxu0 %v519
    %v603 = vpop.f32.mrb[0].mxu0
    %v604 = vadd.f32 0.0, %v603
    %v605 = vpop.f32.mrb[0].mxu0
    %v606 = vpop.f32.mrb[0].mxu0
    %v607 = vpop.f32.mrb[0].mxu0
    %608 = vdwg.mxu0
    %v609 = vsel %vm85, %v559, -inf
    %610 = vmax.xlane.f32.xlu0 %v609
    %v611 = vpop.xlane.xlu0 %610
    %v612 = vsel %vm85, %v604, -inf
    %613 = vmax.xlane.f32.xlu0 %v612
    %v614 = vpop.xlane.xlu0 %613
    %v615 = vsub.f32 %v559, %v611
    %v616 = vsub.f32 %v604, %v614
    %v617 = vmul.f32 %v615, 1.442695
    %v618 = vpow.pop %v617
    %v619 = vmul.f32 %v616, 1.442695
    %v620 = vpow.pop %v619
    %v621 = vsel %vm85, %v618, 0.0
    %622 = vadd.xlane.f32.xlu0 %v621
    %v623 = vpop.xlane.xlu0 %622
    %v624 = vsel %vm85, %v620, 0.0
    %625 = vadd.xlane.f32.xlu0 %v624
    %v626 = vpop.xlane.xlu0 %625
    %v627 = vrcp.pop %v623
    %v628 = vrcp.pop %v626
    %v629 = vmul.f32 %v618, %v627
    %v630 = vmul.f32 %v620, %v628
    %v631 = vpack.c.bf16 %v629, %v629
    %v632 = vpack.c.bf16 %v630, %v630
    %633 = vrot.lane.b32.xlu0 %v83, 80
    %v634 = vpop.permute.xlu0 %633
    %v636 = vsel %vm85, %v631, 0
    %v639 = vsel %vm205, %v634, 0
    %641 = vmatprep.subr.bf16.mxu0 0
    %642 = vmatpush1.bf16.msra.mxu0 %v639
    %643 = vmatprep.subr.bf16.mxu0 0
    %644 = vmatpush1.bf16.msra.mxu0 0
    %645 = vmatprep.subr.bf16.mxu0 0
    %646 = vmatpush1.bf16.msra.mxu0 0
    %647 = vmatprep.subr.bf16.mxu0 0
    %648 = vmatpush1.bf16.msra.mxu0 0
    %649 = vmatprep.subr.bf16.mxu0 0
    %650 = vmatpush1.bf16.msra.mxu0 0
    %651 = vmatprep.subr.bf16.mxu0 0
    %652 = vmatpush1.bf16.msra.mxu0 0
    %653 = vmatprep.subr.bf16.mxu0 0
    %654 = vmatpush1.bf16.msra.mxu0 0
    %655 = vmatprep.subr.bf16.mxu0 0
    %656 = vmatpush1.bf16.msra.mxu0 0
    %657 = vmatprep.subr.bf16.mxu0 0
    %658 = vmatpush1.bf16.msra.mxu0 0
    %659 = vmatprep.subr.bf16.mxu0 0
    %660 = vmatpush1.bf16.msra.mxu0 0
    %661 = vmatprep.subr.bf16.mxu0 0
    %662 = vmatpush1.bf16.msra.mxu0 0
    %663 = vmatprep.subr.bf16.mxu0 0
    %664 = vmatpush1.bf16.msra.mxu0 0
    %665 = vmatprep.subr.bf16.mxu0 0
    %666 = vmatpush1.bf16.msra.mxu0 0
    %667 = vmatprep.subr.bf16.mxu0 0
    %668 = vmatpush1.bf16.msra.mxu0 0
    %669 = vmatprep.subr.bf16.mxu0 0
    %670 = vmatpush1.bf16.msra.mxu0 0
    %671 = vmatprep.subr.bf16.mxu0 0
    %672 = vmatpush1.bf16.msra.mxu0 0
    %673 = vmatprep.mubr.bf16.mxu0 0
    %674 = vmatmul.mubr.bf16.gmra.mrb[0].mxu0 %v636
    %v675 = vpop.f32.mrb[0].mxu0
    %v676 = vadd.f32 0.0, %v675
    %v677 = vpop.f32.mrb[0].mxu0
    %v678 = vpop.f32.mrb[0].mxu0
    %v679 = vpop.f32.mrb[0].mxu0
    %680 = vdwg.mxu0
    %681 = vrot.lane.b32.xlu0 %v84, 80
    %v682 = vpop.permute.xlu0 %681
    %v684 = vsel %vm85, %v632, 0
    %v687 = vsel %vm205, %v682, 0
    %689 = vmatprep.subr.bf16.mxu0 0
    %690 = vmatpush1.bf16.msra.mxu0 %v687
    %691 = vmatprep.subr.bf16.mxu0 0
    %692 = vmatpush1.bf16.msra.mxu0 0
    %693 = vmatprep.subr.bf16.mxu0 0
    %694 = vmatpush1.bf16.msra.mxu0 0
    %695 = vmatprep.subr.bf16.mxu0 0
    %696 = vmatpush1.bf16.msra.mxu0 0
    %697 = vmatprep.subr.bf16.mxu0 0
    %698 = vmatpush1.bf16.msra.mxu0 0
    %699 = vmatprep.subr.bf16.mxu0 0
    %700 = vmatpush1.bf16.msra.mxu0 0
    %701 = vmatprep.subr.bf16.mxu0 0
    %702 = vmatpush1.bf16.msra.mxu0 0
    %703 = vmatprep.subr.bf16.mxu0 0
    %704 = vmatpush1.bf16.msra.mxu0 0
    %705 = vmatprep.subr.bf16.mxu0 0
    %706 = vmatpush1.bf16.msra.mxu0 0
    %707 = vmatprep.subr.bf16.mxu0 0
    %708 = vmatpush1.bf16.msra.mxu0 0
    %709 = vmatprep.subr.bf16.mxu0 0
    %710 = vmatpush1.bf16.msra.mxu0 0
    %711 = vmatprep.subr.bf16.mxu0 0
    %712 = vmatpush1.bf16.msra.mxu0 0
    %713 = vmatprep.subr.bf16.mxu0 0
    %714 = vmatpush1.bf16.msra.mxu0 0
    %715 = vmatprep.subr.bf16.mxu0 0
    %716 = vmatpush1.bf16.msra.mxu0 0
    %717 = vmatprep.subr.bf16.mxu0 0
    %718 = vmatpush1.bf16.msra.mxu0 0
    %719 = vmatprep.subr.bf16.mxu0 0
    %720 = vmatpush1.bf16.msra.mxu0 0
    %721 = vmatprep.mubr.bf16.mxu0 0
    %722 = vmatmul.mubr.bf16.gmra.mrb[0].mxu0 %v684
    %v723 = vpop.f32.mrb[0].mxu0
    %v724 = vadd.f32 0.0, %v723
    %v725 = vpop.f32.mrb[0].mxu0
    %v726 = vpop.f32.mrb[0].mxu0
    %v727 = vpop.f32.mrb[0].mxu0
    %728 = vdwg.mxu0
    %729 = vrot.lane.b32.xlu0 %v82, 104
    %v730 = vpop.permute.xlu0 %729
    %731 = vrot.lane.b32.xlu0 %v83, 104
    %v732 = vpop.permute.xlu0 %731
    %v734 = vsel %vm85, %v730, 0
    %v737 = vsel %vm85, %v732, 0
    %739 = vmatprep.subr.bf16.mxu0 0
    %740 = vmatpush1.bf16.xpose.msra.mxu0 %v737
    %741 = vmatprep.subr.bf16.mxu0 0
    %742 = vmatpush1.bf16.xpose.msra.mxu0 0
    %743 = vmatprep.subr.bf16.mxu0 0
    %744 = vmatpush1.bf16.xpose.msra.mxu0 0
    %745 = vmatprep.subr.bf16.mxu0 0
    %746 = vmatpush1.bf16.xpose.msra.mxu0 0
    %747 = vmatprep.subr.bf16.mxu0 0
    %748 = vmatpush1.bf16.xpose.msra.mxu0 0
    %749 = vmatprep.subr.bf16.mxu0 0
    %750 = vmatpush1.bf16.xpose.msra.mxu0 0
    %751 = vmatprep.subr.bf16.mxu0 0
    %752 = vmatpush1.bf16.xpose.msra.mxu0 0
    %753 = vmatprep.subr.bf16.mxu0 0
    %754 = vmatpush1.bf16.xpose.msra.mxu0 0
    %755 = vmatprep.subr.bf16.mxu0 0
    %756 = vmatpush1.bf16.xpose.msra.mxu0 0
    %757 = vmatprep.subr.bf16.mxu0 0
    %758 = vmatpush1.bf16.xpose.msra.mxu0 0
    %759 = vmatprep.subr.bf16.mxu0 0
    %760 = vmatpush1.bf16.xpose.msra.mxu0 0
    %761 = vmatprep.subr.bf16.mxu0 0
    %762 = vmatpush1.bf16.xpose.msra.mxu0 0
    %763 = vmatprep.subr.bf16.mxu0 0
    %764 = vmatpush1.bf16.xpose.msra.mxu0 0
    %765 = vmatprep.subr.bf16.mxu0 0
    %766 = vmatpush1.bf16.xpose.msra.mxu0 0
    %767 = vmatprep.subr.bf16.mxu0 0
    %768 = vmatpush1.bf16.xpose.msra.mxu0 0
    %769 = vmatprep.subr.bf16.mxu0 0
    %770 = vmatpush1.bf16.xpose.msra.mxu0 0
    %771 = vmatprep.mubr.bf16.mxu0 0
    %772 = vmatmul.mubr.bf16.gmra.mrb[0].mxu0 %v734
    %v773 = vpop.f32.mrb[0].mxu0
    %v774 = vadd.f32 0.0, %v773
    %v775 = vpop.f32.mrb[0].mxu0
    %v776 = vpop.f32.mrb[0].mxu0
    %v777 = vpop.f32.mrb[0].mxu0
    %778 = vdwg.mxu0
    %779 = vrot.lane.b32.xlu0 %v84, 104
    %v780 = vpop.permute.xlu0 %779
    %v782 = vsel %vm85, %v780, 0
    %784 = vmatprep.subr.bf16.mxu0 0
    %785 = vmatpush1.bf16.xpose.msra.mxu0 %v782
    %786 = vmatprep.subr.bf16.mxu0 0
    %787 = vmatpush1.bf16.xpose.msra.mxu0 0
    %788 = vmatprep.subr.bf16.mxu0 0
    %789 = vmatpush1.bf16.xpose.msra.mxu0 0
    %790 = vmatprep.subr.bf16.mxu0 0
    %791 = vmatpush1.bf16.xpose.msra.mxu0 0
    %792 = vmatprep.subr.bf16.mxu0 0
    %793 = vmatpush1.bf16.xpose.msra.mxu0 0
    %794 = vmatprep.subr.bf16.mxu0 0
    %795 = vmatpush1.bf16.xpose.msra.mxu0 0
    %796 = vmatprep.subr.bf16.mxu0 0
    %797 = vmatpush1.bf16.xpose.msra.mxu0 0
    %798 = vmatprep.subr.bf16.mxu0 0
    %799 = vmatpush1.bf16.xpose.msra.mxu0 0
    %800 = vmatprep.subr.bf16.mxu0 0
    %801 = vmatpush1.bf16.xpose.msra.mxu0 0
    %802 = vmatprep.subr.bf16.mxu0 0
    %803 = vmatpush1.bf16.xpose.msra.mxu0 0
    %804 = vmatprep.subr.bf16.mxu0 0
    %805 = vmatpush1.bf16.xpose.msra.mxu0 0
    %806 = vmatprep.subr.bf16.mxu0 0
    %807 = vmatpush1.bf16.xpose.msra.mxu0 0
    %808 = vmatprep.subr.bf16.mxu0 0
    %809 = vmatpush1.bf16.xpose.msra.mxu0 0
    %810 = vmatprep.subr.bf16.mxu0 0
    %811 = vmatpush1.bf16.xpose.msra.mxu0 0
    %812 = vmatprep.subr.bf16.mxu0 0
    %813 = vmatpush1.bf16.xpose.msra.mxu0 0
    %814 = vmatprep.subr.bf16.mxu0 0
    %815 = vmatpush1.bf16.xpose.msra.mxu0 0
    %816 = vmatprep.mubr.bf16.mxu0 0
    %817 = vmatmul.mubr.bf16.gmra.mrb[0].mxu0 %v734
    %v818 = vpop.f32.mrb[0].mxu0
    %v819 = vadd.f32 0.0, %v818
    %v820 = vpop.f32.mrb[0].mxu0
    %v821 = vpop.f32.mrb[0].mxu0
    %v822 = vpop.f32.mrb[0].mxu0
    %823 = vdwg.mxu0
    %v824 = vsel %vm85, %v774, -inf
    %825 = vmax.xlane.f32.xlu0 %v824
    %v826 = vpop.xlane.xlu0 %825
    %v827 = vsel %vm85, %v819, -inf
    %828 = vmax.xlane.f32.xlu0 %v827
    %v829 = vpop.xlane.xlu0 %828
    %v830 = vsub.f32 %v774, %v826
    %v831 = vsub.f32 %v819, %v829
    %v832 = vmul.f32 %v830, 1.442695
    %v833 = vpow.pop %v832
    %v834 = vmul.f32 %v831, 1.442695
    %v835 = vpow.pop %v834
    %v836 = vsel %vm85, %v833, 0.0
    %837 = vadd.xlane.f32.xlu0 %v836
    %v838 = vpop.xlane.xlu0 %837
    %v839 = vsel %vm85, %v835, 0.0
    %840 = vadd.xlane.f32.xlu0 %v839
    %v841 = vpop.xlane.xlu0 %840
    %v842 = vrcp.pop %v838
    %v843 = vrcp.pop %v841
    %v844 = vmul.f32 %v833, %v842
    %v845 = vmul.f32 %v835, %v843
    %v846 = vpack.c.bf16 %v844, %v844
    %v847 = vpack.c.bf16 %v845, %v845
    %848 = vrot.lane.b32.xlu0 %v83, 72
    %v849 = vpop.permute.xlu0 %848
    %v851 = vsel %vm85, %v846, 0
    %v854 = vsel %vm205, %v849, 0
    %856 = vmatprep.subr.bf16.mxu0 0
    %857 = vmatpush1.bf16.msra.mxu0 %v854
    %858 = vmatprep.subr.bf16.mxu0 0
    %859 = vmatpush1.bf16.msra.mxu0 0
    %860 = vmatprep.subr.bf16.mxu0 0
    %861 = vmatpush1.bf16.msra.mxu0 0
    %862 = vmatprep.subr.bf16.mxu0 0
    %863 = vmatpush1.bf16.msra.mxu0 0
    %864 = vmatprep.subr.bf16.mxu0 0
    %865 = vmatpush1.bf16.msra.mxu0 0
    %866 = vmatprep.subr.bf16.mxu0 0
    %867 = vmatpush1.bf16.msra.mxu0 0
    %868 = vmatprep.subr.bf16.mxu0 0
    %869 = vmatpush1.bf16.msra.mxu0 0
    %870 = vmatprep.subr.bf16.mxu0 0
    %871 = vmatpush1.bf16.msra.mxu0 0
    %872 = vmatprep.subr.bf16.mxu0 0
    %873 = vmatpush1.bf16.msra.mxu0 0
    %874 = vmatprep.subr.bf16.mxu0 0
    %875 = vmatpush1.bf16.msra.mxu0 0
    %876 = vmatprep.subr.bf16.mxu0 0
    %877 = vmatpush1.bf16.msra.mxu0 0
    %878 = vmatprep.subr.bf16.mxu0 0
    %879 = vmatpush1.bf16.msra.mxu0 0
    %880 = vmatprep.subr.bf16.mxu0 0
    %881 = vmatpush1.bf16.msra.mxu0 0
    %882 = vmatprep.subr.bf16.mxu0 0
    %883 = vmatpush1.bf16.msra.mxu0 0
    %884 = vmatprep.subr.bf16.mxu0 0
    %885 = vmatpush1.bf16.msra.mxu0 0
    %886 = vmatprep.subr.bf16.mxu0 0
    %887 = vmatpush1.bf16.msra.mxu0 0
    %888 = vmatprep.mubr.bf16.mxu0 0
    %889 = vmatmul.mubr.bf16.gmra.mrb[0].mxu0 %v851
    %v890 = vpop.f32.mrb[0].mxu0
    %v891 = vadd.f32 0.0, %v890
    %v892 = vpop.f32.mrb[0].mxu0
    %v893 = vpop.f32.mrb[0].mxu0
    %v894 = vpop.f32.mrb[0].mxu0
    %895 = vdwg.mxu0
    %896 = vrot.lane.b32.xlu0 %v84, 72
    %v897 = vpop.permute.xlu0 %896
    %v899 = vsel %vm85, %v847, 0
    %v902 = vsel %vm205, %v897, 0
    %904 = vmatprep.subr.bf16.mxu0 0
    %905 = vmatpush1.bf16.msra.mxu0 %v902
    %906 = vmatprep.subr.bf16.mxu0 0
    %907 = vmatpush1.bf16.msra.mxu0 0
    %908 = vmatprep.subr.bf16.mxu0 0
    %909 = vmatpush1.bf16.msra.mxu0 0
    %910 = vmatprep.subr.bf16.mxu0 0
    %911 = vmatpush1.bf16.msra.mxu0 0
    %912 = vmatprep.subr.bf16.mxu0 0
    %913 = vmatpush1.bf16.msra.mxu0 0
    %914 = vmatprep.subr.bf16.mxu0 0
    %915 = vmatpush1.bf16.msra.mxu0 0
    %916 = vmatprep.subr.bf16.mxu0 0
    %917 = vmatpush1.bf16.msra.mxu0 0
    %918 = vmatprep.subr.bf16.mxu0 0
    %919 = vmatpush1.bf16.msra.mxu0 0
    %920 = vmatprep.subr.bf16.mxu0 0
    %921 = vmatpush1.bf16.msra.mxu0 0
    %922 = vmatprep.subr.bf16.mxu0 0
    %923 = vmatpush1.bf16.msra.mxu0 0
    %924 = vmatprep.subr.bf16.mxu0 0
    %925 = vmatpush1.bf16.msra.mxu0 0
    %926 = vmatprep.subr.bf16.mxu0 0
    %927 = vmatpush1.bf16.msra.mxu0 0
    %928 = vmatprep.subr.bf16.mxu0 0
    %929 = vmatpush1.bf16.msra.mxu0 0
    %930 = vmatprep.subr.bf16.mxu0 0
    %931 = vmatpush1.bf16.msra.mxu0 0
    %932 = vmatprep.subr.bf16.mxu0 0
    %933 = vmatpush1.bf16.msra.mxu0 0
    %934 = vmatprep.subr.bf16.mxu0 0
    %935 = vmatpush1.bf16.msra.mxu0 0
    %936 = vmatprep.mubr.bf16.mxu0 0
    %937 = vmatmul.mubr.bf16.gmra.mrb[0].mxu0 %v899
    %v938 = vpop.f32.mrb[0].mxu0
    %v939 = vadd.f32 0.0, %v938
    %v940 = vpop.f32.mrb[0].mxu0
    %v941 = vpop.f32.mrb[0].mxu0
    %v942 = vpop.f32.mrb[0].mxu0
    %943 = vdwg.mxu0
    %946 = vrot.lane.b32.xlu0 %v461, 8
    %v947 = vpop.permute.xlu0 %946
    %948 = vrot.lane.b32.xlu0 %v509, 8
    %v949 = vpop.permute.xlu0 %948
    %954 = vrot.lane.b32.xlu0 %v676, 16
    %v955 = vpop.permute.xlu0 %954
    %956 = vrot.lane.b32.xlu0 %v724, 16
    %v957 = vpop.permute.xlu0 %956
    %962 = vrot.lane.b32.xlu0 %v891, 24
    %v963 = vpop.permute.xlu0 %962
    %964 = vrot.lane.b32.xlu0 %v939, 24
    %v965 = vpop.permute.xlu0 %964
    %v968 = vsel %vm85, %v244, %v947
    %v969 = vsel %vm85, %v293, %v949
    %vm970 = vcmask 130048
    %v971 = vsel %vm970, %v968, %v955
    %v972 = vsel %vm970, %v969, %v957
    %vm973 = vcmask 195584
    %v974 = vsel %vm973, %v971, %v963
    %v975 = vsel %vm973, %v972, %v965
    %v976 = vadd.f32 %v81, %v974
    %v977 = vadd.f32 %v81, %v975
    %v978 = vpack.c.bf16 %v977, %v976
    %v979 = vld [vmem:[%s1 + $0x4] sm:$0xf]
    %v980 = vld [vmem:[%s1 + $0x8] sm:$0xf]
    %v981 = vld [vmem:[%s1 + $0xc] sm:$0xf]
    %v982 = vld [vmem:[%s1 + $0x10] sm:$0xf]
    %v983 = vld [vmem:[%s2 + $0x1] sm:$0x1]
    %v984 = vlaneseq
    %v985 = vshrl.u32 %v984, 7
    %v986 = vsub.s32 0, %v985
    %v987 = vrot.slane %v983, %v986
    %v992 = vunpack.c.l.b16 %v979
    %v993 = vunpack.c.l.b16 %v980
    %v994 = vunpack.c.l.b16 %v981
    %v995 = vunpack.c.l.b16 %v982
    %v996 = vpack.c.b16 %v993, %v992
    %v997 = vpack.c.b16 %v995, %v994
    %vm1000 = vcmask 261120
    %v1002 = vsel %vm1000, %v978, 0
    %1004 = vmatprep.subr.bf16.mxu0 0
    %1005 = vmatpush1.bf16.msra.mxu0 %v996
    %1006 = vmatprep.subr.bf16.mxu0 0
    %1007 = vmatpush1.bf16.msra.mxu0 %v997
    %1008 = vmatprep.subr.bf16.mxu0 0
    %1009 = vmatpush1.bf16.msra.mxu0 0
    %1010 = vmatprep.subr.bf16.mxu0 0
    %1011 = vmatpush1.bf16.msra.mxu0 0
    %1012 = vmatprep.subr.bf16.mxu0 0
    %1013 = vmatpush1.bf16.msra.mxu0 0
    %1014 = vmatprep.subr.bf16.mxu0 0
    %1015 = vmatpush1.bf16.msra.mxu0 0
    %1016 = vmatprep.subr.bf16.mxu0 0
    %1017 = vmatpush1.bf16.msra.mxu0 0
    %1018 = vmatprep.subr.bf16.mxu0 0
    %1019 = vmatpush1.bf16.msra.mxu0 0
    %1020 = vmatprep.subr.bf16.mxu0 0
    %1021 = vmatpush1.bf16.msra.mxu0 0
    %1022 = vmatprep.subr.bf16.mxu0 0
    %1023 = vmatpush1.bf16.msra.mxu0 0
    %1024 = vmatprep.subr.bf16.mxu0 0
    %1025 = vmatpush1.bf16.msra.mxu0 0
    %1026 = vmatprep.subr.bf16.mxu0 0
    %1027 = vmatpush1.bf16.msra.mxu0 0
    %1028 = vmatprep.subr.bf16.mxu0 0
    %1029 = vmatpush1.bf16.msra.mxu0 0
    %1030 = vmatprep.subr.bf16.mxu0 0
    %1031 = vmatpush1.bf16.msra.mxu0 0
    %1032 = vmatprep.subr.bf16.mxu0 0
    %1033 = vmatpush1.bf16.msra.mxu0 0
    %1034 = vmatprep.subr.bf16.mxu0 0
    %1035 = vmatpush1.bf16.msra.mxu0 0
    %1036 = vmatprep.mubr.bf16.mxu0 0
    %1037 = vmatmul.mubr.bf16.gmra.mrb[0].mxu0 %v1002
    %v1038 = vpop.f32.mrb[0].mxu0
    %v1039 = vadd.f32 %v987, %v1038
    %v1040 = vpop.f32.mrb[0].mxu0
    %v1041 = vpop.f32.mrb[0].mxu0
    %v1042 = vadd.f32 %v987, %v1041
    %v1043 = vpop.f32.mrb[0].mxu0
    %1044 = vdwg.mxu0
    %v1045 = vmax.f32 %v1039, 0.0
    %v1046 = vmax.f32 %v1042, 0.0
    %v1047 = vadd.f32 %v976, %v1045
    %v1048 = vadd.f32 %v977, %v1046
    %v1049 = vpack.c.bf16 %v1048, %v1047
    %v1050 = vld [vmem:[%s1 + $0x14] sm:$0xf]
    %v1051 = vld [vmem:[%s1 + $0x18] sm:$0xf]
    %v1052 = vld [vmem:[%s1 + $0x1c] sm:$0xf]
    %v1053 = vld [vmem:[%s1 + $0x20] sm:$0xf]
    %v1054 = vld [vmem:[%s2 + $0x2] sm:$0x1]
    %v1055 = vlaneseq
    %v1056 = vshrl.u32 %v1055, 7
    %v1057 = vsub.s32 0, %v1056
    %v1058 = vrot.slane %v1054, %v1057
    %v1063 = vunpack.c.l.b16 %v1050
    %v1064 = vunpack.c.l.b16 %v1051
    %v1065 = vunpack.c.l.b16 %v1052
    %v1066 = vunpack.c.l.b16 %v1053
    %v1067 = vpack.c.b16 %v1064, %v1063
    %v1068 = vpack.c.b16 %v1066, %v1065
    %v1072 = vsel %vm1000, %v1049, 0
    %1074 = vmatprep.subr.bf16.mxu0 0
    %1075 = vmatpush1.bf16.msra.mxu0 %v1067
    %1076 = vmatprep.subr.bf16.mxu0 0
    %1077 = vmatpush1.bf16.msra.mxu0 %v1068
    %1078 = vmatprep.subr.bf16.mxu0 0
    %1079 = vmatpush1.bf16.msra.mxu0 0
    %1080 = vmatprep.subr.bf16.mxu0 0
    %1081 = vmatpush1.bf16.msra.mxu0 0
    %1082 = vmatprep.subr.bf16.mxu0 0
    %1083 = vmatpush1.bf16.msra.mxu0 0
    %1084 = vmatprep.subr.bf16.mxu0 0
    %1085 = vmatpush1.bf16.msra.mxu0 0
    %1086 = vmatprep.subr.bf16.mxu0 0
    %1087 = vmatpush1.bf16.msra.mxu0 0
    %1088 = vmatprep.subr.bf16.mxu0 0
    %1089 = vmatpush1.bf16.msra.mxu0 0
    %1090 = vmatprep.subr.bf16.mxu0 0
    %1091 = vmatpush1.bf16.msra.mxu0 0
    %1092 = vmatprep.subr.bf16.mxu0 0
    %1093 = vmatpush1.bf16.msra.mxu0 0
    %1094 = vmatprep.subr.bf16.mxu0 0
    %1095 = vmatpush1.bf16.msra.mxu0 0
    %1096 = vmatprep.subr.bf16.mxu0 0
    %1097 = vmatpush1.bf16.msra.mxu0 0
    %1098 = vmatprep.subr.bf16.mxu0 0
    %1099 = vmatpush1.bf16.msra.mxu0 0
    %1100 = vmatprep.subr.bf16.mxu0 0
    %1101 = vmatpush1.bf16.msra.mxu0 0
    %1102 = vmatprep.subr.bf16.mxu0 0
    %1103 = vmatpush1.bf16.msra.mxu0 0
    %1104 = vmatprep.subr.bf16.mxu0 0
    %1105 = vmatpush1.bf16.msra.mxu0 0
    %1106 = vmatprep.mubr.bf16.mxu0 0
    %1107 = vmatmul.mubr.bf16.gmra.mrb[0].mxu0 %v1072
    %v1108 = vpop.f32.mrb[0].mxu0
    %v1109 = vadd.f32 %v1058, %v1108
    %v1110 = vpop.f32.mrb[0].mxu0
    %v1111 = vpop.f32.mrb[0].mxu0
    %v1112 = vadd.f32 %v1058, %v1111
    %v1113 = vpop.f32.mrb[0].mxu0
    %1114 = vdwg.mxu0
    %v1115 = vpack.c.bf16 %v1109, %v1109
    %v1116 = vpack.c.bf16 %v1112, %v1112
    %1117 = vrot.lane.b32.xlu0 %v83, 64
    %v1118 = vpop.permute.xlu0 %1117
    %v1120 = vsel %vm85, %v1118, 0
    %v1123 = vsel %vm85, %v1115, 0
    %1125 = vmatprep.subr.bf16.mxu0 0
    %1126 = vmatpush1.bf16.xpose.msra.mxu0 %v1123
    %1127 = vmatprep.subr.bf16.mxu0 0
    %1128 = vmatpush1.bf16.xpose.msra.mxu0 0
    %1129 = vmatprep.subr.bf16.mxu0 0
    %1130 = vmatpush1.bf16.xpose.msra.mxu0 0
    %1131 = vmatprep.subr.bf16.mxu0 0
    %1132 = vmatpush1.bf16.xpose.msra.mxu0 0
    %1133 = vmatprep.subr.bf16.mxu0 0
    %1134 = vmatpush1.bf16.xpose.msra.mxu0 0
    %1135 = vmatprep.subr.bf16.mxu0 0
    %1136 = vmatpush1.bf16.xpose.msra.mxu0 0
    %1137 = vmatprep.subr.bf16.mxu0 0
    %1138 = vmatpush1.bf16.xpose.msra.mxu0 0
    %1139 = vmatprep.subr.bf16.mxu0 0
    %1140 = vmatpush1.bf16.xpose.msra.mxu0 0
    %1141 = vmatprep.subr.bf16.mxu0 0
    %1142 = vmatpush1.bf16.xpose.msra.mxu0 0
    %1143 = vmatprep.subr.bf16.mxu0 0
    %1144 = vmatpush1.bf16.xpose.msra.mxu0 0
    %1145 = vmatprep.subr.bf16.mxu0 0
    %1146 = vmatpush1.bf16.xpose.msra.mxu0 0
    %1147 = vmatprep.subr.bf16.mxu0 0
    %1148 = vmatpush1.bf16.xpose.msra.mxu0 0
    %1149 = vmatprep.subr.bf16.mxu0 0
    %1150 = vmatpush1.bf16.xpose.msra.mxu0 0
    %1151 = vmatprep.subr.bf16.mxu0 0
    %1152 = vmatpush1.bf16.xpose.msra.mxu0 0
    %1153 = vmatprep.subr.bf16.mxu0 0
    %1154 = vmatpush1.bf16.xpose.msra.mxu0 0
    %1155 = vmatprep.subr.bf16.mxu0 0
    %1156 = vmatpush1.bf16.xpose.msra.mxu0 0
    %1157 = vmatprep.mubr.bf16.mxu0 0
    %1158 = vmatmul.mubr.bf16.gmra.mrb[0].mxu0 %v1120
    %v1159 = vpop.f32.mrb[0].mxu0
    %v1160 = vadd.f32 0.0, %v1159
    %v1161 = vpop.f32.mrb[0].mxu0
    %v1162 = vpop.f32.mrb[0].mxu0
    %v1163 = vpop.f32.mrb[0].mxu0
    %1164 = vdwg.mxu0
    %1165 = vrot.lane.b32.xlu0 %v84, 64
    %v1166 = vpop.permute.xlu0 %1165
    %v1168 = vsel %vm85, %v1166, 0
    %v1171 = vsel %vm85, %v1116, 0
    %1173 = vmatprep.subr.bf16.mxu0 0
    %1174 = vmatpush1.bf16.xpose.msra.mxu0 %v1171
    %1175 = vmatprep.subr.bf16.mxu0 0
    %1176 = vmatpush1.bf16.xpose.msra.mxu0 0
    %1177 = vmatprep.subr.bf16.mxu0 0
    %1178 = vmatpush1.bf16.xpose.msra.mxu0 0
    %1179 = vmatprep.subr.bf16.mxu0 0
    %1180 = vmatpush1.bf16.xpose.msra.mxu0 0
    %1181 = vmatprep.subr.bf16.mxu0 0
    %1182 = vmatpush1.bf16.xpose.msra.mxu0 0
    %1183 = vmatprep.subr.bf16.mxu0 0
    %1184 = vmatpush1.bf16.xpose.msra.mxu0 0
    %1185 = vmatprep.subr.bf16.mxu0 0
    %1186 = vmatpush1.bf16.xpose.msra.mxu0 0
    %1187 = vmatprep.subr.bf16.mxu0 0
    %1188 = vmatpush1.bf16.xpose.msra.mxu0 0
    %1189 = vmatprep.subr.bf16.mxu0 0
    %1190 = vmatpush1.bf16.xpose.msra.mxu0 0
    %1191 = vmatprep.subr.bf16.mxu0 0
    %1192 = vmatpush1.bf16.xpose.msra.mxu0 0
    %1193 = vmatprep.subr.bf16.mxu0 0
    %1194 = vmatpush1.bf16.xpose.msra.mxu0 0
    %1195 = vmatprep.subr.bf16.mxu0 0
    %1196 = vmatpush1.bf16.xpose.msra.mxu0 0
    %1197 = vmatprep.subr.bf16.mxu0 0
    %1198 = vmatpush1.bf16.xpose.msra.mxu0 0
    %1199 = vmatprep.subr.bf16.mxu0 0
    %1200 = vmatpush1.bf16.xpose.msra.mxu0 0
    %1201 = vmatprep.subr.bf16.mxu0 0
    %1202 = vmatpush1.bf16.xpose.msra.mxu0 0
    %1203 = vmatprep.subr.bf16.mxu0 0
    %1204 = vmatpush1.bf16.xpose.msra.mxu0 0
    %1205 = vmatprep.mubr.bf16.mxu0 0
    %1206 = vmatmul.mubr.bf16.gmra.mrb[0].mxu0 %v1168
    %v1207 = vpop.f32.mrb[0].mxu0
    %v1208 = vadd.f32 0.0, %v1207
    %v1209 = vpop.f32.mrb[0].mxu0
    %v1210 = vpop.f32.mrb[0].mxu0
    %v1211 = vpop.f32.mrb[0].mxu0
    %1212 = vdwg.mxu0
    %v1213 = vsel %vm85, %v1160, -inf
    %1214 = vmax.xlane.f32.xlu0 %v1213
    %v1215 = vpop.xlane.xlu0 %1214
    %v1216 = vsel %vm85, %v1208, -inf
    %1217 = vmax.xlane.f32.xlu0 %v1216
    %v1218 = vpop.xlane.xlu0 %1217
    %v1219 = vsub.f32 %v1160, %v1215
    %v1220 = vsub.f32 %v1208, %v1218
    %v1221 = vmul.f32 %v1219, 1.442695
    %v1222 = vpow.pop %v1221
    %v1223 = vmul.f32 %v1220, 1.442695
    %v1224 = vpow.pop %v1223
    %v1225 = vsel %vm85, %v1222, 0.0
    %1226 = vadd.xlane.f32.xlu0 %v1225
    %v1227 = vpop.xlane.xlu0 %1226
    %v1228 = vsel %vm85, %v1224, 0.0
    %1229 = vadd.xlane.f32.xlu0 %v1228
    %v1230 = vpop.xlane.xlu0 %1229
    %v1231 = vrcp.pop %v1227
    %v1232 = vrcp.pop %v1230
    %v1233 = vmul.f32 %v1222, %v1231
    %v1234 = vmul.f32 %v1224, %v1232
    %v1235 = vpack.c.bf16 %v1233, %v1233
    %v1236 = vpack.c.bf16 %v1234, %v1234
    %1238 = vrot.lane.b32.xlu0 %v1115, 96
    %v1239 = vpop.permute.xlu0 %1238
    %v1241 = vsel %vm85, %v1235, 0
    %v1244 = vsel %vm205, %v1239, 0
    %1246 = vmatprep.subr.bf16.mxu0 0
    %1247 = vmatpush1.bf16.msra.mxu0 %v1244
    %1248 = vmatprep.subr.bf16.mxu0 0
    %1249 = vmatpush1.bf16.msra.mxu0 0
    %1250 = vmatprep.subr.bf16.mxu0 0
    %1251 = vmatpush1.bf16.msra.mxu0 0
    %1252 = vmatprep.subr.bf16.mxu0 0
    %1253 = vmatpush1.bf16.msra.mxu0 0
    %1254 = vmatprep.subr.bf16.mxu0 0
    %1255 = vmatpush1.bf16.msra.mxu0 0
    %1256 = vmatprep.subr.bf16.mxu0 0
    %1257 = vmatpush1.bf16.msra.mxu0 0
    %1258 = vmatprep.subr.bf16.mxu0 0
    %1259 = vmatpush1.bf16.msra.mxu0 0
    %1260 = vmatprep.subr.bf16.mxu0 0
    %1261 = vmatpush1.bf16.msra.mxu0 0
    %1262 = vmatprep.subr.bf16.mxu0 0
    %1263 = vmatpush1.bf16.msra.mxu0 0
    %1264 = vmatprep.subr.bf16.mxu0 0
    %1265 = vmatpush1.bf16.msra.mxu0 0
    %1266 = vmatprep.subr.bf16.mxu0 0
    %1267 = vmatpush1.bf16.msra.mxu0 0
    %1268 = vmatprep.subr.bf16.mxu0 0
    %1269 = vmatpush1.bf16.msra.mxu0 0
    %1270 = vmatprep.subr.bf16.mxu0 0
    %1271 = vmatpush1.bf16.msra.mxu0 0
    %1272 = vmatprep.subr.bf16.mxu0 0
    %1273 = vmatpush1.bf16.msra.mxu0 0
    %1274 = vmatprep.subr.bf16.mxu0 0
    %1275 = vmatpush1.bf16.msra.mxu0 0
    %1276 = vmatprep.subr.bf16.mxu0 0
    %1277 = vmatpush1.bf16.msra.mxu0 0
    %1278 = vmatprep.mubr.bf16.mxu0 0
    %1279 = vmatmul.mubr.bf16.gmra.mrb[0].mxu0 %v1241
    %v1280 = vpop.f32.mrb[0].mxu0
    %v1281 = vadd.f32 0.0, %v1280
    %v1282 = vpop.f32.mrb[0].mxu0
    %v1283 = vpop.f32.mrb[0].mxu0
    %v1284 = vpop.f32.mrb[0].mxu0
    %1285 = vdwg.mxu0
    %1287 = vrot.lane.b32.xlu0 %v1116, 96
    %v1288 = vpop.permute.xlu0 %1287
    %v1290 = vsel %vm85, %v1236, 0
    %v1293 = vsel %vm205, %v1288, 0
    %1295 = vmatprep.subr.bf16.mxu0 0
    %1296 = vmatpush1.bf16.msra.mxu0 %v1293
    %1297 = vmatprep.subr.bf16.mxu0 0
    %1298 = vmatpush1.bf16.msra.mxu0 0
    %1299 = vmatprep.subr.bf16.mxu0 0
    %1300 = vmatpush1.bf16.msra.mxu0 0
    %1301 = vmatprep.subr.bf16.mxu0 0
    %1302 = vmatpush1.bf16.msra.mxu0 0
    %1303 = vmatprep.subr.bf16.mxu0 0
    %1304 = vmatpush1.bf16.msra.mxu0 0
    %1305 = vmatprep.subr.bf16.mxu0 0
    %1306 = vmatpush1.bf16.msra.mxu0 0
    %1307 = vmatprep.subr.bf16.mxu0 0
    %1308 = vmatpush1.bf16.msra.mxu0 0
    %1309 = vmatprep.subr.bf16.mxu0 0
    %1310 = vmatpush1.bf16.msra.mxu0 0
    %1311 = vmatprep.subr.bf16.mxu0 0
    %1312 = vmatpush1.bf16.msra.mxu0 0
    %1313 = vmatprep.subr.bf16.mxu0 0
    %1314 = vmatpush1.bf16.msra.mxu0 0
    %1315 = vmatprep.subr.bf16.mxu0 0
    %1316 = vmatpush1.bf16.msra.mxu0 0
    %1317 = vmatprep.subr.bf16.mxu0 0
    %1318 = vmatpush1.bf16.msra.mxu0 0
    %1319 = vmatprep.subr.bf16.mxu0 0
    %1320 = vmatpush1.bf16.msra.mxu0 0
    %1321 = vmatprep.subr.bf16.mxu0 0
    %1322 = vmatpush1.bf16.msra.mxu0 0
    %1323 = vmatprep.subr.bf16.mxu0 0
    %1324 = vmatpush1.bf16.msra.mxu0 0
    %1325 = vmatprep.subr.bf16.mxu0 0
    %1326 = vmatpush1.bf16.msra.mxu0 0
    %1327 = vmatprep.mubr.bf16.mxu0 0
    %1328 = vmatmul.mubr.bf16.gmra.mrb[0].mxu0 %v1290
    %v1329 = vpop.f32.mrb[0].mxu0
    %v1330 = vadd.f32 0.0, %v1329
    %v1331 = vpop.f32.mrb[0].mxu0
    %v1332 = vpop.f32.mrb[0].mxu0
    %v1333 = vpop.f32.mrb[0].mxu0
    %1334 = vdwg.mxu0
    %1335 = vrot.lane.b32.xlu0 %v83, 56
    %v1336 = vpop.permute.xlu0 %1335
    %1337 = vrot.lane.b32.xlu0 %v1115, 120
    %v1338 = vpop.permute.xlu0 %1337
    %v1340 = vsel %vm85, %v1336, 0
    %v1343 = vsel %vm85, %v1338, 0
    %1345 = vmatprep.subr.bf16.mxu0 0
    %1346 = vmatpush1.bf16.xpose.msra.mxu0 %v1343
    %1347 = vmatprep.subr.bf16.mxu0 0
    %1348 = vmatpush1.bf16.xpose.msra.mxu0 0
    %1349 = vmatprep.subr.bf16.mxu0 0
    %1350 = vmatpush1.bf16.xpose.msra.mxu0 0
    %1351 = vmatprep.subr.bf16.mxu0 0
    %1352 = vmatpush1.bf16.xpose.msra.mxu0 0
    %1353 = vmatprep.subr.bf16.mxu0 0
    %1354 = vmatpush1.bf16.xpose.msra.mxu0 0
    %1355 = vmatprep.subr.bf16.mxu0 0
    %1356 = vmatpush1.bf16.xpose.msra.mxu0 0
    %1357 = vmatprep.subr.bf16.mxu0 0
    %1358 = vmatpush1.bf16.xpose.msra.mxu0 0
    %1359 = vmatprep.subr.bf16.mxu0 0
    %1360 = vmatpush1.bf16.xpose.msra.mxu0 0
    %1361 = vmatprep.subr.bf16.mxu0 0
    %1362 = vmatpush1.bf16.xpose.msra.mxu0 0
    %1363 = vmatprep.subr.bf16.mxu0 0
    %1364 = vmatpush1.bf16.xpose.msra.mxu0 0
    %1365 = vmatprep.subr.bf16.mxu0 0
    %1366 = vmatpush1.bf16.xpose.msra.mxu0 0
    %1367 = vmatprep.subr.bf16.mxu0 0
    %1368 = vmatpush1.bf16.xpose.msra.mxu0 0
    %1369 = vmatprep.subr.bf16.mxu0 0
    %1370 = vmatpush1.bf16.xpose.msra.mxu0 0
    %1371 = vmatprep.subr.bf16.mxu0 0
    %1372 = vmatpush1.bf16.xpose.msra.mxu0 0
    %1373 = vmatprep.subr.bf16.mxu0 0
    %1374 = vmatpush1.bf16.xpose.msra.mxu0 0
    %1375 = vmatprep.subr.bf16.mxu0 0
    %1376 = vmatpush1.bf16.xpose.msra.mxu0 0
    %1377 = vmatprep.mubr.bf16.mxu0 0
    %1378 = vmatmul.mubr.bf16.gmra.mrb[0].mxu0 %v1340
    %v1379 = vpop.f32.mrb[0].mxu0
    %v1380 = vadd.f32 0.0, %v1379
    %v1381 = vpop.f32.mrb[0].mxu0
    %v1382 = vpop.f32.mrb[0].mxu0
    %v1383 = vpop.f32.mrb[0].mxu0
    %1384 = vdwg.mxu0
    %1385 = vrot.lane.b32.xlu0 %v84, 56
    %v1386 = vpop.permute.xlu0 %1385
    %1387 = vrot.lane.b32.xlu0 %v1116, 120
    %v1388 = vpop.permute.xlu0 %1387
    %v1390 = vsel %vm85, %v1386, 0
    %v1393 = vsel %vm85, %v1388, 0
    %1395 = vmatprep.subr.bf16.mxu0 0
    %1396 = vmatpush1.bf16.xpose.msra.mxu0 %v1393
    %1397 = vmatprep.subr.bf16.mxu0 0
    %1398 = vmatpush1.bf16.xpose.msra.mxu0 0
    %1399 = vmatprep.subr.bf16.mxu0 0
    %1400 = vmatpush1.bf16.xpose.msra.mxu0 0
    %1401 = vmatprep.subr.bf16.mxu0 0
    %1402 = vmatpush1.bf16.xpose.msra.mxu0 0
    %1403 = vmatprep.subr.bf16.mxu0 0
    %1404 = vmatpush1.bf16.xpose.msra.mxu0 0
    %1405 = vmatprep.subr.bf16.mxu0 0
    %1406 = vmatpush1.bf16.xpose.msra.mxu0 0
    %1407 = vmatprep.subr.bf16.mxu0 0
    %1408 = vmatpush1.bf16.xpose.msra.mxu0 0
    %1409 = vmatprep.subr.bf16.mxu0 0
    %1410 = vmatpush1.bf16.xpose.msra.mxu0 0
    %1411 = vmatprep.subr.bf16.mxu0 0
    %1412 = vmatpush1.bf16.xpose.msra.mxu0 0
    %1413 = vmatprep.subr.bf16.mxu0 0
    %1414 = vmatpush1.bf16.xpose.msra.mxu0 0
    %1415 = vmatprep.subr.bf16.mxu0 0
    %1416 = vmatpush1.bf16.xpose.msra.mxu0 0
    %1417 = vmatprep.subr.bf16.mxu0 0
    %1418 = vmatpush1.bf16.xpose.msra.mxu0 0
    %1419 = vmatprep.subr.bf16.mxu0 0
    %1420 = vmatpush1.bf16.xpose.msra.mxu0 0
    %1421 = vmatprep.subr.bf16.mxu0 0
    %1422 = vmatpush1.bf16.xpose.msra.mxu0 0
    %1423 = vmatprep.subr.bf16.mxu0 0
    %1424 = vmatpush1.bf16.xpose.msra.mxu0 0
    %1425 = vmatprep.subr.bf16.mxu0 0
    %1426 = vmatpush1.bf16.xpose.msra.mxu0 0
    %1427 = vmatprep.mubr.bf16.mxu0 0
    %1428 = vmatmul.mubr.bf16.gmra.mrb[0].mxu0 %v1390
    %v1429 = vpop.f32.mrb[0].mxu0
    %v1430 = vadd.f32 0.0, %v1429
    %v1431 = vpop.f32.mrb[0].mxu0
    %v1432 = vpop.f32.mrb[0].mxu0
    %v1433 = vpop.f32.mrb[0].mxu0
    %1434 = vdwg.mxu0
    %v1435 = vsel %vm85, %v1380, -inf
    %1436 = vmax.xlane.f32.xlu0 %v1435
    %v1437 = vpop.xlane.xlu0 %1436
    %v1438 = vsel %vm85, %v1430, -inf
    %1439 = vmax.xlane.f32.xlu0 %v1438
    %v1440 = vpop.xlane.xlu0 %1439
    %v1441 = vsub.f32 %v1380, %v1437
    %v1442 = vsub.f32 %v1430, %v1440
    %v1443 = vmul.f32 %v1441, 1.442695
    %v1444 = vpow.pop %v1443
    %v1445 = vmul.f32 %v1442, 1.442695
    %v1446 = vpow.pop %v1445
    %v1447 = vsel %vm85, %v1444, 0.0
    %1448 = vadd.xlane.f32.xlu0 %v1447
    %v1449 = vpop.xlane.xlu0 %1448
    %v1450 = vsel %vm85, %v1446, 0.0
    %1451 = vadd.xlane.f32.xlu0 %v1450
    %v1452 = vpop.xlane.xlu0 %1451
    %v1453 = vrcp.pop %v1449
    %v1454 = vrcp.pop %v1452
    %v1455 = vmul.f32 %v1444, %v1453
    %v1456 = vmul.f32 %v1446, %v1454
    %v1457 = vpack.c.bf16 %v1455, %v1455
    %v1458 = vpack.c.bf16 %v1456, %v1456
    %1459 = vrot.lane.b32.xlu0 %v1115, 88
    %v1460 = vpop.permute.xlu0 %1459
    %v1462 = vsel %vm85, %v1457, 0
    %v1465 = vsel %vm205, %v1460, 0
    %1467 = vmatprep.subr.bf16.mxu0 0
    %1468 = vmatpush1.bf16.msra.mxu0 %v1465
    %1469 = vmatprep.subr.bf16.mxu0 0
    %1470 = vmatpush1.bf16.msra.mxu0 0
    %1471 = vmatprep.subr.bf16.mxu0 0
    %1472 = vmatpush1.bf16.msra.mxu0 0
    %1473 = vmatprep.subr.bf16.mxu0 0
    %1474 = vmatpush1.bf16.msra.mxu0 0
    %1475 = vmatprep.subr.bf16.mxu0 0
    %1476 = vmatpush1.bf16.msra.mxu0 0
    %1477 = vmatprep.subr.bf16.mxu0 0
    %1478 = vmatpush1.bf16.msra.mxu0 0
    %1479 = vmatprep.subr.bf16.mxu0 0
    %1480 = vmatpush1.bf16.msra.mxu0 0
    %1481 = vmatprep.subr.bf16.mxu0 0
    %1482 = vmatpush1.bf16.msra.mxu0 0
    %1483 = vmatprep.subr.bf16.mxu0 0
    %1484 = vmatpush1.bf16.msra.mxu0 0
    %1485 = vmatprep.subr.bf16.mxu0 0
    %1486 = vmatpush1.bf16.msra.mxu0 0
    %1487 = vmatprep.subr.bf16.mxu0 0
    %1488 = vmatpush1.bf16.msra.mxu0 0
    %1489 = vmatprep.subr.bf16.mxu0 0
    %1490 = vmatpush1.bf16.msra.mxu0 0
    %1491 = vmatprep.subr.bf16.mxu0 0
    %1492 = vmatpush1.bf16.msra.mxu0 0
    %1493 = vmatprep.subr.bf16.mxu0 0
    %1494 = vmatpush1.bf16.msra.mxu0 0
    %1495 = vmatprep.subr.bf16.mxu0 0
    %1496 = vmatpush1.bf16.msra.mxu0 0
    %1497 = vmatprep.subr.bf16.mxu0 0
    %1498 = vmatpush1.bf16.msra.mxu0 0
    %1499 = vmatprep.mubr.bf16.mxu0 0
    %1500 = vmatmul.mubr.bf16.gmra.mrb[0].mxu0 %v1462
    %v1501 = vpop.f32.mrb[0].mxu0
    %v1502 = vadd.f32 0.0, %v1501
    %v1503 = vpop.f32.mrb[0].mxu0
    %v1504 = vpop.f32.mrb[0].mxu0
    %v1505 = vpop.f32.mrb[0].mxu0
    %1506 = vdwg.mxu0
    %1507 = vrot.lane.b32.xlu0 %v1116, 88
    %v1508 = vpop.permute.xlu0 %1507
    %v1510 = vsel %vm85, %v1458, 0
    %v1513 = vsel %vm205, %v1508, 0
    %1515 = vmatprep.subr.bf16.mxu0 0
    %1516 = vmatpush1.bf16.msra.mxu0 %v1513
    %1517 = vmatprep.subr.bf16.mxu0 0
    %1518 = vmatpush1.bf16.msra.mxu0 0
    %1519 = vmatprep.subr.bf16.mxu0 0
    %1520 = vmatpush1.bf16.msra.mxu0 0
    %1521 = vmatprep.subr.bf16.mxu0 0
    %1522 = vmatpush1.bf16.msra.mxu0 0
    %1523 = vmatprep.subr.bf16.mxu0 0
    %1524 = vmatpush1.bf16.msra.mxu0 0
    %1525 = vmatprep.subr.bf16.mxu0 0
    %1526 = vmatpush1.bf16.msra.mxu0 0
    %1527 = vmatprep.subr.bf16.mxu0 0
    %1528 = vmatpush1.bf16.msra.mxu0 0
    %1529 = vmatprep.subr.bf16.mxu0 0
    %1530 = vmatpush1.bf16.msra.mxu0 0
    %1531 = vmatprep.subr.bf16.mxu0 0
    %1532 = vmatpush1.bf16.msra.mxu0 0
    %1533 = vmatprep.subr.bf16.mxu0 0
    %1534 = vmatpush1.bf16.msra.mxu0 0
    %1535 = vmatprep.subr.bf16.mxu0 0
    %1536 = vmatpush1.bf16.msra.mxu0 0
    %1537 = vmatprep.subr.bf16.mxu0 0
    %1538 = vmatpush1.bf16.msra.mxu0 0
    %1539 = vmatprep.subr.bf16.mxu0 0
    %1540 = vmatpush1.bf16.msra.mxu0 0
    %1541 = vmatprep.subr.bf16.mxu0 0
    %1542 = vmatpush1.bf16.msra.mxu0 0
    %1543 = vmatprep.subr.bf16.mxu0 0
    %1544 = vmatpush1.bf16.msra.mxu0 0
    %1545 = vmatprep.subr.bf16.mxu0 0
    %1546 = vmatpush1.bf16.msra.mxu0 0
    %1547 = vmatprep.mubr.bf16.mxu0 0
    %1548 = vmatmul.mubr.bf16.gmra.mrb[0].mxu0 %v1510
    %v1549 = vpop.f32.mrb[0].mxu0
    %v1550 = vadd.f32 0.0, %v1549
    %v1551 = vpop.f32.mrb[0].mxu0
    %v1552 = vpop.f32.mrb[0].mxu0
    %v1553 = vpop.f32.mrb[0].mxu0
    %1554 = vdwg.mxu0
    %1555 = vrot.lane.b32.xlu0 %v83, 48
    %v1556 = vpop.permute.xlu0 %1555
    %1557 = vrot.lane.b32.xlu0 %v1115, 112
    %v1558 = vpop.permute.xlu0 %1557
    %v1560 = vsel %vm85, %v1556, 0
    %v1563 = vsel %vm85, %v1558, 0
    %1565 = vmatprep.subr.bf16.mxu0 0
    %1566 = vmatpush1.bf16.xpose.msra.mxu0 %v1563
    %1567 = vmatprep.subr.bf16.mxu0 0
    %1568 = vmatpush1.bf16.xpose.msra.mxu0 0
    %1569 = vmatprep.subr.bf16.mxu0 0
    %1570 = vmatpush1.bf16.xpose.msra.mxu0 0
    %1571 = vmatprep.subr.bf16.mxu0 0
    %1572 = vmatpush1.bf16.xpose.msra.mxu0 0
    %1573 = vmatprep.subr.bf16.mxu0 0
    %1574 = vmatpush1.bf16.xpose.msra.mxu0 0
    %1575 = vmatprep.subr.bf16.mxu0 0
    %1576 = vmatpush1.bf16.xpose.msra.mxu0 0
    %1577 = vmatprep.subr.bf16.mxu0 0
    %1578 = vmatpush1.bf16.xpose.msra.mxu0 0
    %1579 = vmatprep.subr.bf16.mxu0 0
    %1580 = vmatpush1.bf16.xpose.msra.mxu0 0
    %1581 = vmatprep.subr.bf16.mxu0 0
    %1582 = vmatpush1.bf16.xpose.msra.mxu0 0
    %1583 = vmatprep.subr.bf16.mxu0 0
    %1584 = vmatpush1.bf16.xpose.msra.mxu0 0
    %1585 = vmatprep.subr.bf16.mxu0 0
    %1586 = vmatpush1.bf16.xpose.msra.mxu0 0
    %1587 = vmatprep.subr.bf16.mxu0 0
    %1588 = vmatpush1.bf16.xpose.msra.mxu0 0
    %1589 = vmatprep.subr.bf16.mxu0 0
    %1590 = vmatpush1.bf16.xpose.msra.mxu0 0
    %1591 = vmatprep.subr.bf16.mxu0 0
    %1592 = vmatpush1.bf16.xpose.msra.mxu0 0
    %1593 = vmatprep.subr.bf16.mxu0 0
    %1594 = vmatpush1.bf16.xpose.msra.mxu0 0
    %1595 = vmatprep.subr.bf16.mxu0 0
    %1596 = vmatpush1.bf16.xpose.msra.mxu0 0
    %1597 = vmatprep.mubr.bf16.mxu0 0
    %1598 = vmatmul.mubr.bf16.gmra.mrb[0].mxu0 %v1560
    %v1599 = vpop.f32.mrb[0].mxu0
    %v1600 = vadd.f32 0.0, %v1599
    %v1601 = vpop.f32.mrb[0].mxu0
    %v1602 = vpop.f32.mrb[0].mxu0
    %v1603 = vpop.f32.mrb[0].mxu0
    %1604 = vdwg.mxu0
    %1605 = vrot.lane.b32.xlu0 %v84, 48
    %v1606 = vpop.permute.xlu0 %1605
    %1607 = vrot.lane.b32.xlu0 %v1116, 112
    %v1608 = vpop.permute.xlu0 %1607
    %v1610 = vsel %vm85, %v1606, 0
    %v1613 = vsel %vm85, %v1608, 0
    %1615 = vmatprep.subr.bf16.mxu0 0
    %1616 = vmatpush1.bf16.xpose.msra.mxu0 %v1613
    %1617 = vmatprep.subr.bf16.mxu0 0
    %1618 = vmatpush1.bf16.xpose.msra.mxu0 0
    %1619 = vmatprep.subr.bf16.mxu0 0
    %1620 = vmatpush1.bf16.xpose.msra.mxu0 0
    %1621 = vmatprep.subr.bf16.mxu0 0
    %1622 = vmatpush1.bf16.xpose.msra.mxu0 0
    %1623 = vmatprep.subr.bf16.mxu0 0
    %1624 = vmatpush1.bf16.xpose.msra.mxu0 0
    %1625 = vmatprep.subr.bf16.mxu0 0
    %1626 = vmatpush1.bf16.xpose.msra.mxu0 0
    %1627 = vmatprep.subr.bf16.mxu0 0
    %1628 = vmatpush1.bf16.xpose.msra.mxu0 0
    %1629 = vmatprep.subr.bf16.mxu0 0
    %1630 = vmatpush1.bf16.xpose.msra.mxu0 0
    %1631 = vmatprep.subr.bf16.mxu0 0
    %1632 = vmatpush1.bf16.xpose.msra.mxu0 0
    %1633 = vmatprep.subr.bf16.mxu0 0
    %1634 = vmatpush1.bf16.xpose.msra.mxu0 0
    %1635 = vmatprep.subr.bf16.mxu0 0
    %1636 = vmatpush1.bf16.xpose.msra.mxu0 0
    %1637 = vmatprep.subr.bf16.mxu0 0
    %1638 = vmatpush1.bf16.xpose.msra.mxu0 0
    %1639 = vmatprep.subr.bf16.mxu0 0
    %1640 = vmatpush1.bf16.xpose.msra.mxu0 0
    %1641 = vmatprep.subr.bf16.mxu0 0
    %1642 = vmatpush1.bf16.xpose.msra.mxu0 0
    %1643 = vmatprep.subr.bf16.mxu0 0
    %1644 = vmatpush1.bf16.xpose.msra.mxu0 0
    %1645 = vmatprep.subr.bf16.mxu0 0
    %1646 = vmatpush1.bf16.xpose.msra.mxu0 0
    %1647 = vmatprep.mubr.bf16.mxu0 0
    %1648 = vmatmul.mubr.bf16.gmra.mrb[0].mxu0 %v1610
    %v1649 = vpop.f32.mrb[0].mxu0
    %v1650 = vadd.f32 0.0, %v1649
    %v1651 = vpop.f32.mrb[0].mxu0
    %v1652 = vpop.f32.mrb[0].mxu0
    %v1653 = vpop.f32.mrb[0].mxu0
    %1654 = vdwg.mxu0
    %v1655 = vsel %vm85, %v1600, -inf
    %1656 = vmax.xlane.f32.xlu0 %v1655
    %v1657 = vpop.xlane.xlu0 %1656
    %v1658 = vsel %vm85, %v1650, -inf
    %1659 = vmax.xlane.f32.xlu0 %v1658
    %v1660 = vpop.xlane.xlu0 %1659
    %v1661 = vsub.f32 %v1600, %v1657
    %v1662 = vsub.f32 %v1650, %v1660
    %v1663 = vmul.f32 %v1661, 1.442695
    %v1664 = vpow.pop %v1663
    %v1665 = vmul.f32 %v1662, 1.442695
    %v1666 = vpow.pop %v1665
    %v1667 = vsel %vm85, %v1664, 0.0
    %1668 = vadd.xlane.f32.xlu0 %v1667
    %v1669 = vpop.xlane.xlu0 %1668
    %v1670 = vsel %vm85, %v1666, 0.0
    %1671 = vadd.xlane.f32.xlu0 %v1670
    %v1672 = vpop.xlane.xlu0 %1671
    %v1673 = vrcp.pop %v1669
    %v1674 = vrcp.pop %v1672
    %v1675 = vmul.f32 %v1664, %v1673
    %v1676 = vmul.f32 %v1666, %v1674
    %v1677 = vpack.c.bf16 %v1675, %v1675
    %v1678 = vpack.c.bf16 %v1676, %v1676
    %1679 = vrot.lane.b32.xlu0 %v1115, 80
    %v1680 = vpop.permute.xlu0 %1679
    %v1682 = vsel %vm85, %v1677, 0
    %v1685 = vsel %vm205, %v1680, 0
    %1687 = vmatprep.subr.bf16.mxu0 0
    %1688 = vmatpush1.bf16.msra.mxu0 %v1685
    %1689 = vmatprep.subr.bf16.mxu0 0
    %1690 = vmatpush1.bf16.msra.mxu0 0
    %1691 = vmatprep.subr.bf16.mxu0 0
    %1692 = vmatpush1.bf16.msra.mxu0 0
    %1693 = vmatprep.subr.bf16.mxu0 0
    %1694 = vmatpush1.bf16.msra.mxu0 0
    %1695 = vmatprep.subr.bf16.mxu0 0
    %1696 = vmatpush1.bf16.msra.mxu0 0
    %1697 = vmatprep.subr.bf16.mxu0 0
    %1698 = vmatpush1.bf16.msra.mxu0 0
    %1699 = vmatprep.subr.bf16.mxu0 0
    %1700 = vmatpush1.bf16.msra.mxu0 0
    %1701 = vmatprep.subr.bf16.mxu0 0
    %1702 = vmatpush1.bf16.msra.mxu0 0
    %1703 = vmatprep.subr.bf16.mxu0 0
    %1704 = vmatpush1.bf16.msra.mxu0 0
    %1705 = vmatprep.subr.bf16.mxu0 0
    %1706 = vmatpush1.bf16.msra.mxu0 0
    %1707 = vmatprep.subr.bf16.mxu0 0
    %1708 = vmatpush1.bf16.msra.mxu0 0
    %1709 = vmatprep.subr.bf16.mxu0 0
    %1710 = vmatpush1.bf16.msra.mxu0 0
    %1711 = vmatprep.subr.bf16.mxu0 0
    %1712 = vmatpush1.bf16.msra.mxu0 0
    %1713 = vmatprep.subr.bf16.mxu0 0
    %1714 = vmatpush1.bf16.msra.mxu0 0
    %1715 = vmatprep.subr.bf16.mxu0 0
    %1716 = vmatpush1.bf16.msra.mxu0 0
    %1717 = vmatprep.subr.bf16.mxu0 0
    %1718 = vmatpush1.bf16.msra.mxu0 0
    %1719 = vmatprep.mubr.bf16.mxu0 0
    %1720 = vmatmul.mubr.bf16.gmra.mrb[0].mxu0 %v1682
    %v1721 = vpop.f32.mrb[0].mxu0
    %v1722 = vadd.f32 0.0, %v1721
    %v1723 = vpop.f32.mrb[0].mxu0
    %v1724 = vpop.f32.mrb[0].mxu0
    %v1725 = vpop.f32.mrb[0].mxu0
    %1726 = vdwg.mxu0
    %1727 = vrot.lane.b32.xlu0 %v1116, 80
    %v1728 = vpop.permute.xlu0 %1727
    %v1730 = vsel %vm85, %v1678, 0
    %v1733 = vsel %vm205, %v1728, 0
    %1735 = vmatprep.subr.bf16.mxu0 0
    %1736 = vmatpush1.bf16.msra.mxu0 %v1733
    %1737 = vmatprep.subr.bf16.mxu0 0
    %1738 = vmatpush1.bf16.msra.mxu0 0
    %1739 = vmatprep.subr.bf16.mxu0 0
    %1740 = vmatpush1.bf16.msra.mxu0 0
    %1741 = vmatprep.subr.bf16.mxu0 0
    %1742 = vmatpush1.bf16.msra.mxu0 0
    %1743 = vmatprep.subr.bf16.mxu0 0
    %1744 = vmatpush1.bf16.msra.mxu0 0
    %1745 = vmatprep.subr.bf16.mxu0 0
    %1746 = vmatpush1.bf16.msra.mxu0 0
    %1747 = vmatprep.subr.bf16.mxu0 0
    %1748 = vmatpush1.bf16.msra.mxu0 0
    %1749 = vmatprep.subr.bf16.mxu0 0
    %1750 = vmatpush1.bf16.msra.mxu0 0
    %1751 = vmatprep.subr.bf16.mxu0 0
    %1752 = vmatpush1.bf16.msra.mxu0 0
    %1753 = vmatprep.subr.bf16.mxu0 0
    %1754 = vmatpush1.bf16.msra.mxu0 0
    %1755 = vmatprep.subr.bf16.mxu0 0
    %1756 = vmatpush1.bf16.msra.mxu0 0
    %1757 = vmatprep.subr.bf16.mxu0 0
    %1758 = vmatpush1.bf16.msra.mxu0 0
    %1759 = vmatprep.subr.bf16.mxu0 0
    %1760 = vmatpush1.bf16.msra.mxu0 0
    %1761 = vmatprep.subr.bf16.mxu0 0
    %1762 = vmatpush1.bf16.msra.mxu0 0
    %1763 = vmatprep.subr.bf16.mxu0 0
    %1764 = vmatpush1.bf16.msra.mxu0 0
    %1765 = vmatprep.subr.bf16.mxu0 0
    %1766 = vmatpush1.bf16.msra.mxu0 0
    %1767 = vmatprep.mubr.bf16.mxu0 0
    %1768 = vmatmul.mubr.bf16.gmra.mrb[0].mxu0 %v1730
    %v1769 = vpop.f32.mrb[0].mxu0
    %v1770 = vadd.f32 0.0, %v1769
    %v1771 = vpop.f32.mrb[0].mxu0
    %v1772 = vpop.f32.mrb[0].mxu0
    %v1773 = vpop.f32.mrb[0].mxu0
    %1774 = vdwg.mxu0
    %1775 = vrot.lane.b32.xlu0 %v83, 40
    %v1776 = vpop.permute.xlu0 %1775
    %1777 = vrot.lane.b32.xlu0 %v1115, 104
    %v1778 = vpop.permute.xlu0 %1777
    %v1780 = vsel %vm85, %v1776, 0
    %v1783 = vsel %vm85, %v1778, 0
    %1785 = vmatprep.subr.bf16.mxu0 0
    %1786 = vmatpush1.bf16.xpose.msra.mxu0 %v1783
    %1787 = vmatprep.subr.bf16.mxu0 0
    %1788 = vmatpush1.bf16.xpose.msra.mxu0 0
    %1789 = vmatprep.subr.bf16.mxu0 0
    %1790 = vmatpush1.bf16.xpose.msra.mxu0 0
    %1791 = vmatprep.subr.bf16.mxu0 0
    %1792 = vmatpush1.bf16.xpose.msra.mxu0 0
    %1793 = vmatprep.subr.bf16.mxu0 0
    %1794 = vmatpush1.bf16.xpose.msra.mxu0 0
    %1795 = vmatprep.subr.bf16.mxu0 0
    %1796 = vmatpush1.bf16.xpose.msra.mxu0 0
    %1797 = vmatprep.subr.bf16.mxu0 0
    %1798 = vmatpush1.bf16.xpose.msra.mxu0 0
    %1799 = vmatprep.subr.bf16.mxu0 0
    %1800 = vmatpush1.bf16.xpose.msra.mxu0 0
    %1801 = vmatprep.subr.bf16.mxu0 0
    %1802 = vmatpush1.bf16.xpose.msra.mxu0 0
    %1803 = vmatprep.subr.bf16.mxu0 0
    %1804 = vmatpush1.bf16.xpose.msra.mxu0 0
    %1805 = vmatprep.subr.bf16.mxu0 0
    %1806 = vmatpush1.bf16.xpose.msra.mxu0 0
    %1807 = vmatprep.subr.bf16.mxu0 0
    %1808 = vmatpush1.bf16.xpose.msra.mxu0 0
    %1809 = vmatprep.subr.bf16.mxu0 0
    %1810 = vmatpush1.bf16.xpose.msra.mxu0 0
    %1811 = vmatprep.subr.bf16.mxu0 0
    %1812 = vmatpush1.bf16.xpose.msra.mxu0 0
    %1813 = vmatprep.subr.bf16.mxu0 0
    %1814 = vmatpush1.bf16.xpose.msra.mxu0 0
    %1815 = vmatprep.subr.bf16.mxu0 0
    %1816 = vmatpush1.bf16.xpose.msra.mxu0 0
    %1817 = vmatprep.mubr.bf16.mxu0 0
    %1818 = vmatmul.mubr.bf16.gmra.mrb[0].mxu0 %v1780
    %v1819 = vpop.f32.mrb[0].mxu0
    %v1820 = vadd.f32 0.0, %v1819
    %v1821 = vpop.f32.mrb[0].mxu0
    %v1822 = vpop.f32.mrb[0].mxu0
    %v1823 = vpop.f32.mrb[0].mxu0
    %1824 = vdwg.mxu0
    %1825 = vrot.lane.b32.xlu0 %v84, 40
    %v1826 = vpop.permute.xlu0 %1825
    %1827 = vrot.lane.b32.xlu0 %v1116, 104
    %v1828 = vpop.permute.xlu0 %1827
    %v1830 = vsel %vm85, %v1826, 0
    %v1833 = vsel %vm85, %v1828, 0
    %1835 = vmatprep.subr.bf16.mxu0 0
    %1836 = vmatpush1.bf16.xpose.msra.mxu0 %v1833
    %1837 = vmatprep.subr.bf16.mxu0 0
    %1838 = vmatpush1.bf16.xpose.msra.mxu0 0
    %1839 = vmatprep.subr.bf16.mxu0 0
    %1840 = vmatpush1.bf16.xpose.msra.mxu0 0
    %1841 = vmatprep.subr.bf16.mxu0 0
    %1842 = vmatpush1.bf16.xpose.msra.mxu0 0
    %1843 = vmatprep.subr.bf16.mxu0 0
    %1844 = vmatpush1.bf16.xpose.msra.mxu0 0
    %1845 = vmatprep.subr.bf16.mxu0 0
    %1846 = vmatpush1.bf16.xpose.msra.mxu0 0
    %1847 = vmatprep.subr.bf16.mxu0 0
    %1848 = vmatpush1.bf16.xpose.msra.mxu0 0
    %1849 = vmatprep.subr.bf16.mxu0 0
    %1850 = vmatpush1.bf16.xpose.msra.mxu0 0
    %1851 = vmatprep.subr.bf16.mxu0 0
    %1852 = vmatpush1.bf16.xpose.msra.mxu0 0
    %1853 = vmatprep.subr.bf16.mxu0 0
    %1854 = vmatpush1.bf16.xpose.msra.mxu0 0
    %1855 = vmatprep.subr.bf16.mxu0 0
    %1856 = vmatpush1.bf16.xpose.msra.mxu0 0
    %1857 = vmatprep.subr.bf16.mxu0 0
    %1858 = vmatpush1.bf16.xpose.msra.mxu0 0
    %1859 = vmatprep.subr.bf16.mxu0 0
    %1860 = vmatpush1.bf16.xpose.msra.mxu0 0
    %1861 = vmatprep.subr.bf16.mxu0 0
    %1862 = vmatpush1.bf16.xpose.msra.mxu0 0
    %1863 = vmatprep.subr.bf16.mxu0 0
    %1864 = vmatpush1.bf16.xpose.msra.mxu0 0
    %1865 = vmatprep.subr.bf16.mxu0 0
    %1866 = vmatpush1.bf16.xpose.msra.mxu0 0
    %1867 = vmatprep.mubr.bf16.mxu0 0
    %1868 = vmatmul.mubr.bf16.gmra.mrb[0].mxu0 %v1830
    %v1869 = vpop.f32.mrb[0].mxu0
    %v1870 = vadd.f32 0.0, %v1869
    %v1871 = vpop.f32.mrb[0].mxu0
    %v1872 = vpop.f32.mrb[0].mxu0
    %v1873 = vpop.f32.mrb[0].mxu0
    %1874 = vdwg.mxu0
    %v1875 = vsel %vm85, %v1820, -inf
    %1876 = vmax.xlane.f32.xlu0 %v1875
    %v1877 = vpop.xlane.xlu0 %1876
    %v1878 = vsel %vm85, %v1870, -inf
    %1879 = vmax.xlane.f32.xlu0 %v1878
    %v1880 = vpop.xlane.xlu0 %1879
    %v1881 = vsub.f32 %v1820, %v1877
    %v1882 = vsub.f32 %v1870, %v1880
    %v1883 = vmul.f32 %v1881, 1.442695
    %v1884 = vpow.pop %v1883
    %v1885 = vmul.f32 %v1882, 1.442695
    %v1886 = vpow.pop %v1885
    %v1887 = vsel %vm85, %v1884, 0.0
    %1888 = vadd.xlane.f32.xlu0 %v1887
    %v1889 = vpop.xlane.xlu0 %1888
    %v1890 = vsel %vm85, %v1886, 0.0
    %1891 = vadd.xlane.f32.xlu0 %v1890
    %v1892 = vpop.xlane.xlu0 %1891
    %v1893 = vrcp.pop %v1889
    %v1894 = vrcp.pop %v1892
    %v1895 = vmul.f32 %v1884, %v1893
    %v1896 = vmul.f32 %v1886, %v1894
    %v1897 = vpack.c.bf16 %v1895, %v1895
    %v1898 = vpack.c.bf16 %v1896, %v1896
    %1899 = vrot.lane.b32.xlu0 %v1115, 72
    %v1900 = vpop.permute.xlu0 %1899
    %v1902 = vsel %vm85, %v1897, 0
    %v1905 = vsel %vm205, %v1900, 0
    %1907 = vmatprep.subr.bf16.mxu0 0
    %1908 = vmatpush1.bf16.msra.mxu0 %v1905
    %1909 = vmatprep.subr.bf16.mxu0 0
    %1910 = vmatpush1.bf16.msra.mxu0 0
    %1911 = vmatprep.subr.bf16.mxu0 0
    %1912 = vmatpush1.bf16.msra.mxu0 0
    %1913 = vmatprep.subr.bf16.mxu0 0
    %1914 = vmatpush1.bf16.msra.mxu0 0
    %1915 = vmatprep.subr.bf16.mxu0 0
    %1916 = vmatpush1.bf16.msra.mxu0 0
    %1917 = vmatprep.subr.bf16.mxu0 0
    %1918 = vmatpush1.bf16.msra.mxu0 0
    %1919 = vmatprep.subr.bf16.mxu0 0
    %1920 = vmatpush1.bf16.msra.mxu0 0
    %1921 = vmatprep.subr.bf16.mxu0 0
    %1922 = vmatpush1.bf16.msra.mxu0 0
    %1923 = vmatprep.subr.bf16.mxu0 0
    %1924 = vmatpush1.bf16.msra.mxu0 0
    %1925 = vmatprep.subr.bf16.mxu0 0
    %1926 = vmatpush1.bf16.msra.mxu0 0
    %1927 = vmatprep.subr.bf16.mxu0 0
    %1928 = vmatpush1.bf16.msra.mxu0 0
    %1929 = vmatprep.subr.bf16.mxu0 0
    %1930 = vmatpush1.bf16.msra.mxu0 0
    %1931 = vmatprep.subr.bf16.mxu0 0
    %1932 = vmatpush1.bf16.msra.mxu0 0
    %1933 = vmatprep.subr.bf16.mxu0 0
    %1934 = vmatpush1.bf16.msra.mxu0 0
    %1935 = vmatprep.subr.bf16.mxu0 0
    %1936 = vmatpush1.bf16.msra.mxu0 0
    %1937 = vmatprep.subr.bf16.mxu0 0
    %1938 = vmatpush1.bf16.msra.mxu0 0
    %1939 = vmatprep.mubr.bf16.mxu0 0
    %1940 = vmatmul.mubr.bf16.gmra.mrb[0].mxu0 %v1902
    %v1941 = vpop.f32.mrb[0].mxu0
    %v1942 = vadd.f32 0.0, %v1941
    %v1943 = vpop.f32.mrb[0].mxu0
    %v1944 = vpop.f32.mrb[0].mxu0
    %v1945 = vpop.f32.mrb[0].mxu0
    %1946 = vdwg.mxu0
    %1947 = vrot.lane.b32.xlu0 %v1116, 72
    %v1948 = vpop.permute.xlu0 %1947
    %v1950 = vsel %vm85, %v1898, 0
    %v1953 = vsel %vm205, %v1948, 0
    %1955 = vmatprep.subr.bf16.mxu0 0
    %1956 = vmatpush1.bf16.msra.mxu0 %v1953
    %1957 = vmatprep.subr.bf16.mxu0 0
    %1958 = vmatpush1.bf16.msra.mxu0 0
    %1959 = vmatprep.subr.bf16.mxu0 0
    %1960 = vmatpush1.bf16.msra.mxu0 0
    %1961 = vmatprep.subr.bf16.mxu0 0
    %1962 = vmatpush1.bf16.msra.mxu0 0
    %1963 = vmatprep.subr.bf16.mxu0 0
    %1964 = vmatpush1.bf16.msra.mxu0 0
    %1965 = vmatprep.subr.bf16.mxu0 0
    %1966 = vmatpush1.bf16.msra.mxu0 0
    %1967 = vmatprep.subr.bf16.mxu0 0
    %1968 = vmatpush1.bf16.msra.mxu0 0
    %1969 = vmatprep.subr.bf16.mxu0 0
    %1970 = vmatpush1.bf16.msra.mxu0 0
    %1971 = vmatprep.subr.bf16.mxu0 0
    %1972 = vmatpush1.bf16.msra.mxu0 0
    %1973 = vmatprep.subr.bf16.mxu0 0
    %1974 = vmatpush1.bf16.msra.mxu0 0
    %1975 = vmatprep.subr.bf16.mxu0 0
    %1976 = vmatpush1.bf16.msra.mxu0 0
    %1977 = vmatprep.subr.bf16.mxu0 0
    %1978 = vmatpush1.bf16.msra.mxu0 0
    %1979 = vmatprep.subr.bf16.mxu0 0
    %1980 = vmatpush1.bf16.msra.mxu0 0
    %1981 = vmatprep.subr.bf16.mxu0 0
    %1982 = vmatpush1.bf16.msra.mxu0 0
    %1983 = vmatprep.subr.bf16.mxu0 0
    %1984 = vmatpush1.bf16.msra.mxu0 0
    %1985 = vmatprep.subr.bf16.mxu0 0
    %1986 = vmatpush1.bf16.msra.mxu0 0
    %1987 = vmatprep.mubr.bf16.mxu0 0
    %1988 = vmatmul.mubr.bf16.gmra.mrb[0].mxu0 %v1950
    %v1989 = vpop.f32.mrb[0].mxu0
    %v1990 = vadd.f32 0.0, %v1989
    %v1991 = vpop.f32.mrb[0].mxu0
    %v1992 = vpop.f32.mrb[0].mxu0
    %v1993 = vpop.f32.mrb[0].mxu0
    %1994 = vdwg.mxu0
    %1997 = vrot.lane.b32.xlu0 %v1502, 8
    %v1998 = vpop.permute.xlu0 %1997
    %1999 = vrot.lane.b32.xlu0 %v1550, 8
    %v2000 = vpop.permute.xlu0 %1999
    %2005 = vrot.lane.b32.xlu0 %v1722, 16
    %v2006 = vpop.permute.xlu0 %2005
    %2007 = vrot.lane.b32.xlu0 %v1770, 16
    %v2008 = vpop.permute.xlu0 %2007
    %2013 = vrot.lane.b32.xlu0 %v1942, 24
    %v2014 = vpop.permute.xlu0 %2013
    %2015 = vrot.lane.b32.xlu0 %v1990, 24
    %v2016 = vpop.permute.xlu0 %2015
    %v2019 = vsel %vm85, %v1281, %v1998
    %v2020 = vsel %vm85, %v1330, %v2000
    %v2021 = vsel %vm970, %v2019, %v2006
    %v2022 = vsel %vm970, %v2020, %v2008
    %v2023 = vsel %vm973, %v2021, %v2014
    %v2024 = vsel %vm973, %v2022, %v2016
    %2027 = vrot.lane.b32.xlu0 %v2023, 64
    %v2028 = vpop.permute.xlu0 %2027
    %2029 = vrot.lane.b32.xlu0 %v2024, 64
    %v2030 = vpop.permute.xlu0 %2029
    %v2033 = vadd.f32 %v75, %v2028
    %v2034 = vadd.f32 %v78, %v2030
    %v2035 = vpack.c.bf16 %v2034, %v2033
    %v2036 = vld [vmem:[%s1 + $0x24] sm:$0xf]
    %v2037 = vld [vmem:[%s1 + $0x28] sm:$0xf]
    %v2038 = vld [vmem:[%s1 + $0x2c] sm:$0xf]
    %v2039 = vld [vmem:[%s1 + $0x30] sm:$0xf]
    %v2040 = vld [vmem:[%s2 + $0x3] sm:$0x1]
    %v2041 = vlaneseq
    %v2042 = vshrl.u32 %v2041, 7
    %v2043 = vsub.s32 0, %v2042
    %v2044 = vrot.slane %v2040, %v2043
    %2046 = vrot.lane.b32.xlu0 %v2035, 64
    %v2047 = vpop.permute.xlu0 %2046
    %v2052 = vunpack.c.l.b16 %v2036
    %v2053 = vunpack.c.l.b16 %v2037
    %v2054 = vunpack.c.l.b16 %v2038
    %v2055 = vunpack.c.l.b16 %v2039
    %v2056 = vpack.c.b16 %v2053, %v2052
    %v2057 = vpack.c.b16 %v2055, %v2054
    %v2061 = vsel %vm1000, %v2047, 0
    %2063 = vmatprep.subr.bf16.mxu0 0
    %2064 = vmatpush1.bf16.msra.mxu0 %v2056
    %2065 = vmatprep.subr.bf16.mxu0 0
    %2066 = vmatpush1.bf16.msra.mxu0 %v2057
    %2067 = vmatprep.subr.bf16.mxu0 0
    %2068 = vmatpush1.bf16.msra.mxu0 0
    %2069 = vmatprep.subr.bf16.mxu0 0
    %2070 = vmatpush1.bf16.msra.mxu0 0
    %2071 = vmatprep.subr.bf16.mxu0 0
    %2072 = vmatpush1.bf16.msra.mxu0 0
    %2073 = vmatprep.subr.bf16.mxu0 0
    %2074 = vmatpush1.bf16.msra.mxu0 0
    %2075 = vmatprep.subr.bf16.mxu0 0
    %2076 = vmatpush1.bf16.msra.mxu0 0
    %2077 = vmatprep.subr.bf16.mxu0 0
    %2078 = vmatpush1.bf16.msra.mxu0 0
    %2079 = vmatprep.subr.bf16.mxu0 0
    %2080 = vmatpush1.bf16.msra.mxu0 0
    %2081 = vmatprep.subr.bf16.mxu0 0
    %2082 = vmatpush1.bf16.msra.mxu0 0
    %2083 = vmatprep.subr.bf16.mxu0 0
    %2084 = vmatpush1.bf16.msra.mxu0 0
    %2085 = vmatprep.subr.bf16.mxu0 0
    %2086 = vmatpush1.bf16.msra.mxu0 0
    %2087 = vmatprep.subr.bf16.mxu0 0
    %2088 = vmatpush1.bf16.msra.mxu0 0
    %2089 = vmatprep.subr.bf16.mxu0 0
    %2090 = vmatpush1.bf16.msra.mxu0 0
    %2091 = vmatprep.subr.bf16.mxu0 0
    %2092 = vmatpush1.bf16.msra.mxu0 0
    %2093 = vmatprep.subr.bf16.mxu0 0
    %2094 = vmatpush1.bf16.msra.mxu0 0
    %2095 = vmatprep.mubr.bf16.mxu0 0
    %2096 = vmatmul.mubr.bf16.gmra.mrb[0].mxu0 %v2061
    %v2097 = vpop.f32.mrb[0].mxu0
    %v2098 = vadd.f32 %v2044, %v2097
    %v2099 = vpop.f32.mrb[0].mxu0
    %v2100 = vpop.f32.mrb[0].mxu0
    %v2101 = vadd.f32 %v2044, %v2100
    %v2102 = vpop.f32.mrb[0].mxu0
    %2103 = vdwg.mxu0
    %v2104 = vmax.f32 %v2098, 0.0
    %v2105 = vmax.f32 %v2101, 0.0
    %2108 = vrot.lane.b32.xlu0 %v2104, 64
    %v2109 = vpop.permute.xlu0 %2108
    %2110 = vrot.lane.b32.xlu0 %v2105, 64
    %v2111 = vpop.permute.xlu0 %2110
    %v2114 = vadd.f32 %v2033, %v2109
    %v2115 = vadd.f32 %v2034, %v2111
    %v2116 = vpack.c.bf16 %v2115, %v2114
    %v2117 = vld [vmem:[%s1 + $0x34] sm:$0xf]
    %v2118 = vld [vmem:[%s1 + $0x38] sm:$0xf]
    %v2119 = vld [vmem:[%s1 + $0x3c] sm:$0xf]
    %v2120 = vld [vmem:[%s1 + $0x40] sm:$0xf]
    %v2121 = vld [vmem:[%s2 + $0x4] sm:$0x1]
    %v2122 = vlaneseq
    %v2123 = vshrl.u32 %v2122, 7
    %v2124 = vsub.s32 0, %v2123
    %v2125 = vrot.slane %v2121, %v2124
    %2127 = vrot.lane.b32.xlu0 %v2116, 64
    %v2128 = vpop.permute.xlu0 %2127
    %v2133 = vunpack.c.l.b16 %v2117
    %v2134 = vunpack.c.l.b16 %v2118
    %v2135 = vunpack.c.l.b16 %v2119
    %v2136 = vunpack.c.l.b16 %v2120
    %v2137 = vpack.c.b16 %v2134, %v2133
    %v2138 = vpack.c.b16 %v2136, %v2135
    %v2142 = vsel %vm1000, %v2128, 0
    %2144 = vmatprep.subr.bf16.mxu0 0
    %2145 = vmatpush1.bf16.msra.mxu0 %v2137
    %2146 = vmatprep.subr.bf16.mxu0 0
    %2147 = vmatpush1.bf16.msra.mxu0 %v2138
    %2148 = vmatprep.subr.bf16.mxu0 0
    %2149 = vmatpush1.bf16.msra.mxu0 0
    %2150 = vmatprep.subr.bf16.mxu0 0
    %2151 = vmatpush1.bf16.msra.mxu0 0
    %2152 = vmatprep.subr.bf16.mxu0 0
    %2153 = vmatpush1.bf16.msra.mxu0 0
    %2154 = vmatprep.subr.bf16.mxu0 0
    %2155 = vmatpush1.bf16.msra.mxu0 0
    %2156 = vmatprep.subr.bf16.mxu0 0
    %2157 = vmatpush1.bf16.msra.mxu0 0
    %2158 = vmatprep.subr.bf16.mxu0 0
    %2159 = vmatpush1.bf16.msra.mxu0 0
    %2160 = vmatprep.subr.bf16.mxu0 0
    %2161 = vmatpush1.bf16.msra.mxu0 0
    %2162 = vmatprep.subr.bf16.mxu0 0
    %2163 = vmatpush1.bf16.msra.mxu0 0
    %2164 = vmatprep.subr.bf16.mxu0 0
    %2165 = vmatpush1.bf16.msra.mxu0 0
    %2166 = vmatprep.subr.bf16.mxu0 0
    %2167 = vmatpush1.bf16.msra.mxu0 0
    %2168 = vmatprep.subr.bf16.mxu0 0
    %2169 = vmatpush1.bf16.msra.mxu0 0
    %2170 = vmatprep.subr.bf16.mxu0 0
    %2171 = vmatpush1.bf16.msra.mxu0 0
    %2172 = vmatprep.subr.bf16.mxu0 0
    %2173 = vmatpush1.bf16.msra.mxu0 0
    %2174 = vmatprep.subr.bf16.mxu0 0
    %2175 = vmatpush1.bf16.msra.mxu0 0
    %2176 = vmatprep.mubr.bf16.mxu0 0
    %2177 = vmatmul.mubr.bf16.gmra.mrb[0].mxu0 %v2142
    %v2178 = vpop.f32.mrb[0].mxu0
    %v2179 = vadd.f32 %v2125, %v2178
    %v2180 = vpop.f32.mrb[0].mxu0
    %v2181 = vpop.f32.mrb[0].mxu0
    %v2182 = vadd.f32 %v2125, %v2181
    %v2183 = vpop.f32.mrb[0].mxu0
    %2184 = vdwg.mxu0
    %v2185 = vld [vmem:[%s3 + $0x8] sm:$0xff]
    %v2186 = vpack.c.bf16 %v2185, %v2185
    %v2187 = vpack.c.bf16 %v2179, %v2179
    %v2188 = vpack.c.bf16 %v2182, %v2182
    %v2190 = vsel %vm85, %v2186, 0
    %v2193 = vsel %vm85, %v2187, 0
    %2195 = vmatprep.subr.bf16.mxu0 0
    %2196 = vmatpush1.bf16.xpose.msra.mxu0 %v2193
    %2197 = vmatprep.subr.bf16.mxu0 0
    %2198 = vmatpush1.bf16.xpose.msra.mxu0 0
    %2199 = vmatprep.subr.bf16.mxu0 0
    %2200 = vmatpush1.bf16.xpose.msra.mxu0 0
    %2201 = vmatprep.subr.bf16.mxu0 0
    %2202 = vmatpush1.bf16.xpose.msra.mxu0 0
    %2203 = vmatprep.subr.bf16.mxu0 0
    %2204 = vmatpush1.bf16.xpose.msra.mxu0 0
    %2205 = vmatprep.subr.bf16.mxu0 0
    %2206 = vmatpush1.bf16.xpose.msra.mxu0 0
    %2207 = vmatprep.subr.bf16.mxu0 0
    %2208 = vmatpush1.bf16.xpose.msra.mxu0 0
    %2209 = vmatprep.subr.bf16.mxu0 0
    %2210 = vmatpush1.bf16.xpose.msra.mxu0 0
    %2211 = vmatprep.subr.bf16.mxu0 0
    %2212 = vmatpush1.bf16.xpose.msra.mxu0 0
    %2213 = vmatprep.subr.bf16.mxu0 0
    %2214 = vmatpush1.bf16.xpose.msra.mxu0 0
    %2215 = vmatprep.subr.bf16.mxu0 0
    %2216 = vmatpush1.bf16.xpose.msra.mxu0 0
    %2217 = vmatprep.subr.bf16.mxu0 0
    %2218 = vmatpush1.bf16.xpose.msra.mxu0 0
    %2219 = vmatprep.subr.bf16.mxu0 0
    %2220 = vmatpush1.bf16.xpose.msra.mxu0 0
    %2221 = vmatprep.subr.bf16.mxu0 0
    %2222 = vmatpush1.bf16.xpose.msra.mxu0 0
    %2223 = vmatprep.subr.bf16.mxu0 0
    %2224 = vmatpush1.bf16.xpose.msra.mxu0 0
    %2225 = vmatprep.subr.bf16.mxu0 0
    %2226 = vmatpush1.bf16.xpose.msra.mxu0 0
    %2227 = vmatprep.mubr.bf16.mxu0 0
    %2228 = vmatmul.mubr.bf16.gmra.mrb[0].mxu0 %v2190
    %v2229 = vpop.f32.mrb[0].mxu0
    %v2230 = vadd.f32 0.0, %v2229
    %v2231 = vpop.f32.mrb[0].mxu0
    %v2232 = vpop.f32.mrb[0].mxu0
    %v2233 = vpop.f32.mrb[0].mxu0
    %2234 = vdwg.mxu0
    %v2236 = vsel %vm85, %v2188, 0
    %2238 = vmatprep.subr.bf16.mxu0 0
    %2239 = vmatpush1.bf16.xpose.msra.mxu0 %v2236
    %2240 = vmatprep.subr.bf16.mxu0 0
    %2241 = vmatpush1.bf16.xpose.msra.mxu0 0
    %2242 = vmatprep.subr.bf16.mxu0 0
    %2243 = vmatpush1.bf16.xpose.msra.mxu0 0
    %2244 = vmatprep.subr.bf16.mxu0 0
    %2245 = vmatpush1.bf16.xpose.msra.mxu0 0
    %2246 = vmatprep.subr.bf16.mxu0 0
    %2247 = vmatpush1.bf16.xpose.msra.mxu0 0
    %2248 = vmatprep.subr.bf16.mxu0 0
    %2249 = vmatpush1.bf16.xpose.msra.mxu0 0
    %2250 = vmatprep.subr.bf16.mxu0 0
    %2251 = vmatpush1.bf16.xpose.msra.mxu0 0
    %2252 = vmatprep.subr.bf16.mxu0 0
    %2253 = vmatpush1.bf16.xpose.msra.mxu0 0
    %2254 = vmatprep.subr.bf16.mxu0 0
    %2255 = vmatpush1.bf16.xpose.msra.mxu0 0
    %2256 = vmatprep.subr.bf16.mxu0 0
    %2257 = vmatpush1.bf16.xpose.msra.mxu0 0
    %2258 = vmatprep.subr.bf16.mxu0 0
    %2259 = vmatpush1.bf16.xpose.msra.mxu0 0
    %2260 = vmatprep.subr.bf16.mxu0 0
    %2261 = vmatpush1.bf16.xpose.msra.mxu0 0
    %2262 = vmatprep.subr.bf16.mxu0 0
    %2263 = vmatpush1.bf16.xpose.msra.mxu0 0
    %2264 = vmatprep.subr.bf16.mxu0 0
    %2265 = vmatpush1.bf16.xpose.msra.mxu0 0
    %2266 = vmatprep.subr.bf16.mxu0 0
    %2267 = vmatpush1.bf16.xpose.msra.mxu0 0
    %2268 = vmatprep.subr.bf16.mxu0 0
    %2269 = vmatpush1.bf16.xpose.msra.mxu0 0
    %2270 = vmatprep.mubr.bf16.mxu0 0
    %2271 = vmatmul.mubr.bf16.gmra.mrb[0].mxu0 %v2190
    %v2272 = vpop.f32.mrb[0].mxu0
    %v2273 = vadd.f32 0.0, %v2272
    %v2274 = vpop.f32.mrb[0].mxu0
    %v2275 = vpop.f32.mrb[0].mxu0
    %v2276 = vpop.f32.mrb[0].mxu0
    %2277 = vdwg.mxu0
    %v2278 = vsel %vm85, %v2230, -inf
    %2279 = vmax.xlane.f32.xlu0 %v2278
    %v2280 = vpop.xlane.xlu0 %2279
    %v2281 = vsel %vm85, %v2273, -inf
    %2282 = vmax.xlane.f32.xlu0 %v2281
    %v2283 = vpop.xlane.xlu0 %2282
    %v2284 = vsub.f32 %v2230, %v2280
    %v2285 = vsub.f32 %v2273, %v2283
    %v2286 = vmul.f32 %v2284, 1.442695
    %v2287 = vpow.pop %v2286
    %v2288 = vmul.f32 %v2285, 1.442695
    %v2289 = vpow.pop %v2288
    %v2290 = vsel %vm85, %v2287, 0.0
    %2291 = vadd.xlane.f32.xlu0 %v2290
    %v2292 = vpop.xlane.xlu0 %2291
    %v2293 = vsel %vm85, %v2289, 0.0
    %2294 = vadd.xlane.f32.xlu0 %v2293
    %v2295 = vpop.xlane.xlu0 %2294
    %v2296 = vrcp.pop %v2292
    %v2297 = vrcp.pop %v2295
    %v2298 = vmul.f32 %v2287, %v2296
    %v2299 = vmul.f32 %v2289, %v2297
    %v2300 = vpack.c.bf16 %v2298, %v2298
    %v2301 = vpack.c.bf16 %v2299, %v2299
    %2303 = vrot.lane.b32.xlu0 %v2187, 96
    %v2304 = vpop.permute.xlu0 %2303
    %v2306 = vsel %vm85, %v2300, 0
    %v2309 = vsel %vm205, %v2304, 0
    %2311 = vmatprep.subr.bf16.mxu0 0
    %2312 = vmatpush1.bf16.msra.mxu0 %v2309
    %2313 = vmatprep.subr.bf16.mxu0 0
    %2314 = vmatpush1.bf16.msra.mxu0 0
    %2315 = vmatprep.subr.bf16.mxu0 0
    %2316 = vmatpush1.bf16.msra.mxu0 0
    %2317 = vmatprep.subr.bf16.mxu0 0
    %2318 = vmatpush1.bf16.msra.mxu0 0
    %2319 = vmatprep.subr.bf16.mxu0 0
    %2320 = vmatpush1.bf16.msra.mxu0 0
    %2321 = vmatprep.subr.bf16.mxu0 0
    %2322 = vmatpush1.bf16.msra.mxu0 0
    %2323 = vmatprep.subr.bf16.mxu0 0
    %2324 = vmatpush1.bf16.msra.mxu0 0
    %2325 = vmatprep.subr.bf16.mxu0 0
    %2326 = vmatpush1.bf16.msra.mxu0 0
    %2327 = vmatprep.subr.bf16.mxu0 0
    %2328 = vmatpush1.bf16.msra.mxu0 0
    %2329 = vmatprep.subr.bf16.mxu0 0
    %2330 = vmatpush1.bf16.msra.mxu0 0
    %2331 = vmatprep.subr.bf16.mxu0 0
    %2332 = vmatpush1.bf16.msra.mxu0 0
    %2333 = vmatprep.subr.bf16.mxu0 0
    %2334 = vmatpush1.bf16.msra.mxu0 0
    %2335 = vmatprep.subr.bf16.mxu0 0
    %2336 = vmatpush1.bf16.msra.mxu0 0
    %2337 = vmatprep.subr.bf16.mxu0 0
    %2338 = vmatpush1.bf16.msra.mxu0 0
    %2339 = vmatprep.subr.bf16.mxu0 0
    %2340 = vmatpush1.bf16.msra.mxu0 0
    %2341 = vmatprep.subr.bf16.mxu0 0
    %2342 = vmatpush1.bf16.msra.mxu0 0
    %2343 = vmatprep.mubr.bf16.mxu0 0
    %2344 = vmatmul.mubr.bf16.gmra.mrb[0].mxu0 %v2306
    %v2345 = vpop.f32.mrb[0].mxu0
    %v2346 = vadd.f32 0.0, %v2345
    %v2347 = vpop.f32.mrb[0].mxu0
    %v2348 = vpop.f32.mrb[0].mxu0
    %v2349 = vpop.f32.mrb[0].mxu0
    %2350 = vdwg.mxu0
    %2352 = vrot.lane.b32.xlu0 %v2188, 96
    %v2353 = vpop.permute.xlu0 %2352
    %v2355 = vsel %vm85, %v2301, 0
    %v2358 = vsel %vm205, %v2353, 0
    %2360 = vmatprep.subr.bf16.mxu0 0
    %2361 = vmatpush1.bf16.msra.mxu0 %v2358
    %2362 = vmatprep.subr.bf16.mxu0 0
    %2363 = vmatpush1.bf16.msra.mxu0 0
    %2364 = vmatprep.subr.bf16.mxu0 0
    %2365 = vmatpush1.bf16.msra.mxu0 0
    %2366 = vmatprep.subr.bf16.mxu0 0
    %2367 = vmatpush1.bf16.msra.mxu0 0
    %2368 = vmatprep.subr.bf16.mxu0 0
    %2369 = vmatpush1.bf16.msra.mxu0 0
    %2370 = vmatprep.subr.bf16.mxu0 0
    %2371 = vmatpush1.bf16.msra.mxu0 0
    %2372 = vmatprep.subr.bf16.mxu0 0
    %2373 = vmatpush1.bf16.msra.mxu0 0
    %2374 = vmatprep.subr.bf16.mxu0 0
    %2375 = vmatpush1.bf16.msra.mxu0 0
    %2376 = vmatprep.subr.bf16.mxu0 0
    %2377 = vmatpush1.bf16.msra.mxu0 0
    %2378 = vmatprep.subr.bf16.mxu0 0
    %2379 = vmatpush1.bf16.msra.mxu0 0
    %2380 = vmatprep.subr.bf16.mxu0 0
    %2381 = vmatpush1.bf16.msra.mxu0 0
    %2382 = vmatprep.subr.bf16.mxu0 0
    %2383 = vmatpush1.bf16.msra.mxu0 0
    %2384 = vmatprep.subr.bf16.mxu0 0
    %2385 = vmatpush1.bf16.msra.mxu0 0
    %2386 = vmatprep.subr.bf16.mxu0 0
    %2387 = vmatpush1.bf16.msra.mxu0 0
    %2388 = vmatprep.subr.bf16.mxu0 0
    %2389 = vmatpush1.bf16.msra.mxu0 0
    %2390 = vmatprep.subr.bf16.mxu0 0
    %2391 = vmatpush1.bf16.msra.mxu0 0
    %2392 = vmatprep.mubr.bf16.mxu0 0
    %2393 = vmatmul.mubr.bf16.gmra.mrb[0].mxu0 %v2355
    %v2394 = vpop.f32.mrb[0].mxu0
    %v2395 = vadd.f32 0.0, %v2394
    %v2396 = vpop.f32.mrb[0].mxu0
    %v2397 = vpop.f32.mrb[0].mxu0
    %v2398 = vpop.f32.mrb[0].mxu0
    %2399 = vdwg.mxu0
    %2401 = vrot.lane.b32.xlu0 %v2186, 120
    %v2402 = vpop.permute.xlu0 %2401
    %2403 = vrot.lane.b32.xlu0 %v2187, 120
    %v2404 = vpop.permute.xlu0 %2403
    %v2406 = vsel %vm85, %v2402, 0
    %v2409 = vsel %vm85, %v2404, 0
    %2411 = vmatprep.subr.bf16.mxu0 0
    %2412 = vmatpush1.bf16.xpose.msra.mxu0 %v2409
    %2413 = vmatprep.subr.bf16.mxu0 0
    %2414 = vmatpush1.bf16.xpose.msra.mxu0 0
    %2415 = vmatprep.subr.bf16.mxu0 0
    %2416 = vmatpush1.bf16.xpose.msra.mxu0 0
    %2417 = vmatprep.subr.bf16.mxu0 0
    %2418 = vmatpush1.bf16.xpose.msra.mxu0 0
    %2419 = vmatprep.subr.bf16.mxu0 0
    %2420 = vmatpush1.bf16.xpose.msra.mxu0 0
    %2421 = vmatprep.subr.bf16.mxu0 0
    %2422 = vmatpush1.bf16.xpose.msra.mxu0 0
    %2423 = vmatprep.subr.bf16.mxu0 0
    %2424 = vmatpush1.bf16.xpose.msra.mxu0 0
    %2425 = vmatprep.subr.bf16.mxu0 0
    %2426 = vmatpush1.bf16.xpose.msra.mxu0 0
    %2427 = vmatprep.subr.bf16.mxu0 0
    %2428 = vmatpush1.bf16.xpose.msra.mxu0 0
    %2429 = vmatprep.subr.bf16.mxu0 0
    %2430 = vmatpush1.bf16.xpose.msra.mxu0 0
    %2431 = vmatprep.subr.bf16.mxu0 0
    %2432 = vmatpush1.bf16.xpose.msra.mxu0 0
    %2433 = vmatprep.subr.bf16.mxu0 0
    %2434 = vmatpush1.bf16.xpose.msra.mxu0 0
    %2435 = vmatprep.subr.bf16.mxu0 0
    %2436 = vmatpush1.bf16.xpose.msra.mxu0 0
    %2437 = vmatprep.subr.bf16.mxu0 0
    %2438 = vmatpush1.bf16.xpose.msra.mxu0 0
    %2439 = vmatprep.subr.bf16.mxu0 0
    %2440 = vmatpush1.bf16.xpose.msra.mxu0 0
    %2441 = vmatprep.subr.bf16.mxu0 0
    %2442 = vmatpush1.bf16.xpose.msra.mxu0 0
    %2443 = vmatprep.mubr.bf16.mxu0 0
    %2444 = vmatmul.mubr.bf16.gmra.mrb[0].mxu0 %v2406
    %v2445 = vpop.f32.mrb[0].mxu0
    %v2446 = vadd.f32 0.0, %v2445
    %v2447 = vpop.f32.mrb[0].mxu0
    %v2448 = vpop.f32.mrb[0].mxu0
    %v2449 = vpop.f32.mrb[0].mxu0
    %2450 = vdwg.mxu0
    %2451 = vrot.lane.b32.xlu0 %v2188, 120
    %v2452 = vpop.permute.xlu0 %2451
    %v2454 = vsel %vm85, %v2452, 0
    %2456 = vmatprep.subr.bf16.mxu0 0
    %2457 = vmatpush1.bf16.xpose.msra.mxu0 %v2454
    %2458 = vmatprep.subr.bf16.mxu0 0
    %2459 = vmatpush1.bf16.xpose.msra.mxu0 0
    %2460 = vmatprep.subr.bf16.mxu0 0
    %2461 = vmatpush1.bf16.xpose.msra.mxu0 0
    %2462 = vmatprep.subr.bf16.mxu0 0
    %2463 = vmatpush1.bf16.xpose.msra.mxu0 0
    %2464 = vmatprep.subr.bf16.mxu0 0
    %2465 = vmatpush1.bf16.xpose.msra.mxu0 0
    %2466 = vmatprep.subr.bf16.mxu0 0
    %2467 = vmatpush1.bf16.xpose.msra.mxu0 0
    %2468 = vmatprep.subr.bf16.mxu0 0
    %2469 = vmatpush1.bf16.xpose.msra.mxu0 0
    %2470 = vmatprep.subr.bf16.mxu0 0
    %2471 = vmatpush1.bf16.xpose.msra.mxu0 0
    %2472 = vmatprep.subr.bf16.mxu0 0
    %2473 = vmatpush1.bf16.xpose.msra.mxu0 0
    %2474 = vmatprep.subr.bf16.mxu0 0
    %2475 = vmatpush1.bf16.xpose.msra.mxu0 0
    %2476 = vmatprep.subr.bf16.mxu0 0
    %2477 = vmatpush1.bf16.xpose.msra.mxu0 0
    %2478 = vmatprep.subr.bf16.mxu0 0
    %2479 = vmatpush1.bf16.xpose.msra.mxu0 0
    %2480 = vmatprep.subr.bf16.mxu0 0
    %2481 = vmatpush1.bf16.xpose.msra.mxu0 0
    %2482 = vmatprep.subr.bf16.mxu0 0
    %2483 = vmatpush1.bf16.xpose.msra.mxu0 0
    %2484 = vmatprep.subr.bf16.mxu0 0
    %2485 = vmatpush1.bf16.xpose.msra.mxu0 0
    %2486 = vmatprep.subr.bf16.mxu0 0
    %2487 = vmatpush1.bf16.xpose.msra.mxu0 0
    %2488 = vmatprep.mubr.bf16.mxu0 0
    %2489 = vmatmul.mubr.bf16.gmra.mrb[0].mxu0 %v2406
    %v2490 = vpop.f32.mrb[0].mxu0
    %v2491 = vadd.f32 0.0, %v2490
    %v2492 = vpop.f32.mrb[0].mxu0
    %v2493 = vpop.f32.mrb[0].mxu0
    %v2494 = vpop.f32.mrb[0].mxu0
    %2495 = vdwg.mxu0
    %v2496 = vsel %vm85, %v2446, -inf
    %2497 = vmax.xlane.f32.xlu0 %v2496
    %v2498 = vpop.xlane.xlu0 %2497
    %v2499 = vsel %vm85, %v2491, -inf
    %2500 = vmax.xlane.f32.xlu0 %v2499
    %v2501 = vpop.xlane.xlu0 %2500
    %v2502 = vsub.f32 %v2446, %v2498
    %v2503 = vsub.f32 %v2491, %v2501
    %v2504 = vmul.f32 %v2502, 1.442695
    %v2505 = vpow.pop %v2504
    %v2506 = vmul.f32 %v2503, 1.442695
    %v2507 = vpow.pop %v2506
    %v2508 = vsel %vm85, %v2505, 0.0
    %2509 = vadd.xlane.f32.xlu0 %v2508
    %v2510 = vpop.xlane.xlu0 %2509
    %v2511 = vsel %vm85, %v2507, 0.0
    %2512 = vadd.xlane.f32.xlu0 %v2511
    %v2513 = vpop.xlane.xlu0 %2512
    %v2514 = vrcp.pop %v2510
    %v2515 = vrcp.pop %v2513
    %v2516 = vmul.f32 %v2505, %v2514
    %v2517 = vmul.f32 %v2507, %v2515
    %v2518 = vpack.c.bf16 %v2516, %v2516
    %v2519 = vpack.c.bf16 %v2517, %v2517
    %2520 = vrot.lane.b32.xlu0 %v2187, 88
    %v2521 = vpop.permute.xlu0 %2520
    %v2523 = vsel %vm85, %v2518, 0
    %v2526 = vsel %vm205, %v2521, 0
    %2528 = vmatprep.subr.bf16.mxu0 0
    %2529 = vmatpush1.bf16.msra.mxu0 %v2526
    %2530 = vmatprep.subr.bf16.mxu0 0
    %2531 = vmatpush1.bf16.msra.mxu0 0
    %2532 = vmatprep.subr.bf16.mxu0 0
    %2533 = vmatpush1.bf16.msra.mxu0 0
    %2534 = vmatprep.subr.bf16.mxu0 0
    %2535 = vmatpush1.bf16.msra.mxu0 0
    %2536 = vmatprep.subr.bf16.mxu0 0
    %2537 = vmatpush1.bf16.msra.mxu0 0
    %2538 = vmatprep.subr.bf16.mxu0 0
    %2539 = vmatpush1.bf16.msra.mxu0 0
    %2540 = vmatprep.subr.bf16.mxu0 0
    %2541 = vmatpush1.bf16.msra.mxu0 0
    %2542 = vmatprep.subr.bf16.mxu0 0
    %2543 = vmatpush1.bf16.msra.mxu0 0
    %2544 = vmatprep.subr.bf16.mxu0 0
    %2545 = vmatpush1.bf16.msra.mxu0 0
    %2546 = vmatprep.subr.bf16.mxu0 0
    %2547 = vmatpush1.bf16.msra.mxu0 0
    %2548 = vmatprep.subr.bf16.mxu0 0
    %2549 = vmatpush1.bf16.msra.mxu0 0
    %2550 = vmatprep.subr.bf16.mxu0 0
    %2551 = vmatpush1.bf16.msra.mxu0 0
    %2552 = vmatprep.subr.bf16.mxu0 0
    %2553 = vmatpush1.bf16.msra.mxu0 0
    %2554 = vmatprep.subr.bf16.mxu0 0
    %2555 = vmatpush1.bf16.msra.mxu0 0
    %2556 = vmatprep.subr.bf16.mxu0 0
    %2557 = vmatpush1.bf16.msra.mxu0 0
    %2558 = vmatprep.subr.bf16.mxu0 0
    %2559 = vmatpush1.bf16.msra.mxu0 0
    %2560 = vmatprep.mubr.bf16.mxu0 0
    %2561 = vmatmul.mubr.bf16.gmra.mrb[0].mxu0 %v2523
    %v2562 = vpop.f32.mrb[0].mxu0
    %v2563 = vadd.f32 0.0, %v2562
    %v2564 = vpop.f32.mrb[0].mxu0
    %v2565 = vpop.f32.mrb[0].mxu0
    %v2566 = vpop.f32.mrb[0].mxu0
    %2567 = vdwg.mxu0
    %2568 = vrot.lane.b32.xlu0 %v2188, 88
    %v2569 = vpop.permute.xlu0 %2568
    %v2571 = vsel %vm85, %v2519, 0
    %v2574 = vsel %vm205, %v2569, 0
    %2576 = vmatprep.subr.bf16.mxu0 0
    %2577 = vmatpush1.bf16.msra.mxu0 %v2574
    %2578 = vmatprep.subr.bf16.mxu0 0
    %2579 = vmatpush1.bf16.msra.mxu0 0
    %2580 = vmatprep.subr.bf16.mxu0 0
    %2581 = vmatpush1.bf16.msra.mxu0 0
    %2582 = vmatprep.subr.bf16.mxu0 0
    %2583 = vmatpush1.bf16.msra.mxu0 0
    %2584 = vmatprep.subr.bf16.mxu0 0
    %2585 = vmatpush1.bf16.msra.mxu0 0
    %2586 = vmatprep.subr.bf16.mxu0 0
    %2587 = vmatpush1.bf16.msra.mxu0 0
    %2588 = vmatprep.subr.bf16.mxu0 0
    %2589 = vmatpush1.bf16.msra.mxu0 0
    %2590 = vmatprep.subr.bf16.mxu0 0
    %2591 = vmatpush1.bf16.msra.mxu0 0
    %2592 = vmatprep.subr.bf16.mxu0 0
    %2593 = vmatpush1.bf16.msra.mxu0 0
    %2594 = vmatprep.subr.bf16.mxu0 0
    %2595 = vmatpush1.bf16.msra.mxu0 0
    %2596 = vmatprep.subr.bf16.mxu0 0
    %2597 = vmatpush1.bf16.msra.mxu0 0
    %2598 = vmatprep.subr.bf16.mxu0 0
    %2599 = vmatpush1.bf16.msra.mxu0 0
    %2600 = vmatprep.subr.bf16.mxu0 0
    %2601 = vmatpush1.bf16.msra.mxu0 0
    %2602 = vmatprep.subr.bf16.mxu0 0
    %2603 = vmatpush1.bf16.msra.mxu0 0
    %2604 = vmatprep.subr.bf16.mxu0 0
    %2605 = vmatpush1.bf16.msra.mxu0 0
    %2606 = vmatprep.subr.bf16.mxu0 0
    %2607 = vmatpush1.bf16.msra.mxu0 0
    %2608 = vmatprep.mubr.bf16.mxu0 0
    %2609 = vmatmul.mubr.bf16.gmra.mrb[0].mxu0 %v2571
    %v2610 = vpop.f32.mrb[0].mxu0
    %v2611 = vadd.f32 0.0, %v2610
    %v2612 = vpop.f32.mrb[0].mxu0
    %v2613 = vpop.f32.mrb[0].mxu0
    %v2614 = vpop.f32.mrb[0].mxu0
    %2615 = vdwg.mxu0
    %2616 = vrot.lane.b32.xlu0 %v2186, 112
    %v2617 = vpop.permute.xlu0 %2616
    %2618 = vrot.lane.b32.xlu0 %v2187, 112
    %v2619 = vpop.permute.xlu0 %2618
    %v2621 = vsel %vm85, %v2617, 0
    %v2624 = vsel %vm85, %v2619, 0
    %2626 = vmatprep.subr.bf16.mxu0 0
    %2627 = vmatpush1.bf16.xpose.msra.mxu0 %v2624
    %2628 = vmatprep.subr.bf16.mxu0 0
    %2629 = vmatpush1.bf16.xpose.msra.mxu0 0
    %2630 = vmatprep.subr.bf16.mxu0 0
    %2631 = vmatpush1.bf16.xpose.msra.mxu0 0
    %2632 = vmatprep.subr.bf16.mxu0 0
    %2633 = vmatpush1.bf16.xpose.msra.mxu0 0
    %2634 = vmatprep.subr.bf16.mxu0 0
    %2635 = vmatpush1.bf16.xpose.msra.mxu0 0
    %2636 = vmatprep.subr.bf16.mxu0 0
    %2637 = vmatpush1.bf16.xpose.msra.mxu0 0
    %2638 = vmatprep.subr.bf16.mxu0 0
    %2639 = vmatpush1.bf16.xpose.msra.mxu0 0
    %2640 = vmatprep.subr.bf16.mxu0 0
    %2641 = vmatpush1.bf16.xpose.msra.mxu0 0
    %2642 = vmatprep.subr.bf16.mxu0 0
    %2643 = vmatpush1.bf16.xpose.msra.mxu0 0
    %2644 = vmatprep.subr.bf16.mxu0 0
    %2645 = vmatpush1.bf16.xpose.msra.mxu0 0
    %2646 = vmatprep.subr.bf16.mxu0 0
    %2647 = vmatpush1.bf16.xpose.msra.mxu0 0
    %2648 = vmatprep.subr.bf16.mxu0 0
    %2649 = vmatpush1.bf16.xpose.msra.mxu0 0
    %2650 = vmatprep.subr.bf16.mxu0 0
    %2651 = vmatpush1.bf16.xpose.msra.mxu0 0
    %2652 = vmatprep.subr.bf16.mxu0 0
    %2653 = vmatpush1.bf16.xpose.msra.mxu0 0
    %2654 = vmatprep.subr.bf16.mxu0 0
    %2655 = vmatpush1.bf16.xpose.msra.mxu0 0
    %2656 = vmatprep.subr.bf16.mxu0 0
    %2657 = vmatpush1.bf16.xpose.msra.mxu0 0
    %2658 = vmatprep.mubr.bf16.mxu0 0
    %2659 = vmatmul.mubr.bf16.gmra.mrb[0].mxu0 %v2621
    %v2660 = vpop.f32.mrb[0].mxu0
    %v2661 = vadd.f32 0.0, %v2660
    %v2662 = vpop.f32.mrb[0].mxu0
    %v2663 = vpop.f32.mrb[0].mxu0
    %v2664 = vpop.f32.mrb[0].mxu0
    %2665 = vdwg.mxu0
    %2666 = vrot.lane.b32.xlu0 %v2188, 112
    %v2667 = vpop.permute.xlu0 %2666
    %v2669 = vsel %vm85, %v2667, 0
    %2671 = vmatprep.subr.bf16.mxu0 0
    %2672 = vmatpush1.bf16.xpose.msra.mxu0 %v2669
    %2673 = vmatprep.subr.bf16.mxu0 0
    %2674 = vmatpush1.bf16.xpose.msra.mxu0 0
    %2675 = vmatprep.subr.bf16.mxu0 0
    %2676 = vmatpush1.bf16.xpose.msra.mxu0 0
    %2677 = vmatprep.subr.bf16.mxu0 0
    %2678 = vmatpush1.bf16.xpose.msra.mxu0 0
    %2679 = vmatprep.subr.bf16.mxu0 0
    %2680 = vmatpush1.bf16.xpose.msra.mxu0 0
    %2681 = vmatprep.subr.bf16.mxu0 0
    %2682 = vmatpush1.bf16.xpose.msra.mxu0 0
    %2683 = vmatprep.subr.bf16.mxu0 0
    %2684 = vmatpush1.bf16.xpose.msra.mxu0 0
    %2685 = vmatprep.subr.bf16.mxu0 0
    %2686 = vmatpush1.bf16.xpose.msra.mxu0 0
    %2687 = vmatprep.subr.bf16.mxu0 0
    %2688 = vmatpush1.bf16.xpose.msra.mxu0 0
    %2689 = vmatprep.subr.bf16.mxu0 0
    %2690 = vmatpush1.bf16.xpose.msra.mxu0 0
    %2691 = vmatprep.subr.bf16.mxu0 0
    %2692 = vmatpush1.bf16.xpose.msra.mxu0 0
    %2693 = vmatprep.subr.bf16.mxu0 0
    %2694 = vmatpush1.bf16.xpose.msra.mxu0 0
    %2695 = vmatprep.subr.bf16.mxu0 0
    %2696 = vmatpush1.bf16.xpose.msra.mxu0 0
    %2697 = vmatprep.subr.bf16.mxu0 0
    %2698 = vmatpush1.bf16.xpose.msra.mxu0 0
    %2699 = vmatprep.subr.bf16.mxu0 0
    %2700 = vmatpush1.bf16.xpose.msra.mxu0 0
    %2701 = vmatprep.subr.bf16.mxu0 0
    %2702 = vmatpush1.bf16.xpose.msra.mxu0 0
    %2703 = vmatprep.mubr.bf16.mxu0 0
    %2704 = vmatmul.mubr.bf16.gmra.mrb[0].mxu0 %v2621
    %v2705 = vpop.f32.mrb[0].mxu0
    %v2706 = vadd.f32 0.0, %v2705
    %v2707 = vpop.f32.mrb[0].mxu0
    %v2708 = vpop.f32.mrb[0].mxu0
    %v2709 = vpop.f32.mrb[0].mxu0
    %2710 = vdwg.mxu0
    %v2711 = vsel %vm85, %v2661, -inf
    %2712 = vmax.xlane.f32.xlu0 %v2711
    %v2713 = vpop.xlane.xlu0 %2712
    %v2714 = vsel %vm85, %v2706, -inf
    %2715 = vmax.xlane.f32.xlu0 %v2714
    %v2716 = vpop.xlane.xlu0 %2715
    %v2717 = vsub.f32 %v2661, %v2713
    %v2718 = vsub.f32 %v2706, %v2716
    %v2719 = vmul.f32 %v2717, 1.442695
    %v2720 = vpow.pop %v2719
    %v2721 = vmul.f32 %v2718, 1.442695
    %v2722 = vpow.pop %v2721
    %v2723 = vsel %vm85, %v2720, 0.0
    %2724 = vadd.xlane.f32.xlu0 %v2723
    %v2725 = vpop.xlane.xlu0 %2724
    %v2726 = vsel %vm85, %v2722, 0.0
    %2727 = vadd.xlane.f32.xlu0 %v2726
    %v2728 = vpop.xlane.xlu0 %2727
    %v2729 = vrcp.pop %v2725
    %v2730 = vrcp.pop %v2728
    %v2731 = vmul.f32 %v2720, %v2729
    %v2732 = vmul.f32 %v2722, %v2730
    %v2733 = vpack.c.bf16 %v2731, %v2731
    %v2734 = vpack.c.bf16 %v2732, %v2732
    %2735 = vrot.lane.b32.xlu0 %v2187, 80
    %v2736 = vpop.permute.xlu0 %2735
    %v2738 = vsel %vm85, %v2733, 0
    %v2741 = vsel %vm205, %v2736, 0
    %2743 = vmatprep.subr.bf16.mxu0 0
    %2744 = vmatpush1.bf16.msra.mxu0 %v2741
    %2745 = vmatprep.subr.bf16.mxu0 0
    %2746 = vmatpush1.bf16.msra.mxu0 0
    %2747 = vmatprep.subr.bf16.mxu0 0
    %2748 = vmatpush1.bf16.msra.mxu0 0
    %2749 = vmatprep.subr.bf16.mxu0 0
    %2750 = vmatpush1.bf16.msra.mxu0 0
    %2751 = vmatprep.subr.bf16.mxu0 0
    %2752 = vmatpush1.bf16.msra.mxu0 0
    %2753 = vmatprep.subr.bf16.mxu0 0
    %2754 = vmatpush1.bf16.msra.mxu0 0
    %2755 = vmatprep.subr.bf16.mxu0 0
    %2756 = vmatpush1.bf16.msra.mxu0 0
    %2757 = vmatprep.subr.bf16.mxu0 0
    %2758 = vmatpush1.bf16.msra.mxu0 0
    %2759 = vmatprep.subr.bf16.mxu0 0
    %2760 = vmatpush1.bf16.msra.mxu0 0
    %2761 = vmatprep.subr.bf16.mxu0 0
    %2762 = vmatpush1.bf16.msra.mxu0 0
    %2763 = vmatprep.subr.bf16.mxu0 0
    %2764 = vmatpush1.bf16.msra.mxu0 0
    %2765 = vmatprep.subr.bf16.mxu0 0
    %2766 = vmatpush1.bf16.msra.mxu0 0
    %2767 = vmatprep.subr.bf16.mxu0 0
    %2768 = vmatpush1.bf16.msra.mxu0 0
    %2769 = vmatprep.subr.bf16.mxu0 0
    %2770 = vmatpush1.bf16.msra.mxu0 0
    %2771 = vmatprep.subr.bf16.mxu0 0
    %2772 = vmatpush1.bf16.msra.mxu0 0
    %2773 = vmatprep.subr.bf16.mxu0 0
    %2774 = vmatpush1.bf16.msra.mxu0 0
    %2775 = vmatprep.mubr.bf16.mxu0 0
    %2776 = vmatmul.mubr.bf16.gmra.mrb[0].mxu0 %v2738
    %v2777 = vpop.f32.mrb[0].mxu0
    %v2778 = vadd.f32 0.0, %v2777
    %v2779 = vpop.f32.mrb[0].mxu0
    %v2780 = vpop.f32.mrb[0].mxu0
    %v2781 = vpop.f32.mrb[0].mxu0
    %2782 = vdwg.mxu0
    %2783 = vrot.lane.b32.xlu0 %v2188, 80
    %v2784 = vpop.permute.xlu0 %2783
    %v2786 = vsel %vm85, %v2734, 0
    %v2789 = vsel %vm205, %v2784, 0
    %2791 = vmatprep.subr.bf16.mxu0 0
    %2792 = vmatpush1.bf16.msra.mxu0 %v2789
    %2793 = vmatprep.subr.bf16.mxu0 0
    %2794 = vmatpush1.bf16.msra.mxu0 0
    %2795 = vmatprep.subr.bf16.mxu0 0
    %2796 = vmatpush1.bf16.msra.mxu0 0
    %2797 = vmatprep.subr.bf16.mxu0 0
    %2798 = vmatpush1.bf16.msra.mxu0 0
    %2799 = vmatprep.subr.bf16.mxu0 0
    %2800 = vmatpush1.bf16.msra.mxu0 0
    %2801 = vmatprep.subr.bf16.mxu0 0
    %2802 = vmatpush1.bf16.msra.mxu0 0
    %2803 = vmatprep.subr.bf16.mxu0 0
    %2804 = vmatpush1.bf16.msra.mxu0 0
    %2805 = vmatprep.subr.bf16.mxu0 0
    %2806 = vmatpush1.bf16.msra.mxu0 0
    %2807 = vmatprep.subr.bf16.mxu0 0
    %2808 = vmatpush1.bf16.msra.mxu0 0
    %2809 = vmatprep.subr.bf16.mxu0 0
    %2810 = vmatpush1.bf16.msra.mxu0 0
    %2811 = vmatprep.subr.bf16.mxu0 0
    %2812 = vmatpush1.bf16.msra.mxu0 0
    %2813 = vmatprep.subr.bf16.mxu0 0
    %2814 = vmatpush1.bf16.msra.mxu0 0
    %2815 = vmatprep.subr.bf16.mxu0 0
    %2816 = vmatpush1.bf16.msra.mxu0 0
    %2817 = vmatprep.subr.bf16.mxu0 0
    %2818 = vmatpush1.bf16.msra.mxu0 0
    %2819 = vmatprep.subr.bf16.mxu0 0
    %2820 = vmatpush1.bf16.msra.mxu0 0
    %2821 = vmatprep.subr.bf16.mxu0 0
    %2822 = vmatpush1.bf16.msra.mxu0 0
    %2823 = vmatprep.mubr.bf16.mxu0 0
    %2824 = vmatmul.mubr.bf16.gmra.mrb[0].mxu0 %v2786
    %v2825 = vpop.f32.mrb[0].mxu0
    %v2826 = vadd.f32 0.0, %v2825
    %v2827 = vpop.f32.mrb[0].mxu0
    %v2828 = vpop.f32.mrb[0].mxu0
    %v2829 = vpop.f32.mrb[0].mxu0
    %2830 = vdwg.mxu0
    %2831 = vrot.lane.b32.xlu0 %v2186, 104
    %v2832 = vpop.permute.xlu0 %2831
    %2833 = vrot.lane.b32.xlu0 %v2187, 104
    %v2834 = vpop.permute.xlu0 %2833
    %v2836 = vsel %vm85, %v2832, 0
    %v2839 = vsel %vm85, %v2834, 0
    %2841 = vmatprep.subr.bf16.mxu0 0
    %2842 = vmatpush1.bf16.xpose.msra.mxu0 %v2839
    %2843 = vmatprep.subr.bf16.mxu0 0
    %2844 = vmatpush1.bf16.xpose.msra.mxu0 0
    %2845 = vmatprep.subr.bf16.mxu0 0
    %2846 = vmatpush1.bf16.xpose.msra.mxu0 0
    %2847 = vmatprep.subr.bf16.mxu0 0
    %2848 = vmatpush1.bf16.xpose.msra.mxu0 0
    %2849 = vmatprep.subr.bf16.mxu0 0
    %2850 = vmatpush1.bf16.xpose.msra.mxu0 0
    %2851 = vmatprep.subr.bf16.mxu0 0
    %2852 = vmatpush1.bf16.xpose.msra.mxu0 0
    %2853 = vmatprep.subr.bf16.mxu0 0
    %2854 = vmatpush1.bf16.xpose.msra.mxu0 0
    %2855 = vmatprep.subr.bf16.mxu0 0
    %2856 = vmatpush1.bf16.xpose.msra.mxu0 0
    %2857 = vmatprep.subr.bf16.mxu0 0
    %2858 = vmatpush1.bf16.xpose.msra.mxu0 0
    %2859 = vmatprep.subr.bf16.mxu0 0
    %2860 = vmatpush1.bf16.xpose.msra.mxu0 0
    %2861 = vmatprep.subr.bf16.mxu0 0
    %2862 = vmatpush1.bf16.xpose.msra.mxu0 0
    %2863 = vmatprep.subr.bf16.mxu0 0
    %2864 = vmatpush1.bf16.xpose.msra.mxu0 0
    %2865 = vmatprep.subr.bf16.mxu0 0
    %2866 = vmatpush1.bf16.xpose.msra.mxu0 0
    %2867 = vmatprep.subr.bf16.mxu0 0
    %2868 = vmatpush1.bf16.xpose.msra.mxu0 0
    %2869 = vmatprep.subr.bf16.mxu0 0
    %2870 = vmatpush1.bf16.xpose.msra.mxu0 0
    %2871 = vmatprep.subr.bf16.mxu0 0
    %2872 = vmatpush1.bf16.xpose.msra.mxu0 0
    %2873 = vmatprep.mubr.bf16.mxu0 0
    %2874 = vmatmul.mubr.bf16.gmra.mrb[0].mxu0 %v2836
    %v2875 = vpop.f32.mrb[0].mxu0
    %v2876 = vadd.f32 0.0, %v2875
    %v2877 = vpop.f32.mrb[0].mxu0
    %v2878 = vpop.f32.mrb[0].mxu0
    %v2879 = vpop.f32.mrb[0].mxu0
    %2880 = vdwg.mxu0
    %2881 = vrot.lane.b32.xlu0 %v2188, 104
    %v2882 = vpop.permute.xlu0 %2881
    %v2884 = vsel %vm85, %v2882, 0
    %2886 = vmatprep.subr.bf16.mxu0 0
    %2887 = vmatpush1.bf16.xpose.msra.mxu0 %v2884
    %2888 = vmatprep.subr.bf16.mxu0 0
    %2889 = vmatpush1.bf16.xpose.msra.mxu0 0
    %2890 = vmatprep.subr.bf16.mxu0 0
    %2891 = vmatpush1.bf16.xpose.msra.mxu0 0
    %2892 = vmatprep.subr.bf16.mxu0 0
    %2893 = vmatpush1.bf16.xpose.msra.mxu0 0
    %2894 = vmatprep.subr.bf16.mxu0 0
    %2895 = vmatpush1.bf16.xpose.msra.mxu0 0
    %2896 = vmatprep.subr.bf16.mxu0 0
    %2897 = vmatpush1.bf16.xpose.msra.mxu0 0
    %2898 = vmatprep.subr.bf16.mxu0 0
    %2899 = vmatpush1.bf16.xpose.msra.mxu0 0
    %2900 = vmatprep.subr.bf16.mxu0 0
    %2901 = vmatpush1.bf16.xpose.msra.mxu0 0
    %2902 = vmatprep.subr.bf16.mxu0 0
    %2903 = vmatpush1.bf16.xpose.msra.mxu0 0
    %2904 = vmatprep.subr.bf16.mxu0 0
    %2905 = vmatpush1.bf16.xpose.msra.mxu0 0
    %2906 = vmatprep.subr.bf16.mxu0 0
    %2907 = vmatpush1.bf16.xpose.msra.mxu0 0
    %2908 = vmatprep.subr.bf16.mxu0 0
    %2909 = vmatpush1.bf16.xpose.msra.mxu0 0
    %2910 = vmatprep.subr.bf16.mxu0 0
    %2911 = vmatpush1.bf16.xpose.msra.mxu0 0
    %2912 = vmatprep.subr.bf16.mxu0 0
    %2913 = vmatpush1.bf16.xpose.msra.mxu0 0
    %2914 = vmatprep.subr.bf16.mxu0 0
    %2915 = vmatpush1.bf16.xpose.msra.mxu0 0
    %2916 = vmatprep.subr.bf16.mxu0 0
    %2917 = vmatpush1.bf16.xpose.msra.mxu0 0
    %2918 = vmatprep.mubr.bf16.mxu0 0
    %2919 = vmatmul.mubr.bf16.gmra.mrb[0].mxu0 %v2836
    %v2920 = vpop.f32.mrb[0].mxu0
    %v2921 = vadd.f32 0.0, %v2920
    %v2922 = vpop.f32.mrb[0].mxu0
    %v2923 = vpop.f32.mrb[0].mxu0
    %v2924 = vpop.f32.mrb[0].mxu0
    %2925 = vdwg.mxu0
    %v2926 = vsel %vm85, %v2876, -inf
    %2927 = vmax.xlane.f32.xlu0 %v2926
    %v2928 = vpop.xlane.xlu0 %2927
    %v2929 = vsel %vm85, %v2921, -inf
    %2930 = vmax.xlane.f32.xlu0 %v2929
    %v2931 = vpop.xlane.xlu0 %2930
    %v2932 = vsub.f32 %v2876, %v2928
    %v2933 = vsub.f32 %v2921, %v2931
    %v2934 = vmul.f32 %v2932, 1.442695
    %v2935 = vpow.pop %v2934
    %v2936 = vmul.f32 %v2933, 1.442695
    %v2937 = vpow.pop %v2936
    %v2938 = vsel %vm85, %v2935, 0.0
    %2939 = vadd.xlane.f32.xlu0 %v2938
    %v2940 = vpop.xlane.xlu0 %2939
    %v2941 = vsel %vm85, %v2937, 0.0
    %2942 = vadd.xlane.f32.xlu0 %v2941
    %v2943 = vpop.xlane.xlu0 %2942
    %v2944 = vrcp.pop %v2940
    %v2945 = vrcp.pop %v2943
    %v2946 = vmul.f32 %v2935, %v2944
    %v2947 = vmul.f32 %v2937, %v2945
    %v2948 = vpack.c.bf16 %v2946, %v2946
    %v2949 = vpack.c.bf16 %v2947, %v2947
    %2950 = vrot.lane.b32.xlu0 %v2187, 72
    %v2951 = vpop.permute.xlu0 %2950
    %v2953 = vsel %vm85, %v2948, 0
    %v2956 = vsel %vm205, %v2951, 0
    %2958 = vmatprep.subr.bf16.mxu0 0
    %2959 = vmatpush1.bf16.msra.mxu0 %v2956
    %2960 = vmatprep.subr.bf16.mxu0 0
    %2961 = vmatpush1.bf16.msra.mxu0 0
    %2962 = vmatprep.subr.bf16.mxu0 0
    %2963 = vmatpush1.bf16.msra.mxu0 0
    %2964 = vmatprep.subr.bf16.mxu0 0
    %2965 = vmatpush1.bf16.msra.mxu0 0
    %2966 = vmatprep.subr.bf16.mxu0 0
    %2967 = vmatpush1.bf16.msra.mxu0 0
    %2968 = vmatprep.subr.bf16.mxu0 0
    %2969 = vmatpush1.bf16.msra.mxu0 0
    %2970 = vmatprep.subr.bf16.mxu0 0
    %2971 = vmatpush1.bf16.msra.mxu0 0
    %2972 = vmatprep.subr.bf16.mxu0 0
    %2973 = vmatpush1.bf16.msra.mxu0 0
    %2974 = vmatprep.subr.bf16.mxu0 0
    %2975 = vmatpush1.bf16.msra.mxu0 0
    %2976 = vmatprep.subr.bf16.mxu0 0
    %2977 = vmatpush1.bf16.msra.mxu0 0
    %2978 = vmatprep.subr.bf16.mxu0 0
    %2979 = vmatpush1.bf16.msra.mxu0 0
    %2980 = vmatprep.subr.bf16.mxu0 0
    %2981 = vmatpush1.bf16.msra.mxu0 0
    %2982 = vmatprep.subr.bf16.mxu0 0
    %2983 = vmatpush1.bf16.msra.mxu0 0
    %2984 = vmatprep.subr.bf16.mxu0 0
    %2985 = vmatpush1.bf16.msra.mxu0 0
    %2986 = vmatprep.subr.bf16.mxu0 0
    %2987 = vmatpush1.bf16.msra.mxu0 0
    %2988 = vmatprep.subr.bf16.mxu0 0
    %2989 = vmatpush1.bf16.msra.mxu0 0
    %2990 = vmatprep.mubr.bf16.mxu0 0
    %2991 = vmatmul.mubr.bf16.gmra.mrb[0].mxu0 %v2953
    %v2992 = vpop.f32.mrb[0].mxu0
    %v2993 = vadd.f32 0.0, %v2992
    %v2994 = vpop.f32.mrb[0].mxu0
    %v2995 = vpop.f32.mrb[0].mxu0
    %v2996 = vpop.f32.mrb[0].mxu0
    %2997 = vdwg.mxu0
    %2998 = vrot.lane.b32.xlu0 %v2188, 72
    %v2999 = vpop.permute.xlu0 %2998
    %v3001 = vsel %vm85, %v2949, 0
    %v3004 = vsel %vm205, %v2999, 0
    %3006 = vmatprep.subr.bf16.mxu0 0
    %3007 = vmatpush1.bf16.msra.mxu0 %v3004
    %3008 = vmatprep.subr.bf16.mxu0 0
    %3009 = vmatpush1.bf16.msra.mxu0 0
    %3010 = vmatprep.subr.bf16.mxu0 0
    %3011 = vmatpush1.bf16.msra.mxu0 0
    %3012 = vmatprep.subr.bf16.mxu0 0
    %3013 = vmatpush1.bf16.msra.mxu0 0
    %3014 = vmatprep.subr.bf16.mxu0 0
    %3015 = vmatpush1.bf16.msra.mxu0 0
    %3016 = vmatprep.subr.bf16.mxu0 0
    %3017 = vmatpush1.bf16.msra.mxu0 0
    %3018 = vmatprep.subr.bf16.mxu0 0
    %3019 = vmatpush1.bf16.msra.mxu0 0
    %3020 = vmatprep.subr.bf16.mxu0 0
    %3021 = vmatpush1.bf16.msra.mxu0 0
    %3022 = vmatprep.subr.bf16.mxu0 0
    %3023 = vmatpush1.bf16.msra.mxu0 0
    %3024 = vmatprep.subr.bf16.mxu0 0
    %3025 = vmatpush1.bf16.msra.mxu0 0
    %3026 = vmatprep.subr.bf16.mxu0 0
    %3027 = vmatpush1.bf16.msra.mxu0 0
    %3028 = vmatprep.subr.bf16.mxu0 0
    %3029 = vmatpush1.bf16.msra.mxu0 0
    %3030 = vmatprep.subr.bf16.mxu0 0
    %3031 = vmatpush1.bf16.msra.mxu0 0
    %3032 = vmatprep.subr.bf16.mxu0 0
    %3033 = vmatpush1.bf16.msra.mxu0 0
    %3034 = vmatprep.subr.bf16.mxu0 0
    %3035 = vmatpush1.bf16.msra.mxu0 0
    %3036 = vmatprep.subr.bf16.mxu0 0
    %3037 = vmatpush1.bf16.msra.mxu0 0
    %3038 = vmatprep.mubr.bf16.mxu0 0
    %3039 = vmatmul.mubr.bf16.gmra.mrb[0].mxu0 %v3001
    %v3040 = vpop.f32.mrb[0].mxu0
    %v3041 = vadd.f32 0.0, %v3040
    %v3042 = vpop.f32.mrb[0].mxu0
    %v3043 = vpop.f32.mrb[0].mxu0
    %v3044 = vpop.f32.mrb[0].mxu0
    %3045 = vdwg.mxu0
    %3048 = vrot.lane.b32.xlu0 %v2563, 8
    %v3049 = vpop.permute.xlu0 %3048
    %3050 = vrot.lane.b32.xlu0 %v2611, 8
    %v3051 = vpop.permute.xlu0 %3050
    %3056 = vrot.lane.b32.xlu0 %v2778, 16
    %v3057 = vpop.permute.xlu0 %3056
    %3058 = vrot.lane.b32.xlu0 %v2826, 16
    %v3059 = vpop.permute.xlu0 %3058
    %3064 = vrot.lane.b32.xlu0 %v2993, 24
    %v3065 = vpop.permute.xlu0 %3064
    %3066 = vrot.lane.b32.xlu0 %v3041, 24
    %v3067 = vpop.permute.xlu0 %3066
    %v3070 = vsel %vm85, %v2346, %v3049
    %v3071 = vsel %vm85, %v2395, %v3051
    %v3072 = vsel %vm970, %v3070, %v3057
    %v3073 = vsel %vm970, %v3071, %v3059
    %v3074 = vsel %vm973, %v3072, %v3065
    %v3075 = vsel %vm973, %v3073, %v3067
    %v3076 = vadd.f32 %v2185, %v3074
    %v3077 = vadd.f32 %v2185, %v3075
    %v3078 = vpack.c.bf16 %v3077, %v3076
    %v3079 = vld [vmem:[%s1 + $0x44] sm:$0xf]
    %v3080 = vld [vmem:[%s1 + $0x48] sm:$0xf]
    %v3081 = vld [vmem:[%s1 + $0x4c] sm:$0xf]
    %v3082 = vld [vmem:[%s1 + $0x50] sm:$0xf]
    %v3083 = vld [vmem:[%s2 + $0x5] sm:$0x1]
    %v3084 = vlaneseq
    %v3085 = vshrl.u32 %v3084, 7
    %v3086 = vsub.s32 0, %v3085
    %v3087 = vrot.slane %v3083, %v3086
    %v3092 = vunpack.c.l.b16 %v3079
    %v3093 = vunpack.c.l.b16 %v3080
    %v3094 = vunpack.c.l.b16 %v3081
    %v3095 = vunpack.c.l.b16 %v3082
    %v3096 = vpack.c.b16 %v3093, %v3092
    %v3097 = vpack.c.b16 %v3095, %v3094
    %v3101 = vsel %vm1000, %v3078, 0
    %3103 = vmatprep.subr.bf16.mxu0 0
    %3104 = vmatpush1.bf16.msra.mxu0 %v3096
    %3105 = vmatprep.subr.bf16.mxu0 0
    %3106 = vmatpush1.bf16.msra.mxu0 %v3097
    %3107 = vmatprep.subr.bf16.mxu0 0
    %3108 = vmatpush1.bf16.msra.mxu0 0
    %3109 = vmatprep.subr.bf16.mxu0 0
    %3110 = vmatpush1.bf16.msra.mxu0 0
    %3111 = vmatprep.subr.bf16.mxu0 0
    %3112 = vmatpush1.bf16.msra.mxu0 0
    %3113 = vmatprep.subr.bf16.mxu0 0
    %3114 = vmatpush1.bf16.msra.mxu0 0
    %3115 = vmatprep.subr.bf16.mxu0 0
    %3116 = vmatpush1.bf16.msra.mxu0 0
    %3117 = vmatprep.subr.bf16.mxu0 0
    %3118 = vmatpush1.bf16.msra.mxu0 0
    %3119 = vmatprep.subr.bf16.mxu0 0
    %3120 = vmatpush1.bf16.msra.mxu0 0
    %3121 = vmatprep.subr.bf16.mxu0 0
    %3122 = vmatpush1.bf16.msra.mxu0 0
    %3123 = vmatprep.subr.bf16.mxu0 0
    %3124 = vmatpush1.bf16.msra.mxu0 0
    %3125 = vmatprep.subr.bf16.mxu0 0
    %3126 = vmatpush1.bf16.msra.mxu0 0
    %3127 = vmatprep.subr.bf16.mxu0 0
    %3128 = vmatpush1.bf16.msra.mxu0 0
    %3129 = vmatprep.subr.bf16.mxu0 0
    %3130 = vmatpush1.bf16.msra.mxu0 0
    %3131 = vmatprep.subr.bf16.mxu0 0
    %3132 = vmatpush1.bf16.msra.mxu0 0
    %3133 = vmatprep.subr.bf16.mxu0 0
    %3134 = vmatpush1.bf16.msra.mxu0 0
    %3135 = vmatprep.mubr.bf16.mxu0 0
    %3136 = vmatmul.mubr.bf16.gmra.mrb[0].mxu0 %v3101
    %v3137 = vpop.f32.mrb[0].mxu0
    %v3138 = vadd.f32 %v3087, %v3137
    %v3139 = vpop.f32.mrb[0].mxu0
    %v3140 = vpop.f32.mrb[0].mxu0
    %v3141 = vadd.f32 %v3087, %v3140
    %v3142 = vpop.f32.mrb[0].mxu0
    %3143 = vdwg.mxu0
    %v3144 = vmax.f32 %v3138, 0.0
    %v3145 = vmax.f32 %v3141, 0.0
    %v3146 = vadd.f32 %v3076, %v3144
    %v3147 = vadd.f32 %v3077, %v3145
    %v3148 = vpack.c.bf16 %v3147, %v3146
    %v3149 = vld [vmem:[%s1 + $0x54] sm:$0xf]
    %v3150 = vld [vmem:[%s1 + $0x58] sm:$0xf]
    %v3151 = vld [vmem:[%s1 + $0x5c] sm:$0xf]
    %v3152 = vld [vmem:[%s1 + $0x60] sm:$0xf]
    %v3153 = vld [vmem:[%s2 + $0x6] sm:$0x1]
    %v3154 = vlaneseq
    %v3155 = vshrl.u32 %v3154, 7
    %v3156 = vsub.s32 0, %v3155
    %v3157 = vrot.slane %v3153, %v3156
    %v3162 = vunpack.c.l.b16 %v3149
    %v3163 = vunpack.c.l.b16 %v3150
    %v3164 = vunpack.c.l.b16 %v3151
    %v3165 = vunpack.c.l.b16 %v3152
    %v3166 = vpack.c.b16 %v3163, %v3162
    %v3167 = vpack.c.b16 %v3165, %v3164
    %v3171 = vsel %vm1000, %v3148, 0
    %3173 = vmatprep.subr.bf16.mxu0 0
    %3174 = vmatpush1.bf16.msra.mxu0 %v3166
    %3175 = vmatprep.subr.bf16.mxu0 0
    %3176 = vmatpush1.bf16.msra.mxu0 %v3167
    %3177 = vmatprep.subr.bf16.mxu0 0
    %3178 = vmatpush1.bf16.msra.mxu0 0
    %3179 = vmatprep.subr.bf16.mxu0 0
    %3180 = vmatpush1.bf16.msra.mxu0 0
    %3181 = vmatprep.subr.bf16.mxu0 0
    %3182 = vmatpush1.bf16.msra.mxu0 0
    %3183 = vmatprep.subr.bf16.mxu0 0
    %3184 = vmatpush1.bf16.msra.mxu0 0
    %3185 = vmatprep.subr.bf16.mxu0 0
    %3186 = vmatpush1.bf16.msra.mxu0 0
    %3187 = vmatprep.subr.bf16.mxu0 0
    %3188 = vmatpush1.bf16.msra.mxu0 0
    %3189 = vmatprep.subr.bf16.mxu0 0
    %3190 = vmatpush1.bf16.msra.mxu0 0
    %3191 = vmatprep.subr.bf16.mxu0 0
    %3192 = vmatpush1.bf16.msra.mxu0 0
    %3193 = vmatprep.subr.bf16.mxu0 0
    %3194 = vmatpush1.bf16.msra.mxu0 0
    %3195 = vmatprep.subr.bf16.mxu0 0
    %3196 = vmatpush1.bf16.msra.mxu0 0
    %3197 = vmatprep.subr.bf16.mxu0 0
    %3198 = vmatpush1.bf16.msra.mxu0 0
    %3199 = vmatprep.subr.bf16.mxu0 0
    %3200 = vmatpush1.bf16.msra.mxu0 0
    %3201 = vmatprep.subr.bf16.mxu0 0
    %3202 = vmatpush1.bf16.msra.mxu0 0
    %3203 = vmatprep.subr.bf16.mxu0 0
    %3204 = vmatpush1.bf16.msra.mxu0 0
    %3205 = vmatprep.mubr.bf16.mxu0 0
    %3206 = vmatmul.mubr.bf16.gmra.mrb[0].mxu0 %v3171
    %v3207 = vpop.f32.mrb[0].mxu0
    %v3208 = vadd.f32 %v3157, %v3207
    %v3209 = vpop.f32.mrb[0].mxu0
    %v3210 = vpop.f32.mrb[0].mxu0
    %v3211 = vadd.f32 %v3157, %v3210
    %v3212 = vpop.f32.mrb[0].mxu0
    %3213 = vdwg.mxu0
    %v3214 = vpack.c.bf16 %v3208, %v3208
    %v3215 = vpack.c.bf16 %v3211, %v3211
    %3216 = vrot.lane.b32.xlu0 %v2187, 64
    %v3217 = vpop.permute.xlu0 %3216
    %v3219 = vsel %vm85, %v3217, 0
    %v3222 = vsel %vm85, %v3214, 0
    %3224 = vmatprep.subr.bf16.mxu0 0
    %3225 = vmatpush1.bf16.xpose.msra.mxu0 %v3222
    %3226 = vmatprep.subr.bf16.mxu0 0
    %3227 = vmatpush1.bf16.xpose.msra.mxu0 0
    %3228 = vmatprep.subr.bf16.mxu0 0
    %3229 = vmatpush1.bf16.xpose.msra.mxu0 0
    %3230 = vmatprep.subr.bf16.mxu0 0
    %3231 = vmatpush1.bf16.xpose.msra.mxu0 0
    %3232 = vmatprep.subr.bf16.mxu0 0
    %3233 = vmatpush1.bf16.xpose.msra.mxu0 0
    %3234 = vmatprep.subr.bf16.mxu0 0
    %3235 = vmatpush1.bf16.xpose.msra.mxu0 0
    %3236 = vmatprep.subr.bf16.mxu0 0
    %3237 = vmatpush1.bf16.xpose.msra.mxu0 0
    %3238 = vmatprep.subr.bf16.mxu0 0
    %3239 = vmatpush1.bf16.xpose.msra.mxu0 0
    %3240 = vmatprep.subr.bf16.mxu0 0
    %3241 = vmatpush1.bf16.xpose.msra.mxu0 0
    %3242 = vmatprep.subr.bf16.mxu0 0
    %3243 = vmatpush1.bf16.xpose.msra.mxu0 0
    %3244 = vmatprep.subr.bf16.mxu0 0
    %3245 = vmatpush1.bf16.xpose.msra.mxu0 0
    %3246 = vmatprep.subr.bf16.mxu0 0
    %3247 = vmatpush1.bf16.xpose.msra.mxu0 0
    %3248 = vmatprep.subr.bf16.mxu0 0
    %3249 = vmatpush1.bf16.xpose.msra.mxu0 0
    %3250 = vmatprep.subr.bf16.mxu0 0
    %3251 = vmatpush1.bf16.xpose.msra.mxu0 0
    %3252 = vmatprep.subr.bf16.mxu0 0
    %3253 = vmatpush1.bf16.xpose.msra.mxu0 0
    %3254 = vmatprep.subr.bf16.mxu0 0
    %3255 = vmatpush1.bf16.xpose.msra.mxu0 0
    %3256 = vmatprep.mubr.bf16.mxu0 0
    %3257 = vmatmul.mubr.bf16.gmra.mrb[0].mxu0 %v3219
    %v3258 = vpop.f32.mrb[0].mxu0
    %v3259 = vadd.f32 0.0, %v3258
    %v3260 = vpop.f32.mrb[0].mxu0
    %v3261 = vpop.f32.mrb[0].mxu0
    %v3262 = vpop.f32.mrb[0].mxu0
    %3263 = vdwg.mxu0
    %3264 = vrot.lane.b32.xlu0 %v2188, 64
    %v3265 = vpop.permute.xlu0 %3264
    %v3267 = vsel %vm85, %v3265, 0
    %v3270 = vsel %vm85, %v3215, 0
    %3272 = vmatprep.subr.bf16.mxu0 0
    %3273 = vmatpush1.bf16.xpose.msra.mxu0 %v3270
    %3274 = vmatprep.subr.bf16.mxu0 0
    %3275 = vmatpush1.bf16.xpose.msra.mxu0 0
    %3276 = vmatprep.subr.bf16.mxu0 0
    %3277 = vmatpush1.bf16.xpose.msra.mxu0 0
    %3278 = vmatprep.subr.bf16.mxu0 0
    %3279 = vmatpush1.bf16.xpose.msra.mxu0 0
    %3280 = vmatprep.subr.bf16.mxu0 0
    %3281 = vmatpush1.bf16.xpose.msra.mxu0 0
    %3282 = vmatprep.subr.bf16.mxu0 0
    %3283 = vmatpush1.bf16.xpose.msra.mxu0 0
    %3284 = vmatprep.subr.bf16.mxu0 0
    %3285 = vmatpush1.bf16.xpose.msra.mxu0 0
    %3286 = vmatprep.subr.bf16.mxu0 0
    %3287 = vmatpush1.bf16.xpose.msra.mxu0 0
    %3288 = vmatprep.subr.bf16.mxu0 0
    %3289 = vmatpush1.bf16.xpose.msra.mxu0 0
    %3290 = vmatprep.subr.bf16.mxu0 0
    %3291 = vmatpush1.bf16.xpose.msra.mxu0 0
    %3292 = vmatprep.subr.bf16.mxu0 0
    %3293 = vmatpush1.bf16.xpose.msra.mxu0 0
    %3294 = vmatprep.subr.bf16.mxu0 0
    %3295 = vmatpush1.bf16.xpose.msra.mxu0 0
    %3296 = vmatprep.subr.bf16.mxu0 0
    %3297 = vmatpush1.bf16.xpose.msra.mxu0 0
    %3298 = vmatprep.subr.bf16.mxu0 0
    %3299 = vmatpush1.bf16.xpose.msra.mxu0 0
    %3300 = vmatprep.subr.bf16.mxu0 0
    %3301 = vmatpush1.bf16.xpose.msra.mxu0 0
    %3302 = vmatprep.subr.bf16.mxu0 0
    %3303 = vmatpush1.bf16.xpose.msra.mxu0 0
    %3304 = vmatprep.mubr.bf16.mxu0 0
    %3305 = vmatmul.mubr.bf16.gmra.mrb[0].mxu0 %v3267
    %v3306 = vpop.f32.mrb[0].mxu0
    %v3307 = vadd.f32 0.0, %v3306
    %v3308 = vpop.f32.mrb[0].mxu0
    %v3309 = vpop.f32.mrb[0].mxu0
    %v3310 = vpop.f32.mrb[0].mxu0
    %3311 = vdwg.mxu0
    %v3312 = vsel %vm85, %v3259, -inf
    %3313 = vmax.xlane.f32.xlu0 %v3312
    %v3314 = vpop.xlane.xlu0 %3313
    %v3315 = vsel %vm85, %v3307, -inf
    %3316 = vmax.xlane.f32.xlu0 %v3315
    %v3317 = vpop.xlane.xlu0 %3316
    %v3318 = vsub.f32 %v3259, %v3314
    %v3319 = vsub.f32 %v3307, %v3317
    %v3320 = vmul.f32 %v3318, 1.442695
    %v3321 = vpow.pop %v3320
    %v3322 = vmul.f32 %v3319, 1.442695
    %v3323 = vpow.pop %v3322
    %v3324 = vsel %vm85, %v3321, 0.0
    %3325 = vadd.xlane.f32.xlu0 %v3324
    %v3326 = vpop.xlane.xlu0 %3325
    %v3327 = vsel %vm85, %v3323, 0.0
    %3328 = vadd.xlane.f32.xlu0 %v3327
    %v3329 = vpop.xlane.xlu0 %3328
    %v3330 = vrcp.pop %v3326
    %v3331 = vrcp.pop %v3329
    %v3332 = vmul.f32 %v3321, %v3330
    %v3333 = vmul.f32 %v3323, %v3331
    %v3334 = vpack.c.bf16 %v3332, %v3332
    %v3335 = vpack.c.bf16 %v3333, %v3333
    %3337 = vrot.lane.b32.xlu0 %v3214, 96
    %v3338 = vpop.permute.xlu0 %3337
    %v3340 = vsel %vm85, %v3334, 0
    %v3343 = vsel %vm205, %v3338, 0
    %3345 = vmatprep.subr.bf16.mxu0 0
    %3346 = vmatpush1.bf16.msra.mxu0 %v3343
    %3347 = vmatprep.subr.bf16.mxu0 0
    %3348 = vmatpush1.bf16.msra.mxu0 0
    %3349 = vmatprep.subr.bf16.mxu0 0
    %3350 = vmatpush1.bf16.msra.mxu0 0
    %3351 = vmatprep.subr.bf16.mxu0 0
    %3352 = vmatpush1.bf16.msra.mxu0 0
    %3353 = vmatprep.subr.bf16.mxu0 0
    %3354 = vmatpush1.bf16.msra.mxu0 0
    %3355 = vmatprep.subr.bf16.mxu0 0
    %3356 = vmatpush1.bf16.msra.mxu0 0
    %3357 = vmatprep.subr.bf16.mxu0 0
    %3358 = vmatpush1.bf16.msra.mxu0 0
    %3359 = vmatprep.subr.bf16.mxu0 0
    %3360 = vmatpush1.bf16.msra.mxu0 0
    %3361 = vmatprep.subr.bf16.mxu0 0
    %3362 = vmatpush1.bf16.msra.mxu0 0
    %3363 = vmatprep.subr.bf16.mxu0 0
    %3364 = vmatpush1.bf16.msra.mxu0 0
    %3365 = vmatprep.subr.bf16.mxu0 0
    %3366 = vmatpush1.bf16.msra.mxu0 0
    %3367 = vmatprep.subr.bf16.mxu0 0
    %3368 = vmatpush1.bf16.msra.mxu0 0
    %3369 = vmatprep.subr.bf16.mxu0 0
    %3370 = vmatpush1.bf16.msra.mxu0 0
    %3371 = vmatprep.subr.bf16.mxu0 0
    %3372 = vmatpush1.bf16.msra.mxu0 0
    %3373 = vmatprep.subr.bf16.mxu0 0
    %3374 = vmatpush1.bf16.msra.mxu0 0
    %3375 = vmatprep.subr.bf16.mxu0 0
    %3376 = vmatpush1.bf16.msra.mxu0 0
    %3377 = vmatprep.mubr.bf16.mxu0 0
    %3378 = vmatmul.mubr.bf16.gmra.mrb[0].mxu0 %v3340
    %v3379 = vpop.f32.mrb[0].mxu0
    %v3380 = vadd.f32 0.0, %v3379
    %v3381 = vpop.f32.mrb[0].mxu0
    %v3382 = vpop.f32.mrb[0].mxu0
    %v3383 = vpop.f32.mrb[0].mxu0
    %3384 = vdwg.mxu0
    %3386 = vrot.lane.b32.xlu0 %v3215, 96
    %v3387 = vpop.permute.xlu0 %3386
    %v3389 = vsel %vm85, %v3335, 0
    %v3392 = vsel %vm205, %v3387, 0
    %3394 = vmatprep.subr.bf16.mxu0 0
    %3395 = vmatpush1.bf16.msra.mxu0 %v3392
    %3396 = vmatprep.subr.bf16.mxu0 0
    %3397 = vmatpush1.bf16.msra.mxu0 0
    %3398 = vmatprep.subr.bf16.mxu0 0
    %3399 = vmatpush1.bf16.msra.mxu0 0
    %3400 = vmatprep.subr.bf16.mxu0 0
    %3401 = vmatpush1.bf16.msra.mxu0 0
    %3402 = vmatprep.subr.bf16.mxu0 0
    %3403 = vmatpush1.bf16.msra.mxu0 0
    %3404 = vmatprep.subr.bf16.mxu0 0
    %3405 = vmatpush1.bf16.msra.mxu0 0
    %3406 = vmatprep.subr.bf16.mxu0 0
    %3407 = vmatpush1.bf16.msra.mxu0 0
    %3408 = vmatprep.subr.bf16.mxu0 0
    %3409 = vmatpush1.bf16.msra.mxu0 0
    %3410 = vmatprep.subr.bf16.mxu0 0
    %3411 = vmatpush1.bf16.msra.mxu0 0
    %3412 = vmatprep.subr.bf16.mxu0 0
    %3413 = vmatpush1.bf16.msra.mxu0 0
    %3414 = vmatprep.subr.bf16.mxu0 0
    %3415 = vmatpush1.bf16.msra.mxu0 0
    %3416 = vmatprep.subr.bf16.mxu0 0
    %3417 = vmatpush1.bf16.msra.mxu0 0
    %3418 = vmatprep.subr.bf16.mxu0 0
    %3419 = vmatpush1.bf16.msra.mxu0 0
    %3420 = vmatprep.subr.bf16.mxu0 0
    %3421 = vmatpush1.bf16.msra.mxu0 0
    %3422 = vmatprep.subr.bf16.mxu0 0
    %3423 = vmatpush1.bf16.msra.mxu0 0
    %3424 = vmatprep.subr.bf16.mxu0 0
    %3425 = vmatpush1.bf16.msra.mxu0 0
    %3426 = vmatprep.mubr.bf16.mxu0 0
    %3427 = vmatmul.mubr.bf16.gmra.mrb[0].mxu0 %v3389
    %v3428 = vpop.f32.mrb[0].mxu0
    %v3429 = vadd.f32 0.0, %v3428
    %v3430 = vpop.f32.mrb[0].mxu0
    %v3431 = vpop.f32.mrb[0].mxu0
    %v3432 = vpop.f32.mrb[0].mxu0
    %3433 = vdwg.mxu0
    %3434 = vrot.lane.b32.xlu0 %v2187, 56
    %v3435 = vpop.permute.xlu0 %3434
    %3436 = vrot.lane.b32.xlu0 %v3214, 120
    %v3437 = vpop.permute.xlu0 %3436
    %v3439 = vsel %vm85, %v3435, 0
    %v3442 = vsel %vm85, %v3437, 0
    %3444 = vmatprep.subr.bf16.mxu0 0
    %3445 = vmatpush1.bf16.xpose.msra.mxu0 %v3442
    %3446 = vmatprep.subr.bf16.mxu0 0
    %3447 = vmatpush1.bf16.xpose.msra.mxu0 0
    %3448 = vmatprep.subr.bf16.mxu0 0
    %3449 = vmatpush1.bf16.xpose.msra.mxu0 0
    %3450 = vmatprep.subr.bf16.mxu0 0
    %3451 = vmatpush1.bf16.xpose.msra.mxu0 0
    %3452 = vmatprep.subr.bf16.mxu0 0
    %3453 = vmatpush1.bf16.xpose.msra.mxu0 0
    %3454 = vmatprep.subr.bf16.mxu0 0
    %3455 = vmatpush1.bf16.xpose.msra.mxu0 0
    %3456 = vmatprep.subr.bf16.mxu0 0
    %3457 = vmatpush1.bf16.xpose.msra.mxu0 0
    %3458 = vmatprep.subr.bf16.mxu0 0
    %3459 = vmatpush1.bf16.xpose.msra.mxu0 0
    %3460 = vmatprep.subr.bf16.mxu0 0
    %3461 = vmatpush1.bf16.xpose.msra.mxu0 0
    %3462 = vmatprep.subr.bf16.mxu0 0
    %3463 = vmatpush1.bf16.xpose.msra.mxu0 0
    %3464 = vmatprep.subr.bf16.mxu0 0
    %3465 = vmatpush1.bf16.xpose.msra.mxu0 0
    %3466 = vmatprep.subr.bf16.mxu0 0
    %3467 = vmatpush1.bf16.xpose.msra.mxu0 0
    %3468 = vmatprep.subr.bf16.mxu0 0
    %3469 = vmatpush1.bf16.xpose.msra.mxu0 0
    %3470 = vmatprep.subr.bf16.mxu0 0
    %3471 = vmatpush1.bf16.xpose.msra.mxu0 0
    %3472 = vmatprep.subr.bf16.mxu0 0
    %3473 = vmatpush1.bf16.xpose.msra.mxu0 0
    %3474 = vmatprep.subr.bf16.mxu0 0
    %3475 = vmatpush1.bf16.xpose.msra.mxu0 0
    %3476 = vmatprep.mubr.bf16.mxu0 0
    %3477 = vmatmul.mubr.bf16.gmra.mrb[0].mxu0 %v3439
    %v3478 = vpop.f32.mrb[0].mxu0
    %v3479 = vadd.f32 0.0, %v3478
    %v3480 = vpop.f32.mrb[0].mxu0
    %v3481 = vpop.f32.mrb[0].mxu0
    %v3482 = vpop.f32.mrb[0].mxu0
    %3483 = vdwg.mxu0
    %3484 = vrot.lane.b32.xlu0 %v2188, 56
    %v3485 = vpop.permute.xlu0 %3484
    %3486 = vrot.lane.b32.xlu0 %v3215, 120
    %v3487 = vpop.permute.xlu0 %3486
    %v3489 = vsel %vm85, %v3485, 0
    %v3492 = vsel %vm85, %v3487, 0
    %3494 = vmatprep.subr.bf16.mxu0 0
    %3495 = vmatpush1.bf16.xpose.msra.mxu0 %v3492
    %3496 = vmatprep.subr.bf16.mxu0 0
    %3497 = vmatpush1.bf16.xpose.msra.mxu0 0
    %3498 = vmatprep.subr.bf16.mxu0 0
    %3499 = vmatpush1.bf16.xpose.msra.mxu0 0
    %3500 = vmatprep.subr.bf16.mxu0 0
    %3501 = vmatpush1.bf16.xpose.msra.mxu0 0
    %3502 = vmatprep.subr.bf16.mxu0 0
    %3503 = vmatpush1.bf16.xpose.msra.mxu0 0
    %3504 = vmatprep.subr.bf16.mxu0 0
    %3505 = vmatpush1.bf16.xpose.msra.mxu0 0
    %3506 = vmatprep.subr.bf16.mxu0 0
    %3507 = vmatpush1.bf16.xpose.msra.mxu0 0
    %3508 = vmatprep.subr.bf16.mxu0 0
    %3509 = vmatpush1.bf16.xpose.msra.mxu0 0
    %3510 = vmatprep.subr.bf16.mxu0 0
    %3511 = vmatpush1.bf16.xpose.msra.mxu0 0
    %3512 = vmatprep.subr.bf16.mxu0 0
    %3513 = vmatpush1.bf16.xpose.msra.mxu0 0
    %3514 = vmatprep.subr.bf16.mxu0 0
    %3515 = vmatpush1.bf16.xpose.msra.mxu0 0
    %3516 = vmatprep.subr.bf16.mxu0 0
    %3517 = vmatpush1.bf16.xpose.msra.mxu0 0
    %3518 = vmatprep.subr.bf16.mxu0 0
    %3519 = vmatpush1.bf16.xpose.msra.mxu0 0
    %3520 = vmatprep.subr.bf16.mxu0 0
    %3521 = vmatpush1.bf16.xpose.msra.mxu0 0
    %3522 = vmatprep.subr.bf16.mxu0 0
    %3523 = vmatpush1.bf16.xpose.msra.mxu0 0
    %3524 = vmatprep.subr.bf16.mxu0 0
    %3525 = vmatpush1.bf16.xpose.msra.mxu0 0
    %3526 = vmatprep.mubr.bf16.mxu0 0
    %3527 = vmatmul.mubr.bf16.gmra.mrb[0].mxu0 %v3489
    %v3528 = vpop.f32.mrb[0].mxu0
    %v3529 = vadd.f32 0.0, %v3528
    %v3530 = vpop.f32.mrb[0].mxu0
    %v3531 = vpop.f32.mrb[0].mxu0
    %v3532 = vpop.f32.mrb[0].mxu0
    %3533 = vdwg.mxu0
    %v3534 = vsel %vm85, %v3479, -inf
    %3535 = vmax.xlane.f32.xlu0 %v3534
    %v3536 = vpop.xlane.xlu0 %3535
    %v3537 = vsel %vm85, %v3529, -inf
    %3538 = vmax.xlane.f32.xlu0 %v3537
    %v3539 = vpop.xlane.xlu0 %3538
    %v3540 = vsub.f32 %v3479, %v3536
    %v3541 = vsub.f32 %v3529, %v3539
    %v3542 = vmul.f32 %v3540, 1.442695
    %v3543 = vpow.pop %v3542
    %v3544 = vmul.f32 %v3541, 1.442695
    %v3545 = vpow.pop %v3544
    %v3546 = vsel %vm85, %v3543, 0.0
    %3547 = vadd.xlane.f32.xlu0 %v3546
    %v3548 = vpop.xlane.xlu0 %3547
    %v3549 = vsel %vm85, %v3545, 0.0
    %3550 = vadd.xlane.f32.xlu0 %v3549
    %v3551 = vpop.xlane.xlu0 %3550
    %v3552 = vrcp.pop %v3548
    %v3553 = vrcp.pop %v3551
    %v3554 = vmul.f32 %v3543, %v3552
    %v3555 = vmul.f32 %v3545, %v3553
    %v3556 = vpack.c.bf16 %v3554, %v3554
    %v3557 = vpack.c.bf16 %v3555, %v3555
    %3558 = vrot.lane.b32.xlu0 %v3214, 88
    %v3559 = vpop.permute.xlu0 %3558
    %v3561 = vsel %vm85, %v3556, 0
    %v3564 = vsel %vm205, %v3559, 0
    %3566 = vmatprep.subr.bf16.mxu0 0
    %3567 = vmatpush1.bf16.msra.mxu0 %v3564
    %3568 = vmatprep.subr.bf16.mxu0 0
    %3569 = vmatpush1.bf16.msra.mxu0 0
    %3570 = vmatprep.subr.bf16.mxu0 0
    %3571 = vmatpush1.bf16.msra.mxu0 0
    %3572 = vmatprep.subr.bf16.mxu0 0
    %3573 = vmatpush1.bf16.msra.mxu0 0
    %3574 = vmatprep.subr.bf16.mxu0 0
    %3575 = vmatpush1.bf16.msra.mxu0 0
    %3576 = vmatprep.subr.bf16.mxu0 0
    %3577 = vmatpush1.bf16.msra.mxu0 0
    %3578 = vmatprep.subr.bf16.mxu0 0
    %3579 = vmatpush1.bf16.msra.mxu0 0
    %3580 = vmatprep.subr.bf16.mxu0 0
    %3581 = vmatpush1.bf16.msra.mxu0 0
    %3582 = vmatprep.subr.bf16.mxu0 0
    %3583 = vmatpush1.bf16.msra.mxu0 0
    %3584 = vmatprep.subr.bf16.mxu0 0
    %3585 = vmatpush1.bf16.msra.mxu0 0
    %3586 = vmatprep.subr.bf16.mxu0 0
    %3587 = vmatpush1.bf16.msra.mxu0 0
    %3588 = vmatprep.subr.bf16.mxu0 0
    %3589 = vmatpush1.bf16.msra.mxu0 0
    %3590 = vmatprep.subr.bf16.mxu0 0
    %3591 = vmatpush1.bf16.msra.mxu0 0
    %3592 = vmatprep.subr.bf16.mxu0 0
    %3593 = vmatpush1.bf16.msra.mxu0 0
    %3594 = vmatprep.subr.bf16.mxu0 0
    %3595 = vmatpush1.bf16.msra.mxu0 0
    %3596 = vmatprep.subr.bf16.mxu0 0
    %3597 = vmatpush1.bf16.msra.mxu0 0
    %3598 = vmatprep.mubr.bf16.mxu0 0
    %3599 = vmatmul.mubr.bf16.gmra.mrb[0].mxu0 %v3561
    %v3600 = vpop.f32.mrb[0].mxu0
    %v3601 = vadd.f32 0.0, %v3600
    %v3602 = vpop.f32.mrb[0].mxu0
    %v3603 = vpop.f32.mrb[0].mxu0
    %v3604 = vpop.f32.mrb[0].mxu0
    %3605 = vdwg.mxu0
    %3606 = vrot.lane.b32.xlu0 %v3215, 88
    %v3607 = vpop.permute.xlu0 %3606
    %v3609 = vsel %vm85, %v3557, 0
    %v3612 = vsel %vm205, %v3607, 0
    %3614 = vmatprep.subr.bf16.mxu0 0
    %3615 = vmatpush1.bf16.msra.mxu0 %v3612
    %3616 = vmatprep.subr.bf16.mxu0 0
    %3617 = vmatpush1.bf16.msra.mxu0 0
    %3618 = vmatprep.subr.bf16.mxu0 0
    %3619 = vmatpush1.bf16.msra.mxu0 0
    %3620 = vmatprep.subr.bf16.mxu0 0
    %3621 = vmatpush1.bf16.msra.mxu0 0
    %3622 = vmatprep.subr.bf16.mxu0 0
    %3623 = vmatpush1.bf16.msra.mxu0 0
    %3624 = vmatprep.subr.bf16.mxu0 0
    %3625 = vmatpush1.bf16.msra.mxu0 0
    %3626 = vmatprep.subr.bf16.mxu0 0
    %3627 = vmatpush1.bf16.msra.mxu0 0
    %3628 = vmatprep.subr.bf16.mxu0 0
    %3629 = vmatpush1.bf16.msra.mxu0 0
    %3630 = vmatprep.subr.bf16.mxu0 0
    %3631 = vmatpush1.bf16.msra.mxu0 0
    %3632 = vmatprep.subr.bf16.mxu0 0
    %3633 = vmatpush1.bf16.msra.mxu0 0
    %3634 = vmatprep.subr.bf16.mxu0 0
    %3635 = vmatpush1.bf16.msra.mxu0 0
    %3636 = vmatprep.subr.bf16.mxu0 0
    %3637 = vmatpush1.bf16.msra.mxu0 0
    %3638 = vmatprep.subr.bf16.mxu0 0
    %3639 = vmatpush1.bf16.msra.mxu0 0
    %3640 = vmatprep.subr.bf16.mxu0 0
    %3641 = vmatpush1.bf16.msra.mxu0 0
    %3642 = vmatprep.subr.bf16.mxu0 0
    %3643 = vmatpush1.bf16.msra.mxu0 0
    %3644 = vmatprep.subr.bf16.mxu0 0
    %3645 = vmatpush1.bf16.msra.mxu0 0
    %3646 = vmatprep.mubr.bf16.mxu0 0
    %3647 = vmatmul.mubr.bf16.gmra.mrb[0].mxu0 %v3609
    %v3648 = vpop.f32.mrb[0].mxu0
    %v3649 = vadd.f32 0.0, %v3648
    %v3650 = vpop.f32.mrb[0].mxu0
    %v3651 = vpop.f32.mrb[0].mxu0
    %v3652 = vpop.f32.mrb[0].mxu0
    %3653 = vdwg.mxu0
    %3654 = vrot.lane.b32.xlu0 %v2187, 48
    %v3655 = vpop.permute.xlu0 %3654
    %3656 = vrot.lane.b32.xlu0 %v3214, 112
    %v3657 = vpop.permute.xlu0 %3656
    %v3659 = vsel %vm85, %v3655, 0
    %v3662 = vsel %vm85, %v3657, 0
    %3664 = vmatprep.subr.bf16.mxu0 0
    %3665 = vmatpush1.bf16.xpose.msra.mxu0 %v3662
    %3666 = vmatprep.subr.bf16.mxu0 0
    %3667 = vmatpush1.bf16.xpose.msra.mxu0 0
    %3668 = vmatprep.subr.bf16.mxu0 0
    %3669 = vmatpush1.bf16.xpose.msra.mxu0 0
    %3670 = vmatprep.subr.bf16.mxu0 0
    %3671 = vmatpush1.bf16.xpose.msra.mxu0 0
    %3672 = vmatprep.subr.bf16.mxu0 0
    %3673 = vmatpush1.bf16.xpose.msra.mxu0 0
    %3674 = vmatprep.subr.bf16.mxu0 0
    %3675 = vmatpush1.bf16.xpose.msra.mxu0 0
    %3676 = vmatprep.subr.bf16.mxu0 0
    %3677 = vmatpush1.bf16.xpose.msra.mxu0 0
    %3678 = vmatprep.subr.bf16.mxu0 0
    %3679 = vmatpush1.bf16.xpose.msra.mxu0 0
    %3680 = vmatprep.subr.bf16.mxu0 0
    %3681 = vmatpush1.bf16.xpose.msra.mxu0 0
    %3682 = vmatprep.subr.bf16.mxu0 0
    %3683 = vmatpush1.bf16.xpose.msra.mxu0 0
    %3684 = vmatprep.subr.bf16.mxu0 0
    %3685 = vmatpush1.bf16.xpose.msra.mxu0 0
    %3686 = vmatprep.subr.bf16.mxu0 0
    %3687 = vmatpush1.bf16.xpose.msra.mxu0 0
    %3688 = vmatprep.subr.bf16.mxu0 0
    %3689 = vmatpush1.bf16.xpose.msra.mxu0 0
    %3690 = vmatprep.subr.bf16.mxu0 0
    %3691 = vmatpush1.bf16.xpose.msra.mxu0 0
    %3692 = vmatprep.subr.bf16.mxu0 0
    %3693 = vmatpush1.bf16.xpose.msra.mxu0 0
    %3694 = vmatprep.subr.bf16.mxu0 0
    %3695 = vmatpush1.bf16.xpose.msra.mxu0 0
    %3696 = vmatprep.mubr.bf16.mxu0 0
    %3697 = vmatmul.mubr.bf16.gmra.mrb[0].mxu0 %v3659
    %v3698 = vpop.f32.mrb[0].mxu0
    %v3699 = vadd.f32 0.0, %v3698
    %v3700 = vpop.f32.mrb[0].mxu0
    %v3701 = vpop.f32.mrb[0].mxu0
    %v3702 = vpop.f32.mrb[0].mxu0
    %3703 = vdwg.mxu0
    %3704 = vrot.lane.b32.xlu0 %v2188, 48
    %v3705 = vpop.permute.xlu0 %3704
    %3706 = vrot.lane.b32.xlu0 %v3215, 112
    %v3707 = vpop.permute.xlu0 %3706
    %v3709 = vsel %vm85, %v3705, 0
    %v3712 = vsel %vm85, %v3707, 0
    %3714 = vmatprep.subr.bf16.mxu0 0
    %3715 = vmatpush1.bf16.xpose.msra.mxu0 %v3712
    %3716 = vmatprep.subr.bf16.mxu0 0
    %3717 = vmatpush1.bf16.xpose.msra.mxu0 0
    %3718 = vmatprep.subr.bf16.mxu0 0
    %3719 = vmatpush1.bf16.xpose.msra.mxu0 0
    %3720 = vmatprep.subr.bf16.mxu0 0
    %3721 = vmatpush1.bf16.xpose.msra.mxu0 0
    %3722 = vmatprep.subr.bf16.mxu0 0
    %3723 = vmatpush1.bf16.xpose.msra.mxu0 0
    %3724 = vmatprep.subr.bf16.mxu0 0
    %3725 = vmatpush1.bf16.xpose.msra.mxu0 0
    %3726 = vmatprep.subr.bf16.mxu0 0
    %3727 = vmatpush1.bf16.xpose.msra.mxu0 0
    %3728 = vmatprep.subr.bf16.mxu0 0
    %3729 = vmatpush1.bf16.xpose.msra.mxu0 0
    %3730 = vmatprep.subr.bf16.mxu0 0
    %3731 = vmatpush1.bf16.xpose.msra.mxu0 0
    %3732 = vmatprep.subr.bf16.mxu0 0
    %3733 = vmatpush1.bf16.xpose.msra.mxu0 0
    %3734 = vmatprep.subr.bf16.mxu0 0
    %3735 = vmatpush1.bf16.xpose.msra.mxu0 0
    %3736 = vmatprep.subr.bf16.mxu0 0
    %3737 = vmatpush1.bf16.xpose.msra.mxu0 0
    %3738 = vmatprep.subr.bf16.mxu0 0
    %3739 = vmatpush1.bf16.xpose.msra.mxu0 0
    %3740 = vmatprep.subr.bf16.mxu0 0
    %3741 = vmatpush1.bf16.xpose.msra.mxu0 0
    %3742 = vmatprep.subr.bf16.mxu0 0
    %3743 = vmatpush1.bf16.xpose.msra.mxu0 0
    %3744 = vmatprep.subr.bf16.mxu0 0
    %3745 = vmatpush1.bf16.xpose.msra.mxu0 0
    %3746 = vmatprep.mubr.bf16.mxu0 0
    %3747 = vmatmul.mubr.bf16.gmra.mrb[0].mxu0 %v3709
    %v3748 = vpop.f32.mrb[0].mxu0
    %v3749 = vadd.f32 0.0, %v3748
    %v3750 = vpop.f32.mrb[0].mxu0
    %v3751 = vpop.f32.mrb[0].mxu0
    %v3752 = vpop.f32.mrb[0].mxu0
    %3753 = vdwg.mxu0
    %v3754 = vsel %vm85, %v3699, -inf
    %3755 = vmax.xlane.f32.xlu0 %v3754
    %v3756 = vpop.xlane.xlu0 %3755
    %v3757 = vsel %vm85, %v3749, -inf
    %3758 = vmax.xlane.f32.xlu0 %v3757
    %v3759 = vpop.xlane.xlu0 %3758
    %v3760 = vsub.f32 %v3699, %v3756
    %v3761 = vsub.f32 %v3749, %v3759
    %v3762 = vmul.f32 %v3760, 1.442695
    %v3763 = vpow.pop %v3762
    %v3764 = vmul.f32 %v3761, 1.442695
    %v3765 = vpow.pop %v3764
    %v3766 = vsel %vm85, %v3763, 0.0
    %3767 = vadd.xlane.f32.xlu0 %v3766
    %v3768 = vpop.xlane.xlu0 %3767
    %v3769 = vsel %vm85, %v3765, 0.0
    %3770 = vadd.xlane.f32.xlu0 %v3769
    %v3771 = vpop.xlane.xlu0 %3770
    %v3772 = vrcp.pop %v3768
    %v3773 = vrcp.pop %v3771
    %v3774 = vmul.f32 %v3763, %v3772
    %v3775 = vmul.f32 %v3765, %v3773
    %v3776 = vpack.c.bf16 %v3774, %v3774
    %v3777 = vpack.c.bf16 %v3775, %v3775
    %3778 = vrot.lane.b32.xlu0 %v3214, 80
    %v3779 = vpop.permute.xlu0 %3778
    %v3781 = vsel %vm85, %v3776, 0
    %v3784 = vsel %vm205, %v3779, 0
    %3786 = vmatprep.subr.bf16.mxu0 0
    %3787 = vmatpush1.bf16.msra.mxu0 %v3784
    %3788 = vmatprep.subr.bf16.mxu0 0
    %3789 = vmatpush1.bf16.msra.mxu0 0
    %3790 = vmatprep.subr.bf16.mxu0 0
    %3791 = vmatpush1.bf16.msra.mxu0 0
    %3792 = vmatprep.subr.bf16.mxu0 0
    %3793 = vmatpush1.bf16.msra.mxu0 0
    %3794 = vmatprep.subr.bf16.mxu0 0
    %3795 = vmatpush1.bf16.msra.mxu0 0
    %3796 = vmatprep.subr.bf16.mxu0 0
    %3797 = vmatpush1.bf16.msra.mxu0 0
    %3798 = vmatprep.subr.bf16.mxu0 0
    %3799 = vmatpush1.bf16.msra.mxu0 0
    %3800 = vmatprep.subr.bf16.mxu0 0
    %3801 = vmatpush1.bf16.msra.mxu0 0
    %3802 = vmatprep.subr.bf16.mxu0 0
    %3803 = vmatpush1.bf16.msra.mxu0 0
    %3804 = vmatprep.subr.bf16.mxu0 0
    %3805 = vmatpush1.bf16.msra.mxu0 0
    %3806 = vmatprep.subr.bf16.mxu0 0
    %3807 = vmatpush1.bf16.msra.mxu0 0
    %3808 = vmatprep.subr.bf16.mxu0 0
    %3809 = vmatpush1.bf16.msra.mxu0 0
    %3810 = vmatprep.subr.bf16.mxu0 0
    %3811 = vmatpush1.bf16.msra.mxu0 0
    %3812 = vmatprep.subr.bf16.mxu0 0
    %3813 = vmatpush1.bf16.msra.mxu0 0
    %3814 = vmatprep.subr.bf16.mxu0 0
    %3815 = vmatpush1.bf16.msra.mxu0 0
    %3816 = vmatprep.subr.bf16.mxu0 0
    %3817 = vmatpush1.bf16.msra.mxu0 0
    %3818 = vmatprep.mubr.bf16.mxu0 0
    %3819 = vmatmul.mubr.bf16.gmra.mrb[0].mxu0 %v3781
    %v3820 = vpop.f32.mrb[0].mxu0
    %v3821 = vadd.f32 0.0, %v3820
    %v3822 = vpop.f32.mrb[0].mxu0
    %v3823 = vpop.f32.mrb[0].mxu0
    %v3824 = vpop.f32.mrb[0].mxu0
    %3825 = vdwg.mxu0
    %3826 = vrot.lane.b32.xlu0 %v3215, 80
    %v3827 = vpop.permute.xlu0 %3826
    %v3829 = vsel %vm85, %v3777, 0
    %v3832 = vsel %vm205, %v3827, 0
    %3834 = vmatprep.subr.bf16.mxu0 0
    %3835 = vmatpush1.bf16.msra.mxu0 %v3832
    %3836 = vmatprep.subr.bf16.mxu0 0
    %3837 = vmatpush1.bf16.msra.mxu0 0
    %3838 = vmatprep.subr.bf16.mxu0 0
    %3839 = vmatpush1.bf16.msra.mxu0 0
    %3840 = vmatprep.subr.bf16.mxu0 0
    %3841 = vmatpush1.bf16.msra.mxu0 0
    %3842 = vmatprep.subr.bf16.mxu0 0
    %3843 = vmatpush1.bf16.msra.mxu0 0
    %3844 = vmatprep.subr.bf16.mxu0 0
    %3845 = vmatpush1.bf16.msra.mxu0 0
    %3846 = vmatprep.subr.bf16.mxu0 0
    %3847 = vmatpush1.bf16.msra.mxu0 0
    %3848 = vmatprep.subr.bf16.mxu0 0
    %3849 = vmatpush1.bf16.msra.mxu0 0
    %3850 = vmatprep.subr.bf16.mxu0 0
    %3851 = vmatpush1.bf16.msra.mxu0 0
    %3852 = vmatprep.subr.bf16.mxu0 0
    %3853 = vmatpush1.bf16.msra.mxu0 0
    %3854 = vmatprep.subr.bf16.mxu0 0
    %3855 = vmatpush1.bf16.msra.mxu0 0
    %3856 = vmatprep.subr.bf16.mxu0 0
    %3857 = vmatpush1.bf16.msra.mxu0 0
    %3858 = vmatprep.subr.bf16.mxu0 0
    %3859 = vmatpush1.bf16.msra.mxu0 0
    %3860 = vmatprep.subr.bf16.mxu0 0
    %3861 = vmatpush1.bf16.msra.mxu0 0
    %3862 = vmatprep.subr.bf16.mxu0 0
    %3863 = vmatpush1.bf16.msra.mxu0 0
    %3864 = vmatprep.subr.bf16.mxu0 0
    %3865 = vmatpush1.bf16.msra.mxu0 0
    %3866 = vmatprep.mubr.bf16.mxu0 0
    %3867 = vmatmul.mubr.bf16.gmra.mrb[0].mxu0 %v3829
    %v3868 = vpop.f32.mrb[0].mxu0
    %v3869 = vadd.f32 0.0, %v3868
    %v3870 = vpop.f32.mrb[0].mxu0
    %v3871 = vpop.f32.mrb[0].mxu0
    %v3872 = vpop.f32.mrb[0].mxu0
    %3873 = vdwg.mxu0
    %3874 = vrot.lane.b32.xlu0 %v2187, 40
    %v3875 = vpop.permute.xlu0 %3874
    %3876 = vrot.lane.b32.xlu0 %v3214, 104
    %v3877 = vpop.permute.xlu0 %3876
    %v3879 = vsel %vm85, %v3875, 0
    %v3882 = vsel %vm85, %v3877, 0
    %3884 = vmatprep.subr.bf16.mxu0 0
    %3885 = vmatpush1.bf16.xpose.msra.mxu0 %v3882
    %3886 = vmatprep.subr.bf16.mxu0 0
    %3887 = vmatpush1.bf16.xpose.msra.mxu0 0
    %3888 = vmatprep.subr.bf16.mxu0 0
    %3889 = vmatpush1.bf16.xpose.msra.mxu0 0
    %3890 = vmatprep.subr.bf16.mxu0 0
    %3891 = vmatpush1.bf16.xpose.msra.mxu0 0
    %3892 = vmatprep.subr.bf16.mxu0 0
    %3893 = vmatpush1.bf16.xpose.msra.mxu0 0
    %3894 = vmatprep.subr.bf16.mxu0 0
    %3895 = vmatpush1.bf16.xpose.msra.mxu0 0
    %3896 = vmatprep.subr.bf16.mxu0 0
    %3897 = vmatpush1.bf16.xpose.msra.mxu0 0
    %3898 = vmatprep.subr.bf16.mxu0 0
    %3899 = vmatpush1.bf16.xpose.msra.mxu0 0
    %3900 = vmatprep.subr.bf16.mxu0 0
    %3901 = vmatpush1.bf16.xpose.msra.mxu0 0
    %3902 = vmatprep.subr.bf16.mxu0 0
    %3903 = vmatpush1.bf16.xpose.msra.mxu0 0
    %3904 = vmatprep.subr.bf16.mxu0 0
    %3905 = vmatpush1.bf16.xpose.msra.mxu0 0
    %3906 = vmatprep.subr.bf16.mxu0 0
    %3907 = vmatpush1.bf16.xpose.msra.mxu0 0
    %3908 = vmatprep.subr.bf16.mxu0 0
    %3909 = vmatpush1.bf16.xpose.msra.mxu0 0
    %3910 = vmatprep.subr.bf16.mxu0 0
    %3911 = vmatpush1.bf16.xpose.msra.mxu0 0
    %3912 = vmatprep.subr.bf16.mxu0 0
    %3913 = vmatpush1.bf16.xpose.msra.mxu0 0
    %3914 = vmatprep.subr.bf16.mxu0 0
    %3915 = vmatpush1.bf16.xpose.msra.mxu0 0
    %3916 = vmatprep.mubr.bf16.mxu0 0
    %3917 = vmatmul.mubr.bf16.gmra.mrb[0].mxu0 %v3879
    %v3918 = vpop.f32.mrb[0].mxu0
    %v3919 = vadd.f32 0.0, %v3918
    %v3920 = vpop.f32.mrb[0].mxu0
    %v3921 = vpop.f32.mrb[0].mxu0
    %v3922 = vpop.f32.mrb[0].mxu0
    %3923 = vdwg.mxu0
    %3924 = vrot.lane.b32.xlu0 %v2188, 40
    %v3925 = vpop.permute.xlu0 %3924
    %3926 = vrot.lane.b32.xlu0 %v3215, 104
    %v3927 = vpop.permute.xlu0 %3926
    %v3929 = vsel %vm85, %v3925, 0
    %v3932 = vsel %vm85, %v3927, 0
    %3934 = vmatprep.subr.bf16.mxu0 0
    %3935 = vmatpush1.bf16.xpose.msra.mxu0 %v3932
    %3936 = vmatprep.subr.bf16.mxu0 0
    %3937 = vmatpush1.bf16.xpose.msra.mxu0 0
    %3938 = vmatprep.subr.bf16.mxu0 0
    %3939 = vmatpush1.bf16.xpose.msra.mxu0 0
    %3940 = vmatprep.subr.bf16.mxu0 0
    %3941 = vmatpush1.bf16.xpose.msra.mxu0 0
    %3942 = vmatprep.subr.bf16.mxu0 0
    %3943 = vmatpush1.bf16.xpose.msra.mxu0 0
    %3944 = vmatprep.subr.bf16.mxu0 0
    %3945 = vmatpush1.bf16.xpose.msra.mxu0 0
    %3946 = vmatprep.subr.bf16.mxu0 0
    %3947 = vmatpush1.bf16.xpose.msra.mxu0 0
    %3948 = vmatprep.subr.bf16.mxu0 0
    %3949 = vmatpush1.bf16.xpose.msra.mxu0 0
    %3950 = vmatprep.subr.bf16.mxu0 0
    %3951 = vmatpush1.bf16.xpose.msra.mxu0 0
    %3952 = vmatprep.subr.bf16.mxu0 0
    %3953 = vmatpush1.bf16.xpose.msra.mxu0 0
    %3954 = vmatprep.subr.bf16.mxu0 0
    %3955 = vmatpush1.bf16.xpose.msra.mxu0 0
    %3956 = vmatprep.subr.bf16.mxu0 0
    %3957 = vmatpush1.bf16.xpose.msra.mxu0 0
    %3958 = vmatprep.subr.bf16.mxu0 0
    %3959 = vmatpush1.bf16.xpose.msra.mxu0 0
    %3960 = vmatprep.subr.bf16.mxu0 0
    %3961 = vmatpush1.bf16.xpose.msra.mxu0 0
    %3962 = vmatprep.subr.bf16.mxu0 0
    %3963 = vmatpush1.bf16.xpose.msra.mxu0 0
    %3964 = vmatprep.subr.bf16.mxu0 0
    %3965 = vmatpush1.bf16.xpose.msra.mxu0 0
    %3966 = vmatprep.mubr.bf16.mxu0 0
    %3967 = vmatmul.mubr.bf16.gmra.mrb[0].mxu0 %v3929
    %v3968 = vpop.f32.mrb[0].mxu0
    %v3969 = vadd.f32 0.0, %v3968
    %v3970 = vpop.f32.mrb[0].mxu0
    %v3971 = vpop.f32.mrb[0].mxu0
    %v3972 = vpop.f32.mrb[0].mxu0
    %3973 = vdwg.mxu0
    %v3974 = vsel %vm85, %v3919, -inf
    %3975 = vmax.xlane.f32.xlu0 %v3974
    %v3976 = vpop.xlane.xlu0 %3975
    %v3977 = vsel %vm85, %v3969, -inf
    %3978 = vmax.xlane.f32.xlu0 %v3977
    %v3979 = vpop.xlane.xlu0 %3978
    %v3980 = vsub.f32 %v3919, %v3976
    %v3981 = vsub.f32 %v3969, %v3979
    %v3982 = vmul.f32 %v3980, 1.442695
    %v3983 = vpow.pop %v3982
    %v3984 = vmul.f32 %v3981, 1.442695
    %v3985 = vpow.pop %v3984
    %v3986 = vsel %vm85, %v3983, 0.0
    %3987 = vadd.xlane.f32.xlu0 %v3986
    %v3988 = vpop.xlane.xlu0 %3987
    %v3989 = vsel %vm85, %v3985, 0.0
    %3990 = vadd.xlane.f32.xlu0 %v3989
    %v3991 = vpop.xlane.xlu0 %3990
    %v3992 = vrcp.pop %v3988
    %v3993 = vrcp.pop %v3991
    %v3994 = vmul.f32 %v3983, %v3992
    %v3995 = vmul.f32 %v3985, %v3993
    %v3996 = vpack.c.bf16 %v3994, %v3994
    %v3997 = vpack.c.bf16 %v3995, %v3995
    %3998 = vrot.lane.b32.xlu0 %v3214, 72
    %v3999 = vpop.permute.xlu0 %3998
    %v4001 = vsel %vm85, %v3996, 0
    %v4004 = vsel %vm205, %v3999, 0
    %4006 = vmatprep.subr.bf16.mxu0 0
    %4007 = vmatpush1.bf16.msra.mxu0 %v4004
    %4008 = vmatprep.subr.bf16.mxu0 0
    %4009 = vmatpush1.bf16.msra.mxu0 0
    %4010 = vmatprep.subr.bf16.mxu0 0
    %4011 = vmatpush1.bf16.msra.mxu0 0
    %4012 = vmatprep.subr.bf16.mxu0 0
    %4013 = vmatpush1.bf16.msra.mxu0 0
    %4014 = vmatprep.subr.bf16.mxu0 0
    %4015 = vmatpush1.bf16.msra.mxu0 0
    %4016 = vmatprep.subr.bf16.mxu0 0
    %4017 = vmatpush1.bf16.msra.mxu0 0
    %4018 = vmatprep.subr.bf16.mxu0 0
    %4019 = vmatpush1.bf16.msra.mxu0 0
    %4020 = vmatprep.subr.bf16.mxu0 0
    %4021 = vmatpush1.bf16.msra.mxu0 0
    %4022 = vmatprep.subr.bf16.mxu0 0
    %4023 = vmatpush1.bf16.msra.mxu0 0
    %4024 = vmatprep.subr.bf16.mxu0 0
    %4025 = vmatpush1.bf16.msra.mxu0 0
    %4026 = vmatprep.subr.bf16.mxu0 0
    %4027 = vmatpush1.bf16.msra.mxu0 0
    %4028 = vmatprep.subr.bf16.mxu0 0
    %4029 = vmatpush1.bf16.msra.mxu0 0
    %4030 = vmatprep.subr.bf16.mxu0 0
    %4031 = vmatpush1.bf16.msra.mxu0 0
    %4032 = vmatprep.subr.bf16.mxu0 0
    %4033 = vmatpush1.bf16.msra.mxu0 0
    %4034 = vmatprep.subr.bf16.mxu0 0
    %4035 = vmatpush1.bf16.msra.mxu0 0
    %4036 = vmatprep.subr.bf16.mxu0 0
    %4037 = vmatpush1.bf16.msra.mxu0 0
    %4038 = vmatprep.mubr.bf16.mxu0 0
    %4039 = vmatmul.mubr.bf16.gmra.mrb[0].mxu0 %v4001
    %v4040 = vpop.f32.mrb[0].mxu0
    %v4041 = vadd.f32 0.0, %v4040
    %v4042 = vpop.f32.mrb[0].mxu0
    %v4043 = vpop.f32.mrb[0].mxu0
    %v4044 = vpop.f32.mrb[0].mxu0
    %4045 = vdwg.mxu0
    %4046 = vrot.lane.b32.xlu0 %v3215, 72
    %v4047 = vpop.permute.xlu0 %4046
    %v4049 = vsel %vm85, %v3997, 0
    %v4052 = vsel %vm205, %v4047, 0
    %4054 = vmatprep.subr.bf16.mxu0 0
    %4055 = vmatpush1.bf16.msra.mxu0 %v4052
    %4056 = vmatprep.subr.bf16.mxu0 0
    %4057 = vmatpush1.bf16.msra.mxu0 0
    %4058 = vmatprep.subr.bf16.mxu0 0
    %4059 = vmatpush1.bf16.msra.mxu0 0
    %4060 = vmatprep.subr.bf16.mxu0 0
    %4061 = vmatpush1.bf16.msra.mxu0 0
    %4062 = vmatprep.subr.bf16.mxu0 0
    %4063 = vmatpush1.bf16.msra.mxu0 0
    %4064 = vmatprep.subr.bf16.mxu0 0
    %4065 = vmatpush1.bf16.msra.mxu0 0
    %4066 = vmatprep.subr.bf16.mxu0 0
    %4067 = vmatpush1.bf16.msra.mxu0 0
    %4068 = vmatprep.subr.bf16.mxu0 0
    %4069 = vmatpush1.bf16.msra.mxu0 0
    %4070 = vmatprep.subr.bf16.mxu0 0
    %4071 = vmatpush1.bf16.msra.mxu0 0
    %4072 = vmatprep.subr.bf16.mxu0 0
    %4073 = vmatpush1.bf16.msra.mxu0 0
    %4074 = vmatprep.subr.bf16.mxu0 0
    %4075 = vmatpush1.bf16.msra.mxu0 0
    %4076 = vmatprep.subr.bf16.mxu0 0
    %4077 = vmatpush1.bf16.msra.mxu0 0
    %4078 = vmatprep.subr.bf16.mxu0 0
    %4079 = vmatpush1.bf16.msra.mxu0 0
    %4080 = vmatprep.subr.bf16.mxu0 0
    %4081 = vmatpush1.bf16.msra.mxu0 0
    %4082 = vmatprep.subr.bf16.mxu0 0
    %4083 = vmatpush1.bf16.msra.mxu0 0
    %4084 = vmatprep.subr.bf16.mxu0 0
    %4085 = vmatpush1.bf16.msra.mxu0 0
    %4086 = vmatprep.mubr.bf16.mxu0 0
    %4087 = vmatmul.mubr.bf16.gmra.mrb[0].mxu0 %v4049
    %v4088 = vpop.f32.mrb[0].mxu0
    %v4089 = vadd.f32 0.0, %v4088
    %v4090 = vpop.f32.mrb[0].mxu0
    %v4091 = vpop.f32.mrb[0].mxu0
    %v4092 = vpop.f32.mrb[0].mxu0
    %4093 = vdwg.mxu0
    %4096 = vrot.lane.b32.xlu0 %v3601, 8
    %v4097 = vpop.permute.xlu0 %4096
    %4098 = vrot.lane.b32.xlu0 %v3649, 8
    %v4099 = vpop.permute.xlu0 %4098
    %4104 = vrot.lane.b32.xlu0 %v3821, 16
    %v4105 = vpop.permute.xlu0 %4104
    %4106 = vrot.lane.b32.xlu0 %v3869, 16
    %v4107 = vpop.permute.xlu0 %4106
    %4112 = vrot.lane.b32.xlu0 %v4041, 24
    %v4113 = vpop.permute.xlu0 %4112
    %4114 = vrot.lane.b32.xlu0 %v4089, 24
    %v4115 = vpop.permute.xlu0 %4114
    %v4118 = vsel %vm85, %v3380, %v4097
    %v4119 = vsel %vm85, %v3429, %v4099
    %v4120 = vsel %vm970, %v4118, %v4105
    %v4121 = vsel %vm970, %v4119, %v4107
    %v4122 = vsel %vm973, %v4120, %v4113
    %v4123 = vsel %vm973, %v4121, %v4115
    %4126 = vrot.lane.b32.xlu0 %v4122, 64
    %v4127 = vpop.permute.xlu0 %4126
    %4128 = vrot.lane.b32.xlu0 %v4123, 64
    %v4129 = vpop.permute.xlu0 %4128
    %v4132 = vadd.f32 %v2179, %v4127
    %v4133 = vadd.f32 %v2182, %v4129
    %v4134 = vpack.c.bf16 %v4133, %v4132
    %v4135 = vld [vmem:[%s1 + $0x64] sm:$0xf]
    %v4136 = vld [vmem:[%s1 + $0x68] sm:$0xf]
    %v4137 = vld [vmem:[%s1 + $0x6c] sm:$0xf]
    %v4138 = vld [vmem:[%s1 + $0x70] sm:$0xf]
    %v4139 = vld [vmem:[%s2 + $0x7] sm:$0x1]
    %v4140 = vlaneseq
    %v4141 = vshrl.u32 %v4140, 7
    %v4142 = vsub.s32 0, %v4141
    %v4143 = vrot.slane %v4139, %v4142
    %4145 = vrot.lane.b32.xlu0 %v4134, 64
    %v4146 = vpop.permute.xlu0 %4145
    %v4151 = vunpack.c.l.b16 %v4135
    %v4152 = vunpack.c.l.b16 %v4136
    %v4153 = vunpack.c.l.b16 %v4137
    %v4154 = vunpack.c.l.b16 %v4138
    %v4155 = vpack.c.b16 %v4152, %v4151
    %v4156 = vpack.c.b16 %v4154, %v4153
    %v4160 = vsel %vm1000, %v4146, 0
    %4162 = vmatprep.subr.bf16.mxu0 0
    %4163 = vmatpush1.bf16.msra.mxu0 %v4155
    %4164 = vmatprep.subr.bf16.mxu0 0
    %4165 = vmatpush1.bf16.msra.mxu0 %v4156
    %4166 = vmatprep.subr.bf16.mxu0 0
    %4167 = vmatpush1.bf16.msra.mxu0 0
    %4168 = vmatprep.subr.bf16.mxu0 0
    %4169 = vmatpush1.bf16.msra.mxu0 0
    %4170 = vmatprep.subr.bf16.mxu0 0
    %4171 = vmatpush1.bf16.msra.mxu0 0
    %4172 = vmatprep.subr.bf16.mxu0 0
    %4173 = vmatpush1.bf16.msra.mxu0 0
    %4174 = vmatprep.subr.bf16.mxu0 0
    %4175 = vmatpush1.bf16.msra.mxu0 0
    %4176 = vmatprep.subr.bf16.mxu0 0
    %4177 = vmatpush1.bf16.msra.mxu0 0
    %4178 = vmatprep.subr.bf16.mxu0 0
    %4179 = vmatpush1.bf16.msra.mxu0 0
    %4180 = vmatprep.subr.bf16.mxu0 0
    %4181 = vmatpush1.bf16.msra.mxu0 0
    %4182 = vmatprep.subr.bf16.mxu0 0
    %4183 = vmatpush1.bf16.msra.mxu0 0
    %4184 = vmatprep.subr.bf16.mxu0 0
    %4185 = vmatpush1.bf16.msra.mxu0 0
    %4186 = vmatprep.subr.bf16.mxu0 0
    %4187 = vmatpush1.bf16.msra.mxu0 0
    %4188 = vmatprep.subr.bf16.mxu0 0
    %4189 = vmatpush1.bf16.msra.mxu0 0
    %4190 = vmatprep.subr.bf16.mxu0 0
    %4191 = vmatpush1.bf16.msra.mxu0 0
    %4192 = vmatprep.subr.bf16.mxu0 0
    %4193 = vmatpush1.bf16.msra.mxu0 0
    %4194 = vmatprep.mubr.bf16.mxu0 0
    %4195 = vmatmul.mubr.bf16.gmra.mrb[0].mxu0 %v4160
    %v4196 = vpop.f32.mrb[0].mxu0
    %v4197 = vadd.f32 %v4143, %v4196
    %v4198 = vpop.f32.mrb[0].mxu0
    %v4199 = vpop.f32.mrb[0].mxu0
    %v4200 = vadd.f32 %v4143, %v4199
    %v4201 = vpop.f32.mrb[0].mxu0
    %4202 = vdwg.mxu0
    %v4203 = vmax.f32 %v4197, 0.0
    %v4204 = vmax.f32 %v4200, 0.0
    %4207 = vrot.lane.b32.xlu0 %v4203, 64
    %v4208 = vpop.permute.xlu0 %4207
    %4209 = vrot.lane.b32.xlu0 %v4204, 64
    %v4210 = vpop.permute.xlu0 %4209
    %v4213 = vadd.f32 %v4132, %v4208
    %v4214 = vadd.f32 %v4133, %v4210
    %v4215 = vpack.c.bf16 %v4214, %v4213
    %v4216 = vld [vmem:[%s1 + $0x74] sm:$0xf]
    %v4217 = vld [vmem:[%s1 + $0x78] sm:$0xf]
    %v4218 = vld [vmem:[%s1 + $0x7c] sm:$0xf]
    %v4219 = vld [vmem:[%s1 + $0x80] sm:$0xf]
    %v4220 = vld [vmem:[%s2 + $0x8] sm:$0x1]
    %v4221 = vlaneseq
    %v4222 = vshrl.u32 %v4221, 7
    %v4223 = vsub.s32 0, %v4222
    %v4224 = vrot.slane %v4220, %v4223
    %4226 = vrot.lane.b32.xlu0 %v4215, 64
    %v4227 = vpop.permute.xlu0 %4226
    %v4232 = vunpack.c.l.b16 %v4216
    %v4233 = vunpack.c.l.b16 %v4217
    %v4234 = vunpack.c.l.b16 %v4218
    %v4235 = vunpack.c.l.b16 %v4219
    %v4236 = vpack.c.b16 %v4233, %v4232
    %v4237 = vpack.c.b16 %v4235, %v4234
    %v4241 = vsel %vm1000, %v4227, 0
    %4243 = vmatprep.subr.bf16.mxu0 0
    %4244 = vmatpush1.bf16.msra.mxu0 %v4236
    %4245 = vmatprep.subr.bf16.mxu0 0
    %4246 = vmatpush1.bf16.msra.mxu0 %v4237
    %4247 = vmatprep.subr.bf16.mxu0 0
    %4248 = vmatpush1.bf16.msra.mxu0 0
    %4249 = vmatprep.subr.bf16.mxu0 0
    %4250 = vmatpush1.bf16.msra.mxu0 0
    %4251 = vmatprep.subr.bf16.mxu0 0
    %4252 = vmatpush1.bf16.msra.mxu0 0
    %4253 = vmatprep.subr.bf16.mxu0 0
    %4254 = vmatpush1.bf16.msra.mxu0 0
    %4255 = vmatprep.subr.bf16.mxu0 0
    %4256 = vmatpush1.bf16.msra.mxu0 0
    %4257 = vmatprep.subr.bf16.mxu0 0
    %4258 = vmatpush1.bf16.msra.mxu0 0
    %4259 = vmatprep.subr.bf16.mxu0 0
    %4260 = vmatpush1.bf16.msra.mxu0 0
    %4261 = vmatprep.subr.bf16.mxu0 0
    %4262 = vmatpush1.bf16.msra.mxu0 0
    %4263 = vmatprep.subr.bf16.mxu0 0
    %4264 = vmatpush1.bf16.msra.mxu0 0
    %4265 = vmatprep.subr.bf16.mxu0 0
    %4266 = vmatpush1.bf16.msra.mxu0 0
    %4267 = vmatprep.subr.bf16.mxu0 0
    %4268 = vmatpush1.bf16.msra.mxu0 0
    %4269 = vmatprep.subr.bf16.mxu0 0
    %4270 = vmatpush1.bf16.msra.mxu0 0
    %4271 = vmatprep.subr.bf16.mxu0 0
    %4272 = vmatpush1.bf16.msra.mxu0 0
    %4273 = vmatprep.subr.bf16.mxu0 0
    %4274 = vmatpush1.bf16.msra.mxu0 0
    %4275 = vmatprep.mubr.bf16.mxu0 0
    %4276 = vmatmul.mubr.bf16.gmra.mrb[0].mxu0 %v4241
    %v4277 = vpop.f32.mrb[0].mxu0
    %v4278 = vadd.f32 %v4224, %v4277
    %v4279 = vpop.f32.mrb[0].mxu0
    %v4280 = vpop.f32.mrb[0].mxu0
    %v4281 = vadd.f32 %v4224, %v4280
    %v4282 = vpop.f32.mrb[0].mxu0
    %4283 = vdwg.mxu0
    %v4284 = vld [vmem:[%s3 + $0x10] sm:$0x3]
    %v4285 = vpack.c.bf16 %v4284, %v4284
    %v4286 = vpack.c.bf16 %v4278, %v4278
    %v4287 = vpack.c.bf16 %v4281, %v4281
    %v4289 = vsel %vm85, %v4285, 0
    %v4292 = vsel %vm85, %v4286, 0
    %4294 = vmatprep.subr.bf16.mxu0 0
    %4295 = vmatpush1.bf16.xpose.msra.mxu0 %v4292
    %4296 = vmatprep.subr.bf16.mxu0 0
    %4297 = vmatpush1.bf16.xpose.msra.mxu0 0
    %4298 = vmatprep.subr.bf16.mxu0 0
    %4299 = vmatpush1.bf16.xpose.msra.mxu0 0
    %4300 = vmatprep.subr.bf16.mxu0 0
    %4301 = vmatpush1.bf16.xpose.msra.mxu0 0
    %4302 = vmatprep.subr.bf16.mxu0 0
    %4303 = vmatpush1.bf16.xpose.msra.mxu0 0
    %4304 = vmatprep.subr.bf16.mxu0 0
    %4305 = vmatpush1.bf16.xpose.msra.mxu0 0
    %4306 = vmatprep.subr.bf16.mxu0 0
    %4307 = vmatpush1.bf16.xpose.msra.mxu0 0
    %4308 = vmatprep.subr.bf16.mxu0 0
    %4309 = vmatpush1.bf16.xpose.msra.mxu0 0
    %4310 = vmatprep.subr.bf16.mxu0 0
    %4311 = vmatpush1.bf16.xpose.msra.mxu0 0
    %4312 = vmatprep.subr.bf16.mxu0 0
    %4313 = vmatpush1.bf16.xpose.msra.mxu0 0
    %4314 = vmatprep.subr.bf16.mxu0 0
    %4315 = vmatpush1.bf16.xpose.msra.mxu0 0
    %4316 = vmatprep.subr.bf16.mxu0 0
    %4317 = vmatpush1.bf16.xpose.msra.mxu0 0
    %4318 = vmatprep.subr.bf16.mxu0 0
    %4319 = vmatpush1.bf16.xpose.msra.mxu0 0
    %4320 = vmatprep.subr.bf16.mxu0 0
    %4321 = vmatpush1.bf16.xpose.msra.mxu0 0
    %4322 = vmatprep.subr.bf16.mxu0 0
    %4323 = vmatpush1.bf16.xpose.msra.mxu0 0
    %4324 = vmatprep.subr.bf16.mxu0 0
    %4325 = vmatpush1.bf16.xpose.msra.mxu0 0
    %4326 = vmatprep.mubr.bf16.mxu0 0
    %4327 = vmatmul.mubr.bf16.gmra.mrb[0].mxu0 %v4289
    %v4328 = vpop.f32.mrb[0].mxu0
    %v4329 = vadd.f32 0.0, %v4328
    %v4330 = vpop.f32.mrb[0].mxu0
    %v4331 = vpop.f32.mrb[0].mxu0
    %v4332 = vpop.f32.mrb[0].mxu0
    %4333 = vdwg.mxu0
    %v4335 = vsel %vm85, %v4287, 0
    %4337 = vmatprep.subr.bf16.mxu0 0
    %4338 = vmatpush1.bf16.xpose.msra.mxu0 %v4335
    %4339 = vmatprep.subr.bf16.mxu0 0
    %4340 = vmatpush1.bf16.xpose.msra.mxu0 0
    %4341 = vmatprep.subr.bf16.mxu0 0
    %4342 = vmatpush1.bf16.xpose.msra.mxu0 0
    %4343 = vmatprep.subr.bf16.mxu0 0
    %4344 = vmatpush1.bf16.xpose.msra.mxu0 0
    %4345 = vmatprep.subr.bf16.mxu0 0
    %4346 = vmatpush1.bf16.xpose.msra.mxu0 0
    %4347 = vmatprep.subr.bf16.mxu0 0
    %4348 = vmatpush1.bf16.xpose.msra.mxu0 0
    %4349 = vmatprep.subr.bf16.mxu0 0
    %4350 = vmatpush1.bf16.xpose.msra.mxu0 0
    %4351 = vmatprep.subr.bf16.mxu0 0
    %4352 = vmatpush1.bf16.xpose.msra.mxu0 0
    %4353 = vmatprep.subr.bf16.mxu0 0
    %4354 = vmatpush1.bf16.xpose.msra.mxu0 0
    %4355 = vmatprep.subr.bf16.mxu0 0
    %4356 = vmatpush1.bf16.xpose.msra.mxu0 0
    %4357 = vmatprep.subr.bf16.mxu0 0
    %4358 = vmatpush1.bf16.xpose.msra.mxu0 0
    %4359 = vmatprep.subr.bf16.mxu0 0
    %4360 = vmatpush1.bf16.xpose.msra.mxu0 0
    %4361 = vmatprep.subr.bf16.mxu0 0
    %4362 = vmatpush1.bf16.xpose.msra.mxu0 0
    %4363 = vmatprep.subr.bf16.mxu0 0
    %4364 = vmatpush1.bf16.xpose.msra.mxu0 0
    %4365 = vmatprep.subr.bf16.mxu0 0
    %4366 = vmatpush1.bf16.xpose.msra.mxu0 0
    %4367 = vmatprep.subr.bf16.mxu0 0
    %4368 = vmatpush1.bf16.xpose.msra.mxu0 0
    %4369 = vmatprep.mubr.bf16.mxu0 0
    %4370 = vmatmul.mubr.bf16.gmra.mrb[0].mxu0 %v4289
    %v4371 = vpop.f32.mrb[0].mxu0
    %v4372 = vadd.f32 0.0, %v4371
    %v4373 = vpop.f32.mrb[0].mxu0
    %v4374 = vpop.f32.mrb[0].mxu0
    %v4375 = vpop.f32.mrb[0].mxu0
    %4376 = vdwg.mxu0
    %vm4377 = vcmask 58368
    %v4378 = vsel %vm4377, %v4329, -inf
    %4379 = vmax.xlane.f32.xlu0 %v4378
    %v4380 = vpop.xlane.xlu0 %4379
    %v4381 = vsel %vm4377, %v4372, -inf
    %4382 = vmax.xlane.f32.xlu0 %v4381
    %v4383 = vpop.xlane.xlu0 %4382
    %v4384 = vsub.f32 %v4329, %v4380
    %v4385 = vsub.f32 %v4372, %v4383
    %v4386 = vmul.f32 %v4384, 1.442695
    %v4387 = vpow.pop %v4386
    %v4388 = vmul.f32 %v4385, 1.442695
    %v4389 = vpow.pop %v4388
    %v4390 = vsel %vm4377, %v4387, 0.0
    %4391 = vadd.xlane.f32.xlu0 %v4390
    %v4392 = vpop.xlane.xlu0 %4391
    %v4393 = vsel %vm4377, %v4389, 0.0
    %4394 = vadd.xlane.f32.xlu0 %v4393
    %v4395 = vpop.xlane.xlu0 %4394
    %v4396 = vrcp.pop %v4392
    %v4397 = vrcp.pop %v4395
    %v4398 = vmul.f32 %v4387, %v4396
    %v4399 = vmul.f32 %v4389, %v4397
    %v4400 = vpack.c.bf16 %v4398, %v4398
    %v4401 = vpack.c.bf16 %v4399, %v4399
    %4403 = vrot.lane.b32.xlu0 %v4286, 96
    %v4404 = vpop.permute.xlu0 %4403
    %v4406 = vsel %vm85, %v4400, 0
    %v4409 = vsel %vm205, %v4404, 0
    %4411 = vmatprep.subr.bf16.mxu0 0
    %4412 = vmatpush1.bf16.msra.mxu0 %v4409
    %4413 = vmatprep.subr.bf16.mxu0 0
    %4414 = vmatpush1.bf16.msra.mxu0 0
    %4415 = vmatprep.subr.bf16.mxu0 0
    %4416 = vmatpush1.bf16.msra.mxu0 0
    %4417 = vmatprep.subr.bf16.mxu0 0
    %4418 = vmatpush1.bf16.msra.mxu0 0
    %4419 = vmatprep.subr.bf16.mxu0 0
    %4420 = vmatpush1.bf16.msra.mxu0 0
    %4421 = vmatprep.subr.bf16.mxu0 0
    %4422 = vmatpush1.bf16.msra.mxu0 0
    %4423 = vmatprep.subr.bf16.mxu0 0
    %4424 = vmatpush1.bf16.msra.mxu0 0
    %4425 = vmatprep.subr.bf16.mxu0 0
    %4426 = vmatpush1.bf16.msra.mxu0 0
    %4427 = vmatprep.subr.bf16.mxu0 0
    %4428 = vmatpush1.bf16.msra.mxu0 0
    %4429 = vmatprep.subr.bf16.mxu0 0
    %4430 = vmatpush1.bf16.msra.mxu0 0
    %4431 = vmatprep.subr.bf16.mxu0 0
    %4432 = vmatpush1.bf16.msra.mxu0 0
    %4433 = vmatprep.subr.bf16.mxu0 0
    %4434 = vmatpush1.bf16.msra.mxu0 0
    %4435 = vmatprep.subr.bf16.mxu0 0
    %4436 = vmatpush1.bf16.msra.mxu0 0
    %4437 = vmatprep.subr.bf16.mxu0 0
    %4438 = vmatpush1.bf16.msra.mxu0 0
    %4439 = vmatprep.subr.bf16.mxu0 0
    %4440 = vmatpush1.bf16.msra.mxu0 0
    %4441 = vmatprep.subr.bf16.mxu0 0
    %4442 = vmatpush1.bf16.msra.mxu0 0
    %4443 = vmatprep.mubr.bf16.mxu0 0
    %4444 = vmatmul.mubr.bf16.gmra.mrb[0].mxu0 %v4406
    %v4445 = vpop.f32.mrb[0].mxu0
    %v4446 = vadd.f32 0.0, %v4445
    %v4447 = vpop.f32.mrb[0].mxu0
    %v4448 = vpop.f32.mrb[0].mxu0
    %v4449 = vpop.f32.mrb[0].mxu0
    %4450 = vdwg.mxu0
    %4452 = vrot.lane.b32.xlu0 %v4287, 96
    %v4453 = vpop.permute.xlu0 %4452
    %v4455 = vsel %vm85, %v4401, 0
    %v4458 = vsel %vm205, %v4453, 0
    %4460 = vmatprep.subr.bf16.mxu0 0
    %4461 = vmatpush1.bf16.msra.mxu0 %v4458
    %4462 = vmatprep.subr.bf16.mxu0 0
    %4463 = vmatpush1.bf16.msra.mxu0 0
    %4464 = vmatprep.subr.bf16.mxu0 0
    %4465 = vmatpush1.bf16.msra.mxu0 0
    %4466 = vmatprep.subr.bf16.mxu0 0
    %4467 = vmatpush1.bf16.msra.mxu0 0
    %4468 = vmatprep.subr.bf16.mxu0 0
    %4469 = vmatpush1.bf16.msra.mxu0 0
    %4470 = vmatprep.subr.bf16.mxu0 0
    %4471 = vmatpush1.bf16.msra.mxu0 0
    %4472 = vmatprep.subr.bf16.mxu0 0
    %4473 = vmatpush1.bf16.msra.mxu0 0
    %4474 = vmatprep.subr.bf16.mxu0 0
    %4475 = vmatpush1.bf16.msra.mxu0 0
    %4476 = vmatprep.subr.bf16.mxu0 0
    %4477 = vmatpush1.bf16.msra.mxu0 0
    %4478 = vmatprep.subr.bf16.mxu0 0
    %4479 = vmatpush1.bf16.msra.mxu0 0
    %4480 = vmatprep.subr.bf16.mxu0 0
    %4481 = vmatpush1.bf16.msra.mxu0 0
    %4482 = vmatprep.subr.bf16.mxu0 0
    %4483 = vmatpush1.bf16.msra.mxu0 0
    %4484 = vmatprep.subr.bf16.mxu0 0
    %4485 = vmatpush1.bf16.msra.mxu0 0
    %4486 = vmatprep.subr.bf16.mxu0 0
    %4487 = vmatpush1.bf16.msra.mxu0 0
    %4488 = vmatprep.subr.bf16.mxu0 0
    %4489 = vmatpush1.bf16.msra.mxu0 0
    %4490 = vmatprep.subr.bf16.mxu0 0
    %4491 = vmatpush1.bf16.msra.mxu0 0
    %4492 = vmatprep.mubr.bf16.mxu0 0
    %4493 = vmatmul.mubr.bf16.gmra.mrb[0].mxu0 %v4455
    %v4494 = vpop.f32.mrb[0].mxu0
    %v4495 = vadd.f32 0.0, %v4494
    %v4496 = vpop.f32.mrb[0].mxu0
    %v4497 = vpop.f32.mrb[0].mxu0
    %v4498 = vpop.f32.mrb[0].mxu0
    %4499 = vdwg.mxu0
    %4501 = vrot.lane.b32.xlu0 %v4285, 120
    %v4502 = vpop.permute.xlu0 %4501
    %4503 = vrot.lane.b32.xlu0 %v4286, 120
    %v4504 = vpop.permute.xlu0 %4503
    %v4506 = vsel %vm85, %v4502, 0
    %v4509 = vsel %vm85, %v4504, 0
    %4511 = vmatprep.subr.bf16.mxu0 0
    %4512 = vmatpush1.bf16.xpose.msra.mxu0 %v4509
    %4513 = vmatprep.subr.bf16.mxu0 0
    %4514 = vmatpush1.bf16.xpose.msra.mxu0 0
    %4515 = vmatprep.subr.bf16.mxu0 0
    %4516 = vmatpush1.bf16.xpose.msra.mxu0 0
    %4517 = vmatprep.subr.bf16.mxu0 0
    %4518 = vmatpush1.bf16.xpose.msra.mxu0 0
    %4519 = vmatprep.subr.bf16.mxu0 0
    %4520 = vmatpush1.bf16.xpose.msra.mxu0 0
    %4521 = vmatprep.subr.bf16.mxu0 0
    %4522 = vmatpush1.bf16.xpose.msra.mxu0 0
    %4523 = vmatprep.subr.bf16.mxu0 0
    %4524 = vmatpush1.bf16.xpose.msra.mxu0 0
    %4525 = vmatprep.subr.bf16.mxu0 0
    %4526 = vmatpush1.bf16.xpose.msra.mxu0 0
    %4527 = vmatprep.subr.bf16.mxu0 0
    %4528 = vmatpush1.bf16.xpose.msra.mxu0 0
    %4529 = vmatprep.subr.bf16.mxu0 0
    %4530 = vmatpush1.bf16.xpose.msra.mxu0 0
    %4531 = vmatprep.subr.bf16.mxu0 0
    %4532 = vmatpush1.bf16.xpose.msra.mxu0 0
    %4533 = vmatprep.subr.bf16.mxu0 0
    %4534 = vmatpush1.bf16.xpose.msra.mxu0 0
    %4535 = vmatprep.subr.bf16.mxu0 0
    %4536 = vmatpush1.bf16.xpose.msra.mxu0 0
    %4537 = vmatprep.subr.bf16.mxu0 0
    %4538 = vmatpush1.bf16.xpose.msra.mxu0 0
    %4539 = vmatprep.subr.bf16.mxu0 0
    %4540 = vmatpush1.bf16.xpose.msra.mxu0 0
    %4541 = vmatprep.subr.bf16.mxu0 0
    %4542 = vmatpush1.bf16.xpose.msra.mxu0 0
    %4543 = vmatprep.mubr.bf16.mxu0 0
    %4544 = vmatmul.mubr.bf16.gmra.mrb[0].mxu0 %v4506
    %v4545 = vpop.f32.mrb[0].mxu0
    %v4546 = vadd.f32 0.0, %v4545
    %v4547 = vpop.f32.mrb[0].mxu0
    %v4548 = vpop.f32.mrb[0].mxu0
    %v4549 = vpop.f32.mrb[0].mxu0
    %4550 = vdwg.mxu0
    %4551 = vrot.lane.b32.xlu0 %v4287, 120
    %v4552 = vpop.permute.xlu0 %4551
    %v4554 = vsel %vm85, %v4552, 0
    %4556 = vmatprep.subr.bf16.mxu0 0
    %4557 = vmatpush1.bf16.xpose.msra.mxu0 %v4554
    %4558 = vmatprep.subr.bf16.mxu0 0
    %4559 = vmatpush1.bf16.xpose.msra.mxu0 0
    %4560 = vmatprep.subr.bf16.mxu0 0
    %4561 = vmatpush1.bf16.xpose.msra.mxu0 0
    %4562 = vmatprep.subr.bf16.mxu0 0
    %4563 = vmatpush1.bf16.xpose.msra.mxu0 0
    %4564 = vmatprep.subr.bf16.mxu0 0
    %4565 = vmatpush1.bf16.xpose.msra.mxu0 0
    %4566 = vmatprep.subr.bf16.mxu0 0
    %4567 = vmatpush1.bf16.xpose.msra.mxu0 0
    %4568 = vmatprep.subr.bf16.mxu0 0
    %4569 = vmatpush1.bf16.xpose.msra.mxu0 0
    %4570 = vmatprep.subr.bf16.mxu0 0
    %4571 = vmatpush1.bf16.xpose.msra.mxu0 0
    %4572 = vmatprep.subr.bf16.mxu0 0
    %4573 = vmatpush1.bf16.xpose.msra.mxu0 0
    %4574 = vmatprep.subr.bf16.mxu0 0
    %4575 = vmatpush1.bf16.xpose.msra.mxu0 0
    %4576 = vmatprep.subr.bf16.mxu0 0
    %4577 = vmatpush1.bf16.xpose.msra.mxu0 0
    %4578 = vmatprep.subr.bf16.mxu0 0
    %4579 = vmatpush1.bf16.xpose.msra.mxu0 0
    %4580 = vmatprep.subr.bf16.mxu0 0
    %4581 = vmatpush1.bf16.xpose.msra.mxu0 0
    %4582 = vmatprep.subr.bf16.mxu0 0
    %4583 = vmatpush1.bf16.xpose.msra.mxu0 0
    %4584 = vmatprep.subr.bf16.mxu0 0
    %4585 = vmatpush1.bf16.xpose.msra.mxu0 0
    %4586 = vmatprep.subr.bf16.mxu0 0
    %4587 = vmatpush1.bf16.xpose.msra.mxu0 0
    %4588 = vmatprep.mubr.bf16.mxu0 0
    %4589 = vmatmul.mubr.bf16.gmra.mrb[0].mxu0 %v4506
    %v4590 = vpop.f32.mrb[0].mxu0
    %v4591 = vadd.f32 0.0, %v4590
    %v4592 = vpop.f32.mrb[0].mxu0
    %v4593 = vpop.f32.mrb[0].mxu0
    %v4594 = vpop.f32.mrb[0].mxu0
    %4595 = vdwg.mxu0
    %v4596 = vsel %vm4377, %v4546, -inf
    %4597 = vmax.xlane.f32.xlu0 %v4596
    %v4598 = vpop.xlane.xlu0 %4597
    %v4599 = vsel %vm4377, %v4591, -inf
    %4600 = vmax.xlane.f32.xlu0 %v4599
    %v4601 = vpop.xlane.xlu0 %4600
    %v4602 = vsub.f32 %v4546, %v4598
    %v4603 = vsub.f32 %v4591, %v4601
    %v4604 = vmul.f32 %v4602, 1.442695
    %v4605 = vpow.pop %v4604
    %v4606 = vmul.f32 %v4603, 1.442695
    %v4607 = vpow.pop %v4606
    %v4608 = vsel %vm4377, %v4605, 0.0
    %4609 = vadd.xlane.f32.xlu0 %v4608
    %v4610 = vpop.xlane.xlu0 %4609
    %v4611 = vsel %vm4377, %v4607, 0.0
    %4612 = vadd.xlane.f32.xlu0 %v4611
    %v4613 = vpop.xlane.xlu0 %4612
    %v4614 = vrcp.pop %v4610
    %v4615 = vrcp.pop %v4613
    %v4616 = vmul.f32 %v4605, %v4614
    %v4617 = vmul.f32 %v4607, %v4615
    %v4618 = vpack.c.bf16 %v4616, %v4616
    %v4619 = vpack.c.bf16 %v4617, %v4617
    %4620 = vrot.lane.b32.xlu0 %v4286, 88
    %v4621 = vpop.permute.xlu0 %4620
    %v4623 = vsel %vm85, %v4618, 0
    %v4626 = vsel %vm205, %v4621, 0
    %4628 = vmatprep.subr.bf16.mxu0 0
    %4629 = vmatpush1.bf16.msra.mxu0 %v4626
    %4630 = vmatprep.subr.bf16.mxu0 0
    %4631 = vmatpush1.bf16.msra.mxu0 0
    %4632 = vmatprep.subr.bf16.mxu0 0
    %4633 = vmatpush1.bf16.msra.mxu0 0
    %4634 = vmatprep.subr.bf16.mxu0 0
    %4635 = vmatpush1.bf16.msra.mxu0 0
    %4636 = vmatprep.subr.bf16.mxu0 0
    %4637 = vmatpush1.bf16.msra.mxu0 0
    %4638 = vmatprep.subr.bf16.mxu0 0
    %4639 = vmatpush1.bf16.msra.mxu0 0
    %4640 = vmatprep.subr.bf16.mxu0 0
    %4641 = vmatpush1.bf16.msra.mxu0 0
    %4642 = vmatprep.subr.bf16.mxu0 0
    %4643 = vmatpush1.bf16.msra.mxu0 0
    %4644 = vmatprep.subr.bf16.mxu0 0
    %4645 = vmatpush1.bf16.msra.mxu0 0
    %4646 = vmatprep.subr.bf16.mxu0 0
    %4647 = vmatpush1.bf16.msra.mxu0 0
    %4648 = vmatprep.subr.bf16.mxu0 0
    %4649 = vmatpush1.bf16.msra.mxu0 0
    %4650 = vmatprep.subr.bf16.mxu0 0
    %4651 = vmatpush1.bf16.msra.mxu0 0
    %4652 = vmatprep.subr.bf16.mxu0 0
    %4653 = vmatpush1.bf16.msra.mxu0 0
    %4654 = vmatprep.subr.bf16.mxu0 0
    %4655 = vmatpush1.bf16.msra.mxu0 0
    %4656 = vmatprep.subr.bf16.mxu0 0
    %4657 = vmatpush1.bf16.msra.mxu0 0
    %4658 = vmatprep.subr.bf16.mxu0 0
    %4659 = vmatpush1.bf16.msra.mxu0 0
    %4660 = vmatprep.mubr.bf16.mxu0 0
    %4661 = vmatmul.mubr.bf16.gmra.mrb[0].mxu0 %v4623
    %v4662 = vpop.f32.mrb[0].mxu0
    %v4663 = vadd.f32 0.0, %v4662
    %v4664 = vpop.f32.mrb[0].mxu0
    %v4665 = vpop.f32.mrb[0].mxu0
    %v4666 = vpop.f32.mrb[0].mxu0
    %4667 = vdwg.mxu0
    %4668 = vrot.lane.b32.xlu0 %v4287, 88
    %v4669 = vpop.permute.xlu0 %4668
    %v4671 = vsel %vm85, %v4619, 0
    %v4674 = vsel %vm205, %v4669, 0
    %4676 = vmatprep.subr.bf16.mxu0 0
    %4677 = vmatpush1.bf16.msra.mxu0 %v4674
    %4678 = vmatprep.subr.bf16.mxu0 0
    %4679 = vmatpush1.bf16.msra.mxu0 0
    %4680 = vmatprep.subr.bf16.mxu0 0
    %4681 = vmatpush1.bf16.msra.mxu0 0
    %4682 = vmatprep.subr.bf16.mxu0 0
    %4683 = vmatpush1.bf16.msra.mxu0 0
    %4684 = vmatprep.subr.bf16.mxu0 0
    %4685 = vmatpush1.bf16.msra.mxu0 0
    %4686 = vmatprep.subr.bf16.mxu0 0
    %4687 = vmatpush1.bf16.msra.mxu0 0
    %4688 = vmatprep.subr.bf16.mxu0 0
    %4689 = vmatpush1.bf16.msra.mxu0 0
    %4690 = vmatprep.subr.bf16.mxu0 0
    %4691 = vmatpush1.bf16.msra.mxu0 0
    %4692 = vmatprep.subr.bf16.mxu0 0
    %4693 = vmatpush1.bf16.msra.mxu0 0
    %4694 = vmatprep.subr.bf16.mxu0 0
    %4695 = vmatpush1.bf16.msra.mxu0 0
    %4696 = vmatprep.subr.bf16.mxu0 0
    %4697 = vmatpush1.bf16.msra.mxu0 0
    %4698 = vmatprep.subr.bf16.mxu0 0
    %4699 = vmatpush1.bf16.msra.mxu0 0
    %4700 = vmatprep.subr.bf16.mxu0 0
    %4701 = vmatpush1.bf16.msra.mxu0 0
    %4702 = vmatprep.subr.bf16.mxu0 0
    %4703 = vmatpush1.bf16.msra.mxu0 0
    %4704 = vmatprep.subr.bf16.mxu0 0
    %4705 = vmatpush1.bf16.msra.mxu0 0
    %4706 = vmatprep.subr.bf16.mxu0 0
    %4707 = vmatpush1.bf16.msra.mxu0 0
    %4708 = vmatprep.mubr.bf16.mxu0 0
    %4709 = vmatmul.mubr.bf16.gmra.mrb[0].mxu0 %v4671
    %v4710 = vpop.f32.mrb[0].mxu0
    %v4711 = vadd.f32 0.0, %v4710
    %v4712 = vpop.f32.mrb[0].mxu0
    %v4713 = vpop.f32.mrb[0].mxu0
    %v4714 = vpop.f32.mrb[0].mxu0
    %4715 = vdwg.mxu0
    %4716 = vrot.lane.b32.xlu0 %v4285, 112
    %v4717 = vpop.permute.xlu0 %4716
    %4718 = vrot.lane.b32.xlu0 %v4286, 112
    %v4719 = vpop.permute.xlu0 %4718
    %v4721 = vsel %vm85, %v4717, 0
    %v4724 = vsel %vm85, %v4719, 0
    %4726 = vmatprep.subr.bf16.mxu0 0
    %4727 = vmatpush1.bf16.xpose.msra.mxu0 %v4724
    %4728 = vmatprep.subr.bf16.mxu0 0
    %4729 = vmatpush1.bf16.xpose.msra.mxu0 0
    %4730 = vmatprep.subr.bf16.mxu0 0
    %4731 = vmatpush1.bf16.xpose.msra.mxu0 0
    %4732 = vmatprep.subr.bf16.mxu0 0
    %4733 = vmatpush1.bf16.xpose.msra.mxu0 0
    %4734 = vmatprep.subr.bf16.mxu0 0
    %4735 = vmatpush1.bf16.xpose.msra.mxu0 0
    %4736 = vmatprep.subr.bf16.mxu0 0
    %4737 = vmatpush1.bf16.xpose.msra.mxu0 0
    %4738 = vmatprep.subr.bf16.mxu0 0
    %4739 = vmatpush1.bf16.xpose.msra.mxu0 0
    %4740 = vmatprep.subr.bf16.mxu0 0
    %4741 = vmatpush1.bf16.xpose.msra.mxu0 0
    %4742 = vmatprep.subr.bf16.mxu0 0
    %4743 = vmatpush1.bf16.xpose.msra.mxu0 0
    %4744 = vmatprep.subr.bf16.mxu0 0
    %4745 = vmatpush1.bf16.xpose.msra.mxu0 0
    %4746 = vmatprep.subr.bf16.mxu0 0
    %4747 = vmatpush1.bf16.xpose.msra.mxu0 0
    %4748 = vmatprep.subr.bf16.mxu0 0
    %4749 = vmatpush1.bf16.xpose.msra.mxu0 0
    %4750 = vmatprep.subr.bf16.mxu0 0
    %4751 = vmatpush1.bf16.xpose.msra.mxu0 0
    %4752 = vmatprep.subr.bf16.mxu0 0
    %4753 = vmatpush1.bf16.xpose.msra.mxu0 0
    %4754 = vmatprep.subr.bf16.mxu0 0
    %4755 = vmatpush1.bf16.xpose.msra.mxu0 0
    %4756 = vmatprep.subr.bf16.mxu0 0
    %4757 = vmatpush1.bf16.xpose.msra.mxu0 0
    %4758 = vmatprep.mubr.bf16.mxu0 0
    %4759 = vmatmul.mubr.bf16.gmra.mrb[0].mxu0 %v4721
    %v4760 = vpop.f32.mrb[0].mxu0
    %v4761 = vadd.f32 0.0, %v4760
    %v4762 = vpop.f32.mrb[0].mxu0
    %v4763 = vpop.f32.mrb[0].mxu0
    %v4764 = vpop.f32.mrb[0].mxu0
    %4765 = vdwg.mxu0
    %4766 = vrot.lane.b32.xlu0 %v4287, 112
    %v4767 = vpop.permute.xlu0 %4766
    %v4769 = vsel %vm85, %v4767, 0
    %4771 = vmatprep.subr.bf16.mxu0 0
    %4772 = vmatpush1.bf16.xpose.msra.mxu0 %v4769
    %4773 = vmatprep.subr.bf16.mxu0 0
    %4774 = vmatpush1.bf16.xpose.msra.mxu0 0
    %4775 = vmatprep.subr.bf16.mxu0 0
    %4776 = vmatpush1.bf16.xpose.msra.mxu0 0
    %4777 = vmatprep.subr.bf16.mxu0 0
    %4778 = vmatpush1.bf16.xpose.msra.mxu0 0
    %4779 = vmatprep.subr.bf16.mxu0 0
    %4780 = vmatpush1.bf16.xpose.msra.mxu0 0
    %4781 = vmatprep.subr.bf16.mxu0 0
    %4782 = vmatpush1.bf16.xpose.msra.mxu0 0
    %4783 = vmatprep.subr.bf16.mxu0 0
    %4784 = vmatpush1.bf16.xpose.msra.mxu0 0
    %4785 = vmatprep.subr.bf16.mxu0 0
    %4786 = vmatpush1.bf16.xpose.msra.mxu0 0
    %4787 = vmatprep.subr.bf16.mxu0 0
    %4788 = vmatpush1.bf16.xpose.msra.mxu0 0
    %4789 = vmatprep.subr.bf16.mxu0 0
    %4790 = vmatpush1.bf16.xpose.msra.mxu0 0
    %4791 = vmatprep.subr.bf16.mxu0 0
    %4792 = vmatpush1.bf16.xpose.msra.mxu0 0
    %4793 = vmatprep.subr.bf16.mxu0 0
    %4794 = vmatpush1.bf16.xpose.msra.mxu0 0
    %4795 = vmatprep.subr.bf16.mxu0 0
    %4796 = vmatpush1.bf16.xpose.msra.mxu0 0
    %4797 = vmatprep.subr.bf16.mxu0 0
    %4798 = vmatpush1.bf16.xpose.msra.mxu0 0
    %4799 = vmatprep.subr.bf16.mxu0 0
    %4800 = vmatpush1.bf16.xpose.msra.mxu0 0
    %4801 = vmatprep.subr.bf16.mxu0 0
    %4802 = vmatpush1.bf16.xpose.msra.mxu0 0
    %4803 = vmatprep.mubr.bf16.mxu0 0
    %4804 = vmatmul.mubr.bf16.gmra.mrb[0].mxu0 %v4721
    %v4805 = vpop.f32.mrb[0].mxu0
    %v4806 = vadd.f32 0.0, %v4805
    %v4807 = vpop.f32.mrb[0].mxu0
    %v4808 = vpop.f32.mrb[0].mxu0
    %v4809 = vpop.f32.mrb[0].mxu0
    %4810 = vdwg.mxu0
    %v4811 = vsel %vm4377, %v4761, -inf
    %4812 = vmax.xlane.f32.xlu0 %v4811
    %v4813 = vpop.xlane.xlu0 %4812
    %v4814 = vsel %vm4377, %v4806, -inf
    %4815 = vmax.xlane.f32.xlu0 %v4814
    %v4816 = vpop.xlane.xlu0 %4815
    %v4817 = vsub.f32 %v4761, %v4813
    %v4818 = vsub.f32 %v4806, %v4816
    %v4819 = vmul.f32 %v4817, 1.442695
    %v4820 = vpow.pop %v4819
    %v4821 = vmul.f32 %v4818, 1.442695
    %v4822 = vpow.pop %v4821
    %v4823 = vsel %vm4377, %v4820, 0.0
    %4824 = vadd.xlane.f32.xlu0 %v4823
    %v4825 = vpop.xlane.xlu0 %4824
    %v4826 = vsel %vm4377, %v4822, 0.0
    %4827 = vadd.xlane.f32.xlu0 %v4826
    %v4828 = vpop.xlane.xlu0 %4827
    %v4829 = vrcp.pop %v4825
    %v4830 = vrcp.pop %v4828
    %v4831 = vmul.f32 %v4820, %v4829
    %v4832 = vmul.f32 %v4822, %v4830
    %v4833 = vpack.c.bf16 %v4831, %v4831
    %v4834 = vpack.c.bf16 %v4832, %v4832
    %4835 = vrot.lane.b32.xlu0 %v4286, 80
    %v4836 = vpop.permute.xlu0 %4835
    %v4838 = vsel %vm85, %v4833, 0
    %v4841 = vsel %vm205, %v4836, 0
    %4843 = vmatprep.subr.bf16.mxu0 0
    %4844 = vmatpush1.bf16.msra.mxu0 %v4841
    %4845 = vmatprep.subr.bf16.mxu0 0
    %4846 = vmatpush1.bf16.msra.mxu0 0
    %4847 = vmatprep.subr.bf16.mxu0 0
    %4848 = vmatpush1.bf16.msra.mxu0 0
    %4849 = vmatprep.subr.bf16.mxu0 0
    %4850 = vmatpush1.bf16.msra.mxu0 0
    %4851 = vmatprep.subr.bf16.mxu0 0
    %4852 = vmatpush1.bf16.msra.mxu0 0
    %4853 = vmatprep.subr.bf16.mxu0 0
    %4854 = vmatpush1.bf16.msra.mxu0 0
    %4855 = vmatprep.subr.bf16.mxu0 0
    %4856 = vmatpush1.bf16.msra.mxu0 0
    %4857 = vmatprep.subr.bf16.mxu0 0
    %4858 = vmatpush1.bf16.msra.mxu0 0
    %4859 = vmatprep.subr.bf16.mxu0 0
    %4860 = vmatpush1.bf16.msra.mxu0 0
    %4861 = vmatprep.subr.bf16.mxu0 0
    %4862 = vmatpush1.bf16.msra.mxu0 0
    %4863 = vmatprep.subr.bf16.mxu0 0
    %4864 = vmatpush1.bf16.msra.mxu0 0
    %4865 = vmatprep.subr.bf16.mxu0 0
    %4866 = vmatpush1.bf16.msra.mxu0 0
    %4867 = vmatprep.subr.bf16.mxu0 0
    %4868 = vmatpush1.bf16.msra.mxu0 0
    %4869 = vmatprep.subr.bf16.mxu0 0
    %4870 = vmatpush1.bf16.msra.mxu0 0
    %4871 = vmatprep.subr.bf16.mxu0 0
    %4872 = vmatpush1.bf16.msra.mxu0 0
    %4873 = vmatprep.subr.bf16.mxu0 0
    %4874 = vmatpush1.bf16.msra.mxu0 0
    %4875 = vmatprep.mubr.bf16.mxu0 0
    %4876 = vmatmul.mubr.bf16.gmra.mrb[0].mxu0 %v4838
    %v4877 = vpop.f32.mrb[0].mxu0
    %v4878 = vadd.f32 0.0, %v4877
    %v4879 = vpop.f32.mrb[0].mxu0
    %v4880 = vpop.f32.mrb[0].mxu0
    %v4881 = vpop.f32.mrb[0].mxu0
    %4882 = vdwg.mxu0
    %4883 = vrot.lane.b32.xlu0 %v4287, 80
    %v4884 = vpop.permute.xlu0 %4883
    %v4886 = vsel %vm85, %v4834, 0
    %v4889 = vsel %vm205, %v4884, 0
    %4891 = vmatprep.subr.bf16.mxu0 0
    %4892 = vmatpush1.bf16.msra.mxu0 %v4889
    %4893 = vmatprep.subr.bf16.mxu0 0
    %4894 = vmatpush1.bf16.msra.mxu0 0
    %4895 = vmatprep.subr.bf16.mxu0 0
    %4896 = vmatpush1.bf16.msra.mxu0 0
    %4897 = vmatprep.subr.bf16.mxu0 0
    %4898 = vmatpush1.bf16.msra.mxu0 0
    %4899 = vmatprep.subr.bf16.mxu0 0
    %4900 = vmatpush1.bf16.msra.mxu0 0
    %4901 = vmatprep.subr.bf16.mxu0 0
    %4902 = vmatpush1.bf16.msra.mxu0 0
    %4903 = vmatprep.subr.bf16.mxu0 0
    %4904 = vmatpush1.bf16.msra.mxu0 0
    %4905 = vmatprep.subr.bf16.mxu0 0
    %4906 = vmatpush1.bf16.msra.mxu0 0
    %4907 = vmatprep.subr.bf16.mxu0 0
    %4908 = vmatpush1.bf16.msra.mxu0 0
    %4909 = vmatprep.subr.bf16.mxu0 0
    %4910 = vmatpush1.bf16.msra.mxu0 0
    %4911 = vmatprep.subr.bf16.mxu0 0
    %4912 = vmatpush1.bf16.msra.mxu0 0
    %4913 = vmatprep.subr.bf16.mxu0 0
    %4914 = vmatpush1.bf16.msra.mxu0 0
    %4915 = vmatprep.subr.bf16.mxu0 0
    %4916 = vmatpush1.bf16.msra.mxu0 0
    %4917 = vmatprep.subr.bf16.mxu0 0
    %4918 = vmatpush1.bf16.msra.mxu0 0
    %4919 = vmatprep.subr.bf16.mxu0 0
    %4920 = vmatpush1.bf16.msra.mxu0 0
    %4921 = vmatprep.subr.bf16.mxu0 0
    %4922 = vmatpush1.bf16.msra.mxu0 0
    %4923 = vmatprep.mubr.bf16.mxu0 0
    %4924 = vmatmul.mubr.bf16.gmra.mrb[0].mxu0 %v4886
    %v4925 = vpop.f32.mrb[0].mxu0
    %v4926 = vadd.f32 0.0, %v4925
    %v4927 = vpop.f32.mrb[0].mxu0
    %v4928 = vpop.f32.mrb[0].mxu0
    %v4929 = vpop.f32.mrb[0].mxu0
    %4930 = vdwg.mxu0
    %4931 = vrot.lane.b32.xlu0 %v4285, 104
    %v4932 = vpop.permute.xlu0 %4931
    %4933 = vrot.lane.b32.xlu0 %v4286, 104
    %v4934 = vpop.permute.xlu0 %4933
    %v4936 = vsel %vm85, %v4932, 0
    %v4939 = vsel %vm85, %v4934, 0
    %4941 = vmatprep.subr.bf16.mxu0 0
    %4942 = vmatpush1.bf16.xpose.msra.mxu0 %v4939
    %4943 = vmatprep.subr.bf16.mxu0 0
    %4944 = vmatpush1.bf16.xpose.msra.mxu0 0
    %4945 = vmatprep.subr.bf16.mxu0 0
    %4946 = vmatpush1.bf16.xpose.msra.mxu0 0
    %4947 = vmatprep.subr.bf16.mxu0 0
    %4948 = vmatpush1.bf16.xpose.msra.mxu0 0
    %4949 = vmatprep.subr.bf16.mxu0 0
    %4950 = vmatpush1.bf16.xpose.msra.mxu0 0
    %4951 = vmatprep.subr.bf16.mxu0 0
    %4952 = vmatpush1.bf16.xpose.msra.mxu0 0
    %4953 = vmatprep.subr.bf16.mxu0 0
    %4954 = vmatpush1.bf16.xpose.msra.mxu0 0
    %4955 = vmatprep.subr.bf16.mxu0 0
    %4956 = vmatpush1.bf16.xpose.msra.mxu0 0
    %4957 = vmatprep.subr.bf16.mxu0 0
    %4958 = vmatpush1.bf16.xpose.msra.mxu0 0
    %4959 = vmatprep.subr.bf16.mxu0 0
    %4960 = vmatpush1.bf16.xpose.msra.mxu0 0
    %4961 = vmatprep.subr.bf16.mxu0 0
    %4962 = vmatpush1.bf16.xpose.msra.mxu0 0
    %4963 = vmatprep.subr.bf16.mxu0 0
    %4964 = vmatpush1.bf16.xpose.msra.mxu0 0
    %4965 = vmatprep.subr.bf16.mxu0 0
    %4966 = vmatpush1.bf16.xpose.msra.mxu0 0
    %4967 = vmatprep.subr.bf16.mxu0 0
    %4968 = vmatpush1.bf16.xpose.msra.mxu0 0
    %4969 = vmatprep.subr.bf16.mxu0 0
    %4970 = vmatpush1.bf16.xpose.msra.mxu0 0
    %4971 = vmatprep.subr.bf16.mxu0 0
    %4972 = vmatpush1.bf16.xpose.msra.mxu0 0
    %4973 = vmatprep.mubr.bf16.mxu0 0
    %4974 = vmatmul.mubr.bf16.gmra.mrb[0].mxu0 %v4936
    %v4975 = vpop.f32.mrb[0].mxu0
    %v4976 = vadd.f32 0.0, %v4975
    %v4977 = vpop.f32.mrb[0].mxu0
    %v4978 = vpop.f32.mrb[0].mxu0
    %v4979 = vpop.f32.mrb[0].mxu0
    %4980 = vdwg.mxu0
    %4981 = vrot.lane.b32.xlu0 %v4287, 104
    %v4982 = vpop.permute.xlu0 %4981
    %v4984 = vsel %vm85, %v4982, 0
    %4986 = vmatprep.subr.bf16.mxu0 0
    %4987 = vmatpush1.bf16.xpose.msra.mxu0 %v4984
    %4988 = vmatprep.subr.bf16.mxu0 0
    %4989 = vmatpush1.bf16.xpose.msra.mxu0 0
    %4990 = vmatprep.subr.bf16.mxu0 0
    %4991 = vmatpush1.bf16.xpose.msra.mxu0 0
    %4992 = vmatprep.subr.bf16.mxu0 0
    %4993 = vmatpush1.bf16.xpose.msra.mxu0 0
    %4994 = vmatprep.subr.bf16.mxu0 0
    %4995 = vmatpush1.bf16.xpose.msra.mxu0 0
    %4996 = vmatprep.subr.bf16.mxu0 0
    %4997 = vmatpush1.bf16.xpose.msra.mxu0 0
    %4998 = vmatprep.subr.bf16.mxu0 0
    %4999 = vmatpush1.bf16.xpose.msra.mxu0 0
    %5000 = vmatprep.subr.bf16.mxu0 0
    %5001 = vmatpush1.bf16.xpose.msra.mxu0 0
    %5002 = vmatprep.subr.bf16.mxu0 0
    %5003 = vmatpush1.bf16.xpose.msra.mxu0 0
    %5004 = vmatprep.subr.bf16.mxu0 0
    %5005 = vmatpush1.bf16.xpose.msra.mxu0 0
    %5006 = vmatprep.subr.bf16.mxu0 0
    %5007 = vmatpush1.bf16.xpose.msra.mxu0 0
    %5008 = vmatprep.subr.bf16.mxu0 0
    %5009 = vmatpush1.bf16.xpose.msra.mxu0 0
    %5010 = vmatprep.subr.bf16.mxu0 0
    %5011 = vmatpush1.bf16.xpose.msra.mxu0 0
    %5012 = vmatprep.subr.bf16.mxu0 0
    %5013 = vmatpush1.bf16.xpose.msra.mxu0 0
    %5014 = vmatprep.subr.bf16.mxu0 0
    %5015 = vmatpush1.bf16.xpose.msra.mxu0 0
    %5016 = vmatprep.subr.bf16.mxu0 0
    %5017 = vmatpush1.bf16.xpose.msra.mxu0 0
    %5018 = vmatprep.mubr.bf16.mxu0 0
    %5019 = vmatmul.mubr.bf16.gmra.mrb[0].mxu0 %v4936
    %v5020 = vpop.f32.mrb[0].mxu0
    %v5021 = vadd.f32 0.0, %v5020
    %v5022 = vpop.f32.mrb[0].mxu0
    %v5023 = vpop.f32.mrb[0].mxu0
    %v5024 = vpop.f32.mrb[0].mxu0
    %5025 = vdwg.mxu0
    %v5026 = vsel %vm4377, %v4976, -inf
    %5027 = vmax.xlane.f32.xlu0 %v5026
    %v5028 = vpop.xlane.xlu0 %5027
    %v5029 = vsel %vm4377, %v5021, -inf
    %5030 = vmax.xlane.f32.xlu0 %v5029
    %v5031 = vpop.xlane.xlu0 %5030
    %v5032 = vsub.f32 %v4976, %v5028
    %v5033 = vsub.f32 %v5021, %v5031
    %v5034 = vmul.f32 %v5032, 1.442695
    %v5035 = vpow.pop %v5034
    %v5036 = vmul.f32 %v5033, 1.442695
    %v5037 = vpow.pop %v5036
    %v5038 = vsel %vm4377, %v5035, 0.0
    %5039 = vadd.xlane.f32.xlu0 %v5038
    %v5040 = vpop.xlane.xlu0 %5039
    %v5041 = vsel %vm4377, %v5037, 0.0
    %5042 = vadd.xlane.f32.xlu0 %v5041
    %v5043 = vpop.xlane.xlu0 %5042
    %v5044 = vrcp.pop %v5040
    %v5045 = vrcp.pop %v5043
    %v5046 = vmul.f32 %v5035, %v5044
    %v5047 = vmul.f32 %v5037, %v5045
    %v5048 = vpack.c.bf16 %v5046, %v5046
    %v5049 = vpack.c.bf16 %v5047, %v5047
    %5050 = vrot.lane.b32.xlu0 %v4286, 72
    %v5051 = vpop.permute.xlu0 %5050
    %v5053 = vsel %vm85, %v5048, 0
    %v5056 = vsel %vm205, %v5051, 0
    %5058 = vmatprep.subr.bf16.mxu0 0
    %5059 = vmatpush1.bf16.msra.mxu0 %v5056
    %5060 = vmatprep.subr.bf16.mxu0 0
    %5061 = vmatpush1.bf16.msra.mxu0 0
    %5062 = vmatprep.subr.bf16.mxu0 0
    %5063 = vmatpush1.bf16.msra.mxu0 0
    %5064 = vmatprep.subr.bf16.mxu0 0
    %5065 = vmatpush1.bf16.msra.mxu0 0
    %5066 = vmatprep.subr.bf16.mxu0 0
    %5067 = vmatpush1.bf16.msra.mxu0 0
    %5068 = vmatprep.subr.bf16.mxu0 0
    %5069 = vmatpush1.bf16.msra.mxu0 0
    %5070 = vmatprep.subr.bf16.mxu0 0
    %5071 = vmatpush1.bf16.msra.mxu0 0
    %5072 = vmatprep.subr.bf16.mxu0 0
    %5073 = vmatpush1.bf16.msra.mxu0 0
    %5074 = vmatprep.subr.bf16.mxu0 0
    %5075 = vmatpush1.bf16.msra.mxu0 0
    %5076 = vmatprep.subr.bf16.mxu0 0
    %5077 = vmatpush1.bf16.msra.mxu0 0
    %5078 = vmatprep.subr.bf16.mxu0 0
    %5079 = vmatpush1.bf16.msra.mxu0 0
    %5080 = vmatprep.subr.bf16.mxu0 0
    %5081 = vmatpush1.bf16.msra.mxu0 0
    %5082 = vmatprep.subr.bf16.mxu0 0
    %5083 = vmatpush1.bf16.msra.mxu0 0
    %5084 = vmatprep.subr.bf16.mxu0 0
    %5085 = vmatpush1.bf16.msra.mxu0 0
    %5086 = vmatprep.subr.bf16.mxu0 0
    %5087 = vmatpush1.bf16.msra.mxu0 0
    %5088 = vmatprep.subr.bf16.mxu0 0
    %5089 = vmatpush1.bf16.msra.mxu0 0
    %5090 = vmatprep.mubr.bf16.mxu0 0
    %5091 = vmatmul.mubr.bf16.gmra.mrb[0].mxu0 %v5053
    %v5092 = vpop.f32.mrb[0].mxu0
    %v5093 = vadd.f32 0.0, %v5092
    %v5094 = vpop.f32.mrb[0].mxu0
    %v5095 = vpop.f32.mrb[0].mxu0
    %v5096 = vpop.f32.mrb[0].mxu0
    %5097 = vdwg.mxu0
    %5098 = vrot.lane.b32.xlu0 %v4287, 72
    %v5099 = vpop.permute.xlu0 %5098
    %v5101 = vsel %vm85, %v5049, 0
    %v5104 = vsel %vm205, %v5099, 0
    %5106 = vmatprep.subr.bf16.mxu0 0
    %5107 = vmatpush1.bf16.msra.mxu0 %v5104
    %5108 = vmatprep.subr.bf16.mxu0 0
    %5109 = vmatpush1.bf16.msra.mxu0 0
    %5110 = vmatprep.subr.bf16.mxu0 0
    %5111 = vmatpush1.bf16.msra.mxu0 0
    %5112 = vmatprep.subr.bf16.mxu0 0
    %5113 = vmatpush1.bf16.msra.mxu0 0
    %5114 = vmatprep.subr.bf16.mxu0 0
    %5115 = vmatpush1.bf16.msra.mxu0 0
    %5116 = vmatprep.subr.bf16.mxu0 0
    %5117 = vmatpush1.bf16.msra.mxu0 0
    %5118 = vmatprep.subr.bf16.mxu0 0
    %5119 = vmatpush1.bf16.msra.mxu0 0
    %5120 = vmatprep.subr.bf16.mxu0 0
    %5121 = vmatpush1.bf16.msra.mxu0 0
    %5122 = vmatprep.subr.bf16.mxu0 0
    %5123 = vmatpush1.bf16.msra.mxu0 0
    %5124 = vmatprep.subr.bf16.mxu0 0
    %5125 = vmatpush1.bf16.msra.mxu0 0
    %5126 = vmatprep.subr.bf16.mxu0 0
    %5127 = vmatpush1.bf16.msra.mxu0 0
    %5128 = vmatprep.subr.bf16.mxu0 0
    %5129 = vmatpush1.bf16.msra.mxu0 0
    %5130 = vmatprep.subr.bf16.mxu0 0
    %5131 = vmatpush1.bf16.msra.mxu0 0
    %5132 = vmatprep.subr.bf16.mxu0 0
    %5133 = vmatpush1.bf16.msra.mxu0 0
    %5134 = vmatprep.subr.bf16.mxu0 0
    %5135 = vmatpush1.bf16.msra.mxu0 0
    %5136 = vmatprep.subr.bf16.mxu0 0
    %5137 = vmatpush1.bf16.msra.mxu0 0
    %5138 = vmatprep.mubr.bf16.mxu0 0
    %5139 = vmatmul.mubr.bf16.gmra.mrb[0].mxu0 %v5101
    %v5140 = vpop.f32.mrb[0].mxu0
    %v5141 = vadd.f32 0.0, %v5140
    %v5142 = vpop.f32.mrb[0].mxu0
    %v5143 = vpop.f32.mrb[0].mxu0
    %v5144 = vpop.f32.mrb[0].mxu0
    %5145 = vdwg.mxu0
    %5148 = vrot.lane.b32.xlu0 %v4663, 8
    %v5149 = vpop.permute.xlu0 %5148
    %5150 = vrot.lane.b32.xlu0 %v4711, 8
    %v5151 = vpop.permute.xlu0 %5150
    %5156 = vrot.lane.b32.xlu0 %v4878, 16
    %v5157 = vpop.permute.xlu0 %5156
    %5158 = vrot.lane.b32.xlu0 %v4926, 16
    %v5159 = vpop.permute.xlu0 %5158
    %5164 = vrot.lane.b32.xlu0 %v5093, 24
    %v5165 = vpop.permute.xlu0 %5164
    %5166 = vrot.lane.b32.xlu0 %v5141, 24
    %v5167 = vpop.permute.xlu0 %5166
    %v5170 = vsel %vm85, %v4446, %v5149
    %v5171 = vsel %vm85, %v4495, %v5151
    %v5172 = vsel %vm970, %v5170, %v5157
    %v5173 = vsel %vm970, %v5171, %v5159
    %v5174 = vsel %vm973, %v5172, %v5165
    %v5175 = vsel %vm973, %v5173, %v5167
    %v5176 = vadd.f32 %v4284, %v5174
    %v5177 = vadd.f32 %v4284, %v5175
    %v5180 = vcombine.low %v5176, %v5177
    %v5182 = vunpack.c.l.s4 1983009808
    %v5183 = vunpack.c.0.s8 %v5182
    %v5184 = vlaneseq
    %v5185 = vshrl.u32 %v5184, 7
    %v5186 = vsub.s32 %v5183, %v5185
    %v5187 = vrot.slane %v5180, %v5186
    %v5189 = vpack.c.bf16 %v5187, %v5187
    %v5190 = vld [vmem:[%s1 + $0x84] sm:$0xf]
    %v5191 = vld [vmem:[%s1 + $0x88] sm:$0xf]
    %v5192 = vld [vmem:[%s1 + $0x8c] sm:$0xf]
    %v5193 = vld [vmem:[%s1 + $0x90] sm:$0xf]
    %v5194 = vld [vmem:[%s2 + $0x9] sm:$0x1]
    %v5195 = vlaneseq
    %v5196 = vshrl.u32 %v5195, 7
    %v5197 = vsub.s32 0, %v5196
    %v5198 = vrot.slane %v5194, %v5197
    %v5203 = vunpack.c.l.b16 %v5190
    %v5204 = vunpack.c.l.b16 %v5191
    %v5205 = vunpack.c.l.b16 %v5192
    %v5206 = vunpack.c.l.b16 %v5193
    %v5207 = vpack.c.b16 %v5204, %v5203
    %v5208 = vpack.c.b16 %v5206, %v5205
    %v5212 = vsel %vm1000, %v5189, 0
    %5214 = vmatprep.subr.bf16.mxu0 0
    %5215 = vmatpush1.bf16.msra.mxu0 %v5207
    %5216 = vmatprep.subr.bf16.mxu0 0
    %5217 = vmatpush1.bf16.msra.mxu0 %v5208
    %5218 = vmatprep.subr.bf16.mxu0 0
    %5219 = vmatpush1.bf16.msra.mxu0 0
    %5220 = vmatprep.subr.bf16.mxu0 0
    %5221 = vmatpush1.bf16.msra.mxu0 0
    %5222 = vmatprep.subr.bf16.mxu0 0
    %5223 = vmatpush1.bf16.msra.mxu0 0
    %5224 = vmatprep.subr.bf16.mxu0 0
    %5225 = vmatpush1.bf16.msra.mxu0 0
    %5226 = vmatprep.subr.bf16.mxu0 0
    %5227 = vmatpush1.bf16.msra.mxu0 0
    %5228 = vmatprep.subr.bf16.mxu0 0
    %5229 = vmatpush1.bf16.msra.mxu0 0
    %5230 = vmatprep.subr.bf16.mxu0 0
    %5231 = vmatpush1.bf16.msra.mxu0 0
    %5232 = vmatprep.subr.bf16.mxu0 0
    %5233 = vmatpush1.bf16.msra.mxu0 0
    %5234 = vmatprep.subr.bf16.mxu0 0
    %5235 = vmatpush1.bf16.msra.mxu0 0
    %5236 = vmatprep.subr.bf16.mxu0 0
    %5237 = vmatpush1.bf16.msra.mxu0 0
    %5238 = vmatprep.subr.bf16.mxu0 0
    %5239 = vmatpush1.bf16.msra.mxu0 0
    %5240 = vmatprep.subr.bf16.mxu0 0
    %5241 = vmatpush1.bf16.msra.mxu0 0
    %5242 = vmatprep.subr.bf16.mxu0 0
    %5243 = vmatpush1.bf16.msra.mxu0 0
    %5244 = vmatprep.subr.bf16.mxu0 0
    %5245 = vmatpush1.bf16.msra.mxu0 0
    %5246 = vmatprep.mubr.bf16.mxu0 0
    %5247 = vmatmul.mubr.bf16.gmra.mrb[0].mxu0 %v5212
    %v5248 = vpop.f32.mrb[0].mxu0
    %v5249 = vadd.f32 %v5198, %v5248
    %v5250 = vpop.f32.mrb[0].mxu0
    %v5251 = vpop.f32.mrb[0].mxu0
    %v5252 = vpop.f32.mrb[0].mxu0
    %5253 = vdwg.mxu0
    %v5254 = vmax.f32 %v5249, 0.0
    %v5257 = vunpack.c.l.s4 1983009808
    %v5258 = vunpack.c.0.s8 %v5257
    %v5259 = vlaneseq
    %v5260 = vshrl.u32 %v5259, 7
    %v5261 = vsub.s32 %v5258, %v5260
    %v5262 = vrot.slane %v5254, %v5261
    %v5263 = vcombine.high %v5262, %v5262
    %v5266 = vadd.f32 %v5176, %v5262
    %v5267 = vadd.f32 %v5177, %v5263
    %v5270 = vcombine.low %v5266, %v5267
    %v5272 = vunpack.c.l.s4 1983009808
    %v5273 = vunpack.c.0.s8 %v5272
    %v5274 = vlaneseq
    %v5275 = vshrl.u32 %v5274, 7
    %v5276 = vsub.s32 %v5273, %v5275
    %v5277 = vrot.slane %v5270, %v5276
    %v5279 = vpack.c.bf16 %v5277, %v5277
    %v5280 = vld [vmem:[%s1 + $0x94] sm:$0xf]
    %v5281 = vld [vmem:[%s1 + $0x98] sm:$0xf]
    %v5282 = vld [vmem:[%s1 + $0x9c] sm:$0xf]
    %v5283 = vld [vmem:[%s1 + $0xa0] sm:$0xf]
    %v5284 = vld [vmem:[%s2 + $0xa] sm:$0x1]
    %v5285 = vlaneseq
    %v5286 = vshrl.u32 %v5285, 7
    %v5287 = vsub.s32 0, %v5286
    %v5288 = vrot.slane %v5284, %v5287
    %v5293 = vunpack.c.l.b16 %v5280
    %v5294 = vunpack.c.l.b16 %v5281
    %v5295 = vunpack.c.l.b16 %v5282
    %v5296 = vunpack.c.l.b16 %v5283
    %v5297 = vpack.c.b16 %v5294, %v5293
    %v5298 = vpack.c.b16 %v5296, %v5295
    %v5302 = vsel %vm1000, %v5279, 0
    %5304 = vmatprep.subr.bf16.mxu0 0
    %5305 = vmatpush1.bf16.msra.mxu0 %v5297
    %5306 = vmatprep.subr.bf16.mxu0 0
    %5307 = vmatpush1.bf16.msra.mxu0 %v5298
    %5308 = vmatprep.subr.bf16.mxu0 0
    %5309 = vmatpush1.bf16.msra.mxu0 0
    %5310 = vmatprep.subr.bf16.mxu0 0
    %5311 = vmatpush1.bf16.msra.mxu0 0
    %5312 = vmatprep.subr.bf16.mxu0 0
    %5313 = vmatpush1.bf16.msra.mxu0 0
    %5314 = vmatprep.subr.bf16.mxu0 0
    %5315 = vmatpush1.bf16.msra.mxu0 0
    %5316 = vmatprep.subr.bf16.mxu0 0
    %5317 = vmatpush1.bf16.msra.mxu0 0
    %5318 = vmatprep.subr.bf16.mxu0 0
    %5319 = vmatpush1.bf16.msra.mxu0 0
    %5320 = vmatprep.subr.bf16.mxu0 0
    %5321 = vmatpush1.bf16.msra.mxu0 0
    %5322 = vmatprep.subr.bf16.mxu0 0
    %5323 = vmatpush1.bf16.msra.mxu0 0
    %5324 = vmatprep.subr.bf16.mxu0 0
    %5325 = vmatpush1.bf16.msra.mxu0 0
    %5326 = vmatprep.subr.bf16.mxu0 0
    %5327 = vmatpush1.bf16.msra.mxu0 0
    %5328 = vmatprep.subr.bf16.mxu0 0
    %5329 = vmatpush1.bf16.msra.mxu0 0
    %5330 = vmatprep.subr.bf16.mxu0 0
    %5331 = vmatpush1.bf16.msra.mxu0 0
    %5332 = vmatprep.subr.bf16.mxu0 0
    %5333 = vmatpush1.bf16.msra.mxu0 0
    %5334 = vmatprep.subr.bf16.mxu0 0
    %5335 = vmatpush1.bf16.msra.mxu0 0
    %5336 = vmatprep.mubr.bf16.mxu0 0
    %5337 = vmatmul.mubr.bf16.gmra.mrb[0].mxu0 %v5302
    %v5338 = vpop.f32.mrb[0].mxu0
    %v5339 = vadd.f32 %v5288, %v5338
    %v5340 = vpop.f32.mrb[0].mxu0
    %v5341 = vpop.f32.mrb[0].mxu0
    %v5342 = vpop.f32.mrb[0].mxu0
    %5343 = vdwg.mxu0
    %v5346 = vunpack.c.l.s4 1983009808
    %v5347 = vunpack.c.0.s8 %v5346
    %v5348 = vlaneseq
    %v5349 = vshrl.u32 %v5348, 7
    %v5350 = vsub.s32 %v5347, %v5349
    %v5351 = vrot.slane %v5339, %v5350
    %v5352 = vcombine.high %v5351, %v5351
    %v5355 = vpack.c.bf16 %v5351, %v5351
    %v5356 = vpack.c.bf16 %v5352, %v5352
    %5358 = vrot.lane.b32.xlu0 %v5355, 96
    %v5359 = vpop.permute.xlu0 %5358
    %v5361 = vsel %vm85, %v5355, 0
    %v5364 = vsel %vm85, %v5359, 0
    %5366 = vmatprep.subr.bf16.mxu0 0
    %5367 = vmatpush1.bf16.xpose.msra.mxu0 %v5364
    %5368 = vmatprep.subr.bf16.mxu0 0
    %5369 = vmatpush1.bf16.xpose.msra.mxu0 0
    %5370 = vmatprep.subr.bf16.mxu0 0
    %5371 = vmatpush1.bf16.xpose.msra.mxu0 0
    %5372 = vmatprep.subr.bf16.mxu0 0
    %5373 = vmatpush1.bf16.xpose.msra.mxu0 0
    %5374 = vmatprep.subr.bf16.mxu0 0
    %5375 = vmatpush1.bf16.xpose.msra.mxu0 0
    %5376 = vmatprep.subr.bf16.mxu0 0
    %5377 = vmatpush1.bf16.xpose.msra.mxu0 0
    %5378 = vmatprep.subr.bf16.mxu0 0
    %5379 = vmatpush1.bf16.xpose.msra.mxu0 0
    %5380 = vmatprep.subr.bf16.mxu0 0
    %5381 = vmatpush1.bf16.xpose.msra.mxu0 0
    %5382 = vmatprep.subr.bf16.mxu0 0
    %5383 = vmatpush1.bf16.xpose.msra.mxu0 0
    %5384 = vmatprep.subr.bf16.mxu0 0
    %5385 = vmatpush1.bf16.xpose.msra.mxu0 0
    %5386 = vmatprep.subr.bf16.mxu0 0
    %5387 = vmatpush1.bf16.xpose.msra.mxu0 0
    %5388 = vmatprep.subr.bf16.mxu0 0
    %5389 = vmatpush1.bf16.xpose.msra.mxu0 0
    %5390 = vmatprep.subr.bf16.mxu0 0
    %5391 = vmatpush1.bf16.xpose.msra.mxu0 0
    %5392 = vmatprep.subr.bf16.mxu0 0
    %5393 = vmatpush1.bf16.xpose.msra.mxu0 0
    %5394 = vmatprep.subr.bf16.mxu0 0
    %5395 = vmatpush1.bf16.xpose.msra.mxu0 0
    %5396 = vmatprep.subr.bf16.mxu0 0
    %5397 = vmatpush1.bf16.xpose.msra.mxu0 0
    %5398 = vmatprep.mubr.bf16.mxu0 0
    %5399 = vmatmul.mubr.bf16.gmra.mrb[0].mxu0 %v5361
    %v5400 = vpop.f32.mrb[0].mxu0
    %v5401 = vadd.f32 0.0, %v5400
    %v5402 = vpop.f32.mrb[0].mxu0
    %v5403 = vpop.f32.mrb[0].mxu0
    %v5404 = vpop.f32.mrb[0].mxu0
    %5405 = vdwg.mxu0
    %5407 = vrot.lane.b32.xlu0 %v5356, 96
    %v5408 = vpop.permute.xlu0 %5407
    %v5410 = vsel %vm85, %v5356, 0
    %v5413 = vsel %vm85, %v5408, 0
    %5415 = vmatprep.subr.bf16.mxu0 0
    %5416 = vmatpush1.bf16.xpose.msra.mxu0 %v5413
    %5417 = vmatprep.subr.bf16.mxu0 0
    %5418 = vmatpush1.bf16.xpose.msra.mxu0 0
    %5419 = vmatprep.subr.bf16.mxu0 0
    %5420 = vmatpush1.bf16.xpose.msra.mxu0 0
    %5421 = vmatprep.subr.bf16.mxu0 0
    %5422 = vmatpush1.bf16.xpose.msra.mxu0 0
    %5423 = vmatprep.subr.bf16.mxu0 0
    %5424 = vmatpush1.bf16.xpose.msra.mxu0 0
    %5425 = vmatprep.subr.bf16.mxu0 0
    %5426 = vmatpush1.bf16.xpose.msra.mxu0 0
    %5427 = vmatprep.subr.bf16.mxu0 0
    %5428 = vmatpush1.bf16.xpose.msra.mxu0 0
    %5429 = vmatprep.subr.bf16.mxu0 0
    %5430 = vmatpush1.bf16.xpose.msra.mxu0 0
    %5431 = vmatprep.subr.bf16.mxu0 0
    %5432 = vmatpush1.bf16.xpose.msra.mxu0 0
    %5433 = vmatprep.subr.bf16.mxu0 0
    %5434 = vmatpush1.bf16.xpose.msra.mxu0 0
    %5435 = vmatprep.subr.bf16.mxu0 0
    %5436 = vmatpush1.bf16.xpose.msra.mxu0 0
    %5437 = vmatprep.subr.bf16.mxu0 0
    %5438 = vmatpush1.bf16.xpose.msra.mxu0 0
    %5439 = vmatprep.subr.bf16.mxu0 0
    %5440 = vmatpush1.bf16.xpose.msra.mxu0 0
    %5441 = vmatprep.subr.bf16.mxu0 0
    %5442 = vmatpush1.bf16.xpose.msra.mxu0 0
    %5443 = vmatprep.subr.bf16.mxu0 0
    %5444 = vmatpush1.bf16.xpose.msra.mxu0 0
    %5445 = vmatprep.subr.bf16.mxu0 0
    %5446 = vmatpush1.bf16.xpose.msra.mxu0 0
    %5447 = vmatprep.mubr.bf16.mxu0 0
    %5448 = vmatmul.mubr.bf16.gmra.mrb[0].mxu0 %v5410
    %v5449 = vpop.f32.mrb[0].mxu0
    %v5450 = vadd.f32 0.0, %v5449
    %v5451 = vpop.f32.mrb[0].mxu0
    %v5452 = vpop.f32.mrb[0].mxu0
    %v5453 = vpop.f32.mrb[0].mxu0
    %5454 = vdwg.mxu0
    %vm5455 = vcmask 9216
    %v5456 = vsel %vm5455, %v5401, -inf
    %5457 = vmax.xlane.f32.xlu0 %v5456
    %v5458 = vpop.xlane.xlu0 %5457
    %v5459 = vsel %vm5455, %v5450, -inf
    %5460 = vmax.xlane.f32.xlu0 %v5459
    %v5461 = vpop.xlane.xlu0 %5460
    %v5462 = vsub.f32 %v5401, %v5458
    %v5463 = vsub.f32 %v5450, %v5461
    %v5464 = vmul.f32 %v5462, 1.442695
    %v5465 = vpow.pop %v5464
    %v5466 = vmul.f32 %v5463, 1.442695
    %v5467 = vpow.pop %v5466
    %v5468 = vsel %vm5455, %v5465, 0.0
    %5469 = vadd.xlane.f32.xlu0 %v5468
    %v5470 = vpop.xlane.xlu0 %5469
    %v5471 = vsel %vm5455, %v5467, 0.0
    %5472 = vadd.xlane.f32.xlu0 %v5471
    %v5473 = vpop.xlane.xlu0 %5472
    %v5474 = vrcp.pop %v5470
    %v5475 = vrcp.pop %v5473
    %v5476 = vmul.f32 %v5465, %v5474
    %v5477 = vmul.f32 %v5467, %v5475
    %v5478 = vpack.c.bf16 %v5476, %v5476
    %v5479 = vpack.c.bf16 %v5477, %v5477
    %5480 = vrot.lane.b32.xlu0 %v5355, 64
    %v5481 = vpop.permute.xlu0 %5480
    %vm5482 = vcmask 15360
    %v5484 = vsel %vm5482, %v5478, 0
    %vm5486 = vcmask 1040384
    %v5488 = vsel %vm5486, %v5481, 0
    %5490 = vmatprep.subr.bf16.mxu0 0
    %5491 = vmatpush1.bf16.msra.mxu0 %v5488
    %5492 = vmatprep.subr.bf16.mxu0 0
    %5493 = vmatpush1.bf16.msra.mxu0 0
    %5494 = vmatprep.subr.bf16.mxu0 0
    %5495 = vmatpush1.bf16.msra.mxu0 0
    %5496 = vmatprep.subr.bf16.mxu0 0
    %5497 = vmatpush1.bf16.msra.mxu0 0
    %5498 = vmatprep.subr.bf16.mxu0 0
    %5499 = vmatpush1.bf16.msra.mxu0 0
    %5500 = vmatprep.subr.bf16.mxu0 0
    %5501 = vmatpush1.bf16.msra.mxu0 0
    %5502 = vmatprep.subr.bf16.mxu0 0
    %5503 = vmatpush1.bf16.msra.mxu0 0
    %5504 = vmatprep.subr.bf16.mxu0 0
    %5505 = vmatpush1.bf16.msra.mxu0 0
    %5506 = vmatprep.subr.bf16.mxu0 0
    %5507 = vmatpush1.bf16.msra.mxu0 0
    %5508 = vmatprep.subr.bf16.mxu0 0
    %5509 = vmatpush1.bf16.msra.mxu0 0
    %5510 = vmatprep.subr.bf16.mxu0 0
    %5511 = vmatpush1.bf16.msra.mxu0 0
    %5512 = vmatprep.subr.bf16.mxu0 0
    %5513 = vmatpush1.bf16.msra.mxu0 0
    %5514 = vmatprep.subr.bf16.mxu0 0
    %5515 = vmatpush1.bf16.msra.mxu0 0
    %5516 = vmatprep.subr.bf16.mxu0 0
    %5517 = vmatpush1.bf16.msra.mxu0 0
    %5518 = vmatprep.subr.bf16.mxu0 0
    %5519 = vmatpush1.bf16.msra.mxu0 0
    %5520 = vmatprep.subr.bf16.mxu0 0
    %5521 = vmatpush1.bf16.msra.mxu0 0
    %5522 = vmatprep.mubr.bf16.mxu0 0
    %5523 = vmatmul.mubr.bf16.gmra.mrb[0].mxu0 %v5484
    %v5524 = vpop.f32.mrb[0].mxu0
    %v5525 = vadd.f32 0.0, %v5524
    %v5526 = vpop.f32.mrb[0].mxu0
    %v5527 = vpop.f32.mrb[0].mxu0
    %v5528 = vpop.f32.mrb[0].mxu0
    %5529 = vdwg.mxu0
    %5530 = vrot.lane.b32.xlu0 %v5356, 64
    %v5531 = vpop.permute.xlu0 %5530
    %v5533 = vsel %vm5482, %v5479, 0
    %v5536 = vsel %vm5486, %v5531, 0
    %5538 = vmatprep.subr.bf16.mxu0 0
    %5539 = vmatpush1.bf16.msra.mxu0 %v5536
    %5540 = vmatprep.subr.bf16.mxu0 0
    %5541 = vmatpush1.bf16.msra.mxu0 0
    %5542 = vmatprep.subr.bf16.mxu0 0
    %5543 = vmatpush1.bf16.msra.mxu0 0
    %5544 = vmatprep.subr.bf16.mxu0 0
    %5545 = vmatpush1.bf16.msra.mxu0 0
    %5546 = vmatprep.subr.bf16.mxu0 0
    %5547 = vmatpush1.bf16.msra.mxu0 0
    %5548 = vmatprep.subr.bf16.mxu0 0
    %5549 = vmatpush1.bf16.msra.mxu0 0
    %5550 = vmatprep.subr.bf16.mxu0 0
    %5551 = vmatpush1.bf16.msra.mxu0 0
    %5552 = vmatprep.subr.bf16.mxu0 0
    %5553 = vmatpush1.bf16.msra.mxu0 0
    %5554 = vmatprep.subr.bf16.mxu0 0
    %5555 = vmatpush1.bf16.msra.mxu0 0
    %5556 = vmatprep.subr.bf16.mxu0 0
    %5557 = vmatpush1.bf16.msra.mxu0 0
    %5558 = vmatprep.subr.bf16.mxu0 0
    %5559 = vmatpush1.bf16.msra.mxu0 0
    %5560 = vmatprep.subr.bf16.mxu0 0
    %5561 = vmatpush1.bf16.msra.mxu0 0
    %5562 = vmatprep.subr.bf16.mxu0 0
    %5563 = vmatpush1.bf16.msra.mxu0 0
    %5564 = vmatprep.subr.bf16.mxu0 0
    %5565 = vmatpush1.bf16.msra.mxu0 0
    %5566 = vmatprep.subr.bf16.mxu0 0
    %5567 = vmatpush1.bf16.msra.mxu0 0
    %5568 = vmatprep.subr.bf16.mxu0 0
    %5569 = vmatpush1.bf16.msra.mxu0 0
    %5570 = vmatprep.mubr.bf16.mxu0 0
    %5571 = vmatmul.mubr.bf16.gmra.mrb[0].mxu0 %v5533
    %v5572 = vpop.f32.mrb[0].mxu0
    %v5573 = vadd.f32 0.0, %v5572
    %v5574 = vpop.f32.mrb[0].mxu0
    %v5575 = vpop.f32.mrb[0].mxu0
    %v5576 = vpop.f32.mrb[0].mxu0
    %5577 = vdwg.mxu0
    %5578 = vrot.lane.b32.xlu0 %v5355, 120
    %v5579 = vpop.permute.xlu0 %5578
    %5580 = vrot.lane.b32.xlu0 %v5355, 88
    %v5581 = vpop.permute.xlu0 %5580
    %v5583 = vsel %vm85, %v5579, 0
    %v5586 = vsel %vm85, %v5581, 0
    %5588 = vmatprep.subr.bf16.mxu0 0
    %5589 = vmatpush1.bf16.xpose.msra.mxu0 %v5586
    %5590 = vmatprep.subr.bf16.mxu0 0
    %5591 = vmatpush1.bf16.xpose.msra.mxu0 0
    %5592 = vmatprep.subr.bf16.mxu0 0
    %5593 = vmatpush1.bf16.xpose.msra.mxu0 0
    %5594 = vmatprep.subr.bf16.mxu0 0
    %5595 = vmatpush1.bf16.xpose.msra.mxu0 0
    %5596 = vmatprep.subr.bf16.mxu0 0
    %5597 = vmatpush1.bf16.xpose.msra.mxu0 0
    %5598 = vmatprep.subr.bf16.mxu0 0
    %5599 = vmatpush1.bf16.xpose.msra.mxu0 0
    %5600 = vmatprep.subr.bf16.mxu0 0
    %5601 = vmatpush1.bf16.xpose.msra.mxu0 0
    %5602 = vmatprep.subr.bf16.mxu0 0
    %5603 = vmatpush1.bf16.xpose.msra.mxu0 0
    %5604 = vmatprep.subr.bf16.mxu0 0
    %5605 = vmatpush1.bf16.xpose.msra.mxu0 0
    %5606 = vmatprep.subr.bf16.mxu0 0
    %5607 = vmatpush1.bf16.xpose.msra.mxu0 0
    %5608 = vmatprep.subr.bf16.mxu0 0
    %5609 = vmatpush1.bf16.xpose.msra.mxu0 0
    %5610 = vmatprep.subr.bf16.mxu0 0
    %5611 = vmatpush1.bf16.xpose.msra.mxu0 0
    %5612 = vmatprep.subr.bf16.mxu0 0
    %5613 = vmatpush1.bf16.xpose.msra.mxu0 0
    %5614 = vmatprep.subr.bf16.mxu0 0
    %5615 = vmatpush1.bf16.xpose.msra.mxu0 0
    %5616 = vmatprep.subr.bf16.mxu0 0
    %5617 = vmatpush1.bf16.xpose.msra.mxu0 0
    %5618 = vmatprep.subr.bf16.mxu0 0
    %5619 = vmatpush1.bf16.xpose.msra.mxu0 0
    %5620 = vmatprep.mubr.bf16.mxu0 0
    %5621 = vmatmul.mubr.bf16.gmra.mrb[0].mxu0 %v5583
    %v5622 = vpop.f32.mrb[0].mxu0
    %v5623 = vadd.f32 0.0, %v5622
    %v5624 = vpop.f32.mrb[0].mxu0
    %v5625 = vpop.f32.mrb[0].mxu0
    %v5626 = vpop.f32.mrb[0].mxu0
    %5627 = vdwg.mxu0
    %5628 = vrot.lane.b32.xlu0 %v5356, 120
    %v5629 = vpop.permute.xlu0 %5628
    %5630 = vrot.lane.b32.xlu0 %v5356, 88
    %v5631 = vpop.permute.xlu0 %5630
    %v5633 = vsel %vm85, %v5629, 0
    %v5636 = vsel %vm85, %v5631, 0
    %5638 = vmatprep.subr.bf16.mxu0 0
    %5639 = vmatpush1.bf16.xpose.msra.mxu0 %v5636
    %5640 = vmatprep.subr.bf16.mxu0 0
    %5641 = vmatpush1.bf16.xpose.msra.mxu0 0
    %5642 = vmatprep.subr.bf16.mxu0 0
    %5643 = vmatpush1.bf16.xpose.msra.mxu0 0
    %5644 = vmatprep.subr.bf16.mxu0 0
    %5645 = vmatpush1.bf16.xpose.msra.mxu0 0
    %5646 = vmatprep.subr.bf16.mxu0 0
    %5647 = vmatpush1.bf16.xpose.msra.mxu0 0
    %5648 = vmatprep.subr.bf16.mxu0 0
    %5649 = vmatpush1.bf16.xpose.msra.mxu0 0
    %5650 = vmatprep.subr.bf16.mxu0 0
    %5651 = vmatpush1.bf16.xpose.msra.mxu0 0
    %5652 = vmatprep.subr.bf16.mxu0 0
    %5653 = vmatpush1.bf16.xpose.msra.mxu0 0
    %5654 = vmatprep.subr.bf16.mxu0 0
    %5655 = vmatpush1.bf16.xpose.msra.mxu0 0
    %5656 = vmatprep.subr.bf16.mxu0 0
    %5657 = vmatpush1.bf16.xpose.msra.mxu0 0
    %5658 = vmatprep.subr.bf16.mxu0 0
    %5659 = vmatpush1.bf16.xpose.msra.mxu0 0
    %5660 = vmatprep.subr.bf16.mxu0 0
    %5661 = vmatpush1.bf16.xpose.msra.mxu0 0
    %5662 = vmatprep.subr.bf16.mxu0 0
    %5663 = vmatpush1.bf16.xpose.msra.mxu0 0
    %5664 = vmatprep.subr.bf16.mxu0 0
    %5665 = vmatpush1.bf16.xpose.msra.mxu0 0
    %5666 = vmatprep.subr.bf16.mxu0 0
    %5667 = vmatpush1.bf16.xpose.msra.mxu0 0
    %5668 = vmatprep.subr.bf16.mxu0 0
    %5669 = vmatpush1.bf16.xpose.msra.mxu0 0
    %5670 = vmatprep.mubr.bf16.mxu0 0
    %5671 = vmatmul.mubr.bf16.gmra.mrb[0].mxu0 %v5633
    %v5672 = vpop.f32.mrb[0].mxu0
    %v5673 = vadd.f32 0.0, %v5672
    %v5674 = vpop.f32.mrb[0].mxu0
    %v5675 = vpop.f32.mrb[0].mxu0
    %v5676 = vpop.f32.mrb[0].mxu0
    %5677 = vdwg.mxu0
    %v5678 = vsel %vm5455, %v5623, -inf
    %5679 = vmax.xlane.f32.xlu0 %v5678
    %v5680 = vpop.xlane.xlu0 %5679
    %v5681 = vsel %vm5455, %v5673, -inf
    %5682 = vmax.xlane.f32.xlu0 %v5681
    %v5683 = vpop.xlane.xlu0 %5682
    %v5684 = vsub.f32 %v5623, %v5680
    %v5685 = vsub.f32 %v5673, %v5683
    %v5686 = vmul.f32 %v5684, 1.442695
    %v5687 = vpow.pop %v5686
    %v5688 = vmul.f32 %v5685, 1.442695
    %v5689 = vpow.pop %v5688
    %v5690 = vsel %vm5455, %v5687, 0.0
    %5691 = vadd.xlane.f32.xlu0 %v5690
    %v5692 = vpop.xlane.xlu0 %5691
    %v5693 = vsel %vm5455, %v5689, 0.0
    %5694 = vadd.xlane.f32.xlu0 %v5693
    %v5695 = vpop.xlane.xlu0 %5694
    %v5696 = vrcp.pop %v5692
    %v5697 = vrcp.pop %v5695
    %v5698 = vmul.f32 %v5687, %v5696
    %v5699 = vmul.f32 %v5689, %v5697
    %v5700 = vpack.c.bf16 %v5698, %v5698
    %v5701 = vpack.c.bf16 %v5699, %v5699
    %5702 = vrot.lane.b32.xlu0 %v5355, 56
    %v5703 = vpop.permute.xlu0 %5702
    %v5705 = vsel %vm5482, %v5700, 0
    %v5708 = vsel %vm5486, %v5703, 0
    %5710 = vmatprep.subr.bf16.mxu0 0
    %5711 = vmatpush1.bf16.msra.mxu0 %v5708
    %5712 = vmatprep.subr.bf16.mxu0 0
    %5713 = vmatpush1.bf16.msra.mxu0 0
    %5714 = vmatprep.subr.bf16.mxu0 0
    %5715 = vmatpush1.bf16.msra.mxu0 0
    %5716 = vmatprep.subr.bf16.mxu0 0
    %5717 = vmatpush1.bf16.msra.mxu0 0
    %5718 = vmatprep.subr.bf16.mxu0 0
    %5719 = vmatpush1.bf16.msra.mxu0 0
    %5720 = vmatprep.subr.bf16.mxu0 0
    %5721 = vmatpush1.bf16.msra.mxu0 0
    %5722 = vmatprep.subr.bf16.mxu0 0
    %5723 = vmatpush1.bf16.msra.mxu0 0
    %5724 = vmatprep.subr.bf16.mxu0 0
    %5725 = vmatpush1.bf16.msra.mxu0 0
    %5726 = vmatprep.subr.bf16.mxu0 0
    %5727 = vmatpush1.bf16.msra.mxu0 0
    %5728 = vmatprep.subr.bf16.mxu0 0
    %5729 = vmatpush1.bf16.msra.mxu0 0
    %5730 = vmatprep.subr.bf16.mxu0 0
    %5731 = vmatpush1.bf16.msra.mxu0 0
    %5732 = vmatprep.subr.bf16.mxu0 0
    %5733 = vmatpush1.bf16.msra.mxu0 0
    %5734 = vmatprep.subr.bf16.mxu0 0
    %5735 = vmatpush1.bf16.msra.mxu0 0
    %5736 = vmatprep.subr.bf16.mxu0 0
    %5737 = vmatpush1.bf16.msra.mxu0 0
    %5738 = vmatprep.subr.bf16.mxu0 0
    %5739 = vmatpush1.bf16.msra.mxu0 0
    %5740 = vmatprep.subr.bf16.mxu0 0
    %5741 = vmatpush1.bf16.msra.mxu0 0
    %5742 = vmatprep.mubr.bf16.mxu0 0
    %5743 = vmatmul.mubr.bf16.gmra.mrb[0].mxu0 %v5705
    %v5744 = vpop.f32.mrb[0].mxu0
    %v5745 = vadd.f32 0.0, %v5744
    %v5746 = vpop.f32.mrb[0].mxu0
    %v5747 = vpop.f32.mrb[0].mxu0
    %v5748 = vpop.f32.mrb[0].mxu0
    %5749 = vdwg.mxu0
    %5750 = vrot.lane.b32.xlu0 %v5356, 56
    %v5751 = vpop.permute.xlu0 %5750
    %v5753 = vsel %vm5482, %v5701, 0
    %v5756 = vsel %vm5486, %v5751, 0
    %5758 = vmatprep.subr.bf16.mxu0 0
    %5759 = vmatpush1.bf16.msra.mxu0 %v5756
    %5760 = vmatprep.subr.bf16.mxu0 0
    %5761 = vmatpush1.bf16.msra.mxu0 0
    %5762 = vmatprep.subr.bf16.mxu0 0
    %5763 = vmatpush1.bf16.msra.mxu0 0
    %5764 = vmatprep.subr.bf16.mxu0 0
    %5765 = vmatpush1.bf16.msra.mxu0 0
    %5766 = vmatprep.subr.bf16.mxu0 0
    %5767 = vmatpush1.bf16.msra.mxu0 0
    %5768 = vmatprep.subr.bf16.mxu0 0
    %5769 = vmatpush1.bf16.msra.mxu0 0
    %5770 = vmatprep.subr.bf16.mxu0 0
    %5771 = vmatpush1.bf16.msra.mxu0 0
    %5772 = vmatprep.subr.bf16.mxu0 0
    %5773 = vmatpush1.bf16.msra.mxu0 0
    %5774 = vmatprep.subr.bf16.mxu0 0
    %5775 = vmatpush1.bf16.msra.mxu0 0
    %5776 = vmatprep.subr.bf16.mxu0 0
    %5777 = vmatpush1.bf16.msra.mxu0 0
    %5778 = vmatprep.subr.bf16.mxu0 0
    %5779 = vmatpush1.bf16.msra.mxu0 0
    %5780 = vmatprep.subr.bf16.mxu0 0
    %5781 = vmatpush1.bf16.msra.mxu0 0
    %5782 = vmatprep.subr.bf16.mxu0 0
    %5783 = vmatpush1.bf16.msra.mxu0 0
    %5784 = vmatprep.subr.bf16.mxu0 0
    %5785 = vmatpush1.bf16.msra.mxu0 0
    %5786 = vmatprep.subr.bf16.mxu0 0
    %5787 = vmatpush1.bf16.msra.mxu0 0
    %5788 = vmatprep.subr.bf16.mxu0 0
    %5789 = vmatpush1.bf16.msra.mxu0 0
    %5790 = vmatprep.mubr.bf16.mxu0 0
    %5791 = vmatmul.mubr.bf16.gmra.mrb[0].mxu0 %v5753
    %v5792 = vpop.f32.mrb[0].mxu0
    %v5793 = vadd.f32 0.0, %v5792
    %v5794 = vpop.f32.mrb[0].mxu0
    %v5795 = vpop.f32.mrb[0].mxu0
    %v5796 = vpop.f32.mrb[0].mxu0
    %5797 = vdwg.mxu0
    %5798 = vrot.lane.b32.xlu0 %v5355, 112
    %v5799 = vpop.permute.xlu0 %5798
    %5800 = vrot.lane.b32.xlu0 %v5355, 80
    %v5801 = vpop.permute.xlu0 %5800
    %v5803 = vsel %vm85, %v5799, 0
    %v5806 = vsel %vm85, %v5801, 0
    %5808 = vmatprep.subr.bf16.mxu0 0
    %5809 = vmatpush1.bf16.xpose.msra.mxu0 %v5806
    %5810 = vmatprep.subr.bf16.mxu0 0
    %5811 = vmatpush1.bf16.xpose.msra.mxu0 0
    %5812 = vmatprep.subr.bf16.mxu0 0
    %5813 = vmatpush1.bf16.xpose.msra.mxu0 0
    %5814 = vmatprep.subr.bf16.mxu0 0
    %5815 = vmatpush1.bf16.xpose.msra.mxu0 0
    %5816 = vmatprep.subr.bf16.mxu0 0
    %5817 = vmatpush1.bf16.xpose.msra.mxu0 0
    %5818 = vmatprep.subr.bf16.mxu0 0
    %5819 = vmatpush1.bf16.xpose.msra.mxu0 0
    %5820 = vmatprep.subr.bf16.mxu0 0
    %5821 = vmatpush1.bf16.xpose.msra.mxu0 0
    %5822 = vmatprep.subr.bf16.mxu0 0
    %5823 = vmatpush1.bf16.xpose.msra.mxu0 0
    %5824 = vmatprep.subr.bf16.mxu0 0
    %5825 = vmatpush1.bf16.xpose.msra.mxu0 0
    %5826 = vmatprep.subr.bf16.mxu0 0
    %5827 = vmatpush1.bf16.xpose.msra.mxu0 0
    %5828 = vmatprep.subr.bf16.mxu0 0
    %5829 = vmatpush1.bf16.xpose.msra.mxu0 0
    %5830 = vmatprep.subr.bf16.mxu0 0
    %5831 = vmatpush1.bf16.xpose.msra.mxu0 0
    %5832 = vmatprep.subr.bf16.mxu0 0
    %5833 = vmatpush1.bf16.xpose.msra.mxu0 0
    %5834 = vmatprep.subr.bf16.mxu0 0
    %5835 = vmatpush1.bf16.xpose.msra.mxu0 0
    %5836 = vmatprep.subr.bf16.mxu0 0
    %5837 = vmatpush1.bf16.xpose.msra.mxu0 0
    %5838 = vmatprep.subr.bf16.mxu0 0
    %5839 = vmatpush1.bf16.xpose.msra.mxu0 0
    %5840 = vmatprep.mubr.bf16.mxu0 0
    %5841 = vmatmul.mubr.bf16.gmra.mrb[0].mxu0 %v5803
    %v5842 = vpop.f32.mrb[0].mxu0
    %v5843 = vadd.f32 0.0, %v5842
    %v5844 = vpop.f32.mrb[0].mxu0
    %v5845 = vpop.f32.mrb[0].mxu0
    %v5846 = vpop.f32.mrb[0].mxu0
    %5847 = vdwg.mxu0
    %5848 = vrot.lane.b32.xlu0 %v5356, 112
    %v5849 = vpop.permute.xlu0 %5848
    %5850 = vrot.lane.b32.xlu0 %v5356, 80
    %v5851 = vpop.permute.xlu0 %5850
    %v5853 = vsel %vm85, %v5849, 0
    %v5856 = vsel %vm85, %v5851, 0
    %5858 = vmatprep.subr.bf16.mxu0 0
    %5859 = vmatpush1.bf16.xpose.msra.mxu0 %v5856
    %5860 = vmatprep.subr.bf16.mxu0 0
    %5861 = vmatpush1.bf16.xpose.msra.mxu0 0
    %5862 = vmatprep.subr.bf16.mxu0 0
    %5863 = vmatpush1.bf16.xpose.msra.mxu0 0
    %5864 = vmatprep.subr.bf16.mxu0 0
    %5865 = vmatpush1.bf16.xpose.msra.mxu0 0
    %5866 = vmatprep.subr.bf16.mxu0 0
    %5867 = vmatpush1.bf16.xpose.msra.mxu0 0
    %5868 = vmatprep.subr.bf16.mxu0 0
    %5869 = vmatpush1.bf16.xpose.msra.mxu0 0
    %5870 = vmatprep.subr.bf16.mxu0 0
    %5871 = vmatpush1.bf16.xpose.msra.mxu0 0
    %5872 = vmatprep.subr.bf16.mxu0 0
    %5873 = vmatpush1.bf16.xpose.msra.mxu0 0
    %5874 = vmatprep.subr.bf16.mxu0 0
    %5875 = vmatpush1.bf16.xpose.msra.mxu0 0
    %5876 = vmatprep.subr.bf16.mxu0 0
    %5877 = vmatpush1.bf16.xpose.msra.mxu0 0
    %5878 = vmatprep.subr.bf16.mxu0 0
    %5879 = vmatpush1.bf16.xpose.msra.mxu0 0
    %5880 = vmatprep.subr.bf16.mxu0 0
    %5881 = vmatpush1.bf16.xpose.msra.mxu0 0
    %5882 = vmatprep.subr.bf16.mxu0 0
    %5883 = vmatpush1.bf16.xpose.msra.mxu0 0
    %5884 = vmatprep.subr.bf16.mxu0 0
    %5885 = vmatpush1.bf16.xpose.msra.mxu0 0
    %5886 = vmatprep.subr.bf16.mxu0 0
    %5887 = vmatpush1.bf16.xpose.msra.mxu0 0
    %5888 = vmatprep.subr.bf16.mxu0 0
    %5889 = vmatpush1.bf16.xpose.msra.mxu0 0
    %5890 = vmatprep.mubr.bf16.mxu0 0
    %5891 = vmatmul.mubr.bf16.gmra.mrb[0].mxu0 %v5853
    %v5892 = vpop.f32.mrb[0].mxu0
    %v5893 = vadd.f32 0.0, %v5892
    %v5894 = vpop.f32.mrb[0].mxu0
    %v5895 = vpop.f32.mrb[0].mxu0
    %v5896 = vpop.f32.mrb[0].mxu0
    %5897 = vdwg.mxu0
    %v5898 = vsel %vm5455, %v5843, -inf
    %5899 = vmax.xlane.f32.xlu0 %v5898
    %v5900 = vpop.xlane.xlu0 %5899
    %v5901 = vsel %vm5455, %v5893, -inf
    %5902 = vmax.xlane.f32.xlu0 %v5901
    %v5903 = vpop.xlane.xlu0 %5902
    %v5904 = vsub.f32 %v5843, %v5900
    %v5905 = vsub.f32 %v5893, %v5903
    %v5906 = vmul.f32 %v5904, 1.442695
    %v5907 = vpow.pop %v5906
    %v5908 = vmul.f32 %v5905, 1.442695
    %v5909 = vpow.pop %v5908
    %v5910 = vsel %vm5455, %v5907, 0.0
    %5911 = vadd.xlane.f32.xlu0 %v5910
    %v5912 = vpop.xlane.xlu0 %5911
    %v5913 = vsel %vm5455, %v5909, 0.0
    %5914 = vadd.xlane.f32.xlu0 %v5913
    %v5915 = vpop.xlane.xlu0 %5914
    %v5916 = vrcp.pop %v5912
    %v5917 = vrcp.pop %v5915
    %v5918 = vmul.f32 %v5907, %v5916
    %v5919 = vmul.f32 %v5909, %v5917
    %v5920 = vpack.c.bf16 %v5918, %v5918
    %v5921 = vpack.c.bf16 %v5919, %v5919
    %5922 = vrot.lane.b32.xlu0 %v5355, 48
    %v5923 = vpop.permute.xlu0 %5922
    %v5925 = vsel %vm5482, %v5920, 0
    %v5928 = vsel %vm5486, %v5923, 0
    %5930 = vmatprep.subr.bf16.mxu0 0
    %5931 = vmatpush1.bf16.msra.mxu0 %v5928
    %5932 = vmatprep.subr.bf16.mxu0 0
    %5933 = vmatpush1.bf16.msra.mxu0 0
    %5934 = vmatprep.subr.bf16.mxu0 0
    %5935 = vmatpush1.bf16.msra.mxu0 0
    %5936 = vmatprep.subr.bf16.mxu0 0
    %5937 = vmatpush1.bf16.msra.mxu0 0
    %5938 = vmatprep.subr.bf16.mxu0 0
    %5939 = vmatpush1.bf16.msra.mxu0 0
    %5940 = vmatprep.subr.bf16.mxu0 0
    %5941 = vmatpush1.bf16.msra.mxu0 0
    %5942 = vmatprep.subr.bf16.mxu0 0
    %5943 = vmatpush1.bf16.msra.mxu0 0
    %5944 = vmatprep.subr.bf16.mxu0 0
    %5945 = vmatpush1.bf16.msra.mxu0 0
    %5946 = vmatprep.subr.bf16.mxu0 0
    %5947 = vmatpush1.bf16.msra.mxu0 0
    %5948 = vmatprep.subr.bf16.mxu0 0
    %5949 = vmatpush1.bf16.msra.mxu0 0
    %5950 = vmatprep.subr.bf16.mxu0 0
    %5951 = vmatpush1.bf16.msra.mxu0 0
    %5952 = vmatprep.subr.bf16.mxu0 0
    %5953 = vmatpush1.bf16.msra.mxu0 0
    %5954 = vmatprep.subr.bf16.mxu0 0
    %5955 = vmatpush1.bf16.msra.mxu0 0
    %5956 = vmatprep.subr.bf16.mxu0 0
    %5957 = vmatpush1.bf16.msra.mxu0 0
    %5958 = vmatprep.subr.bf16.mxu0 0
    %5959 = vmatpush1.bf16.msra.mxu0 0
    %5960 = vmatprep.subr.bf16.mxu0 0
    %5961 = vmatpush1.bf16.msra.mxu0 0
    %5962 = vmatprep.mubr.bf16.mxu0 0
    %5963 = vmatmul.mubr.bf16.gmra.mrb[0].mxu0 %v5925
    %v5964 = vpop.f32.mrb[0].mxu0
    %v5965 = vadd.f32 0.0, %v5964
    %v5966 = vpop.f32.mrb[0].mxu0
    %v5967 = vpop.f32.mrb[0].mxu0
    %v5968 = vpop.f32.mrb[0].mxu0
    %5969 = vdwg.mxu0
    %5970 = vrot.lane.b32.xlu0 %v5356, 48
    %v5971 = vpop.permute.xlu0 %5970
    %v5973 = vsel %vm5482, %v5921, 0
    %v5976 = vsel %vm5486, %v5971, 0
    %5978 = vmatprep.subr.bf16.mxu0 0
    %5979 = vmatpush1.bf16.msra.mxu0 %v5976
    %5980 = vmatprep.subr.bf16.mxu0 0
    %5981 = vmatpush1.bf16.msra.mxu0 0
    %5982 = vmatprep.subr.bf16.mxu0 0
    %5983 = vmatpush1.bf16.msra.mxu0 0
    %5984 = vmatprep.subr.bf16.mxu0 0
    %5985 = vmatpush1.bf16.msra.mxu0 0
    %5986 = vmatprep.subr.bf16.mxu0 0
    %5987 = vmatpush1.bf16.msra.mxu0 0
    %5988 = vmatprep.subr.bf16.mxu0 0
    %5989 = vmatpush1.bf16.msra.mxu0 0
    %5990 = vmatprep.subr.bf16.mxu0 0
    %5991 = vmatpush1.bf16.msra.mxu0 0
    %5992 = vmatprep.subr.bf16.mxu0 0
    %5993 = vmatpush1.bf16.msra.mxu0 0
    %5994 = vmatprep.subr.bf16.mxu0 0
    %5995 = vmatpush1.bf16.msra.mxu0 0
    %5996 = vmatprep.subr.bf16.mxu0 0
    %5997 = vmatpush1.bf16.msra.mxu0 0
    %5998 = vmatprep.subr.bf16.mxu0 0
    %5999 = vmatpush1.bf16.msra.mxu0 0
    %6000 = vmatprep.subr.bf16.mxu0 0
    %6001 = vmatpush1.bf16.msra.mxu0 0
    %6002 = vmatprep.subr.bf16.mxu0 0
    %6003 = vmatpush1.bf16.msra.mxu0 0
    %6004 = vmatprep.subr.bf16.mxu0 0
    %6005 = vmatpush1.bf16.msra.mxu0 0
    %6006 = vmatprep.subr.bf16.mxu0 0
    %6007 = vmatpush1.bf16.msra.mxu0 0
    %6008 = vmatprep.subr.bf16.mxu0 0
    %6009 = vmatpush1.bf16.msra.mxu0 0
    %6010 = vmatprep.mubr.bf16.mxu0 0
    %6011 = vmatmul.mubr.bf16.gmra.mrb[0].mxu0 %v5973
    %v6012 = vpop.f32.mrb[0].mxu0
    %v6013 = vadd.f32 0.0, %v6012
    %v6014 = vpop.f32.mrb[0].mxu0
    %v6015 = vpop.f32.mrb[0].mxu0
    %v6016 = vpop.f32.mrb[0].mxu0
    %6017 = vdwg.mxu0
    %6018 = vrot.lane.b32.xlu0 %v5355, 104
    %v6019 = vpop.permute.xlu0 %6018
    %6020 = vrot.lane.b32.xlu0 %v5355, 72
    %v6021 = vpop.permute.xlu0 %6020
    %v6023 = vsel %vm85, %v6019, 0
    %v6026 = vsel %vm85, %v6021, 0
    %6028 = vmatprep.subr.bf16.mxu0 0
    %6029 = vmatpush1.bf16.xpose.msra.mxu0 %v6026
    %6030 = vmatprep.subr.bf16.mxu0 0
    %6031 = vmatpush1.bf16.xpose.msra.mxu0 0
    %6032 = vmatprep.subr.bf16.mxu0 0
    %6033 = vmatpush1.bf16.xpose.msra.mxu0 0
    %6034 = vmatprep.subr.bf16.mxu0 0
    %6035 = vmatpush1.bf16.xpose.msra.mxu0 0
    %6036 = vmatprep.subr.bf16.mxu0 0
    %6037 = vmatpush1.bf16.xpose.msra.mxu0 0
    %6038 = vmatprep.subr.bf16.mxu0 0
    %6039 = vmatpush1.bf16.xpose.msra.mxu0 0
    %6040 = vmatprep.subr.bf16.mxu0 0
    %6041 = vmatpush1.bf16.xpose.msra.mxu0 0
    %6042 = vmatprep.subr.bf16.mxu0 0
    %6043 = vmatpush1.bf16.xpose.msra.mxu0 0
    %6044 = vmatprep.subr.bf16.mxu0 0
    %6045 = vmatpush1.bf16.xpose.msra.mxu0 0
    %6046 = vmatprep.subr.bf16.mxu0 0
    %6047 = vmatpush1.bf16.xpose.msra.mxu0 0
    %6048 = vmatprep.subr.bf16.mxu0 0
    %6049 = vmatpush1.bf16.xpose.msra.mxu0 0
    %6050 = vmatprep.subr.bf16.mxu0 0
    %6051 = vmatpush1.bf16.xpose.msra.mxu0 0
    %6052 = vmatprep.subr.bf16.mxu0 0
    %6053 = vmatpush1.bf16.xpose.msra.mxu0 0
    %6054 = vmatprep.subr.bf16.mxu0 0
    %6055 = vmatpush1.bf16.xpose.msra.mxu0 0
    %6056 = vmatprep.subr.bf16.mxu0 0
    %6057 = vmatpush1.bf16.xpose.msra.mxu0 0
    %6058 = vmatprep.subr.bf16.mxu0 0
    %6059 = vmatpush1.bf16.xpose.msra.mxu0 0
    %6060 = vmatprep.mubr.bf16.mxu0 0
    %6061 = vmatmul.mubr.bf16.gmra.mrb[0].mxu0 %v6023
    %v6062 = vpop.f32.mrb[0].mxu0
    %v6063 = vadd.f32 0.0, %v6062
    %v6064 = vpop.f32.mrb[0].mxu0
    %v6065 = vpop.f32.mrb[0].mxu0
    %v6066 = vpop.f32.mrb[0].mxu0
    %6067 = vdwg.mxu0
    %6068 = vrot.lane.b32.xlu0 %v5356, 104
    %v6069 = vpop.permute.xlu0 %6068
    %6070 = vrot.lane.b32.xlu0 %v5356, 72
    %v6071 = vpop.permute.xlu0 %6070
    %v6073 = vsel %vm85, %v6069, 0
    %v6076 = vsel %vm85, %v6071, 0
    %6078 = vmatprep.subr.bf16.mxu0 0
    %6079 = vmatpush1.bf16.xpose.msra.mxu0 %v6076
    %6080 = vmatprep.subr.bf16.mxu0 0
    %6081 = vmatpush1.bf16.xpose.msra.mxu0 0
    %6082 = vmatprep.subr.bf16.mxu0 0
    %6083 = vmatpush1.bf16.xpose.msra.mxu0 0
    %6084 = vmatprep.subr.bf16.mxu0 0
    %6085 = vmatpush1.bf16.xpose.msra.mxu0 0
    %6086 = vmatprep.subr.bf16.mxu0 0
    %6087 = vmatpush1.bf16.xpose.msra.mxu0 0
    %6088 = vmatprep.subr.bf16.mxu0 0
    %6089 = vmatpush1.bf16.xpose.msra.mxu0 0
    %6090 = vmatprep.subr.bf16.mxu0 0
    %6091 = vmatpush1.bf16.xpose.msra.mxu0 0
    %6092 = vmatprep.subr.bf16.mxu0 0
    %6093 = vmatpush1.bf16.xpose.msra.mxu0 0
    %6094 = vmatprep.subr.bf16.mxu0 0
    %6095 = vmatpush1.bf16.xpose.msra.mxu0 0
    %6096 = vmatprep.subr.bf16.mxu0 0
    %6097 = vmatpush1.bf16.xpose.msra.mxu0 0
    %6098 = vmatprep.subr.bf16.mxu0 0
    %6099 = vmatpush1.bf16.xpose.msra.mxu0 0
    %6100 = vmatprep.subr.bf16.mxu0 0
    %6101 = vmatpush1.bf16.xpose.msra.mxu0 0
    %6102 = vmatprep.subr.bf16.mxu0 0
    %6103 = vmatpush1.bf16.xpose.msra.mxu0 0
    %6104 = vmatprep.subr.bf16.mxu0 0
    %6105 = vmatpush1.bf16.xpose.msra.mxu0 0
    %6106 = vmatprep.subr.bf16.mxu0 0
    %6107 = vmatpush1.bf16.xpose.msra.mxu0 0
    %6108 = vmatprep.subr.bf16.mxu0 0
    %6109 = vmatpush1.bf16.xpose.msra.mxu0 0
    %6110 = vmatprep.mubr.bf16.mxu0 0
    %6111 = vmatmul.mubr.bf16.gmra.mrb[0].mxu0 %v6073
    %v6112 = vpop.f32.mrb[0].mxu0
    %v6113 = vadd.f32 0.0, %v6112
    %v6114 = vpop.f32.mrb[0].mxu0
    %v6115 = vpop.f32.mrb[0].mxu0
    %v6116 = vpop.f32.mrb[0].mxu0
    %6117 = vdwg.mxu0
    %v6118 = vsel %vm5455, %v6063, -inf
    %6119 = vmax.xlane.f32.xlu0 %v6118
    %v6120 = vpop.xlane.xlu0 %6119
    %v6121 = vsel %vm5455, %v6113, -inf
    %6122 = vmax.xlane.f32.xlu0 %v6121
    %v6123 = vpop.xlane.xlu0 %6122
    %v6124 = vsub.f32 %v6063, %v6120
    %v6125 = vsub.f32 %v6113, %v6123
    %v6126 = vmul.f32 %v6124, 1.442695
    %v6127 = vpow.pop %v6126
    %v6128 = vmul.f32 %v6125, 1.442695
    %v6129 = vpow.pop %v6128
    %v6130 = vsel %vm5455, %v6127, 0.0
    %6131 = vadd.xlane.f32.xlu0 %v6130
    %v6132 = vpop.xlane.xlu0 %6131
    %v6133 = vsel %vm5455, %v6129, 0.0
    %6134 = vadd.xlane.f32.xlu0 %v6133
    %v6135 = vpop.xlane.xlu0 %6134
    %v6136 = vrcp.pop %v6132
    %v6137 = vrcp.pop %v6135
    %v6138 = vmul.f32 %v6127, %v6136
    %v6139 = vmul.f32 %v6129, %v6137
    %v6140 = vpack.c.bf16 %v6138, %v6138
    %v6141 = vpack.c.bf16 %v6139, %v6139
    %6142 = vrot.lane.b32.xlu0 %v5355, 40
    %v6143 = vpop.permute.xlu0 %6142
    %v6145 = vsel %vm5482, %v6140, 0
    %v6148 = vsel %vm5486, %v6143, 0
    %6150 = vmatprep.subr.bf16.mxu0 0
    %6151 = vmatpush1.bf16.msra.mxu0 %v6148
    %6152 = vmatprep.subr.bf16.mxu0 0
    %6153 = vmatpush1.bf16.msra.mxu0 0
    %6154 = vmatprep.subr.bf16.mxu0 0
    %6155 = vmatpush1.bf16.msra.mxu0 0
    %6156 = vmatprep.subr.bf16.mxu0 0
    %6157 = vmatpush1.bf16.msra.mxu0 0
    %6158 = vmatprep.subr.bf16.mxu0 0
    %6159 = vmatpush1.bf16.msra.mxu0 0
    %6160 = vmatprep.subr.bf16.mxu0 0
    %6161 = vmatpush1.bf16.msra.mxu0 0
    %6162 = vmatprep.subr.bf16.mxu0 0
    %6163 = vmatpush1.bf16.msra.mxu0 0
    %6164 = vmatprep.subr.bf16.mxu0 0
    %6165 = vmatpush1.bf16.msra.mxu0 0
    %6166 = vmatprep.subr.bf16.mxu0 0
    %6167 = vmatpush1.bf16.msra.mxu0 0
    %6168 = vmatprep.subr.bf16.mxu0 0
    %6169 = vmatpush1.bf16.msra.mxu0 0
    %6170 = vmatprep.subr.bf16.mxu0 0
    %6171 = vmatpush1.bf16.msra.mxu0 0
    %6172 = vmatprep.subr.bf16.mxu0 0
    %6173 = vmatpush1.bf16.msra.mxu0 0
    %6174 = vmatprep.subr.bf16.mxu0 0
    %6175 = vmatpush1.bf16.msra.mxu0 0
    %6176 = vmatprep.subr.bf16.mxu0 0
    %6177 = vmatpush1.bf16.msra.mxu0 0
    %6178 = vmatprep.subr.bf16.mxu0 0
    %6179 = vmatpush1.bf16.msra.mxu0 0
    %6180 = vmatprep.subr.bf16.mxu0 0
    %6181 = vmatpush1.bf16.msra.mxu0 0
    %6182 = vmatprep.mubr.bf16.mxu0 0
    %6183 = vmatmul.mubr.bf16.gmra.mrb[0].mxu0 %v6145
    %v6184 = vpop.f32.mrb[0].mxu0
    %v6185 = vadd.f32 0.0, %v6184
    %v6186 = vpop.f32.mrb[0].mxu0
    %v6187 = vpop.f32.mrb[0].mxu0
    %v6188 = vpop.f32.mrb[0].mxu0
    %6189 = vdwg.mxu0
    %6190 = vrot.lane.b32.xlu0 %v5356, 40
    %v6191 = vpop.permute.xlu0 %6190
    %v6193 = vsel %vm5482, %v6141, 0
    %v6196 = vsel %vm5486, %v6191, 0
    %6198 = vmatprep.subr.bf16.mxu0 0
    %6199 = vmatpush1.bf16.msra.mxu0 %v6196
    %6200 = vmatprep.subr.bf16.mxu0 0
    %6201 = vmatpush1.bf16.msra.mxu0 0
    %6202 = vmatprep.subr.bf16.mxu0 0
    %6203 = vmatpush1.bf16.msra.mxu0 0
    %6204 = vmatprep.subr.bf16.mxu0 0
    %6205 = vmatpush1.bf16.msra.mxu0 0
    %6206 = vmatprep.subr.bf16.mxu0 0
    %6207 = vmatpush1.bf16.msra.mxu0 0
    %6208 = vmatprep.subr.bf16.mxu0 0
    %6209 = vmatpush1.bf16.msra.mxu0 0
    %6210 = vmatprep.subr.bf16.mxu0 0
    %6211 = vmatpush1.bf16.msra.mxu0 0
    %6212 = vmatprep.subr.bf16.mxu0 0
    %6213 = vmatpush1.bf16.msra.mxu0 0
    %6214 = vmatprep.subr.bf16.mxu0 0
    %6215 = vmatpush1.bf16.msra.mxu0 0
    %6216 = vmatprep.subr.bf16.mxu0 0
    %6217 = vmatpush1.bf16.msra.mxu0 0
    %6218 = vmatprep.subr.bf16.mxu0 0
    %6219 = vmatpush1.bf16.msra.mxu0 0
    %6220 = vmatprep.subr.bf16.mxu0 0
    %6221 = vmatpush1.bf16.msra.mxu0 0
    %6222 = vmatprep.subr.bf16.mxu0 0
    %6223 = vmatpush1.bf16.msra.mxu0 0
    %6224 = vmatprep.subr.bf16.mxu0 0
    %6225 = vmatpush1.bf16.msra.mxu0 0
    %6226 = vmatprep.subr.bf16.mxu0 0
    %6227 = vmatpush1.bf16.msra.mxu0 0
    %6228 = vmatprep.subr.bf16.mxu0 0
    %6229 = vmatpush1.bf16.msra.mxu0 0
    %6230 = vmatprep.mubr.bf16.mxu0 0
    %6231 = vmatmul.mubr.bf16.gmra.mrb[0].mxu0 %v6193
    %v6232 = vpop.f32.mrb[0].mxu0
    %v6233 = vadd.f32 0.0, %v6232
    %v6234 = vpop.f32.mrb[0].mxu0
    %v6235 = vpop.f32.mrb[0].mxu0
    %v6236 = vpop.f32.mrb[0].mxu0
    %6237 = vdwg.mxu0
    %6240 = vrot.lane.b32.xlu0 %v5745, 8
    %v6241 = vpop.permute.xlu0 %6240
    %6242 = vrot.lane.b32.xlu0 %v5793, 8
    %v6243 = vpop.permute.xlu0 %6242
    %6248 = vrot.lane.b32.xlu0 %v5965, 16
    %v6249 = vpop.permute.xlu0 %6248
    %6250 = vrot.lane.b32.xlu0 %v6013, 16
    %v6251 = vpop.permute.xlu0 %6250
    %6256 = vrot.lane.b32.xlu0 %v6185, 24
    %v6257 = vpop.permute.xlu0 %6256
    %6258 = vrot.lane.b32.xlu0 %v6233, 24
    %v6259 = vpop.permute.xlu0 %6258
    %v6262 = vsel %vm85, %v5525, %v6241
    %v6263 = vsel %vm85, %v5573, %v6243
    %v6264 = vsel %vm970, %v6262, %v6249
    %v6265 = vsel %vm970, %v6263, %v6251
    %v6266 = vsel %vm973, %v6264, %v6257
    %v6267 = vsel %vm973, %v6265, %v6259
    %v6268 = vadd.f32 %v5351, %v6266
    %v6269 = vadd.f32 %v5352, %v6267
    %v6272 = vcombine.low %v6268, %v6269
    %v6274 = vunpack.c.l.s4 1983009808
    %v6275 = vunpack.c.0.s8 %v6274
    %v6276 = vlaneseq
    %v6277 = vshrl.u32 %v6276, 7
    %v6278 = vsub.s32 %v6275, %v6277
    %v6279 = vrot.slane %v6272, %v6278
    %v6281 = vpack.c.bf16 %v6279, %v6279
    %v6282 = vld [vmem:[%s1 + $0xa4] sm:$0xf]
    %v6283 = vld [vmem:[%s1 + $0xa8] sm:$0xf]
    %v6284 = vld [vmem:[%s1 + $0xac] sm:$0xf]
    %v6285 = vld [vmem:[%s1 + $0xb0] sm:$0xf]
    %v6286 = vld [vmem:[%s2 + $0xb] sm:$0x1]
    %v6287 = vlaneseq
    %v6288 = vshrl.u32 %v6287, 7
    %v6289 = vsub.s32 0, %v6288
    %v6290 = vrot.slane %v6286, %v6289
    %v6295 = vunpack.c.l.b16 %v6282
    %v6296 = vunpack.c.l.b16 %v6283
    %v6297 = vunpack.c.l.b16 %v6284
    %v6298 = vunpack.c.l.b16 %v6285
    %v6299 = vpack.c.b16 %v6296, %v6295
    %v6300 = vpack.c.b16 %v6298, %v6297
    %v6304 = vsel %vm1000, %v6281, 0
    %6306 = vmatprep.subr.bf16.mxu0 0
    %6307 = vmatpush1.bf16.msra.mxu0 %v6299
    %6308 = vmatprep.subr.bf16.mxu0 0
    %6309 = vmatpush1.bf16.msra.mxu0 %v6300
    %6310 = vmatprep.subr.bf16.mxu0 0
    %6311 = vmatpush1.bf16.msra.mxu0 0
    %6312 = vmatprep.subr.bf16.mxu0 0
    %6313 = vmatpush1.bf16.msra.mxu0 0
    %6314 = vmatprep.subr.bf16.mxu0 0
    %6315 = vmatpush1.bf16.msra.mxu0 0
    %6316 = vmatprep.subr.bf16.mxu0 0
    %6317 = vmatpush1.bf16.msra.mxu0 0
    %6318 = vmatprep.subr.bf16.mxu0 0
    %6319 = vmatpush1.bf16.msra.mxu0 0
    %6320 = vmatprep.subr.bf16.mxu0 0
    %6321 = vmatpush1.bf16.msra.mxu0 0
    %6322 = vmatprep.subr.bf16.mxu0 0
    %6323 = vmatpush1.bf16.msra.mxu0 0
    %6324 = vmatprep.subr.bf16.mxu0 0
    %6325 = vmatpush1.bf16.msra.mxu0 0
    %6326 = vmatprep.subr.bf16.mxu0 0
    %6327 = vmatpush1.bf16.msra.mxu0 0
    %6328 = vmatprep.subr.bf16.mxu0 0
    %6329 = vmatpush1.bf16.msra.mxu0 0
    %6330 = vmatprep.subr.bf16.mxu0 0
    %6331 = vmatpush1.bf16.msra.mxu0 0
    %6332 = vmatprep.subr.bf16.mxu0 0
    %6333 = vmatpush1.bf16.msra.mxu0 0
    %6334 = vmatprep.subr.bf16.mxu0 0
    %6335 = vmatpush1.bf16.msra.mxu0 0
    %6336 = vmatprep.subr.bf16.mxu0 0
    %6337 = vmatpush1.bf16.msra.mxu0 0
    %6338 = vmatprep.mubr.bf16.mxu0 0
    %6339 = vmatmul.mubr.bf16.gmra.mrb[0].mxu0 %v6304
    %v6340 = vpop.f32.mrb[0].mxu0
    %v6341 = vadd.f32 %v6290, %v6340
    %v6342 = vpop.f32.mrb[0].mxu0
    %v6343 = vpop.f32.mrb[0].mxu0
    %v6344 = vpop.f32.mrb[0].mxu0
    %6345 = vdwg.mxu0
    %v6346 = vmax.f32 %v6341, 0.0
    %v6349 = vunpack.c.l.s4 1983009808
    %v6350 = vunpack.c.0.s8 %v6349
    %v6351 = vlaneseq
    %v6352 = vshrl.u32 %v6351, 7
    %v6353 = vsub.s32 %v6350, %v6352
    %v6354 = vrot.slane %v6346, %v6353
    %v6355 = vcombine.high %v6354, %v6354
    %v6358 = vadd.f32 %v6268, %v6354
    %v6359 = vadd.f32 %v6269, %v6355
    %v6362 = vcombine.low %v6358, %v6359
    %v6364 = vunpack.c.l.s4 1983009808
    %v6365 = vunpack.c.0.s8 %v6364
    %v6366 = vlaneseq
    %v6367 = vshrl.u32 %v6366, 7
    %v6368 = vsub.s32 %v6365, %v6367
    %v6369 = vrot.slane %v6362, %v6368
    %v6371 = vpack.c.bf16 %v6369, %v6369
    %v6372 = vld [vmem:[%s1 + $0xb4] sm:$0xf]
    %v6373 = vld [vmem:[%s1 + $0xb8] sm:$0xf]
    %v6374 = vld [vmem:[%s1 + $0xbc] sm:$0xf]
    %v6375 = vld [vmem:[%s1 + $0xc0] sm:$0xf]
    %v6376 = vld [vmem:[%s2 + $0xc] sm:$0x1]
    %v6377 = vlaneseq
    %v6378 = vshrl.u32 %v6377, 7
    %v6379 = vsub.s32 0, %v6378
    %v6380 = vrot.slane %v6376, %v6379
    %v6385 = vunpack.c.l.b16 %v6372
    %v6386 = vunpack.c.l.b16 %v6373
    %v6387 = vunpack.c.l.b16 %v6374
    %v6388 = vunpack.c.l.b16 %v6375
    %v6389 = vpack.c.b16 %v6386, %v6385
    %v6390 = vpack.c.b16 %v6388, %v6387
    %v6394 = vsel %vm1000, %v6371, 0
    %6396 = vmatprep.subr.bf16.mxu0 0
    %6397 = vmatpush1.bf16.msra.mxu0 %v6389
    %6398 = vmatprep.subr.bf16.mxu0 0
    %6399 = vmatpush1.bf16.msra.mxu0 %v6390
    %6400 = vmatprep.subr.bf16.mxu0 0
    %6401 = vmatpush1.bf16.msra.mxu0 0
    %6402 = vmatprep.subr.bf16.mxu0 0
    %6403 = vmatpush1.bf16.msra.mxu0 0
    %6404 = vmatprep.subr.bf16.mxu0 0
    %6405 = vmatpush1.bf16.msra.mxu0 0
    %6406 = vmatprep.subr.bf16.mxu0 0
    %6407 = vmatpush1.bf16.msra.mxu0 0
    %6408 = vmatprep.subr.bf16.mxu0 0
    %6409 = vmatpush1.bf16.msra.mxu0 0
    %6410 = vmatprep.subr.bf16.mxu0 0
    %6411 = vmatpush1.bf16.msra.mxu0 0
    %6412 = vmatprep.subr.bf16.mxu0 0
    %6413 = vmatpush1.bf16.msra.mxu0 0
    %6414 = vmatprep.subr.bf16.mxu0 0
    %6415 = vmatpush1.bf16.msra.mxu0 0
    %6416 = vmatprep.subr.bf16.mxu0 0
    %6417 = vmatpush1.bf16.msra.mxu0 0
    %6418 = vmatprep.subr.bf16.mxu0 0
    %6419 = vmatpush1.bf16.msra.mxu0 0
    %6420 = vmatprep.subr.bf16.mxu0 0
    %6421 = vmatpush1.bf16.msra.mxu0 0
    %6422 = vmatprep.subr.bf16.mxu0 0
    %6423 = vmatpush1.bf16.msra.mxu0 0
    %6424 = vmatprep.subr.bf16.mxu0 0
    %6425 = vmatpush1.bf16.msra.mxu0 0
    %6426 = vmatprep.subr.bf16.mxu0 0
    %6427 = vmatpush1.bf16.msra.mxu0 0
    %6428 = vmatprep.mubr.bf16.mxu0 0
    %6429 = vmatmul.mubr.bf16.gmra.mrb[0].mxu0 %v6394
    %v6430 = vpop.f32.mrb[0].mxu0
    %v6431 = vadd.f32 %v6380, %v6430
    %v6432 = vpop.f32.mrb[0].mxu0
    %v6433 = vpop.f32.mrb[0].mxu0
    %v6434 = vpop.f32.mrb[0].mxu0
    %6435 = vdwg.mxu0
    %v6438 = vunpack.c.l.s4 1983009808
    %v6439 = vunpack.c.0.s8 %v6438
    %v6440 = vlaneseq
    %v6441 = vshrl.u32 %v6440, 7
    %v6442 = vsub.s32 %v6439, %v6441
    %v6443 = vrot.slane %v6431, %v6442
    %v6444 = vcombine.high %v6443, %v6443
    %v6447 = vpack.c.bf16 %v6443, %v6443
    %v6448 = vpack.c.bf16 %v6444, %v6444
    %6450 = vrot.lane.b32.xlu0 %v6447, 96
    %v6451 = vpop.permute.xlu0 %6450
    %v6453 = vsel %vm85, %v6447, 0
    %v6456 = vsel %vm85, %v6451, 0
    %6458 = vmatprep.subr.bf16.mxu0 0
    %6459 = vmatpush1.bf16.xpose.msra.mxu0 %v6456
    %6460 = vmatprep.subr.bf16.mxu0 0
    %6461 = vmatpush1.bf16.xpose.msra.mxu0 0
    %6462 = vmatprep.subr.bf16.mxu0 0
    %6463 = vmatpush1.bf16.xpose.msra.mxu0 0
    %6464 = vmatprep.subr.bf16.mxu0 0
    %6465 = vmatpush1.bf16.xpose.msra.mxu0 0
    %6466 = vmatprep.subr.bf16.mxu0 0
    %6467 = vmatpush1.bf16.xpose.msra.mxu0 0
    %6468 = vmatprep.subr.bf16.mxu0 0
    %6469 = vmatpush1.bf16.xpose.msra.mxu0 0
    %6470 = vmatprep.subr.bf16.mxu0 0
    %6471 = vmatpush1.bf16.xpose.msra.mxu0 0
    %6472 = vmatprep.subr.bf16.mxu0 0
    %6473 = vmatpush1.bf16.xpose.msra.mxu0 0
    %6474 = vmatprep.subr.bf16.mxu0 0
    %6475 = vmatpush1.bf16.xpose.msra.mxu0 0
    %6476 = vmatprep.subr.bf16.mxu0 0
    %6477 = vmatpush1.bf16.xpose.msra.mxu0 0
    %6478 = vmatprep.subr.bf16.mxu0 0
    %6479 = vmatpush1.bf16.xpose.msra.mxu0 0
    %6480 = vmatprep.subr.bf16.mxu0 0
    %6481 = vmatpush1.bf16.xpose.msra.mxu0 0
    %6482 = vmatprep.subr.bf16.mxu0 0
    %6483 = vmatpush1.bf16.xpose.msra.mxu0 0
    %6484 = vmatprep.subr.bf16.mxu0 0
    %6485 = vmatpush1.bf16.xpose.msra.mxu0 0
    %6486 = vmatprep.subr.bf16.mxu0 0
    %6487 = vmatpush1.bf16.xpose.msra.mxu0 0
    %6488 = vmatprep.subr.bf16.mxu0 0
    %6489 = vmatpush1.bf16.xpose.msra.mxu0 0
    %6490 = vmatprep.mubr.bf16.mxu0 0
    %6491 = vmatmul.mubr.bf16.gmra.mrb[0].mxu0 %v6453
    %v6492 = vpop.f32.mrb[0].mxu0
    %v6493 = vadd.f32 0.0, %v6492
    %v6494 = vpop.f32.mrb[0].mxu0
    %v6495 = vpop.f32.mrb[0].mxu0
    %v6496 = vpop.f32.mrb[0].mxu0
    %6497 = vdwg.mxu0
    %6499 = vrot.lane.b32.xlu0 %v6448, 96
    %v6500 = vpop.permute.xlu0 %6499
    %v6502 = vsel %vm85, %v6448, 0
    %v6505 = vsel %vm85, %v6500, 0
    %6507 = vmatprep.subr.bf16.mxu0 0
    %6508 = vmatpush1.bf16.xpose.msra.mxu0 %v6505
    %6509 = vmatprep.subr.bf16.mxu0 0
    %6510 = vmatpush1.bf16.xpose.msra.mxu0 0
    %6511 = vmatprep.subr.bf16.mxu0 0
    %6512 = vmatpush1.bf16.xpose.msra.mxu0 0
    %6513 = vmatprep.subr.bf16.mxu0 0
    %6514 = vmatpush1.bf16.xpose.msra.mxu0 0
    %6515 = vmatprep.subr.bf16.mxu0 0
    %6516 = vmatpush1.bf16.xpose.msra.mxu0 0
    %6517 = vmatprep.subr.bf16.mxu0 0
    %6518 = vmatpush1.bf16.xpose.msra.mxu0 0
    %6519 = vmatprep.subr.bf16.mxu0 0
    %6520 = vmatpush1.bf16.xpose.msra.mxu0 0
    %6521 = vmatprep.subr.bf16.mxu0 0
    %6522 = vmatpush1.bf16.xpose.msra.mxu0 0
    %6523 = vmatprep.subr.bf16.mxu0 0
    %6524 = vmatpush1.bf16.xpose.msra.mxu0 0
    %6525 = vmatprep.subr.bf16.mxu0 0
    %6526 = vmatpush1.bf16.xpose.msra.mxu0 0
    %6527 = vmatprep.subr.bf16.mxu0 0
    %6528 = vmatpush1.bf16.xpose.msra.mxu0 0
    %6529 = vmatprep.subr.bf16.mxu0 0
    %6530 = vmatpush1.bf16.xpose.msra.mxu0 0
    %6531 = vmatprep.subr.bf16.mxu0 0
    %6532 = vmatpush1.bf16.xpose.msra.mxu0 0
    %6533 = vmatprep.subr.bf16.mxu0 0
    %6534 = vmatpush1.bf16.xpose.msra.mxu0 0
    %6535 = vmatprep.subr.bf16.mxu0 0
    %6536 = vmatpush1.bf16.xpose.msra.mxu0 0
    %6537 = vmatprep.subr.bf16.mxu0 0
    %6538 = vmatpush1.bf16.xpose.msra.mxu0 0
    %6539 = vmatprep.mubr.bf16.mxu0 0
    %6540 = vmatmul.mubr.bf16.gmra.mrb[0].mxu0 %v6502
    %v6541 = vpop.f32.mrb[0].mxu0
    %v6542 = vadd.f32 0.0, %v6541
    %v6543 = vpop.f32.mrb[0].mxu0
    %v6544 = vpop.f32.mrb[0].mxu0
    %v6545 = vpop.f32.mrb[0].mxu0
    %6546 = vdwg.mxu0
    %v6547 = vsel %vm5455, %v6493, -inf
    %6548 = vmax.xlane.f32.xlu0 %v6547
    %v6549 = vpop.xlane.xlu0 %6548
    %v6550 = vsel %vm5455, %v6542, -inf
    %6551 = vmax.xlane.f32.xlu0 %v6550
    %v6552 = vpop.xlane.xlu0 %6551
    %v6553 = vsub.f32 %v6493, %v6549
    %v6554 = vsub.f32 %v6542, %v6552
    %v6555 = vmul.f32 %v6553, 1.442695
    %v6556 = vpow.pop %v6555
    %v6557 = vmul.f32 %v6554, 1.442695
    %v6558 = vpow.pop %v6557
    %v6559 = vsel %vm5455, %v6556, 0.0
    %6560 = vadd.xlane.f32.xlu0 %v6559
    %v6561 = vpop.xlane.xlu0 %6560
    %v6562 = vsel %vm5455, %v6558, 0.0
    %6563 = vadd.xlane.f32.xlu0 %v6562
    %v6564 = vpop.xlane.xlu0 %6563
    %v6565 = vrcp.pop %v6561
    %v6566 = vrcp.pop %v6564
    %v6567 = vmul.f32 %v6556, %v6565
    %v6568 = vmul.f32 %v6558, %v6566
    %v6569 = vpack.c.bf16 %v6567, %v6567
    %v6570 = vpack.c.bf16 %v6568, %v6568
    %6571 = vrot.lane.b32.xlu0 %v6447, 64
    %v6572 = vpop.permute.xlu0 %6571
    %v6574 = vsel %vm5482, %v6569, 0
    %v6577 = vsel %vm5486, %v6572, 0
    %6579 = vmatprep.subr.bf16.mxu0 0
    %6580 = vmatpush1.bf16.msra.mxu0 %v6577
    %6581 = vmatprep.subr.bf16.mxu0 0
    %6582 = vmatpush1.bf16.msra.mxu0 0
    %6583 = vmatprep.subr.bf16.mxu0 0
    %6584 = vmatpush1.bf16.msra.mxu0 0
    %6585 = vmatprep.subr.bf16.mxu0 0
    %6586 = vmatpush1.bf16.msra.mxu0 0
    %6587 = vmatprep.subr.bf16.mxu0 0
    %6588 = vmatpush1.bf16.msra.mxu0 0
    %6589 = vmatprep.subr.bf16.mxu0 0
    %6590 = vmatpush1.bf16.msra.mxu0 0
    %6591 = vmatprep.subr.bf16.mxu0 0
    %6592 = vmatpush1.bf16.msra.mxu0 0
    %6593 = vmatprep.subr.bf16.mxu0 0
    %6594 = vmatpush1.bf16.msra.mxu0 0
    %6595 = vmatprep.subr.bf16.mxu0 0
    %6596 = vmatpush1.bf16.msra.mxu0 0
    %6597 = vmatprep.subr.bf16.mxu0 0
    %6598 = vmatpush1.bf16.msra.mxu0 0
    %6599 = vmatprep.subr.bf16.mxu0 0
    %6600 = vmatpush1.bf16.msra.mxu0 0
    %6601 = vmatprep.subr.bf16.mxu0 0
    %6602 = vmatpush1.bf16.msra.mxu0 0
    %6603 = vmatprep.subr.bf16.mxu0 0
    %6604 = vmatpush1.bf16.msra.mxu0 0
    %6605 = vmatprep.subr.bf16.mxu0 0
    %6606 = vmatpush1.bf16.msra.mxu0 0
    %6607 = vmatprep.subr.bf16.mxu0 0
    %6608 = vmatpush1.bf16.msra.mxu0 0
    %6609 = vmatprep.subr.bf16.mxu0 0
    %6610 = vmatpush1.bf16.msra.mxu0 0
    %6611 = vmatprep.mubr.bf16.mxu0 0
    %6612 = vmatmul.mubr.bf16.gmra.mrb[0].mxu0 %v6574
    %v6613 = vpop.f32.mrb[0].mxu0
    %v6614 = vadd.f32 0.0, %v6613
    %v6615 = vpop.f32.mrb[0].mxu0
    %v6616 = vpop.f32.mrb[0].mxu0
    %v6617 = vpop.f32.mrb[0].mxu0
    %6618 = vdwg.mxu0
    %6619 = vrot.lane.b32.xlu0 %v6448, 64
    %v6620 = vpop.permute.xlu0 %6619
    %v6622 = vsel %vm5482, %v6570, 0
    %v6625 = vsel %vm5486, %v6620, 0
    %6627 = vmatprep.subr.bf16.mxu0 0
    %6628 = vmatpush1.bf16.msra.mxu0 %v6625
    %6629 = vmatprep.subr.bf16.mxu0 0
    %6630 = vmatpush1.bf16.msra.mxu0 0
    %6631 = vmatprep.subr.bf16.mxu0 0
    %6632 = vmatpush1.bf16.msra.mxu0 0
    %6633 = vmatprep.subr.bf16.mxu0 0
    %6634 = vmatpush1.bf16.msra.mxu0 0
    %6635 = vmatprep.subr.bf16.mxu0 0
    %6636 = vmatpush1.bf16.msra.mxu0 0
    %6637 = vmatprep.subr.bf16.mxu0 0
    %6638 = vmatpush1.bf16.msra.mxu0 0
    %6639 = vmatprep.subr.bf16.mxu0 0
    %6640 = vmatpush1.bf16.msra.mxu0 0
    %6641 = vmatprep.subr.bf16.mxu0 0
    %6642 = vmatpush1.bf16.msra.mxu0 0
    %6643 = vmatprep.subr.bf16.mxu0 0
    %6644 = vmatpush1.bf16.msra.mxu0 0
    %6645 = vmatprep.subr.bf16.mxu0 0
    %6646 = vmatpush1.bf16.msra.mxu0 0
    %6647 = vmatprep.subr.bf16.mxu0 0
    %6648 = vmatpush1.bf16.msra.mxu0 0
    %6649 = vmatprep.subr.bf16.mxu0 0
    %6650 = vmatpush1.bf16.msra.mxu0 0
    %6651 = vmatprep.subr.bf16.mxu0 0
    %6652 = vmatpush1.bf16.msra.mxu0 0
    %6653 = vmatprep.subr.bf16.mxu0 0
    %6654 = vmatpush1.bf16.msra.mxu0 0
    %6655 = vmatprep.subr.bf16.mxu0 0
    %6656 = vmatpush1.bf16.msra.mxu0 0
    %6657 = vmatprep.subr.bf16.mxu0 0
    %6658 = vmatpush1.bf16.msra.mxu0 0
    %6659 = vmatprep.mubr.bf16.mxu0 0
    %6660 = vmatmul.mubr.bf16.gmra.mrb[0].mxu0 %v6622
    %v6661 = vpop.f32.mrb[0].mxu0
    %v6662 = vadd.f32 0.0, %v6661
    %v6663 = vpop.f32.mrb[0].mxu0
    %v6664 = vpop.f32.mrb[0].mxu0
    %v6665 = vpop.f32.mrb[0].mxu0
    %6666 = vdwg.mxu0
    %6667 = vrot.lane.b32.xlu0 %v6447, 120
    %v6668 = vpop.permute.xlu0 %6667
    %6669 = vrot.lane.b32.xlu0 %v6447, 88
    %v6670 = vpop.permute.xlu0 %6669
    %v6672 = vsel %vm85, %v6668, 0
    %v6675 = vsel %vm85, %v6670, 0
    %6677 = vmatprep.subr.bf16.mxu0 0
    %6678 = vmatpush1.bf16.xpose.msra.mxu0 %v6675
    %6679 = vmatprep.subr.bf16.mxu0 0
    %6680 = vmatpush1.bf16.xpose.msra.mxu0 0
    %6681 = vmatprep.subr.bf16.mxu0 0
    %6682 = vmatpush1.bf16.xpose.msra.mxu0 0
    %6683 = vmatprep.subr.bf16.mxu0 0
    %6684 = vmatpush1.bf16.xpose.msra.mxu0 0
    %6685 = vmatprep.subr.bf16.mxu0 0
    %6686 = vmatpush1.bf16.xpose.msra.mxu0 0
    %6687 = vmatprep.subr.bf16.mxu0 0
    %6688 = vmatpush1.bf16.xpose.msra.mxu0 0
    %6689 = vmatprep.subr.bf16.mxu0 0
    %6690 = vmatpush1.bf16.xpose.msra.mxu0 0
    %6691 = vmatprep.subr.bf16.mxu0 0
    %6692 = vmatpush1.bf16.xpose.msra.mxu0 0
    %6693 = vmatprep.subr.bf16.mxu0 0
    %6694 = vmatpush1.bf16.xpose.msra.mxu0 0
    %6695 = vmatprep.subr.bf16.mxu0 0
    %6696 = vmatpush1.bf16.xpose.msra.mxu0 0
    %6697 = vmatprep.subr.bf16.mxu0 0
    %6698 = vmatpush1.bf16.xpose.msra.mxu0 0
    %6699 = vmatprep.subr.bf16.mxu0 0
    %6700 = vmatpush1.bf16.xpose.msra.mxu0 0
    %6701 = vmatprep.subr.bf16.mxu0 0
    %6702 = vmatpush1.bf16.xpose.msra.mxu0 0
    %6703 = vmatprep.subr.bf16.mxu0 0
    %6704 = vmatpush1.bf16.xpose.msra.mxu0 0
    %6705 = vmatprep.subr.bf16.mxu0 0
    %6706 = vmatpush1.bf16.xpose.msra.mxu0 0
    %6707 = vmatprep.subr.bf16.mxu0 0
    %6708 = vmatpush1.bf16.xpose.msra.mxu0 0
    %6709 = vmatprep.mubr.bf16.mxu0 0
    %6710 = vmatmul.mubr.bf16.gmra.mrb[0].mxu0 %v6672
    %v6711 = vpop.f32.mrb[0].mxu0
    %v6712 = vadd.f32 0.0, %v6711
    %v6713 = vpop.f32.mrb[0].mxu0
    %v6714 = vpop.f32.mrb[0].mxu0
    %v6715 = vpop.f32.mrb[0].mxu0
    %6716 = vdwg.mxu0
    %6717 = vrot.lane.b32.xlu0 %v6448, 120
    %v6718 = vpop.permute.xlu0 %6717
    %6719 = vrot.lane.b32.xlu0 %v6448, 88
    %v6720 = vpop.permute.xlu0 %6719
    %v6722 = vsel %vm85, %v6718, 0
    %v6725 = vsel %vm85, %v6720, 0
    %6727 = vmatprep.subr.bf16.mxu0 0
    %6728 = vmatpush1.bf16.xpose.msra.mxu0 %v6725
    %6729 = vmatprep.subr.bf16.mxu0 0
    %6730 = vmatpush1.bf16.xpose.msra.mxu0 0
    %6731 = vmatprep.subr.bf16.mxu0 0
    %6732 = vmatpush1.bf16.xpose.msra.mxu0 0
    %6733 = vmatprep.subr.bf16.mxu0 0
    %6734 = vmatpush1.bf16.xpose.msra.mxu0 0
    %6735 = vmatprep.subr.bf16.mxu0 0
    %6736 = vmatpush1.bf16.xpose.msra.mxu0 0
    %6737 = vmatprep.subr.bf16.mxu0 0
    %6738 = vmatpush1.bf16.xpose.msra.mxu0 0
    %6739 = vmatprep.subr.bf16.mxu0 0
    %6740 = vmatpush1.bf16.xpose.msra.mxu0 0
    %6741 = vmatprep.subr.bf16.mxu0 0
    %6742 = vmatpush1.bf16.xpose.msra.mxu0 0
    %6743 = vmatprep.subr.bf16.mxu0 0
    %6744 = vmatpush1.bf16.xpose.msra.mxu0 0
    %6745 = vmatprep.subr.bf16.mxu0 0
    %6746 = vmatpush1.bf16.xpose.msra.mxu0 0
    %6747 = vmatprep.subr.bf16.mxu0 0
    %6748 = vmatpush1.bf16.xpose.msra.mxu0 0
    %6749 = vmatprep.subr.bf16.mxu0 0
    %6750 = vmatpush1.bf16.xpose.msra.mxu0 0
    %6751 = vmatprep.subr.bf16.mxu0 0
    %6752 = vmatpush1.bf16.xpose.msra.mxu0 0
    %6753 = vmatprep.subr.bf16.mxu0 0
    %6754 = vmatpush1.bf16.xpose.msra.mxu0 0
    %6755 = vmatprep.subr.bf16.mxu0 0
    %6756 = vmatpush1.bf16.xpose.msra.mxu0 0
    %6757 = vmatprep.subr.bf16.mxu0 0
    %6758 = vmatpush1.bf16.xpose.msra.mxu0 0
    %6759 = vmatprep.mubr.bf16.mxu0 0
    %6760 = vmatmul.mubr.bf16.gmra.mrb[0].mxu0 %v6722
    %v6761 = vpop.f32.mrb[0].mxu0
    %v6762 = vadd.f32 0.0, %v6761
    %v6763 = vpop.f32.mrb[0].mxu0
    %v6764 = vpop.f32.mrb[0].mxu0
    %v6765 = vpop.f32.mrb[0].mxu0
    %6766 = vdwg.mxu0
    %v6767 = vsel %vm5455, %v6712, -inf
    %6768 = vmax.xlane.f32.xlu0 %v6767
    %v6769 = vpop.xlane.xlu0 %6768
    %v6770 = vsel %vm5455, %v6762, -inf
    %6771 = vmax.xlane.f32.xlu0 %v6770
    %v6772 = vpop.xlane.xlu0 %6771
    %v6773 = vsub.f32 %v6712, %v6769
    %v6774 = vsub.f32 %v6762, %v6772
    %v6775 = vmul.f32 %v6773, 1.442695
    %v6776 = vpow.pop %v6775
    %v6777 = vmul.f32 %v6774, 1.442695
    %v6778 = vpow.pop %v6777
    %v6779 = vsel %vm5455, %v6776, 0.0
    %6780 = vadd.xlane.f32.xlu0 %v6779
    %v6781 = vpop.xlane.xlu0 %6780
    %v6782 = vsel %vm5455, %v6778, 0.0
    %6783 = vadd.xlane.f32.xlu0 %v6782
    %v6784 = vpop.xlane.xlu0 %6783
    %v6785 = vrcp.pop %v6781
    %v6786 = vrcp.pop %v6784
    %v6787 = vmul.f32 %v6776, %v6785
    %v6788 = vmul.f32 %v6778, %v6786
    %v6789 = vpack.c.bf16 %v6787, %v6787
    %v6790 = vpack.c.bf16 %v6788, %v6788
    %6791 = vrot.lane.b32.xlu0 %v6447, 56
    %v6792 = vpop.permute.xlu0 %6791
    %v6794 = vsel %vm5482, %v6789, 0
    %v6797 = vsel %vm5486, %v6792, 0
    %6799 = vmatprep.subr.bf16.mxu0 0
    %6800 = vmatpush1.bf16.msra.mxu0 %v6797
    %6801 = vmatprep.subr.bf16.mxu0 0
    %6802 = vmatpush1.bf16.msra.mxu0 0
    %6803 = vmatprep.subr.bf16.mxu0 0
    %6804 = vmatpush1.bf16.msra.mxu0 0
    %6805 = vmatprep.subr.bf16.mxu0 0
    %6806 = vmatpush1.bf16.msra.mxu0 0
    %6807 = vmatprep.subr.bf16.mxu0 0
    %6808 = vmatpush1.bf16.msra.mxu0 0
    %6809 = vmatprep.subr.bf16.mxu0 0
    %6810 = vmatpush1.bf16.msra.mxu0 0
    %6811 = vmatprep.subr.bf16.mxu0 0
    %6812 = vmatpush1.bf16.msra.mxu0 0
    %6813 = vmatprep.subr.bf16.mxu0 0
    %6814 = vmatpush1.bf16.msra.mxu0 0
    %6815 = vmatprep.subr.bf16.mxu0 0
    %6816 = vmatpush1.bf16.msra.mxu0 0
    %6817 = vmatprep.subr.bf16.mxu0 0
    %6818 = vmatpush1.bf16.msra.mxu0 0
    %6819 = vmatprep.subr.bf16.mxu0 0
    %6820 = vmatpush1.bf16.msra.mxu0 0
    %6821 = vmatprep.subr.bf16.mxu0 0
    %6822 = vmatpush1.bf16.msra.mxu0 0
    %6823 = vmatprep.subr.bf16.mxu0 0
    %6824 = vmatpush1.bf16.msra.mxu0 0
    %6825 = vmatprep.subr.bf16.mxu0 0
    %6826 = vmatpush1.bf16.msra.mxu0 0
    %6827 = vmatprep.subr.bf16.mxu0 0
    %6828 = vmatpush1.bf16.msra.mxu0 0
    %6829 = vmatprep.subr.bf16.mxu0 0
    %6830 = vmatpush1.bf16.msra.mxu0 0
    %6831 = vmatprep.mubr.bf16.mxu0 0
    %6832 = vmatmul.mubr.bf16.gmra.mrb[0].mxu0 %v6794
    %v6833 = vpop.f32.mrb[0].mxu0
    %v6834 = vadd.f32 0.0, %v6833
    %v6835 = vpop.f32.mrb[0].mxu0
    %v6836 = vpop.f32.mrb[0].mxu0
    %v6837 = vpop.f32.mrb[0].mxu0
    %6838 = vdwg.mxu0
    %6839 = vrot.lane.b32.xlu0 %v6448, 56
    %v6840 = vpop.permute.xlu0 %6839
    %v6842 = vsel %vm5482, %v6790, 0
    %v6845 = vsel %vm5486, %v6840, 0
    %6847 = vmatprep.subr.bf16.mxu0 0
    %6848 = vmatpush1.bf16.msra.mxu0 %v6845
    %6849 = vmatprep.subr.bf16.mxu0 0
    %6850 = vmatpush1.bf16.msra.mxu0 0
    %6851 = vmatprep.subr.bf16.mxu0 0
    %6852 = vmatpush1.bf16.msra.mxu0 0
    %6853 = vmatprep.subr.bf16.mxu0 0
    %6854 = vmatpush1.bf16.msra.mxu0 0
    %6855 = vmatprep.subr.bf16.mxu0 0
    %6856 = vmatpush1.bf16.msra.mxu0 0
    %6857 = vmatprep.subr.bf16.mxu0 0
    %6858 = vmatpush1.bf16.msra.mxu0 0
    %6859 = vmatprep.subr.bf16.mxu0 0
    %6860 = vmatpush1.bf16.msra.mxu0 0
    %6861 = vmatprep.subr.bf16.mxu0 0
    %6862 = vmatpush1.bf16.msra.mxu0 0
    %6863 = vmatprep.subr.bf16.mxu0 0
    %6864 = vmatpush1.bf16.msra.mxu0 0
    %6865 = vmatprep.subr.bf16.mxu0 0
    %6866 = vmatpush1.bf16.msra.mxu0 0
    %6867 = vmatprep.subr.bf16.mxu0 0
    %6868 = vmatpush1.bf16.msra.mxu0 0
    %6869 = vmatprep.subr.bf16.mxu0 0
    %6870 = vmatpush1.bf16.msra.mxu0 0
    %6871 = vmatprep.subr.bf16.mxu0 0
    %6872 = vmatpush1.bf16.msra.mxu0 0
    %6873 = vmatprep.subr.bf16.mxu0 0
    %6874 = vmatpush1.bf16.msra.mxu0 0
    %6875 = vmatprep.subr.bf16.mxu0 0
    %6876 = vmatpush1.bf16.msra.mxu0 0
    %6877 = vmatprep.subr.bf16.mxu0 0
    %6878 = vmatpush1.bf16.msra.mxu0 0
    %6879 = vmatprep.mubr.bf16.mxu0 0
    %6880 = vmatmul.mubr.bf16.gmra.mrb[0].mxu0 %v6842
    %v6881 = vpop.f32.mrb[0].mxu0
    %v6882 = vadd.f32 0.0, %v6881
    %v6883 = vpop.f32.mrb[0].mxu0
    %v6884 = vpop.f32.mrb[0].mxu0
    %v6885 = vpop.f32.mrb[0].mxu0
    %6886 = vdwg.mxu0
    %6887 = vrot.lane.b32.xlu0 %v6447, 112
    %v6888 = vpop.permute.xlu0 %6887
    %6889 = vrot.lane.b32.xlu0 %v6447, 80
    %v6890 = vpop.permute.xlu0 %6889
    %v6892 = vsel %vm85, %v6888, 0
    %v6895 = vsel %vm85, %v6890, 0
    %6897 = vmatprep.subr.bf16.mxu0 0
    %6898 = vmatpush1.bf16.xpose.msra.mxu0 %v6895
    %6899 = vmatprep.subr.bf16.mxu0 0
    %6900 = vmatpush1.bf16.xpose.msra.mxu0 0
    %6901 = vmatprep.subr.bf16.mxu0 0
    %6902 = vmatpush1.bf16.xpose.msra.mxu0 0
    %6903 = vmatprep.subr.bf16.mxu0 0
    %6904 = vmatpush1.bf16.xpose.msra.mxu0 0
    %6905 = vmatprep.subr.bf16.mxu0 0
    %6906 = vmatpush1.bf16.xpose.msra.mxu0 0
    %6907 = vmatprep.subr.bf16.mxu0 0
    %6908 = vmatpush1.bf16.xpose.msra.mxu0 0
    %6909 = vmatprep.subr.bf16.mxu0 0
    %6910 = vmatpush1.bf16.xpose.msra.mxu0 0
    %6911 = vmatprep.subr.bf16.mxu0 0
    %6912 = vmatpush1.bf16.xpose.msra.mxu0 0
    %6913 = vmatprep.subr.bf16.mxu0 0
    %6914 = vmatpush1.bf16.xpose.msra.mxu0 0
    %6915 = vmatprep.subr.bf16.mxu0 0
    %6916 = vmatpush1.bf16.xpose.msra.mxu0 0
    %6917 = vmatprep.subr.bf16.mxu0 0
    %6918 = vmatpush1.bf16.xpose.msra.mxu0 0
    %6919 = vmatprep.subr.bf16.mxu0 0
    %6920 = vmatpush1.bf16.xpose.msra.mxu0 0
    %6921 = vmatprep.subr.bf16.mxu0 0
    %6922 = vmatpush1.bf16.xpose.msra.mxu0 0
    %6923 = vmatprep.subr.bf16.mxu0 0
    %6924 = vmatpush1.bf16.xpose.msra.mxu0 0
    %6925 = vmatprep.subr.bf16.mxu0 0
    %6926 = vmatpush1.bf16.xpose.msra.mxu0 0
    %6927 = vmatprep.subr.bf16.mxu0 0
    %6928 = vmatpush1.bf16.xpose.msra.mxu0 0
    %6929 = vmatprep.mubr.bf16.mxu0 0
    %6930 = vmatmul.mubr.bf16.gmra.mrb[0].mxu0 %v6892
    %v6931 = vpop.f32.mrb[0].mxu0
    %v6932 = vadd.f32 0.0, %v6931
    %v6933 = vpop.f32.mrb[0].mxu0
    %v6934 = vpop.f32.mrb[0].mxu0
    %v6935 = vpop.f32.mrb[0].mxu0
    %6936 = vdwg.mxu0
    %6937 = vrot.lane.b32.xlu0 %v6448, 112
    %v6938 = vpop.permute.xlu0 %6937
    %6939 = vrot.lane.b32.xlu0 %v6448, 80
    %v6940 = vpop.permute.xlu0 %6939
    %v6942 = vsel %vm85, %v6938, 0
    %v6945 = vsel %vm85, %v6940, 0
    %6947 = vmatprep.subr.bf16.mxu0 0
    %6948 = vmatpush1.bf16.xpose.msra.mxu0 %v6945
    %6949 = vmatprep.subr.bf16.mxu0 0
    %6950 = vmatpush1.bf16.xpose.msra.mxu0 0
    %6951 = vmatprep.subr.bf16.mxu0 0
    %6952 = vmatpush1.bf16.xpose.msra.mxu0 0
    %6953 = vmatprep.subr.bf16.mxu0 0
    %6954 = vmatpush1.bf16.xpose.msra.mxu0 0
    %6955 = vmatprep.subr.bf16.mxu0 0
    %6956 = vmatpush1.bf16.xpose.msra.mxu0 0
    %6957 = vmatprep.subr.bf16.mxu0 0
    %6958 = vmatpush1.bf16.xpose.msra.mxu0 0
    %6959 = vmatprep.subr.bf16.mxu0 0
    %6960 = vmatpush1.bf16.xpose.msra.mxu0 0
    %6961 = vmatprep.subr.bf16.mxu0 0
    %6962 = vmatpush1.bf16.xpose.msra.mxu0 0
    %6963 = vmatprep.subr.bf16.mxu0 0
    %6964 = vmatpush1.bf16.xpose.msra.mxu0 0
    %6965 = vmatprep.subr.bf16.mxu0 0
    %6966 = vmatpush1.bf16.xpose.msra.mxu0 0
    %6967 = vmatprep.subr.bf16.mxu0 0
    %6968 = vmatpush1.bf16.xpose.msra.mxu0 0
    %6969 = vmatprep.subr.bf16.mxu0 0
    %6970 = vmatpush1.bf16.xpose.msra.mxu0 0
    %6971 = vmatprep.subr.bf16.mxu0 0
    %6972 = vmatpush1.bf16.xpose.msra.mxu0 0
    %6973 = vmatprep.subr.bf16.mxu0 0
    %6974 = vmatpush1.bf16.xpose.msra.mxu0 0
    %6975 = vmatprep.subr.bf16.mxu0 0
    %6976 = vmatpush1.bf16.xpose.msra.mxu0 0
    %6977 = vmatprep.subr.bf16.mxu0 0
    %6978 = vmatpush1.bf16.xpose.msra.mxu0 0
    %6979 = vmatprep.mubr.bf16.mxu0 0
    %6980 = vmatmul.mubr.bf16.gmra.mrb[0].mxu0 %v6942
    %v6981 = vpop.f32.mrb[0].mxu0
    %v6982 = vadd.f32 0.0, %v6981
    %v6983 = vpop.f32.mrb[0].mxu0
    %v6984 = vpop.f32.mrb[0].mxu0
    %v6985 = vpop.f32.mrb[0].mxu0
    %6986 = vdwg.mxu0
    %v6987 = vsel %vm5455, %v6932, -inf
    %6988 = vmax.xlane.f32.xlu0 %v6987
    %v6989 = vpop.xlane.xlu0 %6988
    %v6990 = vsel %vm5455, %v6982, -inf
    %6991 = vmax.xlane.f32.xlu0 %v6990
    %v6992 = vpop.xlane.xlu0 %6991
    %v6993 = vsub.f32 %v6932, %v6989
    %v6994 = vsub.f32 %v6982, %v6992
    %v6995 = vmul.f32 %v6993, 1.442695
    %v6996 = vpow.pop %v6995
    %v6997 = vmul.f32 %v6994, 1.442695
    %v6998 = vpow.pop %v6997
    %v6999 = vsel %vm5455, %v6996, 0.0
    %7000 = vadd.xlane.f32.xlu0 %v6999
    %v7001 = vpop.xlane.xlu0 %7000
    %v7002 = vsel %vm5455, %v6998, 0.0
    %7003 = vadd.xlane.f32.xlu0 %v7002
    %v7004 = vpop.xlane.xlu0 %7003
    %v7005 = vrcp.pop %v7001
    %v7006 = vrcp.pop %v7004
    %v7007 = vmul.f32 %v6996, %v7005
    %v7008 = vmul.f32 %v6998, %v7006
    %v7009 = vpack.c.bf16 %v7007, %v7007
    %v7010 = vpack.c.bf16 %v7008, %v7008
    %7011 = vrot.lane.b32.xlu0 %v6447, 48
    %v7012 = vpop.permute.xlu0 %7011
    %v7014 = vsel %vm5482, %v7009, 0
    %v7017 = vsel %vm5486, %v7012, 0
    %7019 = vmatprep.subr.bf16.mxu0 0
    %7020 = vmatpush1.bf16.msra.mxu0 %v7017
    %7021 = vmatprep.subr.bf16.mxu0 0
    %7022 = vmatpush1.bf16.msra.mxu0 0
    %7023 = vmatprep.subr.bf16.mxu0 0
    %7024 = vmatpush1.bf16.msra.mxu0 0
    %7025 = vmatprep.subr.bf16.mxu0 0
    %7026 = vmatpush1.bf16.msra.mxu0 0
    %7027 = vmatprep.subr.bf16.mxu0 0
    %7028 = vmatpush1.bf16.msra.mxu0 0
    %7029 = vmatprep.subr.bf16.mxu0 0
    %7030 = vmatpush1.bf16.msra.mxu0 0
    %7031 = vmatprep.subr.bf16.mxu0 0
    %7032 = vmatpush1.bf16.msra.mxu0 0
    %7033 = vmatprep.subr.bf16.mxu0 0
    %7034 = vmatpush1.bf16.msra.mxu0 0
    %7035 = vmatprep.subr.bf16.mxu0 0
    %7036 = vmatpush1.bf16.msra.mxu0 0
    %7037 = vmatprep.subr.bf16.mxu0 0
    %7038 = vmatpush1.bf16.msra.mxu0 0
    %7039 = vmatprep.subr.bf16.mxu0 0
    %7040 = vmatpush1.bf16.msra.mxu0 0
    %7041 = vmatprep.subr.bf16.mxu0 0
    %7042 = vmatpush1.bf16.msra.mxu0 0
    %7043 = vmatprep.subr.bf16.mxu0 0
    %7044 = vmatpush1.bf16.msra.mxu0 0
    %7045 = vmatprep.subr.bf16.mxu0 0
    %7046 = vmatpush1.bf16.msra.mxu0 0
    %7047 = vmatprep.subr.bf16.mxu0 0
    %7048 = vmatpush1.bf16.msra.mxu0 0
    %7049 = vmatprep.subr.bf16.mxu0 0
    %7050 = vmatpush1.bf16.msra.mxu0 0
    %7051 = vmatprep.mubr.bf16.mxu0 0
    %7052 = vmatmul.mubr.bf16.gmra.mrb[0].mxu0 %v7014
    %v7053 = vpop.f32.mrb[0].mxu0
    %v7054 = vadd.f32 0.0, %v7053
    %v7055 = vpop.f32.mrb[0].mxu0
    %v7056 = vpop.f32.mrb[0].mxu0
    %v7057 = vpop.f32.mrb[0].mxu0
    %7058 = vdwg.mxu0
    %7059 = vrot.lane.b32.xlu0 %v6448, 48
    %v7060 = vpop.permute.xlu0 %7059
    %v7062 = vsel %vm5482, %v7010, 0
    %v7065 = vsel %vm5486, %v7060, 0
    %7067 = vmatprep.subr.bf16.mxu0 0
    %7068 = vmatpush1.bf16.msra.mxu0 %v7065
    %7069 = vmatprep.subr.bf16.mxu0 0
    %7070 = vmatpush1.bf16.msra.mxu0 0
    %7071 = vmatprep.subr.bf16.mxu0 0
    %7072 = vmatpush1.bf16.msra.mxu0 0
    %7073 = vmatprep.subr.bf16.mxu0 0
    %7074 = vmatpush1.bf16.msra.mxu0 0
    %7075 = vmatprep.subr.bf16.mxu0 0
    %7076 = vmatpush1.bf16.msra.mxu0 0
    %7077 = vmatprep.subr.bf16.mxu0 0
    %7078 = vmatpush1.bf16.msra.mxu0 0
    %7079 = vmatprep.subr.bf16.mxu0 0
    %7080 = vmatpush1.bf16.msra.mxu0 0
    %7081 = vmatprep.subr.bf16.mxu0 0
    %7082 = vmatpush1.bf16.msra.mxu0 0
    %7083 = vmatprep.subr.bf16.mxu0 0
    %7084 = vmatpush1.bf16.msra.mxu0 0
    %7085 = vmatprep.subr.bf16.mxu0 0
    %7086 = vmatpush1.bf16.msra.mxu0 0
    %7087 = vmatprep.subr.bf16.mxu0 0
    %7088 = vmatpush1.bf16.msra.mxu0 0
    %7089 = vmatprep.subr.bf16.mxu0 0
    %7090 = vmatpush1.bf16.msra.mxu0 0
    %7091 = vmatprep.subr.bf16.mxu0 0
    %7092 = vmatpush1.bf16.msra.mxu0 0
    %7093 = vmatprep.subr.bf16.mxu0 0
    %7094 = vmatpush1.bf16.msra.mxu0 0
    %7095 = vmatprep.subr.bf16.mxu0 0
    %7096 = vmatpush1.bf16.msra.mxu0 0
    %7097 = vmatprep.subr.bf16.mxu0 0
    %7098 = vmatpush1.bf16.msra.mxu0 0
    %7099 = vmatprep.mubr.bf16.mxu0 0
    %7100 = vmatmul.mubr.bf16.gmra.mrb[0].mxu0 %v7062
    %v7101 = vpop.f32.mrb[0].mxu0
    %v7102 = vadd.f32 0.0, %v7101
    %v7103 = vpop.f32.mrb[0].mxu0
    %v7104 = vpop.f32.mrb[0].mxu0
    %v7105 = vpop.f32.mrb[0].mxu0
    %7106 = vdwg.mxu0
    %7107 = vrot.lane.b32.xlu0 %v6447, 104
    %v7108 = vpop.permute.xlu0 %7107
    %7109 = vrot.lane.b32.xlu0 %v6447, 72
    %v7110 = vpop.permute.xlu0 %7109
    %v7112 = vsel %vm85, %v7108, 0
    %v7115 = vsel %vm85, %v7110, 0
    %7117 = vmatprep.subr.bf16.mxu0 0
    %7118 = vmatpush1.bf16.xpose.msra.mxu0 %v7115
    %7119 = vmatprep.subr.bf16.mxu0 0
    %7120 = vmatpush1.bf16.xpose.msra.mxu0 0
    %7121 = vmatprep.subr.bf16.mxu0 0
    %7122 = vmatpush1.bf16.xpose.msra.mxu0 0
    %7123 = vmatprep.subr.bf16.mxu0 0
    %7124 = vmatpush1.bf16.xpose.msra.mxu0 0
    %7125 = vmatprep.subr.bf16.mxu0 0
    %7126 = vmatpush1.bf16.xpose.msra.mxu0 0
    %7127 = vmatprep.subr.bf16.mxu0 0
    %7128 = vmatpush1.bf16.xpose.msra.mxu0 0
    %7129 = vmatprep.subr.bf16.mxu0 0
    %7130 = vmatpush1.bf16.xpose.msra.mxu0 0
    %7131 = vmatprep.subr.bf16.mxu0 0
    %7132 = vmatpush1.bf16.xpose.msra.mxu0 0
    %7133 = vmatprep.subr.bf16.mxu0 0
    %7134 = vmatpush1.bf16.xpose.msra.mxu0 0
    %7135 = vmatprep.subr.bf16.mxu0 0
    %7136 = vmatpush1.bf16.xpose.msra.mxu0 0
    %7137 = vmatprep.subr.bf16.mxu0 0
    %7138 = vmatpush1.bf16.xpose.msra.mxu0 0
    %7139 = vmatprep.subr.bf16.mxu0 0
    %7140 = vmatpush1.bf16.xpose.msra.mxu0 0
    %7141 = vmatprep.subr.bf16.mxu0 0
    %7142 = vmatpush1.bf16.xpose.msra.mxu0 0
    %7143 = vmatprep.subr.bf16.mxu0 0
    %7144 = vmatpush1.bf16.xpose.msra.mxu0 0
    %7145 = vmatprep.subr.bf16.mxu0 0
    %7146 = vmatpush1.bf16.xpose.msra.mxu0 0
    %7147 = vmatprep.subr.bf16.mxu0 0
    %7148 = vmatpush1.bf16.xpose.msra.mxu0 0
    %7149 = vmatprep.mubr.bf16.mxu0 0
    %7150 = vmatmul.mubr.bf16.gmra.mrb[0].mxu0 %v7112
    %v7151 = vpop.f32.mrb[0].mxu0
    %v7152 = vadd.f32 0.0, %v7151
    %v7153 = vpop.f32.mrb[0].mxu0
    %v7154 = vpop.f32.mrb[0].mxu0
    %v7155 = vpop.f32.mrb[0].mxu0
    %7156 = vdwg.mxu0
    %7157 = vrot.lane.b32.xlu0 %v6448, 104
    %v7158 = vpop.permute.xlu0 %7157
    %7159 = vrot.lane.b32.xlu0 %v6448, 72
    %v7160 = vpop.permute.xlu0 %7159
    %v7162 = vsel %vm85, %v7158, 0
    %v7165 = vsel %vm85, %v7160, 0
    %7167 = vmatprep.subr.bf16.mxu0 0
    %7168 = vmatpush1.bf16.xpose.msra.mxu0 %v7165
    %7169 = vmatprep.subr.bf16.mxu0 0
    %7170 = vmatpush1.bf16.xpose.msra.mxu0 0
    %7171 = vmatprep.subr.bf16.mxu0 0
    %7172 = vmatpush1.bf16.xpose.msra.mxu0 0
    %7173 = vmatprep.subr.bf16.mxu0 0
    %7174 = vmatpush1.bf16.xpose.msra.mxu0 0
    %7175 = vmatprep.subr.bf16.mxu0 0
    %7176 = vmatpush1.bf16.xpose.msra.mxu0 0
    %7177 = vmatprep.subr.bf16.mxu0 0
    %7178 = vmatpush1.bf16.xpose.msra.mxu0 0
    %7179 = vmatprep.subr.bf16.mxu0 0
    %7180 = vmatpush1.bf16.xpose.msra.mxu0 0
    %7181 = vmatprep.subr.bf16.mxu0 0
    %7182 = vmatpush1.bf16.xpose.msra.mxu0 0
    %7183 = vmatprep.subr.bf16.mxu0 0
    %7184 = vmatpush1.bf16.xpose.msra.mxu0 0
    %7185 = vmatprep.subr.bf16.mxu0 0
    %7186 = vmatpush1.bf16.xpose.msra.mxu0 0
    %7187 = vmatprep.subr.bf16.mxu0 0
    %7188 = vmatpush1.bf16.xpose.msra.mxu0 0
    %7189 = vmatprep.subr.bf16.mxu0 0
    %7190 = vmatpush1.bf16.xpose.msra.mxu0 0
    %7191 = vmatprep.subr.bf16.mxu0 0
    %7192 = vmatpush1.bf16.xpose.msra.mxu0 0
    %7193 = vmatprep.subr.bf16.mxu0 0
    %7194 = vmatpush1.bf16.xpose.msra.mxu0 0
    %7195 = vmatprep.subr.bf16.mxu0 0
    %7196 = vmatpush1.bf16.xpose.msra.mxu0 0
    %7197 = vmatprep.subr.bf16.mxu0 0
    %7198 = vmatpush1.bf16.xpose.msra.mxu0 0
    %7199 = vmatprep.mubr.bf16.mxu0 0
    %7200 = vmatmul.mubr.bf16.gmra.mrb[0].mxu0 %v7162
    %v7201 = vpop.f32.mrb[0].mxu0
    %v7202 = vadd.f32 0.0, %v7201
    %v7203 = vpop.f32.mrb[0].mxu0
    %v7204 = vpop.f32.mrb[0].mxu0
    %v7205 = vpop.f32.mrb[0].mxu0
    %7206 = vdwg.mxu0
    %v7207 = vsel %vm5455, %v7152, -inf
    %7208 = vmax.xlane.f32.xlu0 %v7207
    %v7209 = vpop.xlane.xlu0 %7208
    %v7210 = vsel %vm5455, %v7202, -inf
    %7211 = vmax.xlane.f32.xlu0 %v7210
    %v7212 = vpop.xlane.xlu0 %7211
    %v7213 = vsub.f32 %v7152, %v7209
    %v7214 = vsub.f32 %v7202, %v7212
    %v7215 = vmul.f32 %v7213, 1.442695
    %v7216 = vpow.pop %v7215
    %v7217 = vmul.f32 %v7214, 1.442695
    %v7218 = vpow.pop %v7217
    %v7219 = vsel %vm5455, %v7216, 0.0
    %7220 = vadd.xlane.f32.xlu0 %v7219
    %v7221 = vpop.xlane.xlu0 %7220
    %v7222 = vsel %vm5455, %v7218, 0.0
    %7223 = vadd.xlane.f32.xlu0 %v7222
    %v7224 = vpop.xlane.xlu0 %7223
    %v7225 = vrcp.pop %v7221
    %v7226 = vrcp.pop %v7224
    %v7227 = vmul.f32 %v7216, %v7225
    %v7228 = vmul.f32 %v7218, %v7226
    %v7229 = vpack.c.bf16 %v7227, %v7227
    %v7230 = vpack.c.bf16 %v7228, %v7228
    %7231 = vrot.lane.b32.xlu0 %v6447, 40
    %v7232 = vpop.permute.xlu0 %7231
    %v7234 = vsel %vm5482, %v7229, 0
    %v7237 = vsel %vm5486, %v7232, 0
    %7239 = vmatprep.subr.bf16.mxu0 0
    %7240 = vmatpush1.bf16.msra.mxu0 %v7237
    %7241 = vmatprep.subr.bf16.mxu0 0
    %7242 = vmatpush1.bf16.msra.mxu0 0
    %7243 = vmatprep.subr.bf16.mxu0 0
    %7244 = vmatpush1.bf16.msra.mxu0 0
    %7245 = vmatprep.subr.bf16.mxu0 0
    %7246 = vmatpush1.bf16.msra.mxu0 0
    %7247 = vmatprep.subr.bf16.mxu0 0
    %7248 = vmatpush1.bf16.msra.mxu0 0
    %7249 = vmatprep.subr.bf16.mxu0 0
    %7250 = vmatpush1.bf16.msra.mxu0 0
    %7251 = vmatprep.subr.bf16.mxu0 0
    %7252 = vmatpush1.bf16.msra.mxu0 0
    %7253 = vmatprep.subr.bf16.mxu0 0
    %7254 = vmatpush1.bf16.msra.mxu0 0
    %7255 = vmatprep.subr.bf16.mxu0 0
    %7256 = vmatpush1.bf16.msra.mxu0 0
    %7257 = vmatprep.subr.bf16.mxu0 0
    %7258 = vmatpush1.bf16.msra.mxu0 0
    %7259 = vmatprep.subr.bf16.mxu0 0
    %7260 = vmatpush1.bf16.msra.mxu0 0
    %7261 = vmatprep.subr.bf16.mxu0 0
    %7262 = vmatpush1.bf16.msra.mxu0 0
    %7263 = vmatprep.subr.bf16.mxu0 0
    %7264 = vmatpush1.bf16.msra.mxu0 0
    %7265 = vmatprep.subr.bf16.mxu0 0
    %7266 = vmatpush1.bf16.msra.mxu0 0
    %7267 = vmatprep.subr.bf16.mxu0 0
    %7268 = vmatpush1.bf16.msra.mxu0 0
    %7269 = vmatprep.subr.bf16.mxu0 0
    %7270 = vmatpush1.bf16.msra.mxu0 0
    %7271 = vmatprep.mubr.bf16.mxu0 0
    %7272 = vmatmul.mubr.bf16.gmra.mrb[0].mxu0 %v7234
    %v7273 = vpop.f32.mrb[0].mxu0
    %v7274 = vadd.f32 0.0, %v7273
    %v7275 = vpop.f32.mrb[0].mxu0
    %v7276 = vpop.f32.mrb[0].mxu0
    %v7277 = vpop.f32.mrb[0].mxu0
    %7278 = vdwg.mxu0
    %7279 = vrot.lane.b32.xlu0 %v6448, 40
    %v7280 = vpop.permute.xlu0 %7279
    %v7282 = vsel %vm5482, %v7230, 0
    %v7285 = vsel %vm5486, %v7280, 0
    %7287 = vmatprep.subr.bf16.mxu0 0
    %7288 = vmatpush1.bf16.msra.mxu0 %v7285
    %7289 = vmatprep.subr.bf16.mxu0 0
    %7290 = vmatpush1.bf16.msra.mxu0 0
    %7291 = vmatprep.subr.bf16.mxu0 0
    %7292 = vmatpush1.bf16.msra.mxu0 0
    %7293 = vmatprep.subr.bf16.mxu0 0
    %7294 = vmatpush1.bf16.msra.mxu0 0
    %7295 = vmatprep.subr.bf16.mxu0 0
    %7296 = vmatpush1.bf16.msra.mxu0 0
    %7297 = vmatprep.subr.bf16.mxu0 0
    %7298 = vmatpush1.bf16.msra.mxu0 0
    %7299 = vmatprep.subr.bf16.mxu0 0
    %7300 = vmatpush1.bf16.msra.mxu0 0
    %7301 = vmatprep.subr.bf16.mxu0 0
    %7302 = vmatpush1.bf16.msra.mxu0 0
    %7303 = vmatprep.subr.bf16.mxu0 0
    %7304 = vmatpush1.bf16.msra.mxu0 0
    %7305 = vmatprep.subr.bf16.mxu0 0
    %7306 = vmatpush1.bf16.msra.mxu0 0
    %7307 = vmatprep.subr.bf16.mxu0 0
    %7308 = vmatpush1.bf16.msra.mxu0 0
    %7309 = vmatprep.subr.bf16.mxu0 0
    %7310 = vmatpush1.bf16.msra.mxu0 0
    %7311 = vmatprep.subr.bf16.mxu0 0
    %7312 = vmatpush1.bf16.msra.mxu0 0
    %7313 = vmatprep.subr.bf16.mxu0 0
    %7314 = vmatpush1.bf16.msra.mxu0 0
    %7315 = vmatprep.subr.bf16.mxu0 0
    %7316 = vmatpush1.bf16.msra.mxu0 0
    %7317 = vmatprep.subr.bf16.mxu0 0
    %7318 = vmatpush1.bf16.msra.mxu0 0
    %7319 = vmatprep.mubr.bf16.mxu0 0
    %7320 = vmatmul.mubr.bf16.gmra.mrb[0].mxu0 %v7282
    %v7321 = vpop.f32.mrb[0].mxu0
    %v7322 = vadd.f32 0.0, %v7321
    %v7323 = vpop.f32.mrb[0].mxu0
    %v7324 = vpop.f32.mrb[0].mxu0
    %v7325 = vpop.f32.mrb[0].mxu0
    %7326 = vdwg.mxu0
    %7329 = vrot.lane.b32.xlu0 %v6834, 8
    %v7330 = vpop.permute.xlu0 %7329
    %7331 = vrot.lane.b32.xlu0 %v6882, 8
    %v7332 = vpop.permute.xlu0 %7331
    %7337 = vrot.lane.b32.xlu0 %v7054, 16
    %v7338 = vpop.permute.xlu0 %7337
    %7339 = vrot.lane.b32.xlu0 %v7102, 16
    %v7340 = vpop.permute.xlu0 %7339
    %7345 = vrot.lane.b32.xlu0 %v7274, 24
    %v7346 = vpop.permute.xlu0 %7345
    %7347 = vrot.lane.b32.xlu0 %v7322, 24
    %v7348 = vpop.permute.xlu0 %7347
    %v7351 = vsel %vm85, %v6614, %v7330
    %v7352 = vsel %vm85, %v6662, %v7332
    %v7353 = vsel %vm970, %v7351, %v7338
    %v7354 = vsel %vm970, %v7352, %v7340
    %v7355 = vsel %vm973, %v7353, %v7346
    %v7356 = vsel %vm973, %v7354, %v7348
    %v7357 = vadd.f32 %v6443, %v7355
    %v7358 = vadd.f32 %v6444, %v7356
    %v7361 = vcombine.low %v7357, %v7358
    %v7363 = vunpack.c.l.s4 1983009808
    %v7364 = vunpack.c.0.s8 %v7363
    %v7365 = vlaneseq
    %v7366 = vshrl.u32 %v7365, 7
    %v7367 = vsub.s32 %v7364, %v7366
    %v7368 = vrot.slane %v7361, %v7367
    %v7370 = vpack.c.bf16 %v7368, %v7368
    %v7371 = vld [vmem:[%s1 + $0xc4] sm:$0xf]
    %v7372 = vld [vmem:[%s1 + $0xc8] sm:$0xf]
    %v7373 = vld [vmem:[%s1 + $0xcc] sm:$0xf]
    %v7374 = vld [vmem:[%s1 + $0xd0] sm:$0xf]
    %v7375 = vld [vmem:[%s2 + $0xd] sm:$0x1]
    %v7376 = vlaneseq
    %v7377 = vshrl.u32 %v7376, 7
    %v7378 = vsub.s32 0, %v7377
    %v7379 = vrot.slane %v7375, %v7378
    %v7384 = vunpack.c.l.b16 %v7371
    %v7385 = vunpack.c.l.b16 %v7372
    %v7386 = vunpack.c.l.b16 %v7373
    %v7387 = vunpack.c.l.b16 %v7374
    %v7388 = vpack.c.b16 %v7385, %v7384
    %v7389 = vpack.c.b16 %v7387, %v7386
    %v7393 = vsel %vm1000, %v7370, 0
    %7395 = vmatprep.subr.bf16.mxu0 0
    %7396 = vmatpush1.bf16.msra.mxu0 %v7388
    %7397 = vmatprep.subr.bf16.mxu0 0
    %7398 = vmatpush1.bf16.msra.mxu0 %v7389
    %7399 = vmatprep.subr.bf16.mxu0 0
    %7400 = vmatpush1.bf16.msra.mxu0 0
    %7401 = vmatprep.subr.bf16.mxu0 0
    %7402 = vmatpush1.bf16.msra.mxu0 0
    %7403 = vmatprep.subr.bf16.mxu0 0
    %7404 = vmatpush1.bf16.msra.mxu0 0
    %7405 = vmatprep.subr.bf16.mxu0 0
    %7406 = vmatpush1.bf16.msra.mxu0 0
    %7407 = vmatprep.subr.bf16.mxu0 0
    %7408 = vmatpush1.bf16.msra.mxu0 0
    %7409 = vmatprep.subr.bf16.mxu0 0
    %7410 = vmatpush1.bf16.msra.mxu0 0
    %7411 = vmatprep.subr.bf16.mxu0 0
    %7412 = vmatpush1.bf16.msra.mxu0 0
    %7413 = vmatprep.subr.bf16.mxu0 0
    %7414 = vmatpush1.bf16.msra.mxu0 0
    %7415 = vmatprep.subr.bf16.mxu0 0
    %7416 = vmatpush1.bf16.msra.mxu0 0
    %7417 = vmatprep.subr.bf16.mxu0 0
    %7418 = vmatpush1.bf16.msra.mxu0 0
    %7419 = vmatprep.subr.bf16.mxu0 0
    %7420 = vmatpush1.bf16.msra.mxu0 0
    %7421 = vmatprep.subr.bf16.mxu0 0
    %7422 = vmatpush1.bf16.msra.mxu0 0
    %7423 = vmatprep.subr.bf16.mxu0 0
    %7424 = vmatpush1.bf16.msra.mxu0 0
    %7425 = vmatprep.subr.bf16.mxu0 0
    %7426 = vmatpush1.bf16.msra.mxu0 0
    %7427 = vmatprep.mubr.bf16.mxu0 0
    %7428 = vmatmul.mubr.bf16.gmra.mrb[0].mxu0 %v7393
    %v7429 = vpop.f32.mrb[0].mxu0
    %v7430 = vadd.f32 %v7379, %v7429
    %v7431 = vpop.f32.mrb[0].mxu0
    %v7432 = vpop.f32.mrb[0].mxu0
    %v7433 = vpop.f32.mrb[0].mxu0
    %7434 = vdwg.mxu0
    %v7435 = vmax.f32 %v7430, 0.0
    %v7438 = vunpack.c.l.s4 1983009808
    %v7439 = vunpack.c.0.s8 %v7438
    %v7440 = vlaneseq
    %v7441 = vshrl.u32 %v7440, 7
    %v7442 = vsub.s32 %v7439, %v7441
    %v7443 = vrot.slane %v7435, %v7442
    %v7444 = vcombine.high %v7443, %v7443
    %v7447 = vadd.f32 %v7357, %v7443
    %v7448 = vadd.f32 %v7358, %v7444
    %v7451 = vcombine.low %v7447, %v7448
    %v7453 = vunpack.c.l.s4 1983009808
    %v7454 = vunpack.c.0.s8 %v7453
    %v7455 = vlaneseq
    %v7456 = vshrl.u32 %v7455, 7
    %v7457 = vsub.s32 %v7454, %v7456
    %v7458 = vrot.slane %v7451, %v7457
    %v7460 = vpack.c.bf16 %v7458, %v7458
    %v7461 = vld [vmem:[%s1 + $0xd4] sm:$0xf]
    %v7462 = vld [vmem:[%s1 + $0xd8] sm:$0xf]
    %v7463 = vld [vmem:[%s1 + $0xdc] sm:$0xf]
    %v7464 = vld [vmem:[%s1 + $0xe0] sm:$0xf]
    %v7465 = vld [vmem:[%s2 + $0xe] sm:$0x1]
    %v7466 = vlaneseq
    %v7467 = vshrl.u32 %v7466, 7
    %v7468 = vsub.s32 0, %v7467
    %v7469 = vrot.slane %v7465, %v7468
    %v7474 = vunpack.c.l.b16 %v7461
    %v7475 = vunpack.c.l.b16 %v7462
    %v7476 = vunpack.c.l.b16 %v7463
    %v7477 = vunpack.c.l.b16 %v7464
    %v7478 = vpack.c.b16 %v7475, %v7474
    %v7479 = vpack.c.b16 %v7477, %v7476
    %v7483 = vsel %vm1000, %v7460, 0
    %7485 = vmatprep.subr.bf16.mxu0 0
    %7486 = vmatpush1.bf16.msra.mxu0 %v7478
    %7487 = vmatprep.subr.bf16.mxu0 0
    %7488 = vmatpush1.bf16.msra.mxu0 %v7479
    %7489 = vmatprep.subr.bf16.mxu0 0
    %7490 = vmatpush1.bf16.msra.mxu0 0
    %7491 = vmatprep.subr.bf16.mxu0 0
    %7492 = vmatpush1.bf16.msra.mxu0 0
    %7493 = vmatprep.subr.bf16.mxu0 0
    %7494 = vmatpush1.bf16.msra.mxu0 0
    %7495 = vmatprep.subr.bf16.mxu0 0
    %7496 = vmatpush1.bf16.msra.mxu0 0
    %7497 = vmatprep.subr.bf16.mxu0 0
    %7498 = vmatpush1.bf16.msra.mxu0 0
    %7499 = vmatprep.subr.bf16.mxu0 0
    %7500 = vmatpush1.bf16.msra.mxu0 0
    %7501 = vmatprep.subr.bf16.mxu0 0
    %7502 = vmatpush1.bf16.msra.mxu0 0
    %7503 = vmatprep.subr.bf16.mxu0 0
    %7504 = vmatpush1.bf16.msra.mxu0 0
    %7505 = vmatprep.subr.bf16.mxu0 0
    %7506 = vmatpush1.bf16.msra.mxu0 0
    %7507 = vmatprep.subr.bf16.mxu0 0
    %7508 = vmatpush1.bf16.msra.mxu0 0
    %7509 = vmatprep.subr.bf16.mxu0 0
    %7510 = vmatpush1.bf16.msra.mxu0 0
    %7511 = vmatprep.subr.bf16.mxu0 0
    %7512 = vmatpush1.bf16.msra.mxu0 0
    %7513 = vmatprep.subr.bf16.mxu0 0
    %7514 = vmatpush1.bf16.msra.mxu0 0
    %7515 = vmatprep.subr.bf16.mxu0 0
    %7516 = vmatpush1.bf16.msra.mxu0 0
    %7517 = vmatprep.mubr.bf16.mxu0 0
    %7518 = vmatmul.mubr.bf16.gmra.mrb[0].mxu0 %v7483
    %v7519 = vpop.f32.mrb[0].mxu0
    %v7520 = vadd.f32 %v7469, %v7519
    %v7521 = vpop.f32.mrb[0].mxu0
    %v7522 = vpop.f32.mrb[0].mxu0
    %v7523 = vpop.f32.mrb[0].mxu0
    %7524 = vdwg.mxu0
    %v7527 = vunpack.c.l.s4 1983009808
    %v7528 = vunpack.c.0.s8 %v7527
    %v7529 = vlaneseq
    %v7530 = vshrl.u32 %v7529, 7
    %v7531 = vsub.s32 %v7528, %v7530
    %v7532 = vrot.slane %v7520, %v7531
    %v7533 = vcombine.high %v7532, %v7532
    %vm7536 = vcmask 17408
    %7537 = vst.msk [vmem:[#allocation2] sm:$0x3] %vm7536, %v7532
    %7538 = vst.msk [vmem:[#allocation2 + $0x2] sm:$0x3] %vm7536, %v7533
    // Predicated region
    $region18: #{tpu_custom_call.1} parent=1 // pred_check
      _
    $region19: #{tpu_custom_call.1} parent=1 // pred_check_branch
      %7540 = sbr.rel (0) target = $region21
    $region20: #{tpu_custom_call.1} parent=1 // pred_region
      %s7542 = ssub.s32 64, 64
      %7543 = vsyncadd [#allocation3], %s7542
      %s7544 = sshll.u32 [#allocation2], 4
      %s7545 = int_to_ptr.vmem [resolvable:$true] %s7544
      %7550 = dma.vmem_to_hbm [thread:$0]  %s7545, 64, %s4, [#allocation3], 32, 32, 2
    $region21: #{tpu_custom_call.1} parent=1 // pred_fallthru
      _
    // Predicated region
    $region22: #{tpu_custom_call.1} parent=1 // pred_check
      _
    $region23: #{tpu_custom_call.1} parent=1 // pred_check_branch
      %7552 = sbr.rel (0) target = $region25
    $region24: #{tpu_custom_call.1} parent=1 // pred_region
      %7553 = dma.done [#allocation3], 64
    $region25: #{tpu_custom_call.1} parent=1 // pred_fallthru
      _
    %7554 = vsyncpa [#allocation3], 1

</llo_original>
